<compile_context>
chip_gen: v6e
topology: v6e:2x2x1
jax: 0.10.0
libtpu: 0.0.40
codegen_flags: <defaults>
</compile_context>

<pallas_src>
import jax
import jax.numpy as jnp
from jax.experimental import pallas as pl
from jax.experimental.pallas import tpu as pltpu

# ---- small RoBERTa-like config (scaled down from 768-dim for the synthetic run) ----
HIDDEN = 32
NUM_HEADS = 4
HEAD_DIM = HIDDEN // NUM_HEADS
INTERMEDIATE = 64
NUM_LAYERS = 4
VOCAB = 100
MAX_POS = 64
LN_EPS = 1e-5
LAYER_CAT = [-1, -2]          # layers to concatenate (like the torch module's layer_cat)
OUT_DIM = 1                   # must be 1 so output.view(batch_size) is valid


def _layernorm(x, gamma, beta):
    mean = jnp.mean(x, axis=-1, keepdims=True)
    var = jnp.mean((x - mean) ** 2, axis=-1, keepdims=True)
    return (x - mean) * jax.lax.rsqrt(var + LN_EPS) * gamma + beta


def _gelu(x):
    # TODO(synk): tanh-approx GELU; RoBERTa uses erf-GELU (fine for synthetic weights).
    c = 0.7978845608028654  # sqrt(2/pi)
    return 0.5 * x * (1.0 + jnp.tanh(c * (x + 0.044715 * x * x * x)))


# ------------------------- fused Pallas kernel -------------------------

def fused_roberta_kernel(emb_ref, addmask_ref,
                         wqkv_ref, bqkv_ref, wo_ref, bo_ref,
                         g1_ref, be1_ref, w1_ref, b1_ref,
                         w2_ref, b2_ref, g2_ref, be2_ref,
                         hw_ref, hb_ref,
                         out_ref):
    """All encoder layers + LAYER_CAT concat + CLS slice + linear head in one kernel."""
    B, S, H = emb_ref.shape
    NH, D = NUM_HEADS, HEAD_DIM
    scale = 1.0 / (D ** 0.5)

    # additive mask, computed once in the wrapper, broadcast view for softmax
    mask3 = addmask_ref[...][:, None, :]                     # [B, 1, S]

    h = emb_ref[...].reshape(B * S, H)
    hidden = [h]                                             # hidden_states[0] = embeddings

    for l in range(NUM_LAYERS):                              # static unroll, tiny L
        x = hidden[-1]                                       # [B*S, H]

        # fused QKV projection: one MXU push [B*S, H] x [H, 3H]
        qkv = (jnp.dot(x, wqkv_ref[l], preferred_element_type=jnp.float32)
               + bqkv_ref[l]).reshape(B, S, 3 * H)

        # batched (over B) per-head attention; contraction over the last dim
        # of both operands -> no explicit transposes, no row concats.
        head_outs = []
        for hd in range(NH):                                 # static unroll, 4 heads
            qh = qkv[:, :, 0 * H + hd * D: 0 * H + (hd + 1) * D]   # [B, S, D]
            kh = qkv[:, :, 1 * H + hd * D: 1 * H + (hd + 1) * D]
            vh = qkv[:, :, 2 * H + hd * D: 2 * H + (hd + 1) * D]
            s = jnp.einsum('bqd,bkd->bqk', qh, kh,
                           preferred_element_type=jnp.float32) * scale
            s = s + mask3
            s = s - jnp.max(s, axis=-1, keepdims=True)
            p = jnp.exp(s)
            p = p * pl.reciprocal(jnp.sum(p, axis=-1, keepdims=True), approx=True)
            head_outs.append(jnp.einsum('bqk,bkd->bqd', p, vh,
                                        preferred_element_type=jnp.float32))
        ctx = jnp.concatenate(head_outs, axis=-1).reshape(B * S, H)

        attn = jnp.dot(ctx, wo_ref[l], preferred_element_type=jnp.float32) + bo_ref[l]
        h1 = _layernorm(x + attn, g1_ref[l], be1_ref[l])

        ff = _gelu(jnp.dot(h1, w1_ref[l], preferred_element_type=jnp.float32) + b1_ref[l])
        ff = jnp.dot(ff, w2_ref[l], preferred_element_type=jnp.float32) + b2_ref[l]
        hidden.append(_layernorm(h1 + ff, g2_ref[l], be2_ref[l]))

    # LAYER_CAT concat over hidden dim, take [CLS] token (position 0), linear head.
    cls_feats = [hidden[i].reshape(B, S, H)[:, 0, :] for i in LAYER_CAT]   # each [B, H]
    feat = jnp.concatenate(cls_feats, axis=-1)               # [B, H * len(LAYER_CAT)]

    # TODO(synk): nn.Dropout is identity here (eval-mode semantics); torch RNG not reproduced.
    out_ref[...] = (jnp.dot(feat, hw_ref[...], preferred_element_type=jnp.float32)
                    + hb_ref[...])


# ------------------------- wrapper -------------------------

_VMEM = pl.BlockSpec(memory_space=pltpu.MemorySpace.VMEM)


def roberta_layer_cat_forward(input_ids, attention_mask, params):
    B, S = input_ids.shape
    # --- embeddings (glue, plain JAX): word + position embedding, then LN ---
    positions = jnp.arange(S)
    emb = params['word_emb'][input_ids] + params['pos_emb'][positions][None, :, :]
    emb = _layernorm(emb, params['emb_g'], params['emb_b']).astype(jnp.float32)

    # attention_mask: 1.0 -> attend (0 additive), 0.0 -> masked (-1e9 additive)
    add_mask = (attention_mask.astype(jnp.float32) - 1.0) * 1e9       # [B, S]

    args = (emb, add_mask,
            params['wqkv'], params['bqkv'], params['wo'], params['bo'],
            params['g1'], params['be1'], params['w1'], params['b1'],
            params['w2'], params['b2'], params['g2'], params['be2'],
            params['head_w'], params['head_b'])

    out = pl.pallas_call(
        fused_roberta_kernel,
        out_shape=jax.ShapeDtypeStruct((B, OUT_DIM), jnp.float32),
        in_specs=[_VMEM] * len(args),
        out_specs=_VMEM,
    )(*args)
    return out.reshape(B)                                    # output.view(batch_size)


# ------------------------- deterministic parameter init -------------------------

def init_params(key):
    def nrm(k, shape, scale=0.02):
        return scale * jax.random.normal(k, shape, dtype=jnp.float32)

    L, H, I = NUM_LAYERS, HIDDEN, INTERMEDIATE
    keys = jax.random.split(key, 7)
    params = {
        'word_emb': nrm(keys[0], (VOCAB, H)),
        'pos_emb': nrm(keys[1], (MAX_POS, H)),
        'emb_g': jnp.ones((1, H), jnp.float32),
        'emb_b': jnp.zeros((1, H), jnp.float32),
        # per-layer weights stacked along a leading [L, ...] axis
        'wqkv': nrm(keys[2], (L, H, 3 * H)),
        'bqkv': jnp.zeros((L, 1, 3 * H), jnp.float32),
        'wo': nrm(keys[3], (L, H, H)),
        'bo': jnp.zeros((L, 1, H), jnp.float32),
        'g1': jnp.ones((L, 1, H), jnp.float32),
        'be1': jnp.zeros((L, 1, H), jnp.float32),
        'w1': nrm(keys[4], (L, H, I)),
        'b1': jnp.zeros((L, 1, I), jnp.float32),
        'w2': nrm(keys[5], (L, I, H)),
        'b2': jnp.zeros((L, 1, H), jnp.float32),
        'g2': jnp.ones((L, 1, H), jnp.float32),
        'be2': jnp.zeros((L, 1, H), jnp.float32),
        # classification head on concatenated [CLS] features
        'head_w': nrm(keys[6], (H * len(LAYER_CAT), OUT_DIM)),
        'head_b': jnp.zeros((1, OUT_DIM), jnp.float32),
    }
    return params


if __name__ == "__main__":
    B, S = 2, 8
    key = jax.random.PRNGKey(0)
    k_ids, k_params = jax.random.split(key)

    input_ids = jax.random.randint(k_ids, (B, S), 0, VOCAB, dtype=jnp.int32)
    attention_mask = jnp.ones((B, S), dtype=jnp.float32)
    attention_mask = attention_mask.at[1, 6:].set(0.0)   # pad a bit of the 2nd sequence

    params = init_params(k_params)

    fwd = jax.jit(roberta_layer_cat_forward)
    out = jax.block_until_ready(fwd(input_ids, attention_mask, params))
    assert out.shape == (B,), out.shape
    assert bool(jnp.all(jnp.isfinite(out)))
    print("KERNEL_OK")
</pallas_src>

<mosaic_0001>
module attributes {stable_mosaic.version = 11 : i64} {
  func.func @fused_roberta_kernel(%arg0: memref<2x8x32xf32, #tpu.memory_space<vmem>>, %arg1: memref<2x8xf32, #tpu.memory_space<vmem>>, %arg2: memref<4x32x96xf32, #tpu.memory_space<vmem>>, %arg3: memref<4x1x96xf32, #tpu.memory_space<vmem>>, %arg4: memref<4x32x32xf32, #tpu.memory_space<vmem>>, %arg5: memref<4x1x32xf32, #tpu.memory_space<vmem>>, %arg6: memref<4x1x32xf32, #tpu.memory_space<vmem>>, %arg7: memref<4x1x32xf32, #tpu.memory_space<vmem>>, %arg8: memref<4x32x64xf32, #tpu.memory_space<vmem>>, %arg9: memref<4x1x64xf32, #tpu.memory_space<vmem>>, %arg10: memref<4x64x32xf32, #tpu.memory_space<vmem>>, %arg11: memref<4x1x32xf32, #tpu.memory_space<vmem>>, %arg12: memref<4x1x32xf32, #tpu.memory_space<vmem>>, %arg13: memref<4x1x32xf32, #tpu.memory_space<vmem>>, %arg14: memref<64x1xf32, #tpu.memory_space<vmem>>, %arg15: memref<1x1xf32, #tpu.memory_space<vmem>>, %arg16: memref<2x1xf32, #tpu.memory_space<vmem>>) attributes {dimension_semantics = [], scalar_prefetch = 0 : i64, scratch_operands = 0 : i64, tpu.core_type = #tpu.core_type<tc>} {
    %c0 = arith.constant 0 : index
    %c0_0 = arith.constant 0 : index
    %0 = vector.load %arg1[%c0, %c0_0] : memref<2x8xf32, #tpu.memory_space<vmem>>, vector<2x8xf32>
    %1 = vector.shape_cast %0 : vector<2x8xf32> to vector<2x1x8xf32>
    %c0_1 = arith.constant 0 : index
    %c0_2 = arith.constant 0 : index
    %c0_3 = arith.constant 0 : index
    %2 = vector.load %arg0[%c0_1, %c0_2, %c0_3] : memref<2x8x32xf32, #tpu.memory_space<vmem>>, vector<2x8x32xf32>
    %3 = vector.shape_cast %2 : vector<2x8x32xf32> to vector<16x32xf32>
    %c0_4 = arith.constant 0 : index
    %c0_5 = arith.constant 0 : index
    %c0_6 = arith.constant 0 : index
    %4 = vector.load %arg2[%c0_4, %c0_5, %c0_6] : memref<4x32x96xf32, #tpu.memory_space<vmem>>, vector<1x32x96xf32>
    %5 = vector.shape_cast %4 : vector<1x32x96xf32> to vector<32x96xf32>
    %cst = arith.constant dense<0.000000e+00> : vector<16x96xf32>
    %6 = tpu.matmul %3, %5, %cst {dimension_numbers = #tpu.dot_dimension_numbers<[1], [0], [0], [1], [0, 0, 1, 1], [], []>} : vector<16x32xf32>, vector<32x96xf32>, vector<16x96xf32> -> vector<16x96xf32>
    %c0_7 = arith.constant 0 : index
    %c0_8 = arith.constant 0 : index
    %c0_9 = arith.constant 0 : index
    %7 = vector.load %arg3[%c0_7, %c0_8, %c0_9] : memref<4x1x96xf32, #tpu.memory_space<vmem>>, vector<1x1x96xf32>
    %8 = vector.shape_cast %7 : vector<1x1x96xf32> to vector<1x96xf32>
    %9 = vector.broadcast %8 : vector<1x96xf32> to vector<16x96xf32>
    %10 = arith.addf %6, %9 : vector<16x96xf32>
    %11 = vector.shape_cast %10 : vector<16x96xf32> to vector<2x8x96xf32>
    %12 = vector.extract_strided_slice %11 {offsets = [0, 0, 0], sizes = [2, 8, 8], strides = [1, 1, 1]} : vector<2x8x96xf32> to vector<2x8x8xf32>
    %13 = vector.extract_strided_slice %11 {offsets = [0, 0, 32], sizes = [2, 8, 8], strides = [1, 1, 1]} : vector<2x8x96xf32> to vector<2x8x8xf32>
    %14 = vector.extract_strided_slice %11 {offsets = [0, 0, 64], sizes = [2, 8, 8], strides = [1, 1, 1]} : vector<2x8x96xf32> to vector<2x8x8xf32>
    "tpu.trace_start"() <{level = 10 : i32, message = "bqd,bkd->bqk"}> : () -> ()
    %cst_10 = arith.constant dense<0.000000e+00> : vector<2x8x8xf32>
    %15 = tpu.matmul %12, %13, %cst_10 {dimension_numbers = #tpu.dot_dimension_numbers<[2], [2], [1], [1], [0, 0, 0, 1, 1, 1], [0], [0]>} : vector<2x8x8xf32>, vector<2x8x8xf32>, vector<2x8x8xf32> -> vector<2x8x8xf32>
    "tpu.trace_stop"() : () -> ()
    %cst_11 = arith.constant 0.353553385 : f32
    %16 = vector.broadcast %cst_11 : f32 to vector<2x8x8xf32>
    %17 = arith.mulf %15, %16 : vector<2x8x8xf32>
    %18 = vector.broadcast %1 : vector<2x1x8xf32> to vector<2x8x8xf32>
    %19 = arith.addf %17, %18 : vector<2x8x8xf32>
    %cst_12 = arith.constant dense<0xFF800000> : vector<2x8xf32>
    %20 = vector.multi_reduction <maximumf>, %19, %cst_12 [2] : vector<2x8x8xf32> to vector<2x8xf32>
    %21 = vector.shape_cast %20 : vector<2x8xf32> to vector<2x8x1xf32>
    %22 = vector.broadcast %21 : vector<2x8x1xf32> to vector<2x8x8xf32>
    %23 = arith.subf %19, %22 : vector<2x8x8xf32>
    %24 = math.exp %23 : vector<2x8x8xf32>
    %cst_13 = arith.constant dense<0.000000e+00> : vector<2x8xf32>
    %25 = vector.multi_reduction <add>, %24, %cst_13 [2] : vector<2x8x8xf32> to vector<2x8xf32>
    %26 = vector.shape_cast %25 : vector<2x8xf32> to vector<2x8x1xf32>
    %27 = tpu.reciprocal %26 {approx = true} : vector<2x8x1xf32> -> vector<2x8x1xf32>
    %28 = vector.broadcast %27 : vector<2x8x1xf32> to vector<2x8x8xf32>
    %29 = arith.mulf %24, %28 : vector<2x8x8xf32>
    "tpu.trace_start"() <{level = 10 : i32, message = "bqk,bkd->bqd"}> : () -> ()
    %cst_14 = arith.constant dense<0.000000e+00> : vector<2x8x8xf32>
    %30 = tpu.matmul %29, %14, %cst_14 {dimension_numbers = #tpu.dot_dimension_numbers<[2], [1], [1], [2], [0, 0, 0, 1, 1, 2], [0], [0]>} : vector<2x8x8xf32>, vector<2x8x8xf32>, vector<2x8x8xf32> -> vector<2x8x8xf32>
    "tpu.trace_stop"() : () -> ()
    %31 = vector.extract_strided_slice %11 {offsets = [0, 0, 8], sizes = [2, 8, 8], strides = [1, 1, 1]} : vector<2x8x96xf32> to vector<2x8x8xf32>
    %32 = vector.extract_strided_slice %11 {offsets = [0, 0, 40], sizes = [2, 8, 8], strides = [1, 1, 1]} : vector<2x8x96xf32> to vector<2x8x8xf32>
    %33 = vector.extract_strided_slice %11 {offsets = [0, 0, 72], sizes = [2, 8, 8], strides = [1, 1, 1]} : vector<2x8x96xf32> to vector<2x8x8xf32>
    "tpu.trace_start"() <{level = 10 : i32, message = "bqd,bkd->bqk"}> : () -> ()
    %cst_15 = arith.constant dense<0.000000e+00> : vector<2x8x8xf32>
    %34 = tpu.matmul %31, %32, %cst_15 {dimension_numbers = #tpu.dot_dimension_numbers<[2], [2], [1], [1], [0, 0, 0, 1, 1, 1], [0], [0]>} : vector<2x8x8xf32>, vector<2x8x8xf32>, vector<2x8x8xf32> -> vector<2x8x8xf32>
    "tpu.trace_stop"() : () -> ()
    %cst_16 = arith.constant 0.353553385 : f32
    %35 = vector.broadcast %cst_16 : f32 to vector<2x8x8xf32>
    %36 = arith.mulf %34, %35 : vector<2x8x8xf32>
    %37 = vector.broadcast %1 : vector<2x1x8xf32> to vector<2x8x8xf32>
    %38 = arith.addf %36, %37 : vector<2x8x8xf32>
    %cst_17 = arith.constant dense<0xFF800000> : vector<2x8xf32>
    %39 = vector.multi_reduction <maximumf>, %38, %cst_17 [2] : vector<2x8x8xf32> to vector<2x8xf32>
    %40 = vector.shape_cast %39 : vector<2x8xf32> to vector<2x8x1xf32>
    %41 = vector.broadcast %40 : vector<2x8x1xf32> to vector<2x8x8xf32>
    %42 = arith.subf %38, %41 : vector<2x8x8xf32>
    %43 = math.exp %42 : vector<2x8x8xf32>
    %cst_18 = arith.constant dense<0.000000e+00> : vector<2x8xf32>
    %44 = vector.multi_reduction <add>, %43, %cst_18 [2] : vector<2x8x8xf32> to vector<2x8xf32>
    %45 = vector.shape_cast %44 : vector<2x8xf32> to vector<2x8x1xf32>
    %46 = tpu.reciprocal %45 {approx = true} : vector<2x8x1xf32> -> vector<2x8x1xf32>
    %47 = vector.broadcast %46 : vector<2x8x1xf32> to vector<2x8x8xf32>
    %48 = arith.mulf %43, %47 : vector<2x8x8xf32>
    "tpu.trace_start"() <{level = 10 : i32, message = "bqk,bkd->bqd"}> : () -> ()
    %cst_19 = arith.constant dense<0.000000e+00> : vector<2x8x8xf32>
    %49 = tpu.matmul %48, %33, %cst_19 {dimension_numbers = #tpu.dot_dimension_numbers<[2], [1], [1], [2], [0, 0, 0, 1, 1, 2], [0], [0]>} : vector<2x8x8xf32>, vector<2x8x8xf32>, vector<2x8x8xf32> -> vector<2x8x8xf32>
    "tpu.trace_stop"() : () -> ()
    %50 = vector.extract_strided_slice %11 {offsets = [0, 0, 16], sizes = [2, 8, 8], strides = [1, 1, 1]} : vector<2x8x96xf32> to vector<2x8x8xf32>
    %51 = vector.extract_strided_slice %11 {offsets = [0, 0, 48], sizes = [2, 8, 8], strides = [1, 1, 1]} : vector<2x8x96xf32> to vector<2x8x8xf32>
    %52 = vector.extract_strided_slice %11 {offsets = [0, 0, 80], sizes = [2, 8, 8], strides = [1, 1, 1]} : vector<2x8x96xf32> to vector<2x8x8xf32>
    "tpu.trace_start"() <{level = 10 : i32, message = "bqd,bkd->bqk"}> : () -> ()
    %cst_20 = arith.constant dense<0.000000e+00> : vector<2x8x8xf32>
    %53 = tpu.matmul %50, %51, %cst_20 {dimension_numbers = #tpu.dot_dimension_numbers<[2], [2], [1], [1], [0, 0, 0, 1, 1, 1], [0], [0]>} : vector<2x8x8xf32>, vector<2x8x8xf32>, vector<2x8x8xf32> -> vector<2x8x8xf32>
    "tpu.trace_stop"() : () -> ()
    %cst_21 = arith.constant 0.353553385 : f32
    %54 = vector.broadcast %cst_21 : f32 to vector<2x8x8xf32>
    %55 = arith.mulf %53, %54 : vector<2x8x8xf32>
    %56 = vector.broadcast %1 : vector<2x1x8xf32> to vector<2x8x8xf32>
    %57 = arith.addf %55, %56 : vector<2x8x8xf32>
    %cst_22 = arith.constant dense<0xFF800000> : vector<2x8xf32>
    %58 = vector.multi_reduction <maximumf>, %57, %cst_22 [2] : vector<2x8x8xf32> to vector<2x8xf32>
    %59 = vector.shape_cast %58 : vector<2x8xf32> to vector<2x8x1xf32>
    %60 = vector.broadcast %59 : vector<2x8x1xf32> to vector<2x8x8xf32>
    %61 = arith.subf %57, %60 : vector<2x8x8xf32>
    %62 = math.exp %61 : vector<2x8x8xf32>
    %cst_23 = arith.constant dense<0.000000e+00> : vector<2x8xf32>
    %63 = vector.multi_reduction <add>, %62, %cst_23 [2] : vector<2x8x8xf32> to vector<2x8xf32>
    %64 = vector.shape_cast %63 : vector<2x8xf32> to vector<2x8x1xf32>
    %65 = tpu.reciprocal %64 {approx = true} : vector<2x8x1xf32> -> vector<2x8x1xf32>
    %66 = vector.broadcast %65 : vector<2x8x1xf32> to vector<2x8x8xf32>
    %67 = arith.mulf %62, %66 : vector<2x8x8xf32>
    "tpu.trace_start"() <{level = 10 : i32, message = "bqk,bkd->bqd"}> : () -> ()
    %cst_24 = arith.constant dense<0.000000e+00> : vector<2x8x8xf32>
    %68 = tpu.matmul %67, %52, %cst_24 {dimension_numbers = #tpu.dot_dimension_numbers<[2], [1], [1], [2], [0, 0, 0, 1, 1, 2], [0], [0]>} : vector<2x8x8xf32>, vector<2x8x8xf32>, vector<2x8x8xf32> -> vector<2x8x8xf32>
    "tpu.trace_stop"() : () -> ()
    %69 = vector.extract_strided_slice %11 {offsets = [0, 0, 24], sizes = [2, 8, 8], strides = [1, 1, 1]} : vector<2x8x96xf32> to vector<2x8x8xf32>
    %70 = vector.extract_strided_slice %11 {offsets = [0, 0, 56], sizes = [2, 8, 8], strides = [1, 1, 1]} : vector<2x8x96xf32> to vector<2x8x8xf32>
    %71 = vector.extract_strided_slice %11 {offsets = [0, 0, 88], sizes = [2, 8, 8], strides = [1, 1, 1]} : vector<2x8x96xf32> to vector<2x8x8xf32>
    "tpu.trace_start"() <{level = 10 : i32, message = "bqd,bkd->bqk"}> : () -> ()
    %cst_25 = arith.constant dense<0.000000e+00> : vector<2x8x8xf32>
    %72 = tpu.matmul %69, %70, %cst_25 {dimension_numbers = #tpu.dot_dimension_numbers<[2], [2], [1], [1], [0, 0, 0, 1, 1, 1], [0], [0]>} : vector<2x8x8xf32>, vector<2x8x8xf32>, vector<2x8x8xf32> -> vector<2x8x8xf32>
    "tpu.trace_stop"() : () -> ()
    %cst_26 = arith.constant 0.353553385 : f32
    %73 = vector.broadcast %cst_26 : f32 to vector<2x8x8xf32>
    %74 = arith.mulf %72, %73 : vector<2x8x8xf32>
    %75 = vector.broadcast %1 : vector<2x1x8xf32> to vector<2x8x8xf32>
    %76 = arith.addf %74, %75 : vector<2x8x8xf32>
    %cst_27 = arith.constant dense<0xFF800000> : vector<2x8xf32>
    %77 = vector.multi_reduction <maximumf>, %76, %cst_27 [2] : vector<2x8x8xf32> to vector<2x8xf32>
    %78 = vector.shape_cast %77 : vector<2x8xf32> to vector<2x8x1xf32>
    %79 = vector.broadcast %78 : vector<2x8x1xf32> to vector<2x8x8xf32>
    %80 = arith.subf %76, %79 : vector<2x8x8xf32>
    %81 = math.exp %80 : vector<2x8x8xf32>
    %cst_28 = arith.constant dense<0.000000e+00> : vector<2x8xf32>
    %82 = vector.multi_reduction <add>, %81, %cst_28 [2] : vector<2x8x8xf32> to vector<2x8xf32>
    %83 = vector.shape_cast %82 : vector<2x8xf32> to vector<2x8x1xf32>
    %84 = tpu.reciprocal %83 {approx = true} : vector<2x8x1xf32> -> vector<2x8x1xf32>
    %85 = vector.broadcast %84 : vector<2x8x1xf32> to vector<2x8x8xf32>
    %86 = arith.mulf %81, %85 : vector<2x8x8xf32>
    "tpu.trace_start"() <{level = 10 : i32, message = "bqk,bkd->bqd"}> : () -> ()
    %cst_29 = arith.constant dense<0.000000e+00> : vector<2x8x8xf32>
    %87 = tpu.matmul %86, %71, %cst_29 {dimension_numbers = #tpu.dot_dimension_numbers<[2], [1], [1], [2], [0, 0, 0, 1, 1, 2], [0], [0]>} : vector<2x8x8xf32>, vector<2x8x8xf32>, vector<2x8x8xf32> -> vector<2x8x8xf32>
    "tpu.trace_stop"() : () -> ()
    %88 = tpu.concatenate %30, %49, %68, %87 in 2 : vector<2x8x8xf32>, vector<2x8x8xf32>, vector<2x8x8xf32>, vector<2x8x8xf32> -> vector<2x8x32xf32>
    %89 = vector.shape_cast %88 : vector<2x8x32xf32> to vector<16x32xf32>
    %c0_30 = arith.constant 0 : index
    %c0_31 = arith.constant 0 : index
    %c0_32 = arith.constant 0 : index
    %90 = vector.load %arg4[%c0_30, %c0_31, %c0_32] : memref<4x32x32xf32, #tpu.memory_space<vmem>>, vector<1x32x32xf32>
    %91 = vector.shape_cast %90 : vector<1x32x32xf32> to vector<32x32xf32>
    %cst_33 = arith.constant dense<0.000000e+00> : vector<16x32xf32>
    %92 = tpu.matmul %89, %91, %cst_33 {dimension_numbers = #tpu.dot_dimension_numbers<[1], [0], [0], [1], [0, 0, 1, 1], [], []>} : vector<16x32xf32>, vector<32x32xf32>, vector<16x32xf32> -> vector<16x32xf32>
    %c0_34 = arith.constant 0 : index
    %c0_35 = arith.constant 0 : index
    %c0_36 = arith.constant 0 : index
    %93 = vector.load %arg5[%c0_34, %c0_35, %c0_36] : memref<4x1x32xf32, #tpu.memory_space<vmem>>, vector<1x1x32xf32>
    %94 = vector.shape_cast %93 : vector<1x1x32xf32> to vector<1x32xf32>
    %95 = vector.broadcast %94 : vector<1x32xf32> to vector<16x32xf32>
    %96 = arith.addf %92, %95 : vector<16x32xf32>
    %97 = arith.addf %3, %96 : vector<16x32xf32>
    %c0_37 = arith.constant 0 : index
    %c0_38 = arith.constant 0 : index
    %c0_39 = arith.constant 0 : index
    %98 = vector.load %arg6[%c0_37, %c0_38, %c0_39] : memref<4x1x32xf32, #tpu.memory_space<vmem>>, vector<1x1x32xf32>
    %99 = vector.shape_cast %98 : vector<1x1x32xf32> to vector<1x32xf32>
    %c0_40 = arith.constant 0 : index
    %c0_41 = arith.constant 0 : index
    %c0_42 = arith.constant 0 : index
    %100 = vector.load %arg7[%c0_40, %c0_41, %c0_42] : memref<4x1x32xf32, #tpu.memory_space<vmem>>, vector<1x1x32xf32>
    %101 = vector.shape_cast %100 : vector<1x1x32xf32> to vector<1x32xf32>
    %cst_43 = arith.constant dense<0.000000e+00> : vector<16xf32>
    %102 = vector.multi_reduction <add>, %97, %cst_43 [1] : vector<16x32xf32> to vector<16xf32>
    %103 = vector.shape_cast %102 : vector<16xf32> to vector<16x1xf32>
    %cst_44 = arith.constant 3.200000e+01 : f32
    %104 = vector.broadcast %cst_44 : f32 to vector<16x1xf32>
    %105 = arith.divf %103, %104 : vector<16x1xf32>
    %106 = vector.broadcast %105 : vector<16x1xf32> to vector<16x32xf32>
    %107 = arith.subf %97, %106 : vector<16x32xf32>
    %108 = arith.mulf %107, %107 : vector<16x32xf32>
    %cst_45 = arith.constant dense<0.000000e+00> : vector<16xf32>
    %109 = vector.multi_reduction <add>, %108, %cst_45 [1] : vector<16x32xf32> to vector<16xf32>
    %110 = vector.shape_cast %109 : vector<16xf32> to vector<16x1xf32>
    %cst_46 = arith.constant 3.200000e+01 : f32
    %111 = vector.broadcast %cst_46 : f32 to vector<16x1xf32>
    %112 = arith.divf %110, %111 : vector<16x1xf32>
    %113 = vector.broadcast %105 : vector<16x1xf32> to vector<16x32xf32>
    %114 = arith.subf %97, %113 : vector<16x32xf32>
    %cst_47 = arith.constant 9.99999974E-6 : f32
    %115 = vector.broadcast %cst_47 : f32 to vector<16x1xf32>
    %116 = arith.addf %112, %115 : vector<16x1xf32>
    %117 = math.rsqrt %116 : vector<16x1xf32>
    %118 = vector.broadcast %117 : vector<16x1xf32> to vector<16x32xf32>
    %119 = arith.mulf %114, %118 : vector<16x32xf32>
    %120 = vector.broadcast %99 : vector<1x32xf32> to vector<16x32xf32>
    %121 = arith.mulf %119, %120 : vector<16x32xf32>
    %122 = vector.broadcast %101 : vector<1x32xf32> to vector<16x32xf32>
    %123 = arith.addf %121, %122 : vector<16x32xf32>
    %c0_48 = arith.constant 0 : index
    %c0_49 = arith.constant 0 : index
    %c0_50 = arith.constant 0 : index
    %124 = vector.load %arg8[%c0_48, %c0_49, %c0_50] : memref<4x32x64xf32, #tpu.memory_space<vmem>>, vector<1x32x64xf32>
    %125 = vector.shape_cast %124 : vector<1x32x64xf32> to vector<32x64xf32>
    %cst_51 = arith.constant dense<0.000000e+00> : vector<16x64xf32>
    %126 = tpu.matmul %123, %125, %cst_51 {dimension_numbers = #tpu.dot_dimension_numbers<[1], [0], [0], [1], [0, 0, 1, 1], [], []>} : vector<16x32xf32>, vector<32x64xf32>, vector<16x64xf32> -> vector<16x64xf32>
    %c0_52 = arith.constant 0 : index
    %c0_53 = arith.constant 0 : index
    %c0_54 = arith.constant 0 : index
    %127 = vector.load %arg9[%c0_52, %c0_53, %c0_54] : memref<4x1x64xf32, #tpu.memory_space<vmem>>, vector<1x1x64xf32>
    %128 = vector.shape_cast %127 : vector<1x1x64xf32> to vector<1x64xf32>
    %129 = vector.broadcast %128 : vector<1x64xf32> to vector<16x64xf32>
    %130 = arith.addf %126, %129 : vector<16x64xf32>
    %cst_55 = arith.constant 5.000000e-01 : f32
    %131 = vector.broadcast %cst_55 : f32 to vector<16x64xf32>
    %132 = arith.mulf %131, %130 : vector<16x64xf32>
    %cst_56 = arith.constant 4.471500e-02 : f32
    %133 = vector.broadcast %cst_56 : f32 to vector<16x64xf32>
    %134 = arith.mulf %133, %130 : vector<16x64xf32>
    %135 = arith.mulf %134, %130 : vector<16x64xf32>
    %136 = arith.mulf %135, %130 : vector<16x64xf32>
    %137 = arith.addf %130, %136 : vector<16x64xf32>
    %cst_57 = arith.constant 0.797884583 : f32
    %138 = vector.broadcast %cst_57 : f32 to vector<16x64xf32>
    %139 = arith.mulf %138, %137 : vector<16x64xf32>
    %140 = math.tanh %139 : vector<16x64xf32>
    %cst_58 = arith.constant 1.000000e+00 : f32
    %141 = vector.broadcast %cst_58 : f32 to vector<16x64xf32>
    %142 = arith.addf %141, %140 : vector<16x64xf32>
    %143 = arith.mulf %132, %142 : vector<16x64xf32>
    %c0_59 = arith.constant 0 : index
    %c0_60 = arith.constant 0 : index
    %c0_61 = arith.constant 0 : index
    %144 = vector.load %arg10[%c0_59, %c0_60, %c0_61] : memref<4x64x32xf32, #tpu.memory_space<vmem>>, vector<1x64x32xf32>
    %145 = vector.shape_cast %144 : vector<1x64x32xf32> to vector<64x32xf32>
    %cst_62 = arith.constant dense<0.000000e+00> : vector<16x32xf32>
    %146 = tpu.matmul %143, %145, %cst_62 {dimension_numbers = #tpu.dot_dimension_numbers<[1], [0], [0], [1], [0, 0, 1, 1], [], []>} : vector<16x64xf32>, vector<64x32xf32>, vector<16x32xf32> -> vector<16x32xf32>
    %c0_63 = arith.constant 0 : index
    %c0_64 = arith.constant 0 : index
    %c0_65 = arith.constant 0 : index
    %147 = vector.load %arg11[%c0_63, %c0_64, %c0_65] : memref<4x1x32xf32, #tpu.memory_space<vmem>>, vector<1x1x32xf32>
    %148 = vector.shape_cast %147 : vector<1x1x32xf32> to vector<1x32xf32>
    %149 = vector.broadcast %148 : vector<1x32xf32> to vector<16x32xf32>
    %150 = arith.addf %146, %149 : vector<16x32xf32>
    %151 = arith.addf %123, %150 : vector<16x32xf32>
    %c0_66 = arith.constant 0 : index
    %c0_67 = arith.constant 0 : index
    %c0_68 = arith.constant 0 : index
    %152 = vector.load %arg12[%c0_66, %c0_67, %c0_68] : memref<4x1x32xf32, #tpu.memory_space<vmem>>, vector<1x1x32xf32>
    %153 = vector.shape_cast %152 : vector<1x1x32xf32> to vector<1x32xf32>
    %c0_69 = arith.constant 0 : index
    %c0_70 = arith.constant 0 : index
    %c0_71 = arith.constant 0 : index
    %154 = vector.load %arg13[%c0_69, %c0_70, %c0_71] : memref<4x1x32xf32, #tpu.memory_space<vmem>>, vector<1x1x32xf32>
    %155 = vector.shape_cast %154 : vector<1x1x32xf32> to vector<1x32xf32>
    %cst_72 = arith.constant dense<0.000000e+00> : vector<16xf32>
    %156 = vector.multi_reduction <add>, %151, %cst_72 [1] : vector<16x32xf32> to vector<16xf32>
    %157 = vector.shape_cast %156 : vector<16xf32> to vector<16x1xf32>
    %cst_73 = arith.constant 3.200000e+01 : f32
    %158 = vector.broadcast %cst_73 : f32 to vector<16x1xf32>
    %159 = arith.divf %157, %158 : vector<16x1xf32>
    %160 = vector.broadcast %159 : vector<16x1xf32> to vector<16x32xf32>
    %161 = arith.subf %151, %160 : vector<16x32xf32>
    %162 = arith.mulf %161, %161 : vector<16x32xf32>
    %cst_74 = arith.constant dense<0.000000e+00> : vector<16xf32>
    %163 = vector.multi_reduction <add>, %162, %cst_74 [1] : vector<16x32xf32> to vector<16xf32>
    %164 = vector.shape_cast %163 : vector<16xf32> to vector<16x1xf32>
    %cst_75 = arith.constant 3.200000e+01 : f32
    %165 = vector.broadcast %cst_75 : f32 to vector<16x1xf32>
    %166 = arith.divf %164, %165 : vector<16x1xf32>
    %167 = vector.broadcast %159 : vector<16x1xf32> to vector<16x32xf32>
    %168 = arith.subf %151, %167 : vector<16x32xf32>
    %cst_76 = arith.constant 9.99999974E-6 : f32
    %169 = vector.broadcast %cst_76 : f32 to vector<16x1xf32>
    %170 = arith.addf %166, %169 : vector<16x1xf32>
    %171 = math.rsqrt %170 : vector<16x1xf32>
    %172 = vector.broadcast %171 : vector<16x1xf32> to vector<16x32xf32>
    %173 = arith.mulf %168, %172 : vector<16x32xf32>
    %174 = vector.broadcast %153 : vector<1x32xf32> to vector<16x32xf32>
    %175 = arith.mulf %173, %174 : vector<16x32xf32>
    %176 = vector.broadcast %155 : vector<1x32xf32> to vector<16x32xf32>
    %177 = arith.addf %175, %176 : vector<16x32xf32>
    %c1 = arith.constant 1 : index
    %c0_77 = arith.constant 0 : index
    %c0_78 = arith.constant 0 : index
    %178 = vector.load %arg2[%c1, %c0_77, %c0_78] : memref<4x32x96xf32, #tpu.memory_space<vmem>>, vector<1x32x96xf32>
    %179 = vector.shape_cast %178 : vector<1x32x96xf32> to vector<32x96xf32>
    %cst_79 = arith.constant dense<0.000000e+00> : vector<16x96xf32>
    %180 = tpu.matmul %177, %179, %cst_79 {dimension_numbers = #tpu.dot_dimension_numbers<[1], [0], [0], [1], [0, 0, 1, 1], [], []>} : vector<16x32xf32>, vector<32x96xf32>, vector<16x96xf32> -> vector<16x96xf32>
    %c1_80 = arith.constant 1 : index
    %c0_81 = arith.constant 0 : index
    %c0_82 = arith.constant 0 : index
    %181 = vector.load %arg3[%c1_80, %c0_81, %c0_82] : memref<4x1x96xf32, #tpu.memory_space<vmem>>, vector<1x1x96xf32>
    %182 = vector.shape_cast %181 : vector<1x1x96xf32> to vector<1x96xf32>
    %183 = vector.broadcast %182 : vector<1x96xf32> to vector<16x96xf32>
    %184 = arith.addf %180, %183 : vector<16x96xf32>
    %185 = vector.shape_cast %184 : vector<16x96xf32> to vector<2x8x96xf32>
    %186 = vector.extract_strided_slice %185 {offsets = [0, 0, 0], sizes = [2, 8, 8], strides = [1, 1, 1]} : vector<2x8x96xf32> to vector<2x8x8xf32>
    %187 = vector.extract_strided_slice %185 {offsets = [0, 0, 32], sizes = [2, 8, 8], strides = [1, 1, 1]} : vector<2x8x96xf32> to vector<2x8x8xf32>
    %188 = vector.extract_strided_slice %185 {offsets = [0, 0, 64], sizes = [2, 8, 8], strides = [1, 1, 1]} : vector<2x8x96xf32> to vector<2x8x8xf32>
    "tpu.trace_start"() <{level = 10 : i32, message = "bqd,bkd->bqk"}> : () -> ()
    %cst_83 = arith.constant dense<0.000000e+00> : vector<2x8x8xf32>
    %189 = tpu.matmul %186, %187, %cst_83 {dimension_numbers = #tpu.dot_dimension_numbers<[2], [2], [1], [1], [0, 0, 0, 1, 1, 1], [0], [0]>} : vector<2x8x8xf32>, vector<2x8x8xf32>, vector<2x8x8xf32> -> vector<2x8x8xf32>
    "tpu.trace_stop"() : () -> ()
    %cst_84 = arith.constant 0.353553385 : f32
    %190 = vector.broadcast %cst_84 : f32 to vector<2x8x8xf32>
    %191 = arith.mulf %189, %190 : vector<2x8x8xf32>
    %192 = vector.broadcast %1 : vector<2x1x8xf32> to vector<2x8x8xf32>
    %193 = arith.addf %191, %192 : vector<2x8x8xf32>
    %cst_85 = arith.constant dense<0xFF800000> : vector<2x8xf32>
    %194 = vector.multi_reduction <maximumf>, %193, %cst_85 [2] : vector<2x8x8xf32> to vector<2x8xf32>
    %195 = vector.shape_cast %194 : vector<2x8xf32> to vector<2x8x1xf32>
    %196 = vector.broadcast %195 : vector<2x8x1xf32> to vector<2x8x8xf32>
    %197 = arith.subf %193, %196 : vector<2x8x8xf32>
    %198 = math.exp %197 : vector<2x8x8xf32>
    %cst_86 = arith.constant dense<0.000000e+00> : vector<2x8xf32>
    %199 = vector.multi_reduction <add>, %198, %cst_86 [2] : vector<2x8x8xf32> to vector<2x8xf32>
    %200 = vector.shape_cast %199 : vector<2x8xf32> to vector<2x8x1xf32>
    %201 = tpu.reciprocal %200 {approx = true} : vector<2x8x1xf32> -> vector<2x8x1xf32>
    %202 = vector.broadcast %201 : vector<2x8x1xf32> to vector<2x8x8xf32>
    %203 = arith.mulf %198, %202 : vector<2x8x8xf32>
    "tpu.trace_start"() <{level = 10 : i32, message = "bqk,bkd->bqd"}> : () -> ()
    %cst_87 = arith.constant dense<0.000000e+00> : vector<2x8x8xf32>
    %204 = tpu.matmul %203, %188, %cst_87 {dimension_numbers = #tpu.dot_dimension_numbers<[2], [1], [1], [2], [0, 0, 0, 1, 1, 2], [0], [0]>} : vector<2x8x8xf32>, vector<2x8x8xf32>, vector<2x8x8xf32> -> vector<2x8x8xf32>
    "tpu.trace_stop"() : () -> ()
    %205 = vector.extract_strided_slice %185 {offsets = [0, 0, 8], sizes = [2, 8, 8], strides = [1, 1, 1]} : vector<2x8x96xf32> to vector<2x8x8xf32>
    %206 = vector.extract_strided_slice %185 {offsets = [0, 0, 40], sizes = [2, 8, 8], strides = [1, 1, 1]} : vector<2x8x96xf32> to vector<2x8x8xf32>
    %207 = vector.extract_strided_slice %185 {offsets = [0, 0, 72], sizes = [2, 8, 8], strides = [1, 1, 1]} : vector<2x8x96xf32> to vector<2x8x8xf32>
    "tpu.trace_start"() <{level = 10 : i32, message = "bqd,bkd->bqk"}> : () -> ()
    %cst_88 = arith.constant dense<0.000000e+00> : vector<2x8x8xf32>
    %208 = tpu.matmul %205, %206, %cst_88 {dimension_numbers = #tpu.dot_dimension_numbers<[2], [2], [1], [1], [0, 0, 0, 1, 1, 1], [0], [0]>} : vector<2x8x8xf32>, vector<2x8x8xf32>, vector<2x8x8xf32> -> vector<2x8x8xf32>
    "tpu.trace_stop"() : () -> ()
    %cst_89 = arith.constant 0.353553385 : f32
    %209 = vector.broadcast %cst_89 : f32 to vector<2x8x8xf32>
    %210 = arith.mulf %208, %209 : vector<2x8x8xf32>
    %211 = vector.broadcast %1 : vector<2x1x8xf32> to vector<2x8x8xf32>
    %212 = arith.addf %210, %211 : vector<2x8x8xf32>
    %cst_90 = arith.constant dense<0xFF800000> : vector<2x8xf32>
    %213 = vector.multi_reduction <maximumf>, %212, %cst_90 [2] : vector<2x8x8xf32> to vector<2x8xf32>
    %214 = vector.shape_cast %213 : vector<2x8xf32> to vector<2x8x1xf32>
    %215 = vector.broadcast %214 : vector<2x8x1xf32> to vector<2x8x8xf32>
    %216 = arith.subf %212, %215 : vector<2x8x8xf32>
    %217 = math.exp %216 : vector<2x8x8xf32>
    %cst_91 = arith.constant dense<0.000000e+00> : vector<2x8xf32>
    %218 = vector.multi_reduction <add>, %217, %cst_91 [2] : vector<2x8x8xf32> to vector<2x8xf32>
    %219 = vector.shape_cast %218 : vector<2x8xf32> to vector<2x8x1xf32>
    %220 = tpu.reciprocal %219 {approx = true} : vector<2x8x1xf32> -> vector<2x8x1xf32>
    %221 = vector.broadcast %220 : vector<2x8x1xf32> to vector<2x8x8xf32>
    %222 = arith.mulf %217, %221 : vector<2x8x8xf32>
    "tpu.trace_start"() <{level = 10 : i32, message = "bqk,bkd->bqd"}> : () -> ()
    %cst_92 = arith.constant dense<0.000000e+00> : vector<2x8x8xf32>
    %223 = tpu.matmul %222, %207, %cst_92 {dimension_numbers = #tpu.dot_dimension_numbers<[2], [1], [1], [2], [0, 0, 0, 1, 1, 2], [0], [0]>} : vector<2x8x8xf32>, vector<2x8x8xf32>, vector<2x8x8xf32> -> vector<2x8x8xf32>
    "tpu.trace_stop"() : () -> ()
    %224 = vector.extract_strided_slice %185 {offsets = [0, 0, 16], sizes = [2, 8, 8], strides = [1, 1, 1]} : vector<2x8x96xf32> to vector<2x8x8xf32>
    %225 = vector.extract_strided_slice %185 {offsets = [0, 0, 48], sizes = [2, 8, 8], strides = [1, 1, 1]} : vector<2x8x96xf32> to vector<2x8x8xf32>
    %226 = vector.extract_strided_slice %185 {offsets = [0, 0, 80], sizes = [2, 8, 8], strides = [1, 1, 1]} : vector<2x8x96xf32> to vector<2x8x8xf32>
    "tpu.trace_start"() <{level = 10 : i32, message = "bqd,bkd->bqk"}> : () -> ()
    %cst_93 = arith.constant dense<0.000000e+00> : vector<2x8x8xf32>
    %227 = tpu.matmul %224, %225, %cst_93 {dimension_numbers = #tpu.dot_dimension_numbers<[2], [2], [1], [1], [0, 0, 0, 1, 1, 1], [0], [0]>} : vector<2x8x8xf32>, vector<2x8x8xf32>, vector<2x8x8xf32> -> vector<2x8x8xf32>
    "tpu.trace_stop"() : () -> ()
    %cst_94 = arith.constant 0.353553385 : f32
    %228 = vector.broadcast %cst_94 : f32 to vector<2x8x8xf32>
    %229 = arith.mulf %227, %228 : vector<2x8x8xf32>
    %230 = vector.broadcast %1 : vector<2x1x8xf32> to vector<2x8x8xf32>
    %231 = arith.addf %229, %230 : vector<2x8x8xf32>
    %cst_95 = arith.constant dense<0xFF800000> : vector<2x8xf32>
    %232 = vector.multi_reduction <maximumf>, %231, %cst_95 [2] : vector<2x8x8xf32> to vector<2x8xf32>
    %233 = vector.shape_cast %232 : vector<2x8xf32> to vector<2x8x1xf32>
    %234 = vector.broadcast %233 : vector<2x8x1xf32> to vector<2x8x8xf32>
    %235 = arith.subf %231, %234 : vector<2x8x8xf32>
    %236 = math.exp %235 : vector<2x8x8xf32>
    %cst_96 = arith.constant dense<0.000000e+00> : vector<2x8xf32>
    %237 = vector.multi_reduction <add>, %236, %cst_96 [2] : vector<2x8x8xf32> to vector<2x8xf32>
    %238 = vector.shape_cast %237 : vector<2x8xf32> to vector<2x8x1xf32>
    %239 = tpu.reciprocal %238 {approx = true} : vector<2x8x1xf32> -> vector<2x8x1xf32>
    %240 = vector.broadcast %239 : vector<2x8x1xf32> to vector<2x8x8xf32>
    %241 = arith.mulf %236, %240 : vector<2x8x8xf32>
    "tpu.trace_start"() <{level = 10 : i32, message = "bqk,bkd->bqd"}> : () -> ()
    %cst_97 = arith.constant dense<0.000000e+00> : vector<2x8x8xf32>
    %242 = tpu.matmul %241, %226, %cst_97 {dimension_numbers = #tpu.dot_dimension_numbers<[2], [1], [1], [2], [0, 0, 0, 1, 1, 2], [0], [0]>} : vector<2x8x8xf32>, vector<2x8x8xf32>, vector<2x8x8xf32> -> vector<2x8x8xf32>
    "tpu.trace_stop"() : () -> ()
    %243 = vector.extract_strided_slice %185 {offsets = [0, 0, 24], sizes = [2, 8, 8], strides = [1, 1, 1]} : vector<2x8x96xf32> to vector<2x8x8xf32>
    %244 = vector.extract_strided_slice %185 {offsets = [0, 0, 56], sizes = [2, 8, 8], strides = [1, 1, 1]} : vector<2x8x96xf32> to vector<2x8x8xf32>
    %245 = vector.extract_strided_slice %185 {offsets = [0, 0, 88], sizes = [2, 8, 8], strides = [1, 1, 1]} : vector<2x8x96xf32> to vector<2x8x8xf32>
    "tpu.trace_start"() <{level = 10 : i32, message = "bqd,bkd->bqk"}> : () -> ()
    %cst_98 = arith.constant dense<0.000000e+00> : vector<2x8x8xf32>
    %246 = tpu.matmul %243, %244, %cst_98 {dimension_numbers = #tpu.dot_dimension_numbers<[2], [2], [1], [1], [0, 0, 0, 1, 1, 1], [0], [0]>} : vector<2x8x8xf32>, vector<2x8x8xf32>, vector<2x8x8xf32> -> vector<2x8x8xf32>
    "tpu.trace_stop"() : () -> ()
    %cst_99 = arith.constant 0.353553385 : f32
    %247 = vector.broadcast %cst_99 : f32 to vector<2x8x8xf32>
    %248 = arith.mulf %246, %247 : vector<2x8x8xf32>
    %249 = vector.broadcast %1 : vector<2x1x8xf32> to vector<2x8x8xf32>
    %250 = arith.addf %248, %249 : vector<2x8x8xf32>
    %cst_100 = arith.constant dense<0xFF800000> : vector<2x8xf32>
    %251 = vector.multi_reduction <maximumf>, %250, %cst_100 [2] : vector<2x8x8xf32> to vector<2x8xf32>
    %252 = vector.shape_cast %251 : vector<2x8xf32> to vector<2x8x1xf32>
    %253 = vector.broadcast %252 : vector<2x8x1xf32> to vector<2x8x8xf32>
    %254 = arith.subf %250, %253 : vector<2x8x8xf32>
    %255 = math.exp %254 : vector<2x8x8xf32>
    %cst_101 = arith.constant dense<0.000000e+00> : vector<2x8xf32>
    %256 = vector.multi_reduction <add>, %255, %cst_101 [2] : vector<2x8x8xf32> to vector<2x8xf32>
    %257 = vector.shape_cast %256 : vector<2x8xf32> to vector<2x8x1xf32>
    %258 = tpu.reciprocal %257 {approx = true} : vector<2x8x1xf32> -> vector<2x8x1xf32>
    %259 = vector.broadcast %258 : vector<2x8x1xf32> to vector<2x8x8xf32>
    %260 = arith.mulf %255, %259 : vector<2x8x8xf32>
    "tpu.trace_start"() <{level = 10 : i32, message = "bqk,bkd->bqd"}> : () -> ()
    %cst_102 = arith.constant dense<0.000000e+00> : vector<2x8x8xf32>
    %261 = tpu.matmul %260, %245, %cst_102 {dimension_numbers = #tpu.dot_dimension_numbers<[2], [1], [1], [2], [0, 0, 0, 1, 1, 2], [0], [0]>} : vector<2x8x8xf32>, vector<2x8x8xf32>, vector<2x8x8xf32> -> vector<2x8x8xf32>
    "tpu.trace_stop"() : () -> ()
    %262 = tpu.concatenate %204, %223, %242, %261 in 2 : vector<2x8x8xf32>, vector<2x8x8xf32>, vector<2x8x8xf32>, vector<2x8x8xf32> -> vector<2x8x32xf32>
    %263 = vector.shape_cast %262 : vector<2x8x32xf32> to vector<16x32xf32>
    %c1_103 = arith.constant 1 : index
    %c0_104 = arith.constant 0 : index
    %c0_105 = arith.constant 0 : index
    %264 = vector.load %arg4[%c1_103, %c0_104, %c0_105] : memref<4x32x32xf32, #tpu.memory_space<vmem>>, vector<1x32x32xf32>
    %265 = vector.shape_cast %264 : vector<1x32x32xf32> to vector<32x32xf32>
    %cst_106 = arith.constant dense<0.000000e+00> : vector<16x32xf32>
    %266 = tpu.matmul %263, %265, %cst_106 {dimension_numbers = #tpu.dot_dimension_numbers<[1], [0], [0], [1], [0, 0, 1, 1], [], []>} : vector<16x32xf32>, vector<32x32xf32>, vector<16x32xf32> -> vector<16x32xf32>
    %c1_107 = arith.constant 1 : index
    %c0_108 = arith.constant 0 : index
    %c0_109 = arith.constant 0 : index
    %267 = vector.load %arg5[%c1_107, %c0_108, %c0_109] : memref<4x1x32xf32, #tpu.memory_space<vmem>>, vector<1x1x32xf32>
    %268 = vector.shape_cast %267 : vector<1x1x32xf32> to vector<1x32xf32>
    %269 = vector.broadcast %268 : vector<1x32xf32> to vector<16x32xf32>
    %270 = arith.addf %266, %269 : vector<16x32xf32>
    %271 = arith.addf %177, %270 : vector<16x32xf32>
    %c1_110 = arith.constant 1 : index
    %c0_111 = arith.constant 0 : index
    %c0_112 = arith.constant 0 : index
    %272 = vector.load %arg6[%c1_110, %c0_111, %c0_112] : memref<4x1x32xf32, #tpu.memory_space<vmem>>, vector<1x1x32xf32>
    %273 = vector.shape_cast %272 : vector<1x1x32xf32> to vector<1x32xf32>
    %c1_113 = arith.constant 1 : index
    %c0_114 = arith.constant 0 : index
    %c0_115 = arith.constant 0 : index
    %274 = vector.load %arg7[%c1_113, %c0_114, %c0_115] : memref<4x1x32xf32, #tpu.memory_space<vmem>>, vector<1x1x32xf32>
    %275 = vector.shape_cast %274 : vector<1x1x32xf32> to vector<1x32xf32>
    %cst_116 = arith.constant dense<0.000000e+00> : vector<16xf32>
    %276 = vector.multi_reduction <add>, %271, %cst_116 [1] : vector<16x32xf32> to vector<16xf32>
    %277 = vector.shape_cast %276 : vector<16xf32> to vector<16x1xf32>
    %cst_117 = arith.constant 3.200000e+01 : f32
    %278 = vector.broadcast %cst_117 : f32 to vector<16x1xf32>
    %279 = arith.divf %277, %278 : vector<16x1xf32>
    %280 = vector.broadcast %279 : vector<16x1xf32> to vector<16x32xf32>
    %281 = arith.subf %271, %280 : vector<16x32xf32>
    %282 = arith.mulf %281, %281 : vector<16x32xf32>
    %cst_118 = arith.constant dense<0.000000e+00> : vector<16xf32>
    %283 = vector.multi_reduction <add>, %282, %cst_118 [1] : vector<16x32xf32> to vector<16xf32>
    %284 = vector.shape_cast %283 : vector<16xf32> to vector<16x1xf32>
    %cst_119 = arith.constant 3.200000e+01 : f32
    %285 = vector.broadcast %cst_119 : f32 to vector<16x1xf32>
    %286 = arith.divf %284, %285 : vector<16x1xf32>
    %287 = vector.broadcast %279 : vector<16x1xf32> to vector<16x32xf32>
    %288 = arith.subf %271, %287 : vector<16x32xf32>
    %cst_120 = arith.constant 9.99999974E-6 : f32
    %289 = vector.broadcast %cst_120 : f32 to vector<16x1xf32>
    %290 = arith.addf %286, %289 : vector<16x1xf32>
    %291 = math.rsqrt %290 : vector<16x1xf32>
    %292 = vector.broadcast %291 : vector<16x1xf32> to vector<16x32xf32>
    %293 = arith.mulf %288, %292 : vector<16x32xf32>
    %294 = vector.broadcast %273 : vector<1x32xf32> to vector<16x32xf32>
    %295 = arith.mulf %293, %294 : vector<16x32xf32>
    %296 = vector.broadcast %275 : vector<1x32xf32> to vector<16x32xf32>
    %297 = arith.addf %295, %296 : vector<16x32xf32>
    %c1_121 = arith.constant 1 : index
    %c0_122 = arith.constant 0 : index
    %c0_123 = arith.constant 0 : index
    %298 = vector.load %arg8[%c1_121, %c0_122, %c0_123] : memref<4x32x64xf32, #tpu.memory_space<vmem>>, vector<1x32x64xf32>
    %299 = vector.shape_cast %298 : vector<1x32x64xf32> to vector<32x64xf32>
    %cst_124 = arith.constant dense<0.000000e+00> : vector<16x64xf32>
    %300 = tpu.matmul %297, %299, %cst_124 {dimension_numbers = #tpu.dot_dimension_numbers<[1], [0], [0], [1], [0, 0, 1, 1], [], []>} : vector<16x32xf32>, vector<32x64xf32>, vector<16x64xf32> -> vector<16x64xf32>
    %c1_125 = arith.constant 1 : index
    %c0_126 = arith.constant 0 : index
    %c0_127 = arith.constant 0 : index
    %301 = vector.load %arg9[%c1_125, %c0_126, %c0_127] : memref<4x1x64xf32, #tpu.memory_space<vmem>>, vector<1x1x64xf32>
    %302 = vector.shape_cast %301 : vector<1x1x64xf32> to vector<1x64xf32>
    %303 = vector.broadcast %302 : vector<1x64xf32> to vector<16x64xf32>
    %304 = arith.addf %300, %303 : vector<16x64xf32>
    %cst_128 = arith.constant 5.000000e-01 : f32
    %305 = vector.broadcast %cst_128 : f32 to vector<16x64xf32>
    %306 = arith.mulf %305, %304 : vector<16x64xf32>
    %cst_129 = arith.constant 4.471500e-02 : f32
    %307 = vector.broadcast %cst_129 : f32 to vector<16x64xf32>
    %308 = arith.mulf %307, %304 : vector<16x64xf32>
    %309 = arith.mulf %308, %304 : vector<16x64xf32>
    %310 = arith.mulf %309, %304 : vector<16x64xf32>
    %311 = arith.addf %304, %310 : vector<16x64xf32>
    %cst_130 = arith.constant 0.797884583 : f32
    %312 = vector.broadcast %cst_130 : f32 to vector<16x64xf32>
    %313 = arith.mulf %312, %311 : vector<16x64xf32>
    %314 = math.tanh %313 : vector<16x64xf32>
    %cst_131 = arith.constant 1.000000e+00 : f32
    %315 = vector.broadcast %cst_131 : f32 to vector<16x64xf32>
    %316 = arith.addf %315, %314 : vector<16x64xf32>
    %317 = arith.mulf %306, %316 : vector<16x64xf32>
    %c1_132 = arith.constant 1 : index
    %c0_133 = arith.constant 0 : index
    %c0_134 = arith.constant 0 : index
    %318 = vector.load %arg10[%c1_132, %c0_133, %c0_134] : memref<4x64x32xf32, #tpu.memory_space<vmem>>, vector<1x64x32xf32>
    %319 = vector.shape_cast %318 : vector<1x64x32xf32> to vector<64x32xf32>
    %cst_135 = arith.constant dense<0.000000e+00> : vector<16x32xf32>
    %320 = tpu.matmul %317, %319, %cst_135 {dimension_numbers = #tpu.dot_dimension_numbers<[1], [0], [0], [1], [0, 0, 1, 1], [], []>} : vector<16x64xf32>, vector<64x32xf32>, vector<16x32xf32> -> vector<16x32xf32>
    %c1_136 = arith.constant 1 : index
    %c0_137 = arith.constant 0 : index
    %c0_138 = arith.constant 0 : index
    %321 = vector.load %arg11[%c1_136, %c0_137, %c0_138] : memref<4x1x32xf32, #tpu.memory_space<vmem>>, vector<1x1x32xf32>
    %322 = vector.shape_cast %321 : vector<1x1x32xf32> to vector<1x32xf32>
    %323 = vector.broadcast %322 : vector<1x32xf32> to vector<16x32xf32>
    %324 = arith.addf %320, %323 : vector<16x32xf32>
    %325 = arith.addf %297, %324 : vector<16x32xf32>
    %c1_139 = arith.constant 1 : index
    %c0_140 = arith.constant 0 : index
    %c0_141 = arith.constant 0 : index
    %326 = vector.load %arg12[%c1_139, %c0_140, %c0_141] : memref<4x1x32xf32, #tpu.memory_space<vmem>>, vector<1x1x32xf32>
    %327 = vector.shape_cast %326 : vector<1x1x32xf32> to vector<1x32xf32>
    %c1_142 = arith.constant 1 : index
    %c0_143 = arith.constant 0 : index
    %c0_144 = arith.constant 0 : index
    %328 = vector.load %arg13[%c1_142, %c0_143, %c0_144] : memref<4x1x32xf32, #tpu.memory_space<vmem>>, vector<1x1x32xf32>
    %329 = vector.shape_cast %328 : vector<1x1x32xf32> to vector<1x32xf32>
    %cst_145 = arith.constant dense<0.000000e+00> : vector<16xf32>
    %330 = vector.multi_reduction <add>, %325, %cst_145 [1] : vector<16x32xf32> to vector<16xf32>
    %331 = vector.shape_cast %330 : vector<16xf32> to vector<16x1xf32>
    %cst_146 = arith.constant 3.200000e+01 : f32
    %332 = vector.broadcast %cst_146 : f32 to vector<16x1xf32>
    %333 = arith.divf %331, %332 : vector<16x1xf32>
    %334 = vector.broadcast %333 : vector<16x1xf32> to vector<16x32xf32>
    %335 = arith.subf %325, %334 : vector<16x32xf32>
    %336 = arith.mulf %335, %335 : vector<16x32xf32>
    %cst_147 = arith.constant dense<0.000000e+00> : vector<16xf32>
    %337 = vector.multi_reduction <add>, %336, %cst_147 [1] : vector<16x32xf32> to vector<16xf32>
    %338 = vector.shape_cast %337 : vector<16xf32> to vector<16x1xf32>
    %cst_148 = arith.constant 3.200000e+01 : f32
    %339 = vector.broadcast %cst_148 : f32 to vector<16x1xf32>
    %340 = arith.divf %338, %339 : vector<16x1xf32>
    %341 = vector.broadcast %333 : vector<16x1xf32> to vector<16x32xf32>
    %342 = arith.subf %325, %341 : vector<16x32xf32>
    %cst_149 = arith.constant 9.99999974E-6 : f32
    %343 = vector.broadcast %cst_149 : f32 to vector<16x1xf32>
    %344 = arith.addf %340, %343 : vector<16x1xf32>
    %345 = math.rsqrt %344 : vector<16x1xf32>
    %346 = vector.broadcast %345 : vector<16x1xf32> to vector<16x32xf32>
    %347 = arith.mulf %342, %346 : vector<16x32xf32>
    %348 = vector.broadcast %327 : vector<1x32xf32> to vector<16x32xf32>
    %349 = arith.mulf %347, %348 : vector<16x32xf32>
    %350 = vector.broadcast %329 : vector<1x32xf32> to vector<16x32xf32>
    %351 = arith.addf %349, %350 : vector<16x32xf32>
    %c2 = arith.constant 2 : index
    %c0_150 = arith.constant 0 : index
    %c0_151 = arith.constant 0 : index
    %352 = vector.load %arg2[%c2, %c0_150, %c0_151] : memref<4x32x96xf32, #tpu.memory_space<vmem>>, vector<1x32x96xf32>
    %353 = vector.shape_cast %352 : vector<1x32x96xf32> to vector<32x96xf32>
    %cst_152 = arith.constant dense<0.000000e+00> : vector<16x96xf32>
    %354 = tpu.matmul %351, %353, %cst_152 {dimension_numbers = #tpu.dot_dimension_numbers<[1], [0], [0], [1], [0, 0, 1, 1], [], []>} : vector<16x32xf32>, vector<32x96xf32>, vector<16x96xf32> -> vector<16x96xf32>
    %c2_153 = arith.constant 2 : index
    %c0_154 = arith.constant 0 : index
    %c0_155 = arith.constant 0 : index
    %355 = vector.load %arg3[%c2_153, %c0_154, %c0_155] : memref<4x1x96xf32, #tpu.memory_space<vmem>>, vector<1x1x96xf32>
    %356 = vector.shape_cast %355 : vector<1x1x96xf32> to vector<1x96xf32>
    %357 = vector.broadcast %356 : vector<1x96xf32> to vector<16x96xf32>
    %358 = arith.addf %354, %357 : vector<16x96xf32>
    %359 = vector.shape_cast %358 : vector<16x96xf32> to vector<2x8x96xf32>
    %360 = vector.extract_strided_slice %359 {offsets = [0, 0, 0], sizes = [2, 8, 8], strides = [1, 1, 1]} : vector<2x8x96xf32> to vector<2x8x8xf32>
    %361 = vector.extract_strided_slice %359 {offsets = [0, 0, 32], sizes = [2, 8, 8], strides = [1, 1, 1]} : vector<2x8x96xf32> to vector<2x8x8xf32>
    %362 = vector.extract_strided_slice %359 {offsets = [0, 0, 64], sizes = [2, 8, 8], strides = [1, 1, 1]} : vector<2x8x96xf32> to vector<2x8x8xf32>
    "tpu.trace_start"() <{level = 10 : i32, message = "bqd,bkd->bqk"}> : () -> ()
    %cst_156 = arith.constant dense<0.000000e+00> : vector<2x8x8xf32>
    %363 = tpu.matmul %360, %361, %cst_156 {dimension_numbers = #tpu.dot_dimension_numbers<[2], [2], [1], [1], [0, 0, 0, 1, 1, 1], [0], [0]>} : vector<2x8x8xf32>, vector<2x8x8xf32>, vector<2x8x8xf32> -> vector<2x8x8xf32>
    "tpu.trace_stop"() : () -> ()
    %cst_157 = arith.constant 0.353553385 : f32
    %364 = vector.broadcast %cst_157 : f32 to vector<2x8x8xf32>
    %365 = arith.mulf %363, %364 : vector<2x8x8xf32>
    %366 = vector.broadcast %1 : vector<2x1x8xf32> to vector<2x8x8xf32>
    %367 = arith.addf %365, %366 : vector<2x8x8xf32>
    %cst_158 = arith.constant dense<0xFF800000> : vector<2x8xf32>
    %368 = vector.multi_reduction <maximumf>, %367, %cst_158 [2] : vector<2x8x8xf32> to vector<2x8xf32>
    %369 = vector.shape_cast %368 : vector<2x8xf32> to vector<2x8x1xf32>
    %370 = vector.broadcast %369 : vector<2x8x1xf32> to vector<2x8x8xf32>
    %371 = arith.subf %367, %370 : vector<2x8x8xf32>
    %372 = math.exp %371 : vector<2x8x8xf32>
    %cst_159 = arith.constant dense<0.000000e+00> : vector<2x8xf32>
    %373 = vector.multi_reduction <add>, %372, %cst_159 [2] : vector<2x8x8xf32> to vector<2x8xf32>
    %374 = vector.shape_cast %373 : vector<2x8xf32> to vector<2x8x1xf32>
    %375 = tpu.reciprocal %374 {approx = true} : vector<2x8x1xf32> -> vector<2x8x1xf32>
    %376 = vector.broadcast %375 : vector<2x8x1xf32> to vector<2x8x8xf32>
    %377 = arith.mulf %372, %376 : vector<2x8x8xf32>
    "tpu.trace_start"() <{level = 10 : i32, message = "bqk,bkd->bqd"}> : () -> ()
    %cst_160 = arith.constant dense<0.000000e+00> : vector<2x8x8xf32>
    %378 = tpu.matmul %377, %362, %cst_160 {dimension_numbers = #tpu.dot_dimension_numbers<[2], [1], [1], [2], [0, 0, 0, 1, 1, 2], [0], [0]>} : vector<2x8x8xf32>, vector<2x8x8xf32>, vector<2x8x8xf32> -> vector<2x8x8xf32>
    "tpu.trace_stop"() : () -> ()
    %379 = vector.extract_strided_slice %359 {offsets = [0, 0, 8], sizes = [2, 8, 8], strides = [1, 1, 1]} : vector<2x8x96xf32> to vector<2x8x8xf32>
    %380 = vector.extract_strided_slice %359 {offsets = [0, 0, 40], sizes = [2, 8, 8], strides = [1, 1, 1]} : vector<2x8x96xf32> to vector<2x8x8xf32>
    %381 = vector.extract_strided_slice %359 {offsets = [0, 0, 72], sizes = [2, 8, 8], strides = [1, 1, 1]} : vector<2x8x96xf32> to vector<2x8x8xf32>
    "tpu.trace_start"() <{level = 10 : i32, message = "bqd,bkd->bqk"}> : () -> ()
    %cst_161 = arith.constant dense<0.000000e+00> : vector<2x8x8xf32>
    %382 = tpu.matmul %379, %380, %cst_161 {dimension_numbers = #tpu.dot_dimension_numbers<[2], [2], [1], [1], [0, 0, 0, 1, 1, 1], [0], [0]>} : vector<2x8x8xf32>, vector<2x8x8xf32>, vector<2x8x8xf32> -> vector<2x8x8xf32>
    "tpu.trace_stop"() : () -> ()
    %cst_162 = arith.constant 0.353553385 : f32
    %383 = vector.broadcast %cst_162 : f32 to vector<2x8x8xf32>
    %384 = arith.mulf %382, %383 : vector<2x8x8xf32>
    %385 = vector.broadcast %1 : vector<2x1x8xf32> to vector<2x8x8xf32>
    %386 = arith.addf %384, %385 : vector<2x8x8xf32>
    %cst_163 = arith.constant dense<0xFF800000> : vector<2x8xf32>
    %387 = vector.multi_reduction <maximumf>, %386, %cst_163 [2] : vector<2x8x8xf32> to vector<2x8xf32>
    %388 = vector.shape_cast %387 : vector<2x8xf32> to vector<2x8x1xf32>
    %389 = vector.broadcast %388 : vector<2x8x1xf32> to vector<2x8x8xf32>
    %390 = arith.subf %386, %389 : vector<2x8x8xf32>
    %391 = math.exp %390 : vector<2x8x8xf32>
    %cst_164 = arith.constant dense<0.000000e+00> : vector<2x8xf32>
    %392 = vector.multi_reduction <add>, %391, %cst_164 [2] : vector<2x8x8xf32> to vector<2x8xf32>
    %393 = vector.shape_cast %392 : vector<2x8xf32> to vector<2x8x1xf32>
    %394 = tpu.reciprocal %393 {approx = true} : vector<2x8x1xf32> -> vector<2x8x1xf32>
    %395 = vector.broadcast %394 : vector<2x8x1xf32> to vector<2x8x8xf32>
    %396 = arith.mulf %391, %395 : vector<2x8x8xf32>
    "tpu.trace_start"() <{level = 10 : i32, message = "bqk,bkd->bqd"}> : () -> ()
    %cst_165 = arith.constant dense<0.000000e+00> : vector<2x8x8xf32>
    %397 = tpu.matmul %396, %381, %cst_165 {dimension_numbers = #tpu.dot_dimension_numbers<[2], [1], [1], [2], [0, 0, 0, 1, 1, 2], [0], [0]>} : vector<2x8x8xf32>, vector<2x8x8xf32>, vector<2x8x8xf32> -> vector<2x8x8xf32>
    "tpu.trace_stop"() : () -> ()
    %398 = vector.extract_strided_slice %359 {offsets = [0, 0, 16], sizes = [2, 8, 8], strides = [1, 1, 1]} : vector<2x8x96xf32> to vector<2x8x8xf32>
    %399 = vector.extract_strided_slice %359 {offsets = [0, 0, 48], sizes = [2, 8, 8], strides = [1, 1, 1]} : vector<2x8x96xf32> to vector<2x8x8xf32>
    %400 = vector.extract_strided_slice %359 {offsets = [0, 0, 80], sizes = [2, 8, 8], strides = [1, 1, 1]} : vector<2x8x96xf32> to vector<2x8x8xf32>
    "tpu.trace_start"() <{level = 10 : i32, message = "bqd,bkd->bqk"}> : () -> ()
    %cst_166 = arith.constant dense<0.000000e+00> : vector<2x8x8xf32>
    %401 = tpu.matmul %398, %399, %cst_166 {dimension_numbers = #tpu.dot_dimension_numbers<[2], [2], [1], [1], [0, 0, 0, 1, 1, 1], [0], [0]>} : vector<2x8x8xf32>, vector<2x8x8xf32>, vector<2x8x8xf32> -> vector<2x8x8xf32>
    "tpu.trace_stop"() : () -> ()
    %cst_167 = arith.constant 0.353553385 : f32
    %402 = vector.broadcast %cst_167 : f32 to vector<2x8x8xf32>
    %403 = arith.mulf %401, %402 : vector<2x8x8xf32>
    %404 = vector.broadcast %1 : vector<2x1x8xf32> to vector<2x8x8xf32>
    %405 = arith.addf %403, %404 : vector<2x8x8xf32>
    %cst_168 = arith.constant dense<0xFF800000> : vector<2x8xf32>
    %406 = vector.multi_reduction <maximumf>, %405, %cst_168 [2] : vector<2x8x8xf32> to vector<2x8xf32>
    %407 = vector.shape_cast %406 : vector<2x8xf32> to vector<2x8x1xf32>
    %408 = vector.broadcast %407 : vector<2x8x1xf32> to vector<2x8x8xf32>
    %409 = arith.subf %405, %408 : vector<2x8x8xf32>
    %410 = math.exp %409 : vector<2x8x8xf32>
    %cst_169 = arith.constant dense<0.000000e+00> : vector<2x8xf32>
    %411 = vector.multi_reduction <add>, %410, %cst_169 [2] : vector<2x8x8xf32> to vector<2x8xf32>
    %412 = vector.shape_cast %411 : vector<2x8xf32> to vector<2x8x1xf32>
    %413 = tpu.reciprocal %412 {approx = true} : vector<2x8x1xf32> -> vector<2x8x1xf32>
    %414 = vector.broadcast %413 : vector<2x8x1xf32> to vector<2x8x8xf32>
    %415 = arith.mulf %410, %414 : vector<2x8x8xf32>
    "tpu.trace_start"() <{level = 10 : i32, message = "bqk,bkd->bqd"}> : () -> ()
    %cst_170 = arith.constant dense<0.000000e+00> : vector<2x8x8xf32>
    %416 = tpu.matmul %415, %400, %cst_170 {dimension_numbers = #tpu.dot_dimension_numbers<[2], [1], [1], [2], [0, 0, 0, 1, 1, 2], [0], [0]>} : vector<2x8x8xf32>, vector<2x8x8xf32>, vector<2x8x8xf32> -> vector<2x8x8xf32>
    "tpu.trace_stop"() : () -> ()
    %417 = vector.extract_strided_slice %359 {offsets = [0, 0, 24], sizes = [2, 8, 8], strides = [1, 1, 1]} : vector<2x8x96xf32> to vector<2x8x8xf32>
    %418 = vector.extract_strided_slice %359 {offsets = [0, 0, 56], sizes = [2, 8, 8], strides = [1, 1, 1]} : vector<2x8x96xf32> to vector<2x8x8xf32>
    %419 = vector.extract_strided_slice %359 {offsets = [0, 0, 88], sizes = [2, 8, 8], strides = [1, 1, 1]} : vector<2x8x96xf32> to vector<2x8x8xf32>
    "tpu.trace_start"() <{level = 10 : i32, message = "bqd,bkd->bqk"}> : () -> ()
    %cst_171 = arith.constant dense<0.000000e+00> : vector<2x8x8xf32>
    %420 = tpu.matmul %417, %418, %cst_171 {dimension_numbers = #tpu.dot_dimension_numbers<[2], [2], [1], [1], [0, 0, 0, 1, 1, 1], [0], [0]>} : vector<2x8x8xf32>, vector<2x8x8xf32>, vector<2x8x8xf32> -> vector<2x8x8xf32>
    "tpu.trace_stop"() : () -> ()
    %cst_172 = arith.constant 0.353553385 : f32
    %421 = vector.broadcast %cst_172 : f32 to vector<2x8x8xf32>
    %422 = arith.mulf %420, %421 : vector<2x8x8xf32>
    %423 = vector.broadcast %1 : vector<2x1x8xf32> to vector<2x8x8xf32>
    %424 = arith.addf %422, %423 : vector<2x8x8xf32>
    %cst_173 = arith.constant dense<0xFF800000> : vector<2x8xf32>
    %425 = vector.multi_reduction <maximumf>, %424, %cst_173 [2] : vector<2x8x8xf32> to vector<2x8xf32>
    %426 = vector.shape_cast %425 : vector<2x8xf32> to vector<2x8x1xf32>
    %427 = vector.broadcast %426 : vector<2x8x1xf32> to vector<2x8x8xf32>
    %428 = arith.subf %424, %427 : vector<2x8x8xf32>
    %429 = math.exp %428 : vector<2x8x8xf32>
    %cst_174 = arith.constant dense<0.000000e+00> : vector<2x8xf32>
    %430 = vector.multi_reduction <add>, %429, %cst_174 [2] : vector<2x8x8xf32> to vector<2x8xf32>
    %431 = vector.shape_cast %430 : vector<2x8xf32> to vector<2x8x1xf32>
    %432 = tpu.reciprocal %431 {approx = true} : vector<2x8x1xf32> -> vector<2x8x1xf32>
    %433 = vector.broadcast %432 : vector<2x8x1xf32> to vector<2x8x8xf32>
    %434 = arith.mulf %429, %433 : vector<2x8x8xf32>
    "tpu.trace_start"() <{level = 10 : i32, message = "bqk,bkd->bqd"}> : () -> ()
    %cst_175 = arith.constant dense<0.000000e+00> : vector<2x8x8xf32>
    %435 = tpu.matmul %434, %419, %cst_175 {dimension_numbers = #tpu.dot_dimension_numbers<[2], [1], [1], [2], [0, 0, 0, 1, 1, 2], [0], [0]>} : vector<2x8x8xf32>, vector<2x8x8xf32>, vector<2x8x8xf32> -> vector<2x8x8xf32>
    "tpu.trace_stop"() : () -> ()
    %436 = tpu.concatenate %378, %397, %416, %435 in 2 : vector<2x8x8xf32>, vector<2x8x8xf32>, vector<2x8x8xf32>, vector<2x8x8xf32> -> vector<2x8x32xf32>
    %437 = vector.shape_cast %436 : vector<2x8x32xf32> to vector<16x32xf32>
    %c2_176 = arith.constant 2 : index
    %c0_177 = arith.constant 0 : index
    %c0_178 = arith.constant 0 : index
    %438 = vector.load %arg4[%c2_176, %c0_177, %c0_178] : memref<4x32x32xf32, #tpu.memory_space<vmem>>, vector<1x32x32xf32>
    %439 = vector.shape_cast %438 : vector<1x32x32xf32> to vector<32x32xf32>
    %cst_179 = arith.constant dense<0.000000e+00> : vector<16x32xf32>
    %440 = tpu.matmul %437, %439, %cst_179 {dimension_numbers = #tpu.dot_dimension_numbers<[1], [0], [0], [1], [0, 0, 1, 1], [], []>} : vector<16x32xf32>, vector<32x32xf32>, vector<16x32xf32> -> vector<16x32xf32>
    %c2_180 = arith.constant 2 : index
    %c0_181 = arith.constant 0 : index
    %c0_182 = arith.constant 0 : index
    %441 = vector.load %arg5[%c2_180, %c0_181, %c0_182] : memref<4x1x32xf32, #tpu.memory_space<vmem>>, vector<1x1x32xf32>
    %442 = vector.shape_cast %441 : vector<1x1x32xf32> to vector<1x32xf32>
    %443 = vector.broadcast %442 : vector<1x32xf32> to vector<16x32xf32>
    %444 = arith.addf %440, %443 : vector<16x32xf32>
    %445 = arith.addf %351, %444 : vector<16x32xf32>
    %c2_183 = arith.constant 2 : index
    %c0_184 = arith.constant 0 : index
    %c0_185 = arith.constant 0 : index
    %446 = vector.load %arg6[%c2_183, %c0_184, %c0_185] : memref<4x1x32xf32, #tpu.memory_space<vmem>>, vector<1x1x32xf32>
    %447 = vector.shape_cast %446 : vector<1x1x32xf32> to vector<1x32xf32>
    %c2_186 = arith.constant 2 : index
    %c0_187 = arith.constant 0 : index
    %c0_188 = arith.constant 0 : index
    %448 = vector.load %arg7[%c2_186, %c0_187, %c0_188] : memref<4x1x32xf32, #tpu.memory_space<vmem>>, vector<1x1x32xf32>
    %449 = vector.shape_cast %448 : vector<1x1x32xf32> to vector<1x32xf32>
    %cst_189 = arith.constant dense<0.000000e+00> : vector<16xf32>
    %450 = vector.multi_reduction <add>, %445, %cst_189 [1] : vector<16x32xf32> to vector<16xf32>
    %451 = vector.shape_cast %450 : vector<16xf32> to vector<16x1xf32>
    %cst_190 = arith.constant 3.200000e+01 : f32
    %452 = vector.broadcast %cst_190 : f32 to vector<16x1xf32>
    %453 = arith.divf %451, %452 : vector<16x1xf32>
    %454 = vector.broadcast %453 : vector<16x1xf32> to vector<16x32xf32>
    %455 = arith.subf %445, %454 : vector<16x32xf32>
    %456 = arith.mulf %455, %455 : vector<16x32xf32>
    %cst_191 = arith.constant dense<0.000000e+00> : vector<16xf32>
    %457 = vector.multi_reduction <add>, %456, %cst_191 [1] : vector<16x32xf32> to vector<16xf32>
    %458 = vector.shape_cast %457 : vector<16xf32> to vector<16x1xf32>
    %cst_192 = arith.constant 3.200000e+01 : f32
    %459 = vector.broadcast %cst_192 : f32 to vector<16x1xf32>
    %460 = arith.divf %458, %459 : vector<16x1xf32>
    %461 = vector.broadcast %453 : vector<16x1xf32> to vector<16x32xf32>
    %462 = arith.subf %445, %461 : vector<16x32xf32>
    %cst_193 = arith.constant 9.99999974E-6 : f32
    %463 = vector.broadcast %cst_193 : f32 to vector<16x1xf32>
    %464 = arith.addf %460, %463 : vector<16x1xf32>
    %465 = math.rsqrt %464 : vector<16x1xf32>
    %466 = vector.broadcast %465 : vector<16x1xf32> to vector<16x32xf32>
    %467 = arith.mulf %462, %466 : vector<16x32xf32>
    %468 = vector.broadcast %447 : vector<1x32xf32> to vector<16x32xf32>
    %469 = arith.mulf %467, %468 : vector<16x32xf32>
    %470 = vector.broadcast %449 : vector<1x32xf32> to vector<16x32xf32>
    %471 = arith.addf %469, %470 : vector<16x32xf32>
    %c2_194 = arith.constant 2 : index
    %c0_195 = arith.constant 0 : index
    %c0_196 = arith.constant 0 : index
    %472 = vector.load %arg8[%c2_194, %c0_195, %c0_196] : memref<4x32x64xf32, #tpu.memory_space<vmem>>, vector<1x32x64xf32>
    %473 = vector.shape_cast %472 : vector<1x32x64xf32> to vector<32x64xf32>
    %cst_197 = arith.constant dense<0.000000e+00> : vector<16x64xf32>
    %474 = tpu.matmul %471, %473, %cst_197 {dimension_numbers = #tpu.dot_dimension_numbers<[1], [0], [0], [1], [0, 0, 1, 1], [], []>} : vector<16x32xf32>, vector<32x64xf32>, vector<16x64xf32> -> vector<16x64xf32>
    %c2_198 = arith.constant 2 : index
    %c0_199 = arith.constant 0 : index
    %c0_200 = arith.constant 0 : index
    %475 = vector.load %arg9[%c2_198, %c0_199, %c0_200] : memref<4x1x64xf32, #tpu.memory_space<vmem>>, vector<1x1x64xf32>
    %476 = vector.shape_cast %475 : vector<1x1x64xf32> to vector<1x64xf32>
    %477 = vector.broadcast %476 : vector<1x64xf32> to vector<16x64xf32>
    %478 = arith.addf %474, %477 : vector<16x64xf32>
    %cst_201 = arith.constant 5.000000e-01 : f32
    %479 = vector.broadcast %cst_201 : f32 to vector<16x64xf32>
    %480 = arith.mulf %479, %478 : vector<16x64xf32>
    %cst_202 = arith.constant 4.471500e-02 : f32
    %481 = vector.broadcast %cst_202 : f32 to vector<16x64xf32>
    %482 = arith.mulf %481, %478 : vector<16x64xf32>
    %483 = arith.mulf %482, %478 : vector<16x64xf32>
    %484 = arith.mulf %483, %478 : vector<16x64xf32>
    %485 = arith.addf %478, %484 : vector<16x64xf32>
    %cst_203 = arith.constant 0.797884583 : f32
    %486 = vector.broadcast %cst_203 : f32 to vector<16x64xf32>
    %487 = arith.mulf %486, %485 : vector<16x64xf32>
    %488 = math.tanh %487 : vector<16x64xf32>
    %cst_204 = arith.constant 1.000000e+00 : f32
    %489 = vector.broadcast %cst_204 : f32 to vector<16x64xf32>
    %490 = arith.addf %489, %488 : vector<16x64xf32>
    %491 = arith.mulf %480, %490 : vector<16x64xf32>
    %c2_205 = arith.constant 2 : index
    %c0_206 = arith.constant 0 : index
    %c0_207 = arith.constant 0 : index
    %492 = vector.load %arg10[%c2_205, %c0_206, %c0_207] : memref<4x64x32xf32, #tpu.memory_space<vmem>>, vector<1x64x32xf32>
    %493 = vector.shape_cast %492 : vector<1x64x32xf32> to vector<64x32xf32>
    %cst_208 = arith.constant dense<0.000000e+00> : vector<16x32xf32>
    %494 = tpu.matmul %491, %493, %cst_208 {dimension_numbers = #tpu.dot_dimension_numbers<[1], [0], [0], [1], [0, 0, 1, 1], [], []>} : vector<16x64xf32>, vector<64x32xf32>, vector<16x32xf32> -> vector<16x32xf32>
    %c2_209 = arith.constant 2 : index
    %c0_210 = arith.constant 0 : index
    %c0_211 = arith.constant 0 : index
    %495 = vector.load %arg11[%c2_209, %c0_210, %c0_211] : memref<4x1x32xf32, #tpu.memory_space<vmem>>, vector<1x1x32xf32>
    %496 = vector.shape_cast %495 : vector<1x1x32xf32> to vector<1x32xf32>
    %497 = vector.broadcast %496 : vector<1x32xf32> to vector<16x32xf32>
    %498 = arith.addf %494, %497 : vector<16x32xf32>
    %499 = arith.addf %471, %498 : vector<16x32xf32>
    %c2_212 = arith.constant 2 : index
    %c0_213 = arith.constant 0 : index
    %c0_214 = arith.constant 0 : index
    %500 = vector.load %arg12[%c2_212, %c0_213, %c0_214] : memref<4x1x32xf32, #tpu.memory_space<vmem>>, vector<1x1x32xf32>
    %501 = vector.shape_cast %500 : vector<1x1x32xf32> to vector<1x32xf32>
    %c2_215 = arith.constant 2 : index
    %c0_216 = arith.constant 0 : index
    %c0_217 = arith.constant 0 : index
    %502 = vector.load %arg13[%c2_215, %c0_216, %c0_217] : memref<4x1x32xf32, #tpu.memory_space<vmem>>, vector<1x1x32xf32>
    %503 = vector.shape_cast %502 : vector<1x1x32xf32> to vector<1x32xf32>
    %cst_218 = arith.constant dense<0.000000e+00> : vector<16xf32>
    %504 = vector.multi_reduction <add>, %499, %cst_218 [1] : vector<16x32xf32> to vector<16xf32>
    %505 = vector.shape_cast %504 : vector<16xf32> to vector<16x1xf32>
    %cst_219 = arith.constant 3.200000e+01 : f32
    %506 = vector.broadcast %cst_219 : f32 to vector<16x1xf32>
    %507 = arith.divf %505, %506 : vector<16x1xf32>
    %508 = vector.broadcast %507 : vector<16x1xf32> to vector<16x32xf32>
    %509 = arith.subf %499, %508 : vector<16x32xf32>
    %510 = arith.mulf %509, %509 : vector<16x32xf32>
    %cst_220 = arith.constant dense<0.000000e+00> : vector<16xf32>
    %511 = vector.multi_reduction <add>, %510, %cst_220 [1] : vector<16x32xf32> to vector<16xf32>
    %512 = vector.shape_cast %511 : vector<16xf32> to vector<16x1xf32>
    %cst_221 = arith.constant 3.200000e+01 : f32
    %513 = vector.broadcast %cst_221 : f32 to vector<16x1xf32>
    %514 = arith.divf %512, %513 : vector<16x1xf32>
    %515 = vector.broadcast %507 : vector<16x1xf32> to vector<16x32xf32>
    %516 = arith.subf %499, %515 : vector<16x32xf32>
    %cst_222 = arith.constant 9.99999974E-6 : f32
    %517 = vector.broadcast %cst_222 : f32 to vector<16x1xf32>
    %518 = arith.addf %514, %517 : vector<16x1xf32>
    %519 = math.rsqrt %518 : vector<16x1xf32>
    %520 = vector.broadcast %519 : vector<16x1xf32> to vector<16x32xf32>
    %521 = arith.mulf %516, %520 : vector<16x32xf32>
    %522 = vector.broadcast %501 : vector<1x32xf32> to vector<16x32xf32>
    %523 = arith.mulf %521, %522 : vector<16x32xf32>
    %524 = vector.broadcast %503 : vector<1x32xf32> to vector<16x32xf32>
    %525 = arith.addf %523, %524 : vector<16x32xf32>
    %c3 = arith.constant 3 : index
    %c0_223 = arith.constant 0 : index
    %c0_224 = arith.constant 0 : index
    %526 = vector.load %arg2[%c3, %c0_223, %c0_224] : memref<4x32x96xf32, #tpu.memory_space<vmem>>, vector<1x32x96xf32>
    %527 = vector.shape_cast %526 : vector<1x32x96xf32> to vector<32x96xf32>
    %cst_225 = arith.constant dense<0.000000e+00> : vector<16x96xf32>
    %528 = tpu.matmul %525, %527, %cst_225 {dimension_numbers = #tpu.dot_dimension_numbers<[1], [0], [0], [1], [0, 0, 1, 1], [], []>} : vector<16x32xf32>, vector<32x96xf32>, vector<16x96xf32> -> vector<16x96xf32>
    %c3_226 = arith.constant 3 : index
    %c0_227 = arith.constant 0 : index
    %c0_228 = arith.constant 0 : index
    %529 = vector.load %arg3[%c3_226, %c0_227, %c0_228] : memref<4x1x96xf32, #tpu.memory_space<vmem>>, vector<1x1x96xf32>
    %530 = vector.shape_cast %529 : vector<1x1x96xf32> to vector<1x96xf32>
    %531 = vector.broadcast %530 : vector<1x96xf32> to vector<16x96xf32>
    %532 = arith.addf %528, %531 : vector<16x96xf32>
    %533 = vector.shape_cast %532 : vector<16x96xf32> to vector<2x8x96xf32>
    %534 = vector.extract_strided_slice %533 {offsets = [0, 0, 0], sizes = [2, 8, 8], strides = [1, 1, 1]} : vector<2x8x96xf32> to vector<2x8x8xf32>
    %535 = vector.extract_strided_slice %533 {offsets = [0, 0, 32], sizes = [2, 8, 8], strides = [1, 1, 1]} : vector<2x8x96xf32> to vector<2x8x8xf32>
    %536 = vector.extract_strided_slice %533 {offsets = [0, 0, 64], sizes = [2, 8, 8], strides = [1, 1, 1]} : vector<2x8x96xf32> to vector<2x8x8xf32>
    "tpu.trace_start"() <{level = 10 : i32, message = "bqd,bkd->bqk"}> : () -> ()
    %cst_229 = arith.constant dense<0.000000e+00> : vector<2x8x8xf32>
    %537 = tpu.matmul %534, %535, %cst_229 {dimension_numbers = #tpu.dot_dimension_numbers<[2], [2], [1], [1], [0, 0, 0, 1, 1, 1], [0], [0]>} : vector<2x8x8xf32>, vector<2x8x8xf32>, vector<2x8x8xf32> -> vector<2x8x8xf32>
    "tpu.trace_stop"() : () -> ()
    %cst_230 = arith.constant 0.353553385 : f32
    %538 = vector.broadcast %cst_230 : f32 to vector<2x8x8xf32>
    %539 = arith.mulf %537, %538 : vector<2x8x8xf32>
    %540 = vector.broadcast %1 : vector<2x1x8xf32> to vector<2x8x8xf32>
    %541 = arith.addf %539, %540 : vector<2x8x8xf32>
    %cst_231 = arith.constant dense<0xFF800000> : vector<2x8xf32>
    %542 = vector.multi_reduction <maximumf>, %541, %cst_231 [2] : vector<2x8x8xf32> to vector<2x8xf32>
    %543 = vector.shape_cast %542 : vector<2x8xf32> to vector<2x8x1xf32>
    %544 = vector.broadcast %543 : vector<2x8x1xf32> to vector<2x8x8xf32>
    %545 = arith.subf %541, %544 : vector<2x8x8xf32>
    %546 = math.exp %545 : vector<2x8x8xf32>
    %cst_232 = arith.constant dense<0.000000e+00> : vector<2x8xf32>
    %547 = vector.multi_reduction <add>, %546, %cst_232 [2] : vector<2x8x8xf32> to vector<2x8xf32>
    %548 = vector.shape_cast %547 : vector<2x8xf32> to vector<2x8x1xf32>
    %549 = tpu.reciprocal %548 {approx = true} : vector<2x8x1xf32> -> vector<2x8x1xf32>
    %550 = vector.broadcast %549 : vector<2x8x1xf32> to vector<2x8x8xf32>
    %551 = arith.mulf %546, %550 : vector<2x8x8xf32>
    "tpu.trace_start"() <{level = 10 : i32, message = "bqk,bkd->bqd"}> : () -> ()
    %cst_233 = arith.constant dense<0.000000e+00> : vector<2x8x8xf32>
    %552 = tpu.matmul %551, %536, %cst_233 {dimension_numbers = #tpu.dot_dimension_numbers<[2], [1], [1], [2], [0, 0, 0, 1, 1, 2], [0], [0]>} : vector<2x8x8xf32>, vector<2x8x8xf32>, vector<2x8x8xf32> -> vector<2x8x8xf32>
    "tpu.trace_stop"() : () -> ()
    %553 = vector.extract_strided_slice %533 {offsets = [0, 0, 8], sizes = [2, 8, 8], strides = [1, 1, 1]} : vector<2x8x96xf32> to vector<2x8x8xf32>
    %554 = vector.extract_strided_slice %533 {offsets = [0, 0, 40], sizes = [2, 8, 8], strides = [1, 1, 1]} : vector<2x8x96xf32> to vector<2x8x8xf32>
    %555 = vector.extract_strided_slice %533 {offsets = [0, 0, 72], sizes = [2, 8, 8], strides = [1, 1, 1]} : vector<2x8x96xf32> to vector<2x8x8xf32>
    "tpu.trace_start"() <{level = 10 : i32, message = "bqd,bkd->bqk"}> : () -> ()
    %cst_234 = arith.constant dense<0.000000e+00> : vector<2x8x8xf32>
    %556 = tpu.matmul %553, %554, %cst_234 {dimension_numbers = #tpu.dot_dimension_numbers<[2], [2], [1], [1], [0, 0, 0, 1, 1, 1], [0], [0]>} : vector<2x8x8xf32>, vector<2x8x8xf32>, vector<2x8x8xf32> -> vector<2x8x8xf32>
    "tpu.trace_stop"() : () -> ()
    %cst_235 = arith.constant 0.353553385 : f32
    %557 = vector.broadcast %cst_235 : f32 to vector<2x8x8xf32>
    %558 = arith.mulf %556, %557 : vector<2x8x8xf32>
    %559 = vector.broadcast %1 : vector<2x1x8xf32> to vector<2x8x8xf32>
    %560 = arith.addf %558, %559 : vector<2x8x8xf32>
    %cst_236 = arith.constant dense<0xFF800000> : vector<2x8xf32>
    %561 = vector.multi_reduction <maximumf>, %560, %cst_236 [2] : vector<2x8x8xf32> to vector<2x8xf32>
    %562 = vector.shape_cast %561 : vector<2x8xf32> to vector<2x8x1xf32>
    %563 = vector.broadcast %562 : vector<2x8x1xf32> to vector<2x8x8xf32>
    %564 = arith.subf %560, %563 : vector<2x8x8xf32>
    %565 = math.exp %564 : vector<2x8x8xf32>
    %cst_237 = arith.constant dense<0.000000e+00> : vector<2x8xf32>
    %566 = vector.multi_reduction <add>, %565, %cst_237 [2] : vector<2x8x8xf32> to vector<2x8xf32>
    %567 = vector.shape_cast %566 : vector<2x8xf32> to vector<2x8x1xf32>
    %568 = tpu.reciprocal %567 {approx = true} : vector<2x8x1xf32> -> vector<2x8x1xf32>
    %569 = vector.broadcast %568 : vector<2x8x1xf32> to vector<2x8x8xf32>
    %570 = arith.mulf %565, %569 : vector<2x8x8xf32>
    "tpu.trace_start"() <{level = 10 : i32, message = "bqk,bkd->bqd"}> : () -> ()
    %cst_238 = arith.constant dense<0.000000e+00> : vector<2x8x8xf32>
    %571 = tpu.matmul %570, %555, %cst_238 {dimension_numbers = #tpu.dot_dimension_numbers<[2], [1], [1], [2], [0, 0, 0, 1, 1, 2], [0], [0]>} : vector<2x8x8xf32>, vector<2x8x8xf32>, vector<2x8x8xf32> -> vector<2x8x8xf32>
    "tpu.trace_stop"() : () -> ()
    %572 = vector.extract_strided_slice %533 {offsets = [0, 0, 16], sizes = [2, 8, 8], strides = [1, 1, 1]} : vector<2x8x96xf32> to vector<2x8x8xf32>
    %573 = vector.extract_strided_slice %533 {offsets = [0, 0, 48], sizes = [2, 8, 8], strides = [1, 1, 1]} : vector<2x8x96xf32> to vector<2x8x8xf32>
    %574 = vector.extract_strided_slice %533 {offsets = [0, 0, 80], sizes = [2, 8, 8], strides = [1, 1, 1]} : vector<2x8x96xf32> to vector<2x8x8xf32>
    "tpu.trace_start"() <{level = 10 : i32, message = "bqd,bkd->bqk"}> : () -> ()
    %cst_239 = arith.constant dense<0.000000e+00> : vector<2x8x8xf32>
    %575 = tpu.matmul %572, %573, %cst_239 {dimension_numbers = #tpu.dot_dimension_numbers<[2], [2], [1], [1], [0, 0, 0, 1, 1, 1], [0], [0]>} : vector<2x8x8xf32>, vector<2x8x8xf32>, vector<2x8x8xf32> -> vector<2x8x8xf32>
    "tpu.trace_stop"() : () -> ()
    %cst_240 = arith.constant 0.353553385 : f32
    %576 = vector.broadcast %cst_240 : f32 to vector<2x8x8xf32>
    %577 = arith.mulf %575, %576 : vector<2x8x8xf32>
    %578 = vector.broadcast %1 : vector<2x1x8xf32> to vector<2x8x8xf32>
    %579 = arith.addf %577, %578 : vector<2x8x8xf32>
    %cst_241 = arith.constant dense<0xFF800000> : vector<2x8xf32>
    %580 = vector.multi_reduction <maximumf>, %579, %cst_241 [2] : vector<2x8x8xf32> to vector<2x8xf32>
    %581 = vector.shape_cast %580 : vector<2x8xf32> to vector<2x8x1xf32>
    %582 = vector.broadcast %581 : vector<2x8x1xf32> to vector<2x8x8xf32>
    %583 = arith.subf %579, %582 : vector<2x8x8xf32>
    %584 = math.exp %583 : vector<2x8x8xf32>
    %cst_242 = arith.constant dense<0.000000e+00> : vector<2x8xf32>
    %585 = vector.multi_reduction <add>, %584, %cst_242 [2] : vector<2x8x8xf32> to vector<2x8xf32>
    %586 = vector.shape_cast %585 : vector<2x8xf32> to vector<2x8x1xf32>
    %587 = tpu.reciprocal %586 {approx = true} : vector<2x8x1xf32> -> vector<2x8x1xf32>
    %588 = vector.broadcast %587 : vector<2x8x1xf32> to vector<2x8x8xf32>
    %589 = arith.mulf %584, %588 : vector<2x8x8xf32>
    "tpu.trace_start"() <{level = 10 : i32, message = "bqk,bkd->bqd"}> : () -> ()
    %cst_243 = arith.constant dense<0.000000e+00> : vector<2x8x8xf32>
    %590 = tpu.matmul %589, %574, %cst_243 {dimension_numbers = #tpu.dot_dimension_numbers<[2], [1], [1], [2], [0, 0, 0, 1, 1, 2], [0], [0]>} : vector<2x8x8xf32>, vector<2x8x8xf32>, vector<2x8x8xf32> -> vector<2x8x8xf32>
    "tpu.trace_stop"() : () -> ()
    %591 = vector.extract_strided_slice %533 {offsets = [0, 0, 24], sizes = [2, 8, 8], strides = [1, 1, 1]} : vector<2x8x96xf32> to vector<2x8x8xf32>
    %592 = vector.extract_strided_slice %533 {offsets = [0, 0, 56], sizes = [2, 8, 8], strides = [1, 1, 1]} : vector<2x8x96xf32> to vector<2x8x8xf32>
    %593 = vector.extract_strided_slice %533 {offsets = [0, 0, 88], sizes = [2, 8, 8], strides = [1, 1, 1]} : vector<2x8x96xf32> to vector<2x8x8xf32>
    "tpu.trace_start"() <{level = 10 : i32, message = "bqd,bkd->bqk"}> : () -> ()
    %cst_244 = arith.constant dense<0.000000e+00> : vector<2x8x8xf32>
    %594 = tpu.matmul %591, %592, %cst_244 {dimension_numbers = #tpu.dot_dimension_numbers<[2], [2], [1], [1], [0, 0, 0, 1, 1, 1], [0], [0]>} : vector<2x8x8xf32>, vector<2x8x8xf32>, vector<2x8x8xf32> -> vector<2x8x8xf32>
    "tpu.trace_stop"() : () -> ()
    %cst_245 = arith.constant 0.353553385 : f32
    %595 = vector.broadcast %cst_245 : f32 to vector<2x8x8xf32>
    %596 = arith.mulf %594, %595 : vector<2x8x8xf32>
    %597 = vector.broadcast %1 : vector<2x1x8xf32> to vector<2x8x8xf32>
    %598 = arith.addf %596, %597 : vector<2x8x8xf32>
    %cst_246 = arith.constant dense<0xFF800000> : vector<2x8xf32>
    %599 = vector.multi_reduction <maximumf>, %598, %cst_246 [2] : vector<2x8x8xf32> to vector<2x8xf32>
    %600 = vector.shape_cast %599 : vector<2x8xf32> to vector<2x8x1xf32>
    %601 = vector.broadcast %600 : vector<2x8x1xf32> to vector<2x8x8xf32>
    %602 = arith.subf %598, %601 : vector<2x8x8xf32>
    %603 = math.exp %602 : vector<2x8x8xf32>
    %cst_247 = arith.constant dense<0.000000e+00> : vector<2x8xf32>
    %604 = vector.multi_reduction <add>, %603, %cst_247 [2] : vector<2x8x8xf32> to vector<2x8xf32>
    %605 = vector.shape_cast %604 : vector<2x8xf32> to vector<2x8x1xf32>
    %606 = tpu.reciprocal %605 {approx = true} : vector<2x8x1xf32> -> vector<2x8x1xf32>
    %607 = vector.broadcast %606 : vector<2x8x1xf32> to vector<2x8x8xf32>
    %608 = arith.mulf %603, %607 : vector<2x8x8xf32>
    "tpu.trace_start"() <{level = 10 : i32, message = "bqk,bkd->bqd"}> : () -> ()
    %cst_248 = arith.constant dense<0.000000e+00> : vector<2x8x8xf32>
    %609 = tpu.matmul %608, %593, %cst_248 {dimension_numbers = #tpu.dot_dimension_numbers<[2], [1], [1], [2], [0, 0, 0, 1, 1, 2], [0], [0]>} : vector<2x8x8xf32>, vector<2x8x8xf32>, vector<2x8x8xf32> -> vector<2x8x8xf32>
    "tpu.trace_stop"() : () -> ()
    %610 = tpu.concatenate %552, %571, %590, %609 in 2 : vector<2x8x8xf32>, vector<2x8x8xf32>, vector<2x8x8xf32>, vector<2x8x8xf32> -> vector<2x8x32xf32>
    %611 = vector.shape_cast %610 : vector<2x8x32xf32> to vector<16x32xf32>
    %c3_249 = arith.constant 3 : index
    %c0_250 = arith.constant 0 : index
    %c0_251 = arith.constant 0 : index
    %612 = vector.load %arg4[%c3_249, %c0_250, %c0_251] : memref<4x32x32xf32, #tpu.memory_space<vmem>>, vector<1x32x32xf32>
    %613 = vector.shape_cast %612 : vector<1x32x32xf32> to vector<32x32xf32>
    %cst_252 = arith.constant dense<0.000000e+00> : vector<16x32xf32>
    %614 = tpu.matmul %611, %613, %cst_252 {dimension_numbers = #tpu.dot_dimension_numbers<[1], [0], [0], [1], [0, 0, 1, 1], [], []>} : vector<16x32xf32>, vector<32x32xf32>, vector<16x32xf32> -> vector<16x32xf32>
    %c3_253 = arith.constant 3 : index
    %c0_254 = arith.constant 0 : index
    %c0_255 = arith.constant 0 : index
    %615 = vector.load %arg5[%c3_253, %c0_254, %c0_255] : memref<4x1x32xf32, #tpu.memory_space<vmem>>, vector<1x1x32xf32>
    %616 = vector.shape_cast %615 : vector<1x1x32xf32> to vector<1x32xf32>
    %617 = vector.broadcast %616 : vector<1x32xf32> to vector<16x32xf32>
    %618 = arith.addf %614, %617 : vector<16x32xf32>
    %619 = arith.addf %525, %618 : vector<16x32xf32>
    %c3_256 = arith.constant 3 : index
    %c0_257 = arith.constant 0 : index
    %c0_258 = arith.constant 0 : index
    %620 = vector.load %arg6[%c3_256, %c0_257, %c0_258] : memref<4x1x32xf32, #tpu.memory_space<vmem>>, vector<1x1x32xf32>
    %621 = vector.shape_cast %620 : vector<1x1x32xf32> to vector<1x32xf32>
    %c3_259 = arith.constant 3 : index
    %c0_260 = arith.constant 0 : index
    %c0_261 = arith.constant 0 : index
    %622 = vector.load %arg7[%c3_259, %c0_260, %c0_261] : memref<4x1x32xf32, #tpu.memory_space<vmem>>, vector<1x1x32xf32>
    %623 = vector.shape_cast %622 : vector<1x1x32xf32> to vector<1x32xf32>
    %cst_262 = arith.constant dense<0.000000e+00> : vector<16xf32>
    %624 = vector.multi_reduction <add>, %619, %cst_262 [1] : vector<16x32xf32> to vector<16xf32>
    %625 = vector.shape_cast %624 : vector<16xf32> to vector<16x1xf32>
    %cst_263 = arith.constant 3.200000e+01 : f32
    %626 = vector.broadcast %cst_263 : f32 to vector<16x1xf32>
    %627 = arith.divf %625, %626 : vector<16x1xf32>
    %628 = vector.broadcast %627 : vector<16x1xf32> to vector<16x32xf32>
    %629 = arith.subf %619, %628 : vector<16x32xf32>
    %630 = arith.mulf %629, %629 : vector<16x32xf32>
    %cst_264 = arith.constant dense<0.000000e+00> : vector<16xf32>
    %631 = vector.multi_reduction <add>, %630, %cst_264 [1] : vector<16x32xf32> to vector<16xf32>
    %632 = vector.shape_cast %631 : vector<16xf32> to vector<16x1xf32>
    %cst_265 = arith.constant 3.200000e+01 : f32
    %633 = vector.broadcast %cst_265 : f32 to vector<16x1xf32>
    %634 = arith.divf %632, %633 : vector<16x1xf32>
    %635 = vector.broadcast %627 : vector<16x1xf32> to vector<16x32xf32>
    %636 = arith.subf %619, %635 : vector<16x32xf32>
    %cst_266 = arith.constant 9.99999974E-6 : f32
    %637 = vector.broadcast %cst_266 : f32 to vector<16x1xf32>
    %638 = arith.addf %634, %637 : vector<16x1xf32>
    %639 = math.rsqrt %638 : vector<16x1xf32>
    %640 = vector.broadcast %639 : vector<16x1xf32> to vector<16x32xf32>
    %641 = arith.mulf %636, %640 : vector<16x32xf32>
    %642 = vector.broadcast %621 : vector<1x32xf32> to vector<16x32xf32>
    %643 = arith.mulf %641, %642 : vector<16x32xf32>
    %644 = vector.broadcast %623 : vector<1x32xf32> to vector<16x32xf32>
    %645 = arith.addf %643, %644 : vector<16x32xf32>
    %c3_267 = arith.constant 3 : index
    %c0_268 = arith.constant 0 : index
    %c0_269 = arith.constant 0 : index
    %646 = vector.load %arg8[%c3_267, %c0_268, %c0_269] : memref<4x32x64xf32, #tpu.memory_space<vmem>>, vector<1x32x64xf32>
    %647 = vector.shape_cast %646 : vector<1x32x64xf32> to vector<32x64xf32>
    %cst_270 = arith.constant dense<0.000000e+00> : vector<16x64xf32>
    %648 = tpu.matmul %645, %647, %cst_270 {dimension_numbers = #tpu.dot_dimension_numbers<[1], [0], [0], [1], [0, 0, 1, 1], [], []>} : vector<16x32xf32>, vector<32x64xf32>, vector<16x64xf32> -> vector<16x64xf32>
    %c3_271 = arith.constant 3 : index
    %c0_272 = arith.constant 0 : index
    %c0_273 = arith.constant 0 : index
    %649 = vector.load %arg9[%c3_271, %c0_272, %c0_273] : memref<4x1x64xf32, #tpu.memory_space<vmem>>, vector<1x1x64xf32>
    %650 = vector.shape_cast %649 : vector<1x1x64xf32> to vector<1x64xf32>
    %651 = vector.broadcast %650 : vector<1x64xf32> to vector<16x64xf32>
    %652 = arith.addf %648, %651 : vector<16x64xf32>
    %cst_274 = arith.constant 5.000000e-01 : f32
    %653 = vector.broadcast %cst_274 : f32 to vector<16x64xf32>
    %654 = arith.mulf %653, %652 : vector<16x64xf32>
    %cst_275 = arith.constant 4.471500e-02 : f32
    %655 = vector.broadcast %cst_275 : f32 to vector<16x64xf32>
    %656 = arith.mulf %655, %652 : vector<16x64xf32>
    %657 = arith.mulf %656, %652 : vector<16x64xf32>
    %658 = arith.mulf %657, %652 : vector<16x64xf32>
    %659 = arith.addf %652, %658 : vector<16x64xf32>
    %cst_276 = arith.constant 0.797884583 : f32
    %660 = vector.broadcast %cst_276 : f32 to vector<16x64xf32>
    %661 = arith.mulf %660, %659 : vector<16x64xf32>
    %662 = math.tanh %661 : vector<16x64xf32>
    %cst_277 = arith.constant 1.000000e+00 : f32
    %663 = vector.broadcast %cst_277 : f32 to vector<16x64xf32>
    %664 = arith.addf %663, %662 : vector<16x64xf32>
    %665 = arith.mulf %654, %664 : vector<16x64xf32>
    %c3_278 = arith.constant 3 : index
    %c0_279 = arith.constant 0 : index
    %c0_280 = arith.constant 0 : index
    %666 = vector.load %arg10[%c3_278, %c0_279, %c0_280] : memref<4x64x32xf32, #tpu.memory_space<vmem>>, vector<1x64x32xf32>
    %667 = vector.shape_cast %666 : vector<1x64x32xf32> to vector<64x32xf32>
    %cst_281 = arith.constant dense<0.000000e+00> : vector<16x32xf32>
    %668 = tpu.matmul %665, %667, %cst_281 {dimension_numbers = #tpu.dot_dimension_numbers<[1], [0], [0], [1], [0, 0, 1, 1], [], []>} : vector<16x64xf32>, vector<64x32xf32>, vector<16x32xf32> -> vector<16x32xf32>
    %c3_282 = arith.constant 3 : index
    %c0_283 = arith.constant 0 : index
    %c0_284 = arith.constant 0 : index
    %669 = vector.load %arg11[%c3_282, %c0_283, %c0_284] : memref<4x1x32xf32, #tpu.memory_space<vmem>>, vector<1x1x32xf32>
    %670 = vector.shape_cast %669 : vector<1x1x32xf32> to vector<1x32xf32>
    %671 = vector.broadcast %670 : vector<1x32xf32> to vector<16x32xf32>
    %672 = arith.addf %668, %671 : vector<16x32xf32>
    %673 = arith.addf %645, %672 : vector<16x32xf32>
    %c3_285 = arith.constant 3 : index
    %c0_286 = arith.constant 0 : index
    %c0_287 = arith.constant 0 : index
    %674 = vector.load %arg12[%c3_285, %c0_286, %c0_287] : memref<4x1x32xf32, #tpu.memory_space<vmem>>, vector<1x1x32xf32>
    %675 = vector.shape_cast %674 : vector<1x1x32xf32> to vector<1x32xf32>
    %c3_288 = arith.constant 3 : index
    %c0_289 = arith.constant 0 : index
    %c0_290 = arith.constant 0 : index
    %676 = vector.load %arg13[%c3_288, %c0_289, %c0_290] : memref<4x1x32xf32, #tpu.memory_space<vmem>>, vector<1x1x32xf32>
    %677 = vector.shape_cast %676 : vector<1x1x32xf32> to vector<1x32xf32>
    %cst_291 = arith.constant dense<0.000000e+00> : vector<16xf32>
    %678 = vector.multi_reduction <add>, %673, %cst_291 [1] : vector<16x32xf32> to vector<16xf32>
    %679 = vector.shape_cast %678 : vector<16xf32> to vector<16x1xf32>
    %cst_292 = arith.constant 3.200000e+01 : f32
    %680 = vector.broadcast %cst_292 : f32 to vector<16x1xf32>
    %681 = arith.divf %679, %680 : vector<16x1xf32>
    %682 = vector.broadcast %681 : vector<16x1xf32> to vector<16x32xf32>
    %683 = arith.subf %673, %682 : vector<16x32xf32>
    %684 = arith.mulf %683, %683 : vector<16x32xf32>
    %cst_293 = arith.constant dense<0.000000e+00> : vector<16xf32>
    %685 = vector.multi_reduction <add>, %684, %cst_293 [1] : vector<16x32xf32> to vector<16xf32>
    %686 = vector.shape_cast %685 : vector<16xf32> to vector<16x1xf32>
    %cst_294 = arith.constant 3.200000e+01 : f32
    %687 = vector.broadcast %cst_294 : f32 to vector<16x1xf32>
    %688 = arith.divf %686, %687 : vector<16x1xf32>
    %689 = vector.broadcast %681 : vector<16x1xf32> to vector<16x32xf32>
    %690 = arith.subf %673, %689 : vector<16x32xf32>
    %cst_295 = arith.constant 9.99999974E-6 : f32
    %691 = vector.broadcast %cst_295 : f32 to vector<16x1xf32>
    %692 = arith.addf %688, %691 : vector<16x1xf32>
    %693 = math.rsqrt %692 : vector<16x1xf32>
    %694 = vector.broadcast %693 : vector<16x1xf32> to vector<16x32xf32>
    %695 = arith.mulf %690, %694 : vector<16x32xf32>
    %696 = vector.broadcast %675 : vector<1x32xf32> to vector<16x32xf32>
    %697 = arith.mulf %695, %696 : vector<16x32xf32>
    %698 = vector.broadcast %677 : vector<1x32xf32> to vector<16x32xf32>
    %699 = arith.addf %697, %698 : vector<16x32xf32>
    %700 = vector.shape_cast %699 : vector<16x32xf32> to vector<2x8x32xf32>
    %701 = vector.extract_strided_slice %700 {offsets = [0, 0, 0], sizes = [2, 1, 32], strides = [1, 1, 1]} : vector<2x8x32xf32> to vector<2x1x32xf32>
    %702 = vector.shape_cast %701 : vector<2x1x32xf32> to vector<2x32xf32>
    %703 = vector.shape_cast %525 : vector<16x32xf32> to vector<2x8x32xf32>
    %704 = vector.extract_strided_slice %703 {offsets = [0, 0, 0], sizes = [2, 1, 32], strides = [1, 1, 1]} : vector<2x8x32xf32> to vector<2x1x32xf32>
    %705 = vector.shape_cast %704 : vector<2x1x32xf32> to vector<2x32xf32>
    %706 = tpu.concatenate %702, %705 in 1 : vector<2x32xf32>, vector<2x32xf32> -> vector<2x64xf32>
    %c0_296 = arith.constant 0 : index
    %c0_297 = arith.constant 0 : index
    %707 = vector.load %arg14[%c0_296, %c0_297] : memref<64x1xf32, #tpu.memory_space<vmem>>, vector<64x1xf32>
    %cst_298 = arith.constant dense<0.000000e+00> : vector<2x1xf32>
    %708 = tpu.matmul %706, %707, %cst_298 {dimension_numbers = #tpu.dot_dimension_numbers<[1], [0], [0], [1], [0, 0, 1, 1], [], []>} : vector<2x64xf32>, vector<64x1xf32>, vector<2x1xf32> -> vector<2x1xf32>
    %c0_299 = arith.constant 0 : index
    %c0_300 = arith.constant 0 : index
    %709 = vector.load %arg15[%c0_299, %c0_300] : memref<1x1xf32, #tpu.memory_space<vmem>>, vector<1x1xf32>
    %710 = vector.broadcast %709 : vector<1x1xf32> to vector<2x1xf32>
    %711 = arith.addf %708, %710 : vector<2x1xf32>
    %c0_301 = arith.constant 0 : index
    %c0_302 = arith.constant 0 : index
    %712 = vector.load %arg16[%c0_301, %c0_302] : memref<2x1xf32, #tpu.memory_space<vmem>>, vector<2x1xf32>
    tpu.vector_store %arg16[%c0_301, %c0_302], %711 {strides = array<i32>} : memref<2x1xf32, #tpu.memory_space<vmem>>, vector<2x1xf32>,
    return
  }
}

</mosaic_0001>

<llo_original>
// kernel: roberta_layer_cat_forward.1
$region0: #{roberta_layer_cat_forward.1}
  #allocation0 [shape = 'u32[]', space=smem, size = 0x4, offset = 0x4, fixed_abs, tag = 'smem constant byte address 0x4 - core index']
  #allocation1 [shape = 'u32[144,128]{1,0:T(1,128)}', space=vmem, size = 0x12000, scoped, tag = 'internal scratch']
  #allocation2 [shape = 'f32[1,1]{1,0:T(1,128)S(1)}', space=vmem, size = 0x200, scoped, tag = 'scoped memory for roberta_layer_cat_forward.1']
  %s0 = inlined_call_operand.vmem [shape: f32[2,8,32], index: 0, kind: input, shape index: {}]
  %s1 = inlined_call_operand.vmem [shape: f32[2,8], index: 1, kind: input, shape index: {}]
  %s2 = inlined_call_operand.vmem [shape: f32[4,32,96], index: 2, kind: input, shape index: {}]
  %s3 = inlined_call_operand.vmem [shape: f32[4,1,96], index: 3, kind: input, shape index: {}]
  %s4 = inlined_call_operand.vmem [shape: f32[4,32,32], index: 4, kind: input, shape index: {}]
  %s5 = inlined_call_operand.vmem [shape: f32[4,1,32], index: 5, kind: input, shape index: {}]
  %s6 = inlined_call_operand.vmem [shape: f32[4,1,32], index: 6, kind: input, shape index: {}]
  %s7 = inlined_call_operand.vmem [shape: f32[4,1,32], index: 7, kind: input, shape index: {}]
  %s8 = inlined_call_operand.vmem [shape: f32[4,32,64], index: 8, kind: input, shape index: {}]
  %s9 = inlined_call_operand.vmem [shape: f32[4,1,64], index: 9, kind: input, shape index: {}]
  %s10 = inlined_call_operand.vmem [shape: f32[4,64,32], index: 10, kind: input, shape index: {}]
  %s11 = inlined_call_operand.vmem [shape: f32[4,1,32], index: 11, kind: input, shape index: {}]
  %s12 = inlined_call_operand.vmem [shape: f32[4,1,32], index: 12, kind: input, shape index: {}]
  %s13 = inlined_call_operand.vmem [shape: f32[4,1,32], index: 13, kind: input, shape index: {}]
  %s14 = inlined_call_operand.vmem [shape: f32[64,1], index: 14, kind: input, shape index: {}]
  %s15 = inlined_call_operand.<no memory space> [shape: f32[1,1], index: 15, kind: input, shape index: {}]
  %s16 = inlined_call_operand.vmem [shape: f32[2,1], index: 16, kind: output, shape index: {}]
  %s17 = sld [smem:[#allocation0]]
  $region74: #{roberta_layer_cat_forward.1} parent=0
    _
  %s19 = ssub.s32 1, %s17
  %s20 = scalar_select 0, %s19, %s17
  %v21 = vstv %s15
  %22 = vst [vmem:[#allocation2] sm:$0x1] %v21
  // Predicated region
  $region2: #{roberta_layer_cat_forward.1} parent=0 // pred_check
    _
  $region3: #{roberta_layer_cat_forward.1} parent=0 // pred_check_branch
    %24 = sbr.rel (0) target = $region5
  $region4: #{roberta_layer_cat_forward.1} parent=0 // pred_region
    _
  $region5: #{roberta_layer_cat_forward.1} parent=0 // pred_fallthru
    _
  // Predicated region
  $region6: #{roberta_layer_cat_forward.1} parent=0 // pred_check
    _
  $region7: #{roberta_layer_cat_forward.1} parent=0 // pred_check_branch
    %26 = sbr.rel (0) target = $region9
  $region8: #{roberta_layer_cat_forward.1} parent=0 // pred_region
    _
  $region9: #{roberta_layer_cat_forward.1} parent=0 // pred_fallthru
    _
  // Predicated region
  $region10: #{roberta_layer_cat_forward.1} parent=0 // pred_check
    _
  $region11: #{roberta_layer_cat_forward.1} parent=0 // pred_check_branch
    %28 = sbr.rel (0) target = $region13
  $region12: #{roberta_layer_cat_forward.1} parent=0 // pred_region
    _
  $region13: #{roberta_layer_cat_forward.1} parent=0 // pred_fallthru
    _
  // Predicated region
  $region14: #{roberta_layer_cat_forward.1} parent=0 // pred_check
    _
  $region15: #{roberta_layer_cat_forward.1} parent=0 // pred_check_branch
    %30 = sbr.rel (0) target = $region17
  $region16: #{roberta_layer_cat_forward.1} parent=0 // pred_region
    _
  $region17: #{roberta_layer_cat_forward.1} parent=0 // pred_fallthru
    _
  // Predicated region
  $region18: #{roberta_layer_cat_forward.1} parent=0 // pred_check
    _
  $region19: #{roberta_layer_cat_forward.1} parent=0 // pred_check_branch
    %32 = sbr.rel (0) target = $region21
  $region20: #{roberta_layer_cat_forward.1} parent=0 // pred_region
    _
  $region21: #{roberta_layer_cat_forward.1} parent=0 // pred_fallthru
    _
  // Predicated region
  $region22: #{roberta_layer_cat_forward.1} parent=0 // pred_check
    _
  $region23: #{roberta_layer_cat_forward.1} parent=0 // pred_check_branch
    %34 = sbr.rel (0) target = $region25
  $region24: #{roberta_layer_cat_forward.1} parent=0 // pred_region
    _
  $region25: #{roberta_layer_cat_forward.1} parent=0 // pred_fallthru
    _
  // Predicated region
  $region26: #{roberta_layer_cat_forward.1} parent=0 // pred_check
    _
  $region27: #{roberta_layer_cat_forward.1} parent=0 // pred_check_branch
    %36 = sbr.rel (0) target = $region29
  $region28: #{roberta_layer_cat_forward.1} parent=0 // pred_region
    _
  $region29: #{roberta_layer_cat_forward.1} parent=0 // pred_fallthru
    _
  // Predicated region
  $region30: #{roberta_layer_cat_forward.1} parent=0 // pred_check
    _
  $region31: #{roberta_layer_cat_forward.1} parent=0 // pred_check_branch
    %38 = sbr.rel (0) target = $region33
  $region32: #{roberta_layer_cat_forward.1} parent=0 // pred_region
    _
  $region33: #{roberta_layer_cat_forward.1} parent=0 // pred_fallthru
    _
  // Predicated region
  $region34: #{roberta_layer_cat_forward.1} parent=0 // pred_check
    _
  $region35: #{roberta_layer_cat_forward.1} parent=0 // pred_check_branch
    %40 = sbr.rel (0) target = $region37
  $region36: #{roberta_layer_cat_forward.1} parent=0 // pred_region
    _
  $region37: #{roberta_layer_cat_forward.1} parent=0 // pred_fallthru
    _
  // Predicated region
  $region38: #{roberta_layer_cat_forward.1} parent=0 // pred_check
    _
  $region39: #{roberta_layer_cat_forward.1} parent=0 // pred_check_branch
    %42 = sbr.rel (0) target = $region41
  $region40: #{roberta_layer_cat_forward.1} parent=0 // pred_region
    _
  $region41: #{roberta_layer_cat_forward.1} parent=0 // pred_fallthru
    _
  // Predicated region
  $region42: #{roberta_layer_cat_forward.1} parent=0 // pred_check
    _
  $region43: #{roberta_layer_cat_forward.1} parent=0 // pred_check_branch
    %44 = sbr.rel (0) target = $region45
  $region44: #{roberta_layer_cat_forward.1} parent=0 // pred_region
    _
  $region45: #{roberta_layer_cat_forward.1} parent=0 // pred_fallthru
    _
  // Predicated region
  $region46: #{roberta_layer_cat_forward.1} parent=0 // pred_check
    _
  $region47: #{roberta_layer_cat_forward.1} parent=0 // pred_check_branch
    %46 = sbr.rel (0) target = $region49
  $region48: #{roberta_layer_cat_forward.1} parent=0 // pred_region
    _
  $region49: #{roberta_layer_cat_forward.1} parent=0 // pred_fallthru
    _
  // Predicated region
  $region50: #{roberta_layer_cat_forward.1} parent=0 // pred_check
    _
  $region51: #{roberta_layer_cat_forward.1} parent=0 // pred_check_branch
    %48 = sbr.rel (0) target = $region53
  $region52: #{roberta_layer_cat_forward.1} parent=0 // pred_region
    _
  $region53: #{roberta_layer_cat_forward.1} parent=0 // pred_fallthru
    _
  // Predicated region
  $region54: #{roberta_layer_cat_forward.1} parent=0 // pred_check
    _
  $region55: #{roberta_layer_cat_forward.1} parent=0 // pred_check_branch
    %50 = sbr.rel (0) target = $region57
  $region56: #{roberta_layer_cat_forward.1} parent=0 // pred_region
    _
  $region57: #{roberta_layer_cat_forward.1} parent=0 // pred_fallthru
    _
  // Predicated region
  $region58: #{roberta_layer_cat_forward.1} parent=0 // pred_check
    _
  $region59: #{roberta_layer_cat_forward.1} parent=0 // pred_check_branch
    %52 = sbr.rel (0) target = $region61
  $region60: #{roberta_layer_cat_forward.1} parent=0 // pred_region
    _
  $region61: #{roberta_layer_cat_forward.1} parent=0 // pred_fallthru
    _
  // Predicated region
  $region62: #{roberta_layer_cat_forward.1} parent=0 // pred_check
    _
  $region63: #{roberta_layer_cat_forward.1} parent=0 // pred_check_branch
    %54 = sbr.rel (0) target = $region65
  $region64: #{roberta_layer_cat_forward.1} parent=0 // pred_region
    _
  $region65: #{roberta_layer_cat_forward.1} parent=0 // pred_fallthru
    _
  %v55 = vld [vmem:[%s1] sm:$0x3]
  %v58 = vunpack.c.l.s4 1966171168
  %v59 = vunpack.c.0.s8 %v58
  %v60 = vlaneseq
  %v61 = vshrl.u32 %v60, 7
  %v62 = vsub.s32 %v59, %v61
  %v63 = vrot.slane %v55, %v62
  %v64 = vcombine.high %v63, %v63
  %v66 = vunpack.c.l.s4 1966171168
  %v67 = vunpack.c.0.s8 %v66
  %v68 = vlaneseq
  %v69 = vshrl.u32 %v68, 7
  %v70 = vsub.s32 %v67, %v69
  %v71 = vrot.slane %v63, %v70
  %v73 = vunpack.c.l.s4 1966171168
  %v74 = vunpack.c.0.s8 %v73
  %v75 = vlaneseq
  %v76 = vshrl.u32 %v75, 7
  %v77 = vsub.s32 %v74, %v76
  %v78 = vrot.slane %v64, %v77
  %v79 = vld [vmem:[%s0] sm:$0xff]
  %v80 = vld [vmem:[%s0 + $0x8] sm:$0xff]
  %v81 = vld [vmem:[%s2] sm:$0xff]
  %v82 = vld [vmem:[%s2 + $0x8] sm:$0xff]
  %v83 = vld [vmem:[%s2 + $0x10] sm:$0xff]
  %v84 = vld [vmem:[%s2 + $0x18] sm:$0xff]
  %v85 = vld [vmem:[%s3] sm:$0x1]
  %v87 = vlaneseq
  %v88 = vshrl.u32 %v87, 7
  %v89 = vsub.s32 0, %v88
  %v90 = vrot.slane %v85, %v89
  %vm92 = vcmask 261120
  %v94 = vsel %vm92, %v79, 0
  %v97 = vsel %vm92, %v80, 0
  %99 = vmatprep.subr.mxu0 0.0
  %100 = vmatpush1.msra.mxu0 0.0
  %101 = vmatprep.subr.mxu0 0.0
  %102 = vmatpush1.msra.mxu0 0.0
  %103 = vmatprep.subr.mxu0 0.0
  %104 = vmatpush1.msra.mxu0 0.0
  %105 = vmatprep.subr.mxu0 0.0
  %106 = vmatpush1.msra.mxu0 0.0
  %107 = vmatprep.subr.mxu0 0.0
  %108 = vmatpush1.msra.mxu0 0.0
  %109 = vmatprep.subr.mxu0 0.0
  %110 = vmatpush1.msra.mxu0 0.0
  %111 = vmatprep.subr.mxu0 0.0
  %112 = vmatpush1.msra.mxu0 0.0
  %113 = vmatprep.subr.mxu0 0.0
  %114 = vmatpush1.msra.mxu0 0.0
  %115 = vmatprep.subr.mxu0 0.0
  %116 = vmatpush1.msra.mxu0 0.0
  %117 = vmatprep.subr.mxu0 0.0
  %118 = vmatpush1.msra.mxu0 0.0
  %119 = vmatprep.subr.mxu0 0.0
  %120 = vmatpush1.msra.mxu0 0.0
  %121 = vmatprep.subr.mxu0 0.0
  %122 = vmatpush1.msra.mxu0 0.0
  %123 = vmatprep.subr.mxu0 0.0
  %124 = vmatpush1.msra.mxu0 %v84
  %125 = vmatprep.subr.mxu0 0.0
  %126 = vmatpush1.msra.mxu0 %v83
  %127 = vmatprep.subr.mxu0 0.0
  %128 = vmatpush1.msra.mxu0 %v82
  %129 = vmatprep.subr.mxu0 0.0
  %130 = vmatpush1.msra.mxu0 %v81
  %131 = vmatprep.subr.mxu0 0.0
  %132 = vmatpush2.msra.mxu0 0.0
  %133 = vmatprep.subr.mxu0 0.0
  %134 = vmatpush2.msra.mxu0 0.0
  %135 = vmatprep.subr.mxu0 0.0
  %136 = vmatpush2.msra.mxu0 0.0
  %137 = vmatprep.subr.mxu0 0.0
  %138 = vmatpush2.msra.mxu0 0.0
  %139 = vmatprep.subr.mxu0 0.0
  %140 = vmatpush2.msra.mxu0 0.0
  %141 = vmatprep.subr.mxu0 0.0
  %142 = vmatpush2.msra.mxu0 0.0
  %143 = vmatprep.subr.mxu0 0.0
  %144 = vmatpush2.msra.mxu0 0.0
  %145 = vmatprep.subr.mxu0 0.0
  %146 = vmatpush2.msra.mxu0 0.0
  %147 = vmatprep.subr.mxu0 0.0
  %148 = vmatpush2.msra.mxu0 0.0
  %149 = vmatprep.subr.mxu0 0.0
  %150 = vmatpush2.msra.mxu0 0.0
  %151 = vmatprep.subr.mxu0 0.0
  %152 = vmatpush2.msra.mxu0 0.0
  %153 = vmatprep.subr.mxu0 0.0
  %154 = vmatpush2.msra.mxu0 0.0
  %155 = vmatprep.subr.mxu0 0.0
  %156 = vmatpush2.msra.mxu0 0.0
  %157 = vmatprep.subr.mxu0 0.0
  %158 = vmatpush2.msra.mxu0 0.0
  %159 = vmatprep.subr.mxu0 0.0
  %160 = vmatpush2.msra.mxu0 0.0
  %161 = vmatprep.subr.mxu0 0.0
  %162 = vmatpush2.msra.mxu0 0.0
  %163 = vmatprep.mubr.f32.mxu0 0.0
  %164 = vmatmul.mubr.f32.gmra.mxu0 %v94
  %v165 = vpop.f32.mrf.mxu0
  %v166 = vadd.f32 %v90, %v165
  %v167 = vpop.f32.mrf.mxu0
  %168 = vmatprep.mubr.f32.mxu0 0.0
  %169 = vmatmul.mubr.f32.gmra.mxu0 %v97
  %v170 = vpop.f32.mrf.mxu0
  %v171 = vadd.f32 %v90, %v170
  %v172 = vpop.f32.mrf.mxu0
  %173 = vdwg.mxu0
  %175 = vrot.lane.b32.xlu0 %v166, 96
  %v176 = vpop.permute.xlu0 %175
  %vm177 = vcmask 64512
  %v178 = vsel %vm177, %v166, 0
  %v180 = vsel %vm177, %v176, 0
  %182 = vmatprep.subr.mxu0 0.0
  %183 = vmatpush1.xpose.msra.mxu0 0.0
  %184 = vmatprep.subr.mxu0 0.0
  %185 = vmatpush1.xpose.msra.mxu0 0.0
  %186 = vmatprep.subr.mxu0 0.0
  %187 = vmatpush1.xpose.msra.mxu0 0.0
  %188 = vmatprep.subr.mxu0 0.0
  %189 = vmatpush1.xpose.msra.mxu0 0.0
  %190 = vmatprep.subr.mxu0 0.0
  %191 = vmatpush1.xpose.msra.mxu0 0.0
  %192 = vmatprep.subr.mxu0 0.0
  %193 = vmatpush1.xpose.msra.mxu0 0.0
  %194 = vmatprep.subr.mxu0 0.0
  %195 = vmatpush1.xpose.msra.mxu0 0.0
  %196 = vmatprep.subr.mxu0 0.0
  %197 = vmatpush1.xpose.msra.mxu0 0.0
  %198 = vmatprep.subr.mxu0 0.0
  %199 = vmatpush1.xpose.msra.mxu0 0.0
  %200 = vmatprep.subr.mxu0 0.0
  %201 = vmatpush1.xpose.msra.mxu0 0.0
  %202 = vmatprep.subr.mxu0 0.0
  %203 = vmatpush1.xpose.msra.mxu0 0.0
  %204 = vmatprep.subr.mxu0 0.0
  %205 = vmatpush1.xpose.msra.mxu0 0.0
  %206 = vmatprep.subr.mxu0 0.0
  %207 = vmatpush1.xpose.msra.mxu0 0.0
  %208 = vmatprep.subr.mxu0 0.0
  %209 = vmatpush1.xpose.msra.mxu0 0.0
  %210 = vmatprep.subr.mxu0 0.0
  %211 = vmatpush1.xpose.msra.mxu0 0.0
  %212 = vmatprep.subr.mxu0 0.0
  %213 = vmatpush1.xpose.msra.mxu0 %v180
  %214 = vmatprep.subr.mxu0 0.0
  %215 = vmatpush2.xpose.msra.mxu0 0.0
  %216 = vmatprep.subr.mxu0 0.0
  %217 = vmatpush2.xpose.msra.mxu0 0.0
  %218 = vmatprep.subr.mxu0 0.0
  %219 = vmatpush2.xpose.msra.mxu0 0.0
  %220 = vmatprep.subr.mxu0 0.0
  %221 = vmatpush2.xpose.msra.mxu0 0.0
  %222 = vmatprep.subr.mxu0 0.0
  %223 = vmatpush2.xpose.msra.mxu0 0.0
  %224 = vmatprep.subr.mxu0 0.0
  %225 = vmatpush2.xpose.msra.mxu0 0.0
  %226 = vmatprep.subr.mxu0 0.0
  %227 = vmatpush2.xpose.msra.mxu0 0.0
  %228 = vmatprep.subr.mxu0 0.0
  %229 = vmatpush2.xpose.msra.mxu0 0.0
  %230 = vmatprep.subr.mxu0 0.0
  %231 = vmatpush2.xpose.msra.mxu0 0.0
  %232 = vmatprep.subr.mxu0 0.0
  %233 = vmatpush2.xpose.msra.mxu0 0.0
  %234 = vmatprep.subr.mxu0 0.0
  %235 = vmatpush2.xpose.msra.mxu0 0.0
  %236 = vmatprep.subr.mxu0 0.0
  %237 = vmatpush2.xpose.msra.mxu0 0.0
  %238 = vmatprep.subr.mxu0 0.0
  %239 = vmatpush2.xpose.msra.mxu0 0.0
  %240 = vmatprep.subr.mxu0 0.0
  %241 = vmatpush2.xpose.msra.mxu0 0.0
  %242 = vmatprep.subr.mxu0 0.0
  %243 = vmatpush2.xpose.msra.mxu0 0.0
  %244 = vmatprep.subr.mxu0 0.0
  %245 = vmatpush2.xpose.msra.mxu0 0.0
  %246 = vmatprep.mubr.f32.mxu0 0.0
  %247 = vmatmul.mubr.f32.gmra.mxu0 %v178
  %v248 = vpop.f32.mrf.mxu0
  %v249 = vadd.f32 0.0, %v248
  %v250 = vpop.f32.mrf.mxu0
  %251 = vdwg.mxu0
  %253 = vrot.lane.b32.xlu0 %v171, 96
  %v254 = vpop.permute.xlu0 %253
  %v255 = vsel %vm177, %v171, 0
  %v257 = vsel %vm177, %v254, 0
  %259 = vmatprep.subr.mxu0 0.0
  %260 = vmatpush1.xpose.msra.mxu0 0.0
  %261 = vmatprep.subr.mxu0 0.0
  %262 = vmatpush1.xpose.msra.mxu0 0.0
  %263 = vmatprep.subr.mxu0 0.0
  %264 = vmatpush1.xpose.msra.mxu0 0.0
  %265 = vmatprep.subr.mxu0 0.0
  %266 = vmatpush1.xpose.msra.mxu0 0.0
  %267 = vmatprep.subr.mxu0 0.0
  %268 = vmatpush1.xpose.msra.mxu0 0.0
  %269 = vmatprep.subr.mxu0 0.0
  %270 = vmatpush1.xpose.msra.mxu0 0.0
  %271 = vmatprep.subr.mxu0 0.0
  %272 = vmatpush1.xpose.msra.mxu0 0.0
  %273 = vmatprep.subr.mxu0 0.0
  %274 = vmatpush1.xpose.msra.mxu0 0.0
  %275 = vmatprep.subr.mxu0 0.0
  %276 = vmatpush1.xpose.msra.mxu0 0.0
  %277 = vmatprep.subr.mxu0 0.0
  %278 = vmatpush1.xpose.msra.mxu0 0.0
  %279 = vmatprep.subr.mxu0 0.0
  %280 = vmatpush1.xpose.msra.mxu0 0.0
  %281 = vmatprep.subr.mxu0 0.0
  %282 = vmatpush1.xpose.msra.mxu0 0.0
  %283 = vmatprep.subr.mxu0 0.0
  %284 = vmatpush1.xpose.msra.mxu0 0.0
  %285 = vmatprep.subr.mxu0 0.0
  %286 = vmatpush1.xpose.msra.mxu0 0.0
  %287 = vmatprep.subr.mxu0 0.0
  %288 = vmatpush1.xpose.msra.mxu0 0.0
  %289 = vmatprep.subr.mxu0 0.0
  %290 = vmatpush1.xpose.msra.mxu0 %v257
  %291 = vmatprep.subr.mxu0 0.0
  %292 = vmatpush2.xpose.msra.mxu0 0.0
  %293 = vmatprep.subr.mxu0 0.0
  %294 = vmatpush2.xpose.msra.mxu0 0.0
  %295 = vmatprep.subr.mxu0 0.0
  %296 = vmatpush2.xpose.msra.mxu0 0.0
  %297 = vmatprep.subr.mxu0 0.0
  %298 = vmatpush2.xpose.msra.mxu0 0.0
  %299 = vmatprep.subr.mxu0 0.0
  %300 = vmatpush2.xpose.msra.mxu0 0.0
  %301 = vmatprep.subr.mxu0 0.0
  %302 = vmatpush2.xpose.msra.mxu0 0.0
  %303 = vmatprep.subr.mxu0 0.0
  %304 = vmatpush2.xpose.msra.mxu0 0.0
  %305 = vmatprep.subr.mxu0 0.0
  %306 = vmatpush2.xpose.msra.mxu0 0.0
  %307 = vmatprep.subr.mxu0 0.0
  %308 = vmatpush2.xpose.msra.mxu0 0.0
  %309 = vmatprep.subr.mxu0 0.0
  %310 = vmatpush2.xpose.msra.mxu0 0.0
  %311 = vmatprep.subr.mxu0 0.0
  %312 = vmatpush2.xpose.msra.mxu0 0.0
  %313 = vmatprep.subr.mxu0 0.0
  %314 = vmatpush2.xpose.msra.mxu0 0.0
  %315 = vmatprep.subr.mxu0 0.0
  %316 = vmatpush2.xpose.msra.mxu0 0.0
  %317 = vmatprep.subr.mxu0 0.0
  %318 = vmatpush2.xpose.msra.mxu0 0.0
  %319 = vmatprep.subr.mxu0 0.0
  %320 = vmatpush2.xpose.msra.mxu0 0.0
  %321 = vmatprep.subr.mxu0 0.0
  %322 = vmatpush2.xpose.msra.mxu0 0.0
  %323 = vmatprep.mubr.f32.mxu0 0.0
  %324 = vmatmul.mubr.f32.gmra.mxu0 %v255
  %v325 = vpop.f32.mrf.mxu0
  %v326 = vadd.f32 0.0, %v325
  %v327 = vpop.f32.mrf.mxu0
  %328 = vdwg.mxu0
  %v329 = vmul.f32 %v249, 0.35355338
  %v330 = vmul.f32 %v326, 0.35355338
  %v331 = vlaneseq
  %v332 = vshrl.u32 %v331, 7
  %v333 = vsub.s32 0, %v332
  %v334 = vrot.slane %v71, %v333
  %v335 = vlaneseq
  %v336 = vshrl.u32 %v335, 7
  %v337 = vsub.s32 0, %v336
  %v338 = vrot.slane %v78, %v337
  %v341 = vadd.f32 %v329, %v334
  %v342 = vadd.f32 %v330, %v338
  %v343 = vsel %vm177, %v341, -inf
  %344 = vmax.xlane.f32.xlu0 %v343
  %v345 = vpop.xlane.xlu0 %344
  %v346 = vsel %vm177, %v342, -inf
  %347 = vmax.xlane.f32.xlu0 %v346
  %v348 = vpop.xlane.xlu0 %347
  %v349 = vsub.f32 %v341, %v345
  %v350 = vsub.f32 %v342, %v348
  %v351 = vmul.f32 %v349, 1.442695
  %v352 = vpow.pop %v351
  %v353 = vmul.f32 %v350, 1.442695
  %v354 = vpow.pop %v353
  %v355 = vsel %vm177, %v352, 0.0
  %356 = vadd.xlane.f32.xlu0 %v355
  %v357 = vpop.xlane.xlu0 %356
  %v358 = vsel %vm177, %v354, 0.0
  %359 = vadd.xlane.f32.xlu0 %v358
  %v360 = vpop.xlane.xlu0 %359
  %v361 = vrcp.pop %v357
  %v362 = vrcp.pop %v360
  %v363 = vmul.f32 %v352, %v361
  %v364 = vmul.f32 %v354, %v362
  %365 = vrot.lane.b32.xlu0 %v166, 64
  %v366 = vpop.permute.xlu0 %365
  %v369 = vsel %vm177, %v363, 0
  %371 = vmatprep.subr.mxu0 0.0
  %372 = vmatpush1.msra.mxu0 0.0
  %373 = vmatprep.subr.mxu0 0.0
  %374 = vmatpush1.msra.mxu0 0.0
  %375 = vmatprep.subr.mxu0 0.0
  %376 = vmatpush1.msra.mxu0 0.0
  %377 = vmatprep.subr.mxu0 0.0
  %378 = vmatpush1.msra.mxu0 0.0
  %379 = vmatprep.subr.mxu0 0.0
  %380 = vmatpush1.msra.mxu0 0.0
  %381 = vmatprep.subr.mxu0 0.0
  %382 = vmatpush1.msra.mxu0 0.0
  %383 = vmatprep.subr.mxu0 0.0
  %384 = vmatpush1.msra.mxu0 0.0
  %385 = vmatprep.subr.mxu0 0.0
  %386 = vmatpush1.msra.mxu0 0.0
  %387 = vmatprep.subr.mxu0 0.0
  %388 = vmatpush1.msra.mxu0 0.0
  %389 = vmatprep.subr.mxu0 0.0
  %390 = vmatpush1.msra.mxu0 0.0
  %391 = vmatprep.subr.mxu0 0.0
  %392 = vmatpush1.msra.mxu0 0.0
  %393 = vmatprep.subr.mxu0 0.0
  %394 = vmatpush1.msra.mxu0 0.0
  %395 = vmatprep.subr.mxu0 0.0
  %396 = vmatpush1.msra.mxu0 0.0
  %397 = vmatprep.subr.mxu0 0.0
  %398 = vmatpush1.msra.mxu0 0.0
  %399 = vmatprep.subr.mxu0 0.0
  %400 = vmatpush1.msra.mxu0 0.0
  %401 = vmatprep.subr.mxu0 0.0
  %402 = vmatpush1.msra.mxu0 %v366
  %403 = vmatprep.subr.mxu0 0.0
  %404 = vmatpush2.msra.mxu0 0.0
  %405 = vmatprep.subr.mxu0 0.0
  %406 = vmatpush2.msra.mxu0 0.0
  %407 = vmatprep.subr.mxu0 0.0
  %408 = vmatpush2.msra.mxu0 0.0
  %409 = vmatprep.subr.mxu0 0.0
  %410 = vmatpush2.msra.mxu0 0.0
  %411 = vmatprep.subr.mxu0 0.0
  %412 = vmatpush2.msra.mxu0 0.0
  %413 = vmatprep.subr.mxu0 0.0
  %414 = vmatpush2.msra.mxu0 0.0
  %415 = vmatprep.subr.mxu0 0.0
  %416 = vmatpush2.msra.mxu0 0.0
  %417 = vmatprep.subr.mxu0 0.0
  %418 = vmatpush2.msra.mxu0 0.0
  %419 = vmatprep.subr.mxu0 0.0
  %420 = vmatpush2.msra.mxu0 0.0
  %421 = vmatprep.subr.mxu0 0.0
  %422 = vmatpush2.msra.mxu0 0.0
  %423 = vmatprep.subr.mxu0 0.0
  %424 = vmatpush2.msra.mxu0 0.0
  %425 = vmatprep.subr.mxu0 0.0
  %426 = vmatpush2.msra.mxu0 0.0
  %427 = vmatprep.subr.mxu0 0.0
  %428 = vmatpush2.msra.mxu0 0.0
  %429 = vmatprep.subr.mxu0 0.0
  %430 = vmatpush2.msra.mxu0 0.0
  %431 = vmatprep.subr.mxu0 0.0
  %432 = vmatpush2.msra.mxu0 0.0
  %433 = vmatprep.subr.mxu0 0.0
  %434 = vmatpush2.msra.mxu0 0.0
  %435 = vmatprep.mubr.f32.mxu0 0.0
  %436 = vmatmul.mubr.f32.gmra.mxu0 %v369
  %v437 = vpop.f32.mrf.mxu0
  %v438 = vadd.f32 0.0, %v437
  %v439 = vpop.f32.mrf.mxu0
  %440 = vdwg.mxu0
  %441 = vrot.lane.b32.xlu0 %v171, 64
  %v442 = vpop.permute.xlu0 %441
  %v445 = vsel %vm177, %v364, 0
  %447 = vmatprep.subr.mxu0 0.0
  %448 = vmatpush1.msra.mxu0 0.0
  %449 = vmatprep.subr.mxu0 0.0
  %450 = vmatpush1.msra.mxu0 0.0
  %451 = vmatprep.subr.mxu0 0.0
  %452 = vmatpush1.msra.mxu0 0.0
  %453 = vmatprep.subr.mxu0 0.0
  %454 = vmatpush1.msra.mxu0 0.0
  %455 = vmatprep.subr.mxu0 0.0
  %456 = vmatpush1.msra.mxu0 0.0
  %457 = vmatprep.subr.mxu0 0.0
  %458 = vmatpush1.msra.mxu0 0.0
  %459 = vmatprep.subr.mxu0 0.0
  %460 = vmatpush1.msra.mxu0 0.0
  %461 = vmatprep.subr.mxu0 0.0
  %462 = vmatpush1.msra.mxu0 0.0
  %463 = vmatprep.subr.mxu0 0.0
  %464 = vmatpush1.msra.mxu0 0.0
  %465 = vmatprep.subr.mxu0 0.0
  %466 = vmatpush1.msra.mxu0 0.0
  %467 = vmatprep.subr.mxu0 0.0
  %468 = vmatpush1.msra.mxu0 0.0
  %469 = vmatprep.subr.mxu0 0.0
  %470 = vmatpush1.msra.mxu0 0.0
  %471 = vmatprep.subr.mxu0 0.0
  %472 = vmatpush1.msra.mxu0 0.0
  %473 = vmatprep.subr.mxu0 0.0
  %474 = vmatpush1.msra.mxu0 0.0
  %475 = vmatprep.subr.mxu0 0.0
  %476 = vmatpush1.msra.mxu0 0.0
  %477 = vmatprep.subr.mxu0 0.0
  %478 = vmatpush1.msra.mxu0 %v442
  %479 = vmatprep.subr.mxu0 0.0
  %480 = vmatpush2.msra.mxu0 0.0
  %481 = vmatprep.subr.mxu0 0.0
  %482 = vmatpush2.msra.mxu0 0.0
  %483 = vmatprep.subr.mxu0 0.0
  %484 = vmatpush2.msra.mxu0 0.0
  %485 = vmatprep.subr.mxu0 0.0
  %486 = vmatpush2.msra.mxu0 0.0
  %487 = vmatprep.subr.mxu0 0.0
  %488 = vmatpush2.msra.mxu0 0.0
  %489 = vmatprep.subr.mxu0 0.0
  %490 = vmatpush2.msra.mxu0 0.0
  %491 = vmatprep.subr.mxu0 0.0
  %492 = vmatpush2.msra.mxu0 0.0
  %493 = vmatprep.subr.mxu0 0.0
  %494 = vmatpush2.msra.mxu0 0.0
  %495 = vmatprep.subr.mxu0 0.0
  %496 = vmatpush2.msra.mxu0 0.0
  %497 = vmatprep.subr.mxu0 0.0
  %498 = vmatpush2.msra.mxu0 0.0
  %499 = vmatprep.subr.mxu0 0.0
  %500 = vmatpush2.msra.mxu0 0.0
  %501 = vmatprep.subr.mxu0 0.0
  %502 = vmatpush2.msra.mxu0 0.0
  %503 = vmatprep.subr.mxu0 0.0
  %504 = vmatpush2.msra.mxu0 0.0
  %505 = vmatprep.subr.mxu0 0.0
  %506 = vmatpush2.msra.mxu0 0.0
  %507 = vmatprep.subr.mxu0 0.0
  %508 = vmatpush2.msra.mxu0 0.0
  %509 = vmatprep.subr.mxu0 0.0
  %510 = vmatpush2.msra.mxu0 0.0
  %511 = vmatprep.mubr.f32.mxu0 0.0
  %512 = vmatmul.mubr.f32.gmra.mxu0 %v445
  %v513 = vpop.f32.mrf.mxu0
  %v514 = vadd.f32 0.0, %v513
  %v515 = vpop.f32.mrf.mxu0
  %516 = vdwg.mxu0
  %517 = vrot.lane.b32.xlu0 %v166, 120
  %v518 = vpop.permute.xlu0 %517
  %519 = vrot.lane.b32.xlu0 %v166, 88
  %v520 = vpop.permute.xlu0 %519
  %v521 = vsel %vm177, %v518, 0
  %v523 = vsel %vm177, %v520, 0
  %525 = vmatprep.subr.mxu0 0.0
  %526 = vmatpush1.xpose.msra.mxu0 0.0
  %527 = vmatprep.subr.mxu0 0.0
  %528 = vmatpush1.xpose.msra.mxu0 0.0
  %529 = vmatprep.subr.mxu0 0.0
  %530 = vmatpush1.xpose.msra.mxu0 0.0
  %531 = vmatprep.subr.mxu0 0.0
  %532 = vmatpush1.xpose.msra.mxu0 0.0
  %533 = vmatprep.subr.mxu0 0.0
  %534 = vmatpush1.xpose.msra.mxu0 0.0
  %535 = vmatprep.subr.mxu0 0.0
  %536 = vmatpush1.xpose.msra.mxu0 0.0
  %537 = vmatprep.subr.mxu0 0.0
  %538 = vmatpush1.xpose.msra.mxu0 0.0
  %539 = vmatprep.subr.mxu0 0.0
  %540 = vmatpush1.xpose.msra.mxu0 0.0
  %541 = vmatprep.subr.mxu0 0.0
  %542 = vmatpush1.xpose.msra.mxu0 0.0
  %543 = vmatprep.subr.mxu0 0.0
  %544 = vmatpush1.xpose.msra.mxu0 0.0
  %545 = vmatprep.subr.mxu0 0.0
  %546 = vmatpush1.xpose.msra.mxu0 0.0
  %547 = vmatprep.subr.mxu0 0.0
  %548 = vmatpush1.xpose.msra.mxu0 0.0
  %549 = vmatprep.subr.mxu0 0.0
  %550 = vmatpush1.xpose.msra.mxu0 0.0
  %551 = vmatprep.subr.mxu0 0.0
  %552 = vmatpush1.xpose.msra.mxu0 0.0
  %553 = vmatprep.subr.mxu0 0.0
  %554 = vmatpush1.xpose.msra.mxu0 0.0
  %555 = vmatprep.subr.mxu0 0.0
  %556 = vmatpush1.xpose.msra.mxu0 %v523
  %557 = vmatprep.subr.mxu0 0.0
  %558 = vmatpush2.xpose.msra.mxu0 0.0
  %559 = vmatprep.subr.mxu0 0.0
  %560 = vmatpush2.xpose.msra.mxu0 0.0
  %561 = vmatprep.subr.mxu0 0.0
  %562 = vmatpush2.xpose.msra.mxu0 0.0
  %563 = vmatprep.subr.mxu0 0.0
  %564 = vmatpush2.xpose.msra.mxu0 0.0
  %565 = vmatprep.subr.mxu0 0.0
  %566 = vmatpush2.xpose.msra.mxu0 0.0
  %567 = vmatprep.subr.mxu0 0.0
  %568 = vmatpush2.xpose.msra.mxu0 0.0
  %569 = vmatprep.subr.mxu0 0.0
  %570 = vmatpush2.xpose.msra.mxu0 0.0
  %571 = vmatprep.subr.mxu0 0.0
  %572 = vmatpush2.xpose.msra.mxu0 0.0
  %573 = vmatprep.subr.mxu0 0.0
  %574 = vmatpush2.xpose.msra.mxu0 0.0
  %575 = vmatprep.subr.mxu0 0.0
  %576 = vmatpush2.xpose.msra.mxu0 0.0
  %577 = vmatprep.subr.mxu0 0.0
  %578 = vmatpush2.xpose.msra.mxu0 0.0
  %579 = vmatprep.subr.mxu0 0.0
  %580 = vmatpush2.xpose.msra.mxu0 0.0
  %581 = vmatprep.subr.mxu0 0.0
  %582 = vmatpush2.xpose.msra.mxu0 0.0
  %583 = vmatprep.subr.mxu0 0.0
  %584 = vmatpush2.xpose.msra.mxu0 0.0
  %585 = vmatprep.subr.mxu0 0.0
  %586 = vmatpush2.xpose.msra.mxu0 0.0
  %587 = vmatprep.subr.mxu0 0.0
  %588 = vmatpush2.xpose.msra.mxu0 0.0
  %589 = vmatprep.mubr.f32.mxu0 0.0
  %590 = vmatmul.mubr.f32.gmra.mxu0 %v521
  %v591 = vpop.f32.mrf.mxu0
  %v592 = vadd.f32 0.0, %v591
  %v593 = vpop.f32.mrf.mxu0
  %594 = vdwg.mxu0
  %595 = vrot.lane.b32.xlu0 %v171, 120
  %v596 = vpop.permute.xlu0 %595
  %597 = vrot.lane.b32.xlu0 %v171, 88
  %v598 = vpop.permute.xlu0 %597
  %v599 = vsel %vm177, %v596, 0
  %v601 = vsel %vm177, %v598, 0
  %603 = vmatprep.subr.mxu0 0.0
  %604 = vmatpush1.xpose.msra.mxu0 0.0
  %605 = vmatprep.subr.mxu0 0.0
  %606 = vmatpush1.xpose.msra.mxu0 0.0
  %607 = vmatprep.subr.mxu0 0.0
  %608 = vmatpush1.xpose.msra.mxu0 0.0
  %609 = vmatprep.subr.mxu0 0.0
  %610 = vmatpush1.xpose.msra.mxu0 0.0
  %611 = vmatprep.subr.mxu0 0.0
  %612 = vmatpush1.xpose.msra.mxu0 0.0
  %613 = vmatprep.subr.mxu0 0.0
  %614 = vmatpush1.xpose.msra.mxu0 0.0
  %615 = vmatprep.subr.mxu0 0.0
  %616 = vmatpush1.xpose.msra.mxu0 0.0
  %617 = vmatprep.subr.mxu0 0.0
  %618 = vmatpush1.xpose.msra.mxu0 0.0
  %619 = vmatprep.subr.mxu0 0.0
  %620 = vmatpush1.xpose.msra.mxu0 0.0
  %621 = vmatprep.subr.mxu0 0.0
  %622 = vmatpush1.xpose.msra.mxu0 0.0
  %623 = vmatprep.subr.mxu0 0.0
  %624 = vmatpush1.xpose.msra.mxu0 0.0
  %625 = vmatprep.subr.mxu0 0.0
  %626 = vmatpush1.xpose.msra.mxu0 0.0
  %627 = vmatprep.subr.mxu0 0.0
  %628 = vmatpush1.xpose.msra.mxu0 0.0
  %629 = vmatprep.subr.mxu0 0.0
  %630 = vmatpush1.xpose.msra.mxu0 0.0
  %631 = vmatprep.subr.mxu0 0.0
  %632 = vmatpush1.xpose.msra.mxu0 0.0
  %633 = vmatprep.subr.mxu0 0.0
  %634 = vmatpush1.xpose.msra.mxu0 %v601
  %635 = vmatprep.subr.mxu0 0.0
  %636 = vmatpush2.xpose.msra.mxu0 0.0
  %637 = vmatprep.subr.mxu0 0.0
  %638 = vmatpush2.xpose.msra.mxu0 0.0
  %639 = vmatprep.subr.mxu0 0.0
  %640 = vmatpush2.xpose.msra.mxu0 0.0
  %641 = vmatprep.subr.mxu0 0.0
  %642 = vmatpush2.xpose.msra.mxu0 0.0
  %643 = vmatprep.subr.mxu0 0.0
  %644 = vmatpush2.xpose.msra.mxu0 0.0
  %645 = vmatprep.subr.mxu0 0.0
  %646 = vmatpush2.xpose.msra.mxu0 0.0
  %647 = vmatprep.subr.mxu0 0.0
  %648 = vmatpush2.xpose.msra.mxu0 0.0
  %649 = vmatprep.subr.mxu0 0.0
  %650 = vmatpush2.xpose.msra.mxu0 0.0
  %651 = vmatprep.subr.mxu0 0.0
  %652 = vmatpush2.xpose.msra.mxu0 0.0
  %653 = vmatprep.subr.mxu0 0.0
  %654 = vmatpush2.xpose.msra.mxu0 0.0
  %655 = vmatprep.subr.mxu0 0.0
  %656 = vmatpush2.xpose.msra.mxu0 0.0
  %657 = vmatprep.subr.mxu0 0.0
  %658 = vmatpush2.xpose.msra.mxu0 0.0
  %659 = vmatprep.subr.mxu0 0.0
  %660 = vmatpush2.xpose.msra.mxu0 0.0
  %661 = vmatprep.subr.mxu0 0.0
  %662 = vmatpush2.xpose.msra.mxu0 0.0
  %663 = vmatprep.subr.mxu0 0.0
  %664 = vmatpush2.xpose.msra.mxu0 0.0
  %665 = vmatprep.subr.mxu0 0.0
  %666 = vmatpush2.xpose.msra.mxu0 0.0
  %667 = vmatprep.mubr.f32.mxu0 0.0
  %668 = vmatmul.mubr.f32.gmra.mxu0 %v599
  %v669 = vpop.f32.mrf.mxu0
  %v670 = vadd.f32 0.0, %v669
  %v671 = vpop.f32.mrf.mxu0
  %672 = vdwg.mxu0
  %v673 = vmul.f32 %v592, 0.35355338
  %v674 = vmul.f32 %v670, 0.35355338
  %v675 = vadd.f32 %v673, %v334
  %v676 = vadd.f32 %v674, %v338
  %v677 = vsel %vm177, %v675, -inf
  %678 = vmax.xlane.f32.xlu0 %v677
  %v679 = vpop.xlane.xlu0 %678
  %v680 = vsel %vm177, %v676, -inf
  %681 = vmax.xlane.f32.xlu0 %v680
  %v682 = vpop.xlane.xlu0 %681
  %v683 = vsub.f32 %v675, %v679
  %v684 = vsub.f32 %v676, %v682
  %v685 = vmul.f32 %v683, 1.442695
  %v686 = vpow.pop %v685
  %v687 = vmul.f32 %v684, 1.442695
  %v688 = vpow.pop %v687
  %v689 = vsel %vm177, %v686, 0.0
  %690 = vadd.xlane.f32.xlu0 %v689
  %v691 = vpop.xlane.xlu0 %690
  %v692 = vsel %vm177, %v688, 0.0
  %693 = vadd.xlane.f32.xlu0 %v692
  %v694 = vpop.xlane.xlu0 %693
  %v695 = vrcp.pop %v691
  %v696 = vrcp.pop %v694
  %v697 = vmul.f32 %v686, %v695
  %v698 = vmul.f32 %v688, %v696
  %699 = vrot.lane.b32.xlu0 %v166, 56
  %v700 = vpop.permute.xlu0 %699
  %v703 = vsel %vm177, %v697, 0
  %705 = vmatprep.subr.mxu0 0.0
  %706 = vmatpush1.msra.mxu0 0.0
  %707 = vmatprep.subr.mxu0 0.0
  %708 = vmatpush1.msra.mxu0 0.0
  %709 = vmatprep.subr.mxu0 0.0
  %710 = vmatpush1.msra.mxu0 0.0
  %711 = vmatprep.subr.mxu0 0.0
  %712 = vmatpush1.msra.mxu0 0.0
  %713 = vmatprep.subr.mxu0 0.0
  %714 = vmatpush1.msra.mxu0 0.0
  %715 = vmatprep.subr.mxu0 0.0
  %716 = vmatpush1.msra.mxu0 0.0
  %717 = vmatprep.subr.mxu0 0.0
  %718 = vmatpush1.msra.mxu0 0.0
  %719 = vmatprep.subr.mxu0 0.0
  %720 = vmatpush1.msra.mxu0 0.0
  %721 = vmatprep.subr.mxu0 0.0
  %722 = vmatpush1.msra.mxu0 0.0
  %723 = vmatprep.subr.mxu0 0.0
  %724 = vmatpush1.msra.mxu0 0.0
  %725 = vmatprep.subr.mxu0 0.0
  %726 = vmatpush1.msra.mxu0 0.0
  %727 = vmatprep.subr.mxu0 0.0
  %728 = vmatpush1.msra.mxu0 0.0
  %729 = vmatprep.subr.mxu0 0.0
  %730 = vmatpush1.msra.mxu0 0.0
  %731 = vmatprep.subr.mxu0 0.0
  %732 = vmatpush1.msra.mxu0 0.0
  %733 = vmatprep.subr.mxu0 0.0
  %734 = vmatpush1.msra.mxu0 0.0
  %735 = vmatprep.subr.mxu0 0.0
  %736 = vmatpush1.msra.mxu0 %v700
  %737 = vmatprep.subr.mxu0 0.0
  %738 = vmatpush2.msra.mxu0 0.0
  %739 = vmatprep.subr.mxu0 0.0
  %740 = vmatpush2.msra.mxu0 0.0
  %741 = vmatprep.subr.mxu0 0.0
  %742 = vmatpush2.msra.mxu0 0.0
  %743 = vmatprep.subr.mxu0 0.0
  %744 = vmatpush2.msra.mxu0 0.0
  %745 = vmatprep.subr.mxu0 0.0
  %746 = vmatpush2.msra.mxu0 0.0
  %747 = vmatprep.subr.mxu0 0.0
  %748 = vmatpush2.msra.mxu0 0.0
  %749 = vmatprep.subr.mxu0 0.0
  %750 = vmatpush2.msra.mxu0 0.0
  %751 = vmatprep.subr.mxu0 0.0
  %752 = vmatpush2.msra.mxu0 0.0
  %753 = vmatprep.subr.mxu0 0.0
  %754 = vmatpush2.msra.mxu0 0.0
  %755 = vmatprep.subr.mxu0 0.0
  %756 = vmatpush2.msra.mxu0 0.0
  %757 = vmatprep.subr.mxu0 0.0
  %758 = vmatpush2.msra.mxu0 0.0
  %759 = vmatprep.subr.mxu0 0.0
  %760 = vmatpush2.msra.mxu0 0.0
  %761 = vmatprep.subr.mxu0 0.0
  %762 = vmatpush2.msra.mxu0 0.0
  %763 = vmatprep.subr.mxu0 0.0
  %764 = vmatpush2.msra.mxu0 0.0
  %765 = vmatprep.subr.mxu0 0.0
  %766 = vmatpush2.msra.mxu0 0.0
  %767 = vmatprep.subr.mxu0 0.0
  %768 = vmatpush2.msra.mxu0 0.0
  %769 = vmatprep.mubr.f32.mxu0 0.0
  %770 = vmatmul.mubr.f32.gmra.mxu0 %v703
  %v771 = vpop.f32.mrf.mxu0
  %v772 = vadd.f32 0.0, %v771
  %v773 = vpop.f32.mrf.mxu0
  %774 = vdwg.mxu0
  %775 = vrot.lane.b32.xlu0 %v171, 56
  %v776 = vpop.permute.xlu0 %775
  %v779 = vsel %vm177, %v698, 0
  %781 = vmatprep.subr.mxu0 0.0
  %782 = vmatpush1.msra.mxu0 0.0
  %783 = vmatprep.subr.mxu0 0.0
  %784 = vmatpush1.msra.mxu0 0.0
  %785 = vmatprep.subr.mxu0 0.0
  %786 = vmatpush1.msra.mxu0 0.0
  %787 = vmatprep.subr.mxu0 0.0
  %788 = vmatpush1.msra.mxu0 0.0
  %789 = vmatprep.subr.mxu0 0.0
  %790 = vmatpush1.msra.mxu0 0.0
  %791 = vmatprep.subr.mxu0 0.0
  %792 = vmatpush1.msra.mxu0 0.0
  %793 = vmatprep.subr.mxu0 0.0
  %794 = vmatpush1.msra.mxu0 0.0
  %795 = vmatprep.subr.mxu0 0.0
  %796 = vmatpush1.msra.mxu0 0.0
  %797 = vmatprep.subr.mxu0 0.0
  %798 = vmatpush1.msra.mxu0 0.0
  %799 = vmatprep.subr.mxu0 0.0
  %800 = vmatpush1.msra.mxu0 0.0
  %801 = vmatprep.subr.mxu0 0.0
  %802 = vmatpush1.msra.mxu0 0.0
  %803 = vmatprep.subr.mxu0 0.0
  %804 = vmatpush1.msra.mxu0 0.0
  %805 = vmatprep.subr.mxu0 0.0
  %806 = vmatpush1.msra.mxu0 0.0
  %807 = vmatprep.subr.mxu0 0.0
  %808 = vmatpush1.msra.mxu0 0.0
  %809 = vmatprep.subr.mxu0 0.0
  %810 = vmatpush1.msra.mxu0 0.0
  %811 = vmatprep.subr.mxu0 0.0
  %812 = vmatpush1.msra.mxu0 %v776
  %813 = vmatprep.subr.mxu0 0.0
  %814 = vmatpush2.msra.mxu0 0.0
  %815 = vmatprep.subr.mxu0 0.0
  %816 = vmatpush2.msra.mxu0 0.0
  %817 = vmatprep.subr.mxu0 0.0
  %818 = vmatpush2.msra.mxu0 0.0
  %819 = vmatprep.subr.mxu0 0.0
  %820 = vmatpush2.msra.mxu0 0.0
  %821 = vmatprep.subr.mxu0 0.0
  %822 = vmatpush2.msra.mxu0 0.0
  %823 = vmatprep.subr.mxu0 0.0
  %824 = vmatpush2.msra.mxu0 0.0
  %825 = vmatprep.subr.mxu0 0.0
  %826 = vmatpush2.msra.mxu0 0.0
  %827 = vmatprep.subr.mxu0 0.0
  %828 = vmatpush2.msra.mxu0 0.0
  %829 = vmatprep.subr.mxu0 0.0
  %830 = vmatpush2.msra.mxu0 0.0
  %831 = vmatprep.subr.mxu0 0.0
  %832 = vmatpush2.msra.mxu0 0.0
  %833 = vmatprep.subr.mxu0 0.0
  %834 = vmatpush2.msra.mxu0 0.0
  %835 = vmatprep.subr.mxu0 0.0
  %836 = vmatpush2.msra.mxu0 0.0
  %837 = vmatprep.subr.mxu0 0.0
  %838 = vmatpush2.msra.mxu0 0.0
  %839 = vmatprep.subr.mxu0 0.0
  %840 = vmatpush2.msra.mxu0 0.0
  %841 = vmatprep.subr.mxu0 0.0
  %842 = vmatpush2.msra.mxu0 0.0
  %843 = vmatprep.subr.mxu0 0.0
  %844 = vmatpush2.msra.mxu0 0.0
  %845 = vmatprep.mubr.f32.mxu0 0.0
  %846 = vmatmul.mubr.f32.gmra.mxu0 %v779
  %v847 = vpop.f32.mrf.mxu0
  %v848 = vadd.f32 0.0, %v847
  %v849 = vpop.f32.mrf.mxu0
  %850 = vdwg.mxu0
  %851 = vrot.lane.b32.xlu0 %v166, 112
  %v852 = vpop.permute.xlu0 %851
  %853 = vrot.lane.b32.xlu0 %v166, 80
  %v854 = vpop.permute.xlu0 %853
  %v855 = vsel %vm177, %v852, 0
  %v857 = vsel %vm177, %v854, 0
  %859 = vmatprep.subr.mxu0 0.0
  %860 = vmatpush1.xpose.msra.mxu0 0.0
  %861 = vmatprep.subr.mxu0 0.0
  %862 = vmatpush1.xpose.msra.mxu0 0.0
  %863 = vmatprep.subr.mxu0 0.0
  %864 = vmatpush1.xpose.msra.mxu0 0.0
  %865 = vmatprep.subr.mxu0 0.0
  %866 = vmatpush1.xpose.msra.mxu0 0.0
  %867 = vmatprep.subr.mxu0 0.0
  %868 = vmatpush1.xpose.msra.mxu0 0.0
  %869 = vmatprep.subr.mxu0 0.0
  %870 = vmatpush1.xpose.msra.mxu0 0.0
  %871 = vmatprep.subr.mxu0 0.0
  %872 = vmatpush1.xpose.msra.mxu0 0.0
  %873 = vmatprep.subr.mxu0 0.0
  %874 = vmatpush1.xpose.msra.mxu0 0.0
  %875 = vmatprep.subr.mxu0 0.0
  %876 = vmatpush1.xpose.msra.mxu0 0.0
  %877 = vmatprep.subr.mxu0 0.0
  %878 = vmatpush1.xpose.msra.mxu0 0.0
  %879 = vmatprep.subr.mxu0 0.0
  %880 = vmatpush1.xpose.msra.mxu0 0.0
  %881 = vmatprep.subr.mxu0 0.0
  %882 = vmatpush1.xpose.msra.mxu0 0.0
  %883 = vmatprep.subr.mxu0 0.0
  %884 = vmatpush1.xpose.msra.mxu0 0.0
  %885 = vmatprep.subr.mxu0 0.0
  %886 = vmatpush1.xpose.msra.mxu0 0.0
  %887 = vmatprep.subr.mxu0 0.0
  %888 = vmatpush1.xpose.msra.mxu0 0.0
  %889 = vmatprep.subr.mxu0 0.0
  %890 = vmatpush1.xpose.msra.mxu0 %v857
  %891 = vmatprep.subr.mxu0 0.0
  %892 = vmatpush2.xpose.msra.mxu0 0.0
  %893 = vmatprep.subr.mxu0 0.0
  %894 = vmatpush2.xpose.msra.mxu0 0.0
  %895 = vmatprep.subr.mxu0 0.0
  %896 = vmatpush2.xpose.msra.mxu0 0.0
  %897 = vmatprep.subr.mxu0 0.0
  %898 = vmatpush2.xpose.msra.mxu0 0.0
  %899 = vmatprep.subr.mxu0 0.0
  %900 = vmatpush2.xpose.msra.mxu0 0.0
  %901 = vmatprep.subr.mxu0 0.0
  %902 = vmatpush2.xpose.msra.mxu0 0.0
  %903 = vmatprep.subr.mxu0 0.0
  %904 = vmatpush2.xpose.msra.mxu0 0.0
  %905 = vmatprep.subr.mxu0 0.0
  %906 = vmatpush2.xpose.msra.mxu0 0.0
  %907 = vmatprep.subr.mxu0 0.0
  %908 = vmatpush2.xpose.msra.mxu0 0.0
  %909 = vmatprep.subr.mxu0 0.0
  %910 = vmatpush2.xpose.msra.mxu0 0.0
  %911 = vmatprep.subr.mxu0 0.0
  %912 = vmatpush2.xpose.msra.mxu0 0.0
  %913 = vmatprep.subr.mxu0 0.0
  %914 = vmatpush2.xpose.msra.mxu0 0.0
  %915 = vmatprep.subr.mxu0 0.0
  %916 = vmatpush2.xpose.msra.mxu0 0.0
  %917 = vmatprep.subr.mxu0 0.0
  %918 = vmatpush2.xpose.msra.mxu0 0.0
  %919 = vmatprep.subr.mxu0 0.0
  %920 = vmatpush2.xpose.msra.mxu0 0.0
  %921 = vmatprep.subr.mxu0 0.0
  %922 = vmatpush2.xpose.msra.mxu0 0.0
  %923 = vmatprep.mubr.f32.mxu0 0.0
  %924 = vmatmul.mubr.f32.gmra.mxu0 %v855
  %v925 = vpop.f32.mrf.mxu0
  %v926 = vadd.f32 0.0, %v925
  %v927 = vpop.f32.mrf.mxu0
  %928 = vdwg.mxu0
  %929 = vrot.lane.b32.xlu0 %v171, 112
  %v930 = vpop.permute.xlu0 %929
  %931 = vrot.lane.b32.xlu0 %v171, 80
  %v932 = vpop.permute.xlu0 %931
  %v933 = vsel %vm177, %v930, 0
  %v935 = vsel %vm177, %v932, 0
  %937 = vmatprep.subr.mxu0 0.0
  %938 = vmatpush1.xpose.msra.mxu0 0.0
  %939 = vmatprep.subr.mxu0 0.0
  %940 = vmatpush1.xpose.msra.mxu0 0.0
  %941 = vmatprep.subr.mxu0 0.0
  %942 = vmatpush1.xpose.msra.mxu0 0.0
  %943 = vmatprep.subr.mxu0 0.0
  %944 = vmatpush1.xpose.msra.mxu0 0.0
  %945 = vmatprep.subr.mxu0 0.0
  %946 = vmatpush1.xpose.msra.mxu0 0.0
  %947 = vmatprep.subr.mxu0 0.0
  %948 = vmatpush1.xpose.msra.mxu0 0.0
  %949 = vmatprep.subr.mxu0 0.0
  %950 = vmatpush1.xpose.msra.mxu0 0.0
  %951 = vmatprep.subr.mxu0 0.0
  %952 = vmatpush1.xpose.msra.mxu0 0.0
  %953 = vmatprep.subr.mxu0 0.0
  %954 = vmatpush1.xpose.msra.mxu0 0.0
  %955 = vmatprep.subr.mxu0 0.0
  %956 = vmatpush1.xpose.msra.mxu0 0.0
  %957 = vmatprep.subr.mxu0 0.0
  %958 = vmatpush1.xpose.msra.mxu0 0.0
  %959 = vmatprep.subr.mxu0 0.0
  %960 = vmatpush1.xpose.msra.mxu0 0.0
  %961 = vmatprep.subr.mxu0 0.0
  %962 = vmatpush1.xpose.msra.mxu0 0.0
  %963 = vmatprep.subr.mxu0 0.0
  %964 = vmatpush1.xpose.msra.mxu0 0.0
  %965 = vmatprep.subr.mxu0 0.0
  %966 = vmatpush1.xpose.msra.mxu0 0.0
  %967 = vmatprep.subr.mxu0 0.0
  %968 = vmatpush1.xpose.msra.mxu0 %v935
  %969 = vmatprep.subr.mxu0 0.0
  %970 = vmatpush2.xpose.msra.mxu0 0.0
  %971 = vmatprep.subr.mxu0 0.0
  %972 = vmatpush2.xpose.msra.mxu0 0.0
  %973 = vmatprep.subr.mxu0 0.0
  %974 = vmatpush2.xpose.msra.mxu0 0.0
  %975 = vmatprep.subr.mxu0 0.0
  %976 = vmatpush2.xpose.msra.mxu0 0.0
  %977 = vmatprep.subr.mxu0 0.0
  %978 = vmatpush2.xpose.msra.mxu0 0.0
  %979 = vmatprep.subr.mxu0 0.0
  %980 = vmatpush2.xpose.msra.mxu0 0.0
  %981 = vmatprep.subr.mxu0 0.0
  %982 = vmatpush2.xpose.msra.mxu0 0.0
  %983 = vmatprep.subr.mxu0 0.0
  %984 = vmatpush2.xpose.msra.mxu0 0.0
  %985 = vmatprep.subr.mxu0 0.0
  %986 = vmatpush2.xpose.msra.mxu0 0.0
  %987 = vmatprep.subr.mxu0 0.0
  %988 = vmatpush2.xpose.msra.mxu0 0.0
  %989 = vmatprep.subr.mxu0 0.0
  %990 = vmatpush2.xpose.msra.mxu0 0.0
  %991 = vmatprep.subr.mxu0 0.0
  %992 = vmatpush2.xpose.msra.mxu0 0.0
  %993 = vmatprep.subr.mxu0 0.0
  %994 = vmatpush2.xpose.msra.mxu0 0.0
  %995 = vmatprep.subr.mxu0 0.0
  %996 = vmatpush2.xpose.msra.mxu0 0.0
  %997 = vmatprep.subr.mxu0 0.0
  %998 = vmatpush2.xpose.msra.mxu0 0.0
  %999 = vmatprep.subr.mxu0 0.0
  %1000 = vmatpush2.xpose.msra.mxu0 0.0
  %1001 = vmatprep.mubr.f32.mxu0 0.0
  %1002 = vmatmul.mubr.f32.gmra.mxu0 %v933
  %v1003 = vpop.f32.mrf.mxu0
  %v1004 = vadd.f32 0.0, %v1003
  %v1005 = vpop.f32.mrf.mxu0
  %1006 = vdwg.mxu0
  %v1007 = vmul.f32 %v926, 0.35355338
  %v1008 = vmul.f32 %v1004, 0.35355338
  %v1009 = vadd.f32 %v1007, %v334
  %v1010 = vadd.f32 %v1008, %v338
  %v1011 = vsel %vm177, %v1009, -inf
  %1012 = vmax.xlane.f32.xlu0 %v1011
  %v1013 = vpop.xlane.xlu0 %1012
  %v1014 = vsel %vm177, %v1010, -inf
  %1015 = vmax.xlane.f32.xlu0 %v1014
  %v1016 = vpop.xlane.xlu0 %1015
  %v1017 = vsub.f32 %v1009, %v1013
  %v1018 = vsub.f32 %v1010, %v1016
  %v1019 = vmul.f32 %v1017, 1.442695
  %v1020 = vpow.pop %v1019
  %v1021 = vmul.f32 %v1018, 1.442695
  %v1022 = vpow.pop %v1021
  %v1023 = vsel %vm177, %v1020, 0.0
  %1024 = vadd.xlane.f32.xlu0 %v1023
  %v1025 = vpop.xlane.xlu0 %1024
  %v1026 = vsel %vm177, %v1022, 0.0
  %1027 = vadd.xlane.f32.xlu0 %v1026
  %v1028 = vpop.xlane.xlu0 %1027
  %v1029 = vrcp.pop %v1025
  %v1030 = vrcp.pop %v1028
  %v1031 = vmul.f32 %v1020, %v1029
  %v1032 = vmul.f32 %v1022, %v1030
  %1033 = vrot.lane.b32.xlu0 %v166, 48
  %v1034 = vpop.permute.xlu0 %1033
  %v1037 = vsel %vm177, %v1031, 0
  %1039 = vmatprep.subr.mxu0 0.0
  %1040 = vmatpush1.msra.mxu0 0.0
  %1041 = vmatprep.subr.mxu0 0.0
  %1042 = vmatpush1.msra.mxu0 0.0
  %1043 = vmatprep.subr.mxu0 0.0
  %1044 = vmatpush1.msra.mxu0 0.0
  %1045 = vmatprep.subr.mxu0 0.0
  %1046 = vmatpush1.msra.mxu0 0.0
  %1047 = vmatprep.subr.mxu0 0.0
  %1048 = vmatpush1.msra.mxu0 0.0
  %1049 = vmatprep.subr.mxu0 0.0
  %1050 = vmatpush1.msra.mxu0 0.0
  %1051 = vmatprep.subr.mxu0 0.0
  %1052 = vmatpush1.msra.mxu0 0.0
  %1053 = vmatprep.subr.mxu0 0.0
  %1054 = vmatpush1.msra.mxu0 0.0
  %1055 = vmatprep.subr.mxu0 0.0
  %1056 = vmatpush1.msra.mxu0 0.0
  %1057 = vmatprep.subr.mxu0 0.0
  %1058 = vmatpush1.msra.mxu0 0.0
  %1059 = vmatprep.subr.mxu0 0.0
  %1060 = vmatpush1.msra.mxu0 0.0
  %1061 = vmatprep.subr.mxu0 0.0
  %1062 = vmatpush1.msra.mxu0 0.0
  %1063 = vmatprep.subr.mxu0 0.0
  %1064 = vmatpush1.msra.mxu0 0.0
  %1065 = vmatprep.subr.mxu0 0.0
  %1066 = vmatpush1.msra.mxu0 0.0
  %1067 = vmatprep.subr.mxu0 0.0
  %1068 = vmatpush1.msra.mxu0 0.0
  %1069 = vmatprep.subr.mxu0 0.0
  %1070 = vmatpush1.msra.mxu0 %v1034
  %1071 = vmatprep.subr.mxu0 0.0
  %1072 = vmatpush2.msra.mxu0 0.0
  %1073 = vmatprep.subr.mxu0 0.0
  %1074 = vmatpush2.msra.mxu0 0.0
  %1075 = vmatprep.subr.mxu0 0.0
  %1076 = vmatpush2.msra.mxu0 0.0
  %1077 = vmatprep.subr.mxu0 0.0
  %1078 = vmatpush2.msra.mxu0 0.0
  %1079 = vmatprep.subr.mxu0 0.0
  %1080 = vmatpush2.msra.mxu0 0.0
  %1081 = vmatprep.subr.mxu0 0.0
  %1082 = vmatpush2.msra.mxu0 0.0
  %1083 = vmatprep.subr.mxu0 0.0
  %1084 = vmatpush2.msra.mxu0 0.0
  %1085 = vmatprep.subr.mxu0 0.0
  %1086 = vmatpush2.msra.mxu0 0.0
  %1087 = vmatprep.subr.mxu0 0.0
  %1088 = vmatpush2.msra.mxu0 0.0
  %1089 = vmatprep.subr.mxu0 0.0
  %1090 = vmatpush2.msra.mxu0 0.0
  %1091 = vmatprep.subr.mxu0 0.0
  %1092 = vmatpush2.msra.mxu0 0.0
  %1093 = vmatprep.subr.mxu0 0.0
  %1094 = vmatpush2.msra.mxu0 0.0
  %1095 = vmatprep.subr.mxu0 0.0
  %1096 = vmatpush2.msra.mxu0 0.0
  %1097 = vmatprep.subr.mxu0 0.0
  %1098 = vmatpush2.msra.mxu0 0.0
  %1099 = vmatprep.subr.mxu0 0.0
  %1100 = vmatpush2.msra.mxu0 0.0
  %1101 = vmatprep.subr.mxu0 0.0
  %1102 = vmatpush2.msra.mxu0 0.0
  %1103 = vmatprep.mubr.f32.mxu0 0.0
  %1104 = vmatmul.mubr.f32.gmra.mxu0 %v1037
  %v1105 = vpop.f32.mrf.mxu0
  %v1106 = vadd.f32 0.0, %v1105
  %v1107 = vpop.f32.mrf.mxu0
  %1108 = vdwg.mxu0
  %1109 = vrot.lane.b32.xlu0 %v171, 48
  %v1110 = vpop.permute.xlu0 %1109
  %v1113 = vsel %vm177, %v1032, 0
  %1115 = vmatprep.subr.mxu0 0.0
  %1116 = vmatpush1.msra.mxu0 0.0
  %1117 = vmatprep.subr.mxu0 0.0
  %1118 = vmatpush1.msra.mxu0 0.0
  %1119 = vmatprep.subr.mxu0 0.0
  %1120 = vmatpush1.msra.mxu0 0.0
  %1121 = vmatprep.subr.mxu0 0.0
  %1122 = vmatpush1.msra.mxu0 0.0
  %1123 = vmatprep.subr.mxu0 0.0
  %1124 = vmatpush1.msra.mxu0 0.0
  %1125 = vmatprep.subr.mxu0 0.0
  %1126 = vmatpush1.msra.mxu0 0.0
  %1127 = vmatprep.subr.mxu0 0.0
  %1128 = vmatpush1.msra.mxu0 0.0
  %1129 = vmatprep.subr.mxu0 0.0
  %1130 = vmatpush1.msra.mxu0 0.0
  %1131 = vmatprep.subr.mxu0 0.0
  %1132 = vmatpush1.msra.mxu0 0.0
  %1133 = vmatprep.subr.mxu0 0.0
  %1134 = vmatpush1.msra.mxu0 0.0
  %1135 = vmatprep.subr.mxu0 0.0
  %1136 = vmatpush1.msra.mxu0 0.0
  %1137 = vmatprep.subr.mxu0 0.0
  %1138 = vmatpush1.msra.mxu0 0.0
  %1139 = vmatprep.subr.mxu0 0.0
  %1140 = vmatpush1.msra.mxu0 0.0
  %1141 = vmatprep.subr.mxu0 0.0
  %1142 = vmatpush1.msra.mxu0 0.0
  %1143 = vmatprep.subr.mxu0 0.0
  %1144 = vmatpush1.msra.mxu0 0.0
  %1145 = vmatprep.subr.mxu0 0.0
  %1146 = vmatpush1.msra.mxu0 %v1110
  %1147 = vmatprep.subr.mxu0 0.0
  %1148 = vmatpush2.msra.mxu0 0.0
  %1149 = vmatprep.subr.mxu0 0.0
  %1150 = vmatpush2.msra.mxu0 0.0
  %1151 = vmatprep.subr.mxu0 0.0
  %1152 = vmatpush2.msra.mxu0 0.0
  %1153 = vmatprep.subr.mxu0 0.0
  %1154 = vmatpush2.msra.mxu0 0.0
  %1155 = vmatprep.subr.mxu0 0.0
  %1156 = vmatpush2.msra.mxu0 0.0
  %1157 = vmatprep.subr.mxu0 0.0
  %1158 = vmatpush2.msra.mxu0 0.0
  %1159 = vmatprep.subr.mxu0 0.0
  %1160 = vmatpush2.msra.mxu0 0.0
  %1161 = vmatprep.subr.mxu0 0.0
  %1162 = vmatpush2.msra.mxu0 0.0
  %1163 = vmatprep.subr.mxu0 0.0
  %1164 = vmatpush2.msra.mxu0 0.0
  %1165 = vmatprep.subr.mxu0 0.0
  %1166 = vmatpush2.msra.mxu0 0.0
  %1167 = vmatprep.subr.mxu0 0.0
  %1168 = vmatpush2.msra.mxu0 0.0
  %1169 = vmatprep.subr.mxu0 0.0
  %1170 = vmatpush2.msra.mxu0 0.0
  %1171 = vmatprep.subr.mxu0 0.0
  %1172 = vmatpush2.msra.mxu0 0.0
  %1173 = vmatprep.subr.mxu0 0.0
  %1174 = vmatpush2.msra.mxu0 0.0
  %1175 = vmatprep.subr.mxu0 0.0
  %1176 = vmatpush2.msra.mxu0 0.0
  %1177 = vmatprep.subr.mxu0 0.0
  %1178 = vmatpush2.msra.mxu0 0.0
  %1179 = vmatprep.mubr.f32.mxu0 0.0
  %1180 = vmatmul.mubr.f32.gmra.mxu0 %v1113
  %v1181 = vpop.f32.mrf.mxu0
  %v1182 = vadd.f32 0.0, %v1181
  %v1183 = vpop.f32.mrf.mxu0
  %1184 = vdwg.mxu0
  %1185 = vrot.lane.b32.xlu0 %v166, 104
  %v1186 = vpop.permute.xlu0 %1185
  %1187 = vrot.lane.b32.xlu0 %v166, 72
  %v1188 = vpop.permute.xlu0 %1187
  %v1189 = vsel %vm177, %v1186, 0
  %v1191 = vsel %vm177, %v1188, 0
  %1193 = vmatprep.subr.mxu0 0.0
  %1194 = vmatpush1.xpose.msra.mxu0 0.0
  %1195 = vmatprep.subr.mxu0 0.0
  %1196 = vmatpush1.xpose.msra.mxu0 0.0
  %1197 = vmatprep.subr.mxu0 0.0
  %1198 = vmatpush1.xpose.msra.mxu0 0.0
  %1199 = vmatprep.subr.mxu0 0.0
  %1200 = vmatpush1.xpose.msra.mxu0 0.0
  %1201 = vmatprep.subr.mxu0 0.0
  %1202 = vmatpush1.xpose.msra.mxu0 0.0
  %1203 = vmatprep.subr.mxu0 0.0
  %1204 = vmatpush1.xpose.msra.mxu0 0.0
  %1205 = vmatprep.subr.mxu0 0.0
  %1206 = vmatpush1.xpose.msra.mxu0 0.0
  %1207 = vmatprep.subr.mxu0 0.0
  %1208 = vmatpush1.xpose.msra.mxu0 0.0
  %1209 = vmatprep.subr.mxu0 0.0
  %1210 = vmatpush1.xpose.msra.mxu0 0.0
  %1211 = vmatprep.subr.mxu0 0.0
  %1212 = vmatpush1.xpose.msra.mxu0 0.0
  %1213 = vmatprep.subr.mxu0 0.0
  %1214 = vmatpush1.xpose.msra.mxu0 0.0
  %1215 = vmatprep.subr.mxu0 0.0
  %1216 = vmatpush1.xpose.msra.mxu0 0.0
  %1217 = vmatprep.subr.mxu0 0.0
  %1218 = vmatpush1.xpose.msra.mxu0 0.0
  %1219 = vmatprep.subr.mxu0 0.0
  %1220 = vmatpush1.xpose.msra.mxu0 0.0
  %1221 = vmatprep.subr.mxu0 0.0
  %1222 = vmatpush1.xpose.msra.mxu0 0.0
  %1223 = vmatprep.subr.mxu0 0.0
  %1224 = vmatpush1.xpose.msra.mxu0 %v1191
  %1225 = vmatprep.subr.mxu0 0.0
  %1226 = vmatpush2.xpose.msra.mxu0 0.0
  %1227 = vmatprep.subr.mxu0 0.0
  %1228 = vmatpush2.xpose.msra.mxu0 0.0
  %1229 = vmatprep.subr.mxu0 0.0
  %1230 = vmatpush2.xpose.msra.mxu0 0.0
  %1231 = vmatprep.subr.mxu0 0.0
  %1232 = vmatpush2.xpose.msra.mxu0 0.0
  %1233 = vmatprep.subr.mxu0 0.0
  %1234 = vmatpush2.xpose.msra.mxu0 0.0
  %1235 = vmatprep.subr.mxu0 0.0
  %1236 = vmatpush2.xpose.msra.mxu0 0.0
  %1237 = vmatprep.subr.mxu0 0.0
  %1238 = vmatpush2.xpose.msra.mxu0 0.0
  %1239 = vmatprep.subr.mxu0 0.0
  %1240 = vmatpush2.xpose.msra.mxu0 0.0
  %1241 = vmatprep.subr.mxu0 0.0
  %1242 = vmatpush2.xpose.msra.mxu0 0.0
  %1243 = vmatprep.subr.mxu0 0.0
  %1244 = vmatpush2.xpose.msra.mxu0 0.0
  %1245 = vmatprep.subr.mxu0 0.0
  %1246 = vmatpush2.xpose.msra.mxu0 0.0
  %1247 = vmatprep.subr.mxu0 0.0
  %1248 = vmatpush2.xpose.msra.mxu0 0.0
  %1249 = vmatprep.subr.mxu0 0.0
  %1250 = vmatpush2.xpose.msra.mxu0 0.0
  %1251 = vmatprep.subr.mxu0 0.0
  %1252 = vmatpush2.xpose.msra.mxu0 0.0
  %1253 = vmatprep.subr.mxu0 0.0
  %1254 = vmatpush2.xpose.msra.mxu0 0.0
  %1255 = vmatprep.subr.mxu0 0.0
  %1256 = vmatpush2.xpose.msra.mxu0 0.0
  %1257 = vmatprep.mubr.f32.mxu0 0.0
  %1258 = vmatmul.mubr.f32.gmra.mxu0 %v1189
  %v1259 = vpop.f32.mrf.mxu0
  %v1260 = vadd.f32 0.0, %v1259
  %v1261 = vpop.f32.mrf.mxu0
  %1262 = vdwg.mxu0
  %1263 = vrot.lane.b32.xlu0 %v171, 104
  %v1264 = vpop.permute.xlu0 %1263
  %1265 = vrot.lane.b32.xlu0 %v171, 72
  %v1266 = vpop.permute.xlu0 %1265
  %v1267 = vsel %vm177, %v1264, 0
  %v1269 = vsel %vm177, %v1266, 0
  %1271 = vmatprep.subr.mxu0 0.0
  %1272 = vmatpush1.xpose.msra.mxu0 0.0
  %1273 = vmatprep.subr.mxu0 0.0
  %1274 = vmatpush1.xpose.msra.mxu0 0.0
  %1275 = vmatprep.subr.mxu0 0.0
  %1276 = vmatpush1.xpose.msra.mxu0 0.0
  %1277 = vmatprep.subr.mxu0 0.0
  %1278 = vmatpush1.xpose.msra.mxu0 0.0
  %1279 = vmatprep.subr.mxu0 0.0
  %1280 = vmatpush1.xpose.msra.mxu0 0.0
  %1281 = vmatprep.subr.mxu0 0.0
  %1282 = vmatpush1.xpose.msra.mxu0 0.0
  %1283 = vmatprep.subr.mxu0 0.0
  %1284 = vmatpush1.xpose.msra.mxu0 0.0
  %1285 = vmatprep.subr.mxu0 0.0
  %1286 = vmatpush1.xpose.msra.mxu0 0.0
  %1287 = vmatprep.subr.mxu0 0.0
  %1288 = vmatpush1.xpose.msra.mxu0 0.0
  %1289 = vmatprep.subr.mxu0 0.0
  %1290 = vmatpush1.xpose.msra.mxu0 0.0
  %1291 = vmatprep.subr.mxu0 0.0
  %1292 = vmatpush1.xpose.msra.mxu0 0.0
  %1293 = vmatprep.subr.mxu0 0.0
  %1294 = vmatpush1.xpose.msra.mxu0 0.0
  %1295 = vmatprep.subr.mxu0 0.0
  %1296 = vmatpush1.xpose.msra.mxu0 0.0
  %1297 = vmatprep.subr.mxu0 0.0
  %1298 = vmatpush1.xpose.msra.mxu0 0.0
  %1299 = vmatprep.subr.mxu0 0.0
  %1300 = vmatpush1.xpose.msra.mxu0 0.0
  %1301 = vmatprep.subr.mxu0 0.0
  %1302 = vmatpush1.xpose.msra.mxu0 %v1269
  %1303 = vmatprep.subr.mxu0 0.0
  %1304 = vmatpush2.xpose.msra.mxu0 0.0
  %1305 = vmatprep.subr.mxu0 0.0
  %1306 = vmatpush2.xpose.msra.mxu0 0.0
  %1307 = vmatprep.subr.mxu0 0.0
  %1308 = vmatpush2.xpose.msra.mxu0 0.0
  %1309 = vmatprep.subr.mxu0 0.0
  %1310 = vmatpush2.xpose.msra.mxu0 0.0
  %1311 = vmatprep.subr.mxu0 0.0
  %1312 = vmatpush2.xpose.msra.mxu0 0.0
  %1313 = vmatprep.subr.mxu0 0.0
  %1314 = vmatpush2.xpose.msra.mxu0 0.0
  %1315 = vmatprep.subr.mxu0 0.0
  %1316 = vmatpush2.xpose.msra.mxu0 0.0
  %1317 = vmatprep.subr.mxu0 0.0
  %1318 = vmatpush2.xpose.msra.mxu0 0.0
  %1319 = vmatprep.subr.mxu0 0.0
  %1320 = vmatpush2.xpose.msra.mxu0 0.0
  %1321 = vmatprep.subr.mxu0 0.0
  %1322 = vmatpush2.xpose.msra.mxu0 0.0
  %1323 = vmatprep.subr.mxu0 0.0
  %1324 = vmatpush2.xpose.msra.mxu0 0.0
  %1325 = vmatprep.subr.mxu0 0.0
  %1326 = vmatpush2.xpose.msra.mxu0 0.0
  %1327 = vmatprep.subr.mxu0 0.0
  %1328 = vmatpush2.xpose.msra.mxu0 0.0
  %1329 = vmatprep.subr.mxu0 0.0
  %1330 = vmatpush2.xpose.msra.mxu0 0.0
  %1331 = vmatprep.subr.mxu0 0.0
  %1332 = vmatpush2.xpose.msra.mxu0 0.0
  %1333 = vmatprep.subr.mxu0 0.0
  %1334 = vmatpush2.xpose.msra.mxu0 0.0
  %1335 = vmatprep.mubr.f32.mxu0 0.0
  %1336 = vmatmul.mubr.f32.gmra.mxu0 %v1267
  %v1337 = vpop.f32.mrf.mxu0
  %v1338 = vadd.f32 0.0, %v1337
  %v1339 = vpop.f32.mrf.mxu0
  %1340 = vdwg.mxu0
  %v1341 = vmul.f32 %v1260, 0.35355338
  %v1342 = vmul.f32 %v1338, 0.35355338
  %v1343 = vadd.f32 %v1341, %v334
  %v1344 = vadd.f32 %v1342, %v338
  %v1345 = vsel %vm177, %v1343, -inf
  %1346 = vmax.xlane.f32.xlu0 %v1345
  %v1347 = vpop.xlane.xlu0 %1346
  %v1348 = vsel %vm177, %v1344, -inf
  %1349 = vmax.xlane.f32.xlu0 %v1348
  %v1350 = vpop.xlane.xlu0 %1349
  %v1351 = vsub.f32 %v1343, %v1347
  %v1352 = vsub.f32 %v1344, %v1350
  %v1353 = vmul.f32 %v1351, 1.442695
  %v1354 = vpow.pop %v1353
  %v1355 = vmul.f32 %v1352, 1.442695
  %v1356 = vpow.pop %v1355
  %v1357 = vsel %vm177, %v1354, 0.0
  %1358 = vadd.xlane.f32.xlu0 %v1357
  %v1359 = vpop.xlane.xlu0 %1358
  %v1360 = vsel %vm177, %v1356, 0.0
  %1361 = vadd.xlane.f32.xlu0 %v1360
  %v1362 = vpop.xlane.xlu0 %1361
  %v1363 = vrcp.pop %v1359
  %v1364 = vrcp.pop %v1362
  %v1365 = vmul.f32 %v1354, %v1363
  %v1366 = vmul.f32 %v1356, %v1364
  %1367 = vrot.lane.b32.xlu0 %v166, 40
  %v1368 = vpop.permute.xlu0 %1367
  %v1371 = vsel %vm177, %v1365, 0
  %1373 = vmatprep.subr.mxu0 0.0
  %1374 = vmatpush1.msra.mxu0 0.0
  %1375 = vmatprep.subr.mxu0 0.0
  %1376 = vmatpush1.msra.mxu0 0.0
  %1377 = vmatprep.subr.mxu0 0.0
  %1378 = vmatpush1.msra.mxu0 0.0
  %1379 = vmatprep.subr.mxu0 0.0
  %1380 = vmatpush1.msra.mxu0 0.0
  %1381 = vmatprep.subr.mxu0 0.0
  %1382 = vmatpush1.msra.mxu0 0.0
  %1383 = vmatprep.subr.mxu0 0.0
  %1384 = vmatpush1.msra.mxu0 0.0
  %1385 = vmatprep.subr.mxu0 0.0
  %1386 = vmatpush1.msra.mxu0 0.0
  %1387 = vmatprep.subr.mxu0 0.0
  %1388 = vmatpush1.msra.mxu0 0.0
  %1389 = vmatprep.subr.mxu0 0.0
  %1390 = vmatpush1.msra.mxu0 0.0
  %1391 = vmatprep.subr.mxu0 0.0
  %1392 = vmatpush1.msra.mxu0 0.0
  %1393 = vmatprep.subr.mxu0 0.0
  %1394 = vmatpush1.msra.mxu0 0.0
  %1395 = vmatprep.subr.mxu0 0.0
  %1396 = vmatpush1.msra.mxu0 0.0
  %1397 = vmatprep.subr.mxu0 0.0
  %1398 = vmatpush1.msra.mxu0 0.0
  %1399 = vmatprep.subr.mxu0 0.0
  %1400 = vmatpush1.msra.mxu0 0.0
  %1401 = vmatprep.subr.mxu0 0.0
  %1402 = vmatpush1.msra.mxu0 0.0
  %1403 = vmatprep.subr.mxu0 0.0
  %1404 = vmatpush1.msra.mxu0 %v1368
  %1405 = vmatprep.subr.mxu0 0.0
  %1406 = vmatpush2.msra.mxu0 0.0
  %1407 = vmatprep.subr.mxu0 0.0
  %1408 = vmatpush2.msra.mxu0 0.0
  %1409 = vmatprep.subr.mxu0 0.0
  %1410 = vmatpush2.msra.mxu0 0.0
  %1411 = vmatprep.subr.mxu0 0.0
  %1412 = vmatpush2.msra.mxu0 0.0
  %1413 = vmatprep.subr.mxu0 0.0
  %1414 = vmatpush2.msra.mxu0 0.0
  %1415 = vmatprep.subr.mxu0 0.0
  %1416 = vmatpush2.msra.mxu0 0.0
  %1417 = vmatprep.subr.mxu0 0.0
  %1418 = vmatpush2.msra.mxu0 0.0
  %1419 = vmatprep.subr.mxu0 0.0
  %1420 = vmatpush2.msra.mxu0 0.0
  %1421 = vmatprep.subr.mxu0 0.0
  %1422 = vmatpush2.msra.mxu0 0.0
  %1423 = vmatprep.subr.mxu0 0.0
  %1424 = vmatpush2.msra.mxu0 0.0
  %1425 = vmatprep.subr.mxu0 0.0
  %1426 = vmatpush2.msra.mxu0 0.0
  %1427 = vmatprep.subr.mxu0 0.0
  %1428 = vmatpush2.msra.mxu0 0.0
  %1429 = vmatprep.subr.mxu0 0.0
  %1430 = vmatpush2.msra.mxu0 0.0
  %1431 = vmatprep.subr.mxu0 0.0
  %1432 = vmatpush2.msra.mxu0 0.0
  %1433 = vmatprep.subr.mxu0 0.0
  %1434 = vmatpush2.msra.mxu0 0.0
  %1435 = vmatprep.subr.mxu0 0.0
  %1436 = vmatpush2.msra.mxu0 0.0
  %1437 = vmatprep.mubr.f32.mxu0 0.0
  %1438 = vmatmul.mubr.f32.gmra.mxu0 %v1371
  %v1439 = vpop.f32.mrf.mxu0
  %v1440 = vadd.f32 0.0, %v1439
  %v1441 = vpop.f32.mrf.mxu0
  %1442 = vdwg.mxu0
  %1443 = vrot.lane.b32.xlu0 %v171, 40
  %v1444 = vpop.permute.xlu0 %1443
  %v1447 = vsel %vm177, %v1366, 0
  %1449 = vmatprep.subr.mxu0 0.0
  %1450 = vmatpush1.msra.mxu0 0.0
  %1451 = vmatprep.subr.mxu0 0.0
  %1452 = vmatpush1.msra.mxu0 0.0
  %1453 = vmatprep.subr.mxu0 0.0
  %1454 = vmatpush1.msra.mxu0 0.0
  %1455 = vmatprep.subr.mxu0 0.0
  %1456 = vmatpush1.msra.mxu0 0.0
  %1457 = vmatprep.subr.mxu0 0.0
  %1458 = vmatpush1.msra.mxu0 0.0
  %1459 = vmatprep.subr.mxu0 0.0
  %1460 = vmatpush1.msra.mxu0 0.0
  %1461 = vmatprep.subr.mxu0 0.0
  %1462 = vmatpush1.msra.mxu0 0.0
  %1463 = vmatprep.subr.mxu0 0.0
  %1464 = vmatpush1.msra.mxu0 0.0
  %1465 = vmatprep.subr.mxu0 0.0
  %1466 = vmatpush1.msra.mxu0 0.0
  %1467 = vmatprep.subr.mxu0 0.0
  %1468 = vmatpush1.msra.mxu0 0.0
  %1469 = vmatprep.subr.mxu0 0.0
  %1470 = vmatpush1.msra.mxu0 0.0
  %1471 = vmatprep.subr.mxu0 0.0
  %1472 = vmatpush1.msra.mxu0 0.0
  %1473 = vmatprep.subr.mxu0 0.0
  %1474 = vmatpush1.msra.mxu0 0.0
  %1475 = vmatprep.subr.mxu0 0.0
  %1476 = vmatpush1.msra.mxu0 0.0
  %1477 = vmatprep.subr.mxu0 0.0
  %1478 = vmatpush1.msra.mxu0 0.0
  %1479 = vmatprep.subr.mxu0 0.0
  %1480 = vmatpush1.msra.mxu0 %v1444
  %1481 = vmatprep.subr.mxu0 0.0
  %1482 = vmatpush2.msra.mxu0 0.0
  %1483 = vmatprep.subr.mxu0 0.0
  %1484 = vmatpush2.msra.mxu0 0.0
  %1485 = vmatprep.subr.mxu0 0.0
  %1486 = vmatpush2.msra.mxu0 0.0
  %1487 = vmatprep.subr.mxu0 0.0
  %1488 = vmatpush2.msra.mxu0 0.0
  %1489 = vmatprep.subr.mxu0 0.0
  %1490 = vmatpush2.msra.mxu0 0.0
  %1491 = vmatprep.subr.mxu0 0.0
  %1492 = vmatpush2.msra.mxu0 0.0
  %1493 = vmatprep.subr.mxu0 0.0
  %1494 = vmatpush2.msra.mxu0 0.0
  %1495 = vmatprep.subr.mxu0 0.0
  %1496 = vmatpush2.msra.mxu0 0.0
  %1497 = vmatprep.subr.mxu0 0.0
  %1498 = vmatpush2.msra.mxu0 0.0
  %1499 = vmatprep.subr.mxu0 0.0
  %1500 = vmatpush2.msra.mxu0 0.0
  %1501 = vmatprep.subr.mxu0 0.0
  %1502 = vmatpush2.msra.mxu0 0.0
  %1503 = vmatprep.subr.mxu0 0.0
  %1504 = vmatpush2.msra.mxu0 0.0
  %1505 = vmatprep.subr.mxu0 0.0
  %1506 = vmatpush2.msra.mxu0 0.0
  %1507 = vmatprep.subr.mxu0 0.0
  %1508 = vmatpush2.msra.mxu0 0.0
  %1509 = vmatprep.subr.mxu0 0.0
  %1510 = vmatpush2.msra.mxu0 0.0
  %1511 = vmatprep.subr.mxu0 0.0
  %1512 = vmatpush2.msra.mxu0 0.0
  %1513 = vmatprep.mubr.f32.mxu0 0.0
  %1514 = vmatmul.mubr.f32.gmra.mxu0 %v1447
  %v1515 = vpop.f32.mrf.mxu0
  %v1516 = vadd.f32 0.0, %v1515
  %v1517 = vpop.f32.mrf.mxu0
  %1518 = vdwg.mxu0
  %1521 = vrot.lane.b32.xlu0 %v772, 8
  %v1522 = vpop.permute.xlu0 %1521
  %1523 = vrot.lane.b32.xlu0 %v848, 8
  %v1524 = vpop.permute.xlu0 %1523
  %1529 = vrot.lane.b32.xlu0 %v1106, 16
  %v1530 = vpop.permute.xlu0 %1529
  %1531 = vrot.lane.b32.xlu0 %v1182, 16
  %v1532 = vpop.permute.xlu0 %1531
  %1537 = vrot.lane.b32.xlu0 %v1440, 24
  %v1538 = vpop.permute.xlu0 %1537
  %1539 = vrot.lane.b32.xlu0 %v1516, 24
  %v1540 = vpop.permute.xlu0 %1539
  %v1543 = vsel %vm177, %v438, %v1522
  %v1544 = vsel %vm177, %v514, %v1524
  %vm1545 = vcmask 130048
  %v1546 = vsel %vm1545, %v1543, %v1530
  %v1547 = vsel %vm1545, %v1544, %v1532
  %vm1548 = vcmask 195584
  %v1549 = vsel %vm1548, %v1546, %v1538
  %v1550 = vsel %vm1548, %v1547, %v1540
  %v1551 = vld [vmem:[%s4] sm:$0xff]
  %v1552 = vld [vmem:[%s4 + $0x8] sm:$0xff]
  %v1553 = vld [vmem:[%s4 + $0x10] sm:$0xff]
  %v1554 = vld [vmem:[%s4 + $0x18] sm:$0xff]
  %v1555 = vld [vmem:[%s5] sm:$0x1]
  %v1557 = vlaneseq
  %v1558 = vshrl.u32 %v1557, 7
  %v1559 = vsub.s32 0, %v1558
  %v1560 = vrot.slane %v1555, %v1559
  %v1563 = vsel %vm92, %v1549, 0
  %v1566 = vsel %vm92, %v1550, 0
  %1568 = vmatprep.subr.mxu0 0.0
  %1569 = vmatpush1.msra.mxu0 0.0
  %1570 = vmatprep.subr.mxu0 0.0
  %1571 = vmatpush1.msra.mxu0 0.0
  %1572 = vmatprep.subr.mxu0 0.0
  %1573 = vmatpush1.msra.mxu0 0.0
  %1574 = vmatprep.subr.mxu0 0.0
  %1575 = vmatpush1.msra.mxu0 0.0
  %1576 = vmatprep.subr.mxu0 0.0
  %1577 = vmatpush1.msra.mxu0 0.0
  %1578 = vmatprep.subr.mxu0 0.0
  %1579 = vmatpush1.msra.mxu0 0.0
  %1580 = vmatprep.subr.mxu0 0.0
  %1581 = vmatpush1.msra.mxu0 0.0
  %1582 = vmatprep.subr.mxu0 0.0
  %1583 = vmatpush1.msra.mxu0 0.0
  %1584 = vmatprep.subr.mxu0 0.0
  %1585 = vmatpush1.msra.mxu0 0.0
  %1586 = vmatprep.subr.mxu0 0.0
  %1587 = vmatpush1.msra.mxu0 0.0
  %1588 = vmatprep.subr.mxu0 0.0
  %1589 = vmatpush1.msra.mxu0 0.0
  %1590 = vmatprep.subr.mxu0 0.0
  %1591 = vmatpush1.msra.mxu0 0.0
  %1592 = vmatprep.subr.mxu0 0.0
  %1593 = vmatpush1.msra.mxu0 %v1554
  %1594 = vmatprep.subr.mxu0 0.0
  %1595 = vmatpush1.msra.mxu0 %v1553
  %1596 = vmatprep.subr.mxu0 0.0
  %1597 = vmatpush1.msra.mxu0 %v1552
  %1598 = vmatprep.subr.mxu0 0.0
  %1599 = vmatpush1.msra.mxu0 %v1551
  %1600 = vmatprep.subr.mxu0 0.0
  %1601 = vmatpush2.msra.mxu0 0.0
  %1602 = vmatprep.subr.mxu0 0.0
  %1603 = vmatpush2.msra.mxu0 0.0
  %1604 = vmatprep.subr.mxu0 0.0
  %1605 = vmatpush2.msra.mxu0 0.0
  %1606 = vmatprep.subr.mxu0 0.0
  %1607 = vmatpush2.msra.mxu0 0.0
  %1608 = vmatprep.subr.mxu0 0.0
  %1609 = vmatpush2.msra.mxu0 0.0
  %1610 = vmatprep.subr.mxu0 0.0
  %1611 = vmatpush2.msra.mxu0 0.0
  %1612 = vmatprep.subr.mxu0 0.0
  %1613 = vmatpush2.msra.mxu0 0.0
  %1614 = vmatprep.subr.mxu0 0.0
  %1615 = vmatpush2.msra.mxu0 0.0
  %1616 = vmatprep.subr.mxu0 0.0
  %1617 = vmatpush2.msra.mxu0 0.0
  %1618 = vmatprep.subr.mxu0 0.0
  %1619 = vmatpush2.msra.mxu0 0.0
  %1620 = vmatprep.subr.mxu0 0.0
  %1621 = vmatpush2.msra.mxu0 0.0
  %1622 = vmatprep.subr.mxu0 0.0
  %1623 = vmatpush2.msra.mxu0 0.0
  %1624 = vmatprep.subr.mxu0 0.0
  %1625 = vmatpush2.msra.mxu0 0.0
  %1626 = vmatprep.subr.mxu0 0.0
  %1627 = vmatpush2.msra.mxu0 0.0
  %1628 = vmatprep.subr.mxu0 0.0
  %1629 = vmatpush2.msra.mxu0 0.0
  %1630 = vmatprep.subr.mxu0 0.0
  %1631 = vmatpush2.msra.mxu0 0.0
  %1632 = vmatprep.mubr.f32.mxu0 0.0
  %1633 = vmatmul.mubr.f32.gmra.mxu0 %v1563
  %v1634 = vpop.f32.mrf.mxu0
  %v1635 = vadd.f32 %v1560, %v1634
  %v1636 = vpop.f32.mrf.mxu0
  %1637 = vmatprep.mubr.f32.mxu0 0.0
  %1638 = vmatmul.mubr.f32.gmra.mxu0 %v1566
  %v1639 = vpop.f32.mrf.mxu0
  %v1640 = vadd.f32 %v1560, %v1639
  %v1641 = vpop.f32.mrf.mxu0
  %1642 = vdwg.mxu0
  %v1643 = vadd.f32 %v79, %v1635
  %v1644 = vadd.f32 %v80, %v1640
  %v1645 = vld [vmem:[%s6] sm:$0x1]
  %v1646 = vld [vmem:[%s7] sm:$0x1]
  %v1647 = vsel %vm92, %v1643, 0.0
  %1648 = vadd.xlane.f32.xlu0 %v1647
  %v1649 = vpop.xlane.xlu0 %1648
  %v1650 = vsel %vm92, %v1644, 0.0
  %1651 = vadd.xlane.f32.xlu0 %v1650
  %v1652 = vpop.xlane.xlu0 %1651
  %v1653 = vrcp.pop 32.0
  %v1654 = vmul.f32 %v1649, %v1653
  %v1655 = vmul.f32 %v1652, %v1653
  %v1656 = vsub.f32 %v1643, %v1654
  %v1657 = vsub.f32 %v1644, %v1655
  %v1658 = vmul.f32 %v1656, %v1656
  %v1659 = vmul.f32 %v1657, %v1657
  %v1660 = vsel %vm92, %v1658, 0.0
  %1661 = vadd.xlane.f32.xlu0 %v1660
  %v1662 = vpop.xlane.xlu0 %1661
  %v1663 = vsel %vm92, %v1659, 0.0
  %1664 = vadd.xlane.f32.xlu0 %v1663
  %v1665 = vpop.xlane.xlu0 %1664
  %v1666 = vmul.f32 %v1662, %v1653
  %v1667 = vmul.f32 %v1665, %v1653
  %v1668 = vadd.f32 %v1666, 1e-05
  %v1669 = vadd.f32 %v1667, 1e-05
  %v1670 = vrsqrt.pop %v1668
  %v1671 = vrsqrt.pop %v1669
  %v1672 = vmul.f32 %v1656, %v1670
  %v1673 = vmul.f32 %v1657, %v1671
  %v1675 = vlaneseq
  %v1676 = vshrl.u32 %v1675, 7
  %v1677 = vsub.s32 0, %v1676
  %v1678 = vrot.slane %v1645, %v1677
  %v1680 = vmul.f32 %v1672, %v1678
  %v1681 = vmul.f32 %v1673, %v1678
  %v1683 = vlaneseq
  %v1684 = vshrl.u32 %v1683, 7
  %v1685 = vsub.s32 0, %v1684
  %v1686 = vrot.slane %v1646, %v1685
  %v1688 = vadd.f32 %v1680, %v1686
  %v1689 = vadd.f32 %v1681, %v1686
  %v1690 = vld [vmem:[%s8] sm:$0xff]
  %v1691 = vld [vmem:[%s8 + $0x8] sm:$0xff]
  %v1692 = vld [vmem:[%s8 + $0x10] sm:$0xff]
  %v1693 = vld [vmem:[%s8 + $0x18] sm:$0xff]
  %v1694 = vld [vmem:[%s9] sm:$0x1]
  %v1696 = vlaneseq
  %v1697 = vshrl.u32 %v1696, 7
  %v1698 = vsub.s32 0, %v1697
  %v1699 = vrot.slane %v1694, %v1698
  %v1702 = vsel %vm92, %v1688, 0
  %v1705 = vsel %vm92, %v1689, 0
  %1707 = vmatprep.subr.mxu0 0.0
  %1708 = vmatpush1.msra.mxu0 0.0
  %1709 = vmatprep.subr.mxu0 0.0
  %1710 = vmatpush1.msra.mxu0 0.0
  %1711 = vmatprep.subr.mxu0 0.0
  %1712 = vmatpush1.msra.mxu0 0.0
  %1713 = vmatprep.subr.mxu0 0.0
  %1714 = vmatpush1.msra.mxu0 0.0
  %1715 = vmatprep.subr.mxu0 0.0
  %1716 = vmatpush1.msra.mxu0 0.0
  %1717 = vmatprep.subr.mxu0 0.0
  %1718 = vmatpush1.msra.mxu0 0.0
  %1719 = vmatprep.subr.mxu0 0.0
  %1720 = vmatpush1.msra.mxu0 0.0
  %1721 = vmatprep.subr.mxu0 0.0
  %1722 = vmatpush1.msra.mxu0 0.0
  %1723 = vmatprep.subr.mxu0 0.0
  %1724 = vmatpush1.msra.mxu0 0.0
  %1725 = vmatprep.subr.mxu0 0.0
  %1726 = vmatpush1.msra.mxu0 0.0
  %1727 = vmatprep.subr.mxu0 0.0
  %1728 = vmatpush1.msra.mxu0 0.0
  %1729 = vmatprep.subr.mxu0 0.0
  %1730 = vmatpush1.msra.mxu0 0.0
  %1731 = vmatprep.subr.mxu0 0.0
  %1732 = vmatpush1.msra.mxu0 %v1693
  %1733 = vmatprep.subr.mxu0 0.0
  %1734 = vmatpush1.msra.mxu0 %v1692
  %1735 = vmatprep.subr.mxu0 0.0
  %1736 = vmatpush1.msra.mxu0 %v1691
  %1737 = vmatprep.subr.mxu0 0.0
  %1738 = vmatpush1.msra.mxu0 %v1690
  %1739 = vmatprep.subr.mxu0 0.0
  %1740 = vmatpush2.msra.mxu0 0.0
  %1741 = vmatprep.subr.mxu0 0.0
  %1742 = vmatpush2.msra.mxu0 0.0
  %1743 = vmatprep.subr.mxu0 0.0
  %1744 = vmatpush2.msra.mxu0 0.0
  %1745 = vmatprep.subr.mxu0 0.0
  %1746 = vmatpush2.msra.mxu0 0.0
  %1747 = vmatprep.subr.mxu0 0.0
  %1748 = vmatpush2.msra.mxu0 0.0
  %1749 = vmatprep.subr.mxu0 0.0
  %1750 = vmatpush2.msra.mxu0 0.0
  %1751 = vmatprep.subr.mxu0 0.0
  %1752 = vmatpush2.msra.mxu0 0.0
  %1753 = vmatprep.subr.mxu0 0.0
  %1754 = vmatpush2.msra.mxu0 0.0
  %1755 = vmatprep.subr.mxu0 0.0
  %1756 = vmatpush2.msra.mxu0 0.0
  %1757 = vmatprep.subr.mxu0 0.0
  %1758 = vmatpush2.msra.mxu0 0.0
  %1759 = vmatprep.subr.mxu0 0.0
  %1760 = vmatpush2.msra.mxu0 0.0
  %1761 = vmatprep.subr.mxu0 0.0
  %1762 = vmatpush2.msra.mxu0 0.0
  %1763 = vmatprep.subr.mxu0 0.0
  %1764 = vmatpush2.msra.mxu0 0.0
  %1765 = vmatprep.subr.mxu0 0.0
  %1766 = vmatpush2.msra.mxu0 0.0
  %1767 = vmatprep.subr.mxu0 0.0
  %1768 = vmatpush2.msra.mxu0 0.0
  %1769 = vmatprep.subr.mxu0 0.0
  %1770 = vmatpush2.msra.mxu0 0.0
  %1771 = vmatprep.mubr.f32.mxu0 0.0
  %1772 = vmatmul.mubr.f32.gmra.mxu0 %v1702
  %v1773 = vpop.f32.mrf.mxu0
  %v1774 = vadd.f32 %v1699, %v1773
  %v1775 = vpop.f32.mrf.mxu0
  %1776 = vmatprep.mubr.f32.mxu0 0.0
  %1777 = vmatmul.mubr.f32.gmra.mxu0 %v1705
  %v1778 = vpop.f32.mrf.mxu0
  %v1779 = vadd.f32 %v1699, %v1778
  %v1780 = vpop.f32.mrf.mxu0
  %1781 = vdwg.mxu0
  %v1782 = vmul.f32 %v1774, 0.5
  %v1783 = vmul.f32 %v1779, 0.5
  %v1784 = vmul.f32 %v1774, 0.044715
  %v1785 = vmul.f32 %v1779, 0.044715
  %v1786 = vmul.f32 %v1784, %v1774
  %v1787 = vmul.f32 %v1785, %v1779
  %v1788 = vmul.f32 %v1786, %v1774
  %v1789 = vmul.f32 %v1787, %v1779
  %v1790 = vadd.f32 %v1774, %v1788
  %v1791 = vadd.f32 %v1779, %v1789
  %v1792 = vmul.f32 %v1790, 0.7978846
  %v1793 = vmul.f32 %v1791, 0.7978846
  %v1794 = vtanh.pop %v1792
  %v1795 = vtanh.pop %v1793
  %v1796 = vadd.f32 %v1794, 1.0
  %v1797 = vadd.f32 %v1795, 1.0
  %v1798 = vmul.f32 %v1782, %v1796
  %v1799 = vmul.f32 %v1783, %v1797
  %v1800 = vld [vmem:[%s10] sm:$0xff]
  %v1801 = vld [vmem:[%s10 + $0x8] sm:$0xff]
  %v1802 = vld [vmem:[%s10 + $0x10] sm:$0xff]
  %v1803 = vld [vmem:[%s10 + $0x18] sm:$0xff]
  %v1804 = vld [vmem:[%s10 + $0x20] sm:$0xff]
  %v1805 = vld [vmem:[%s10 + $0x28] sm:$0xff]
  %v1806 = vld [vmem:[%s10 + $0x30] sm:$0xff]
  %v1807 = vld [vmem:[%s10 + $0x38] sm:$0xff]
  %v1808 = vld [vmem:[%s11] sm:$0x1]
  %v1810 = vlaneseq
  %v1811 = vshrl.u32 %v1810, 7
  %v1812 = vsub.s32 0, %v1811
  %v1813 = vrot.slane %v1808, %v1812
  %vm1815 = vcmask 523264
  %v1817 = vsel %vm1815, %v1798, 0
  %v1820 = vsel %vm1815, %v1799, 0
  %1822 = vmatprep.subr.mxu0 0.0
  %1823 = vmatpush1.msra.mxu0 0.0
  %1824 = vmatprep.subr.mxu0 0.0
  %1825 = vmatpush1.msra.mxu0 0.0
  %1826 = vmatprep.subr.mxu0 0.0
  %1827 = vmatpush1.msra.mxu0 0.0
  %1828 = vmatprep.subr.mxu0 0.0
  %1829 = vmatpush1.msra.mxu0 0.0
  %1830 = vmatprep.subr.mxu0 0.0
  %1831 = vmatpush1.msra.mxu0 0.0
  %1832 = vmatprep.subr.mxu0 0.0
  %1833 = vmatpush1.msra.mxu0 0.0
  %1834 = vmatprep.subr.mxu0 0.0
  %1835 = vmatpush1.msra.mxu0 0.0
  %1836 = vmatprep.subr.mxu0 0.0
  %1837 = vmatpush1.msra.mxu0 0.0
  %1838 = vmatprep.subr.mxu0 0.0
  %1839 = vmatpush1.msra.mxu0 %v1807
  %1840 = vmatprep.subr.mxu0 0.0
  %1841 = vmatpush1.msra.mxu0 %v1806
  %1842 = vmatprep.subr.mxu0 0.0
  %1843 = vmatpush1.msra.mxu0 %v1805
  %1844 = vmatprep.subr.mxu0 0.0
  %1845 = vmatpush1.msra.mxu0 %v1804
  %1846 = vmatprep.subr.mxu0 0.0
  %1847 = vmatpush1.msra.mxu0 %v1803
  %1848 = vmatprep.subr.mxu0 0.0
  %1849 = vmatpush1.msra.mxu0 %v1802
  %1850 = vmatprep.subr.mxu0 0.0
  %1851 = vmatpush1.msra.mxu0 %v1801
  %1852 = vmatprep.subr.mxu0 0.0
  %1853 = vmatpush1.msra.mxu0 %v1800
  %1854 = vmatprep.subr.mxu0 0.0
  %1855 = vmatpush2.msra.mxu0 0.0
  %1856 = vmatprep.subr.mxu0 0.0
  %1857 = vmatpush2.msra.mxu0 0.0
  %1858 = vmatprep.subr.mxu0 0.0
  %1859 = vmatpush2.msra.mxu0 0.0
  %1860 = vmatprep.subr.mxu0 0.0
  %1861 = vmatpush2.msra.mxu0 0.0
  %1862 = vmatprep.subr.mxu0 0.0
  %1863 = vmatpush2.msra.mxu0 0.0
  %1864 = vmatprep.subr.mxu0 0.0
  %1865 = vmatpush2.msra.mxu0 0.0
  %1866 = vmatprep.subr.mxu0 0.0
  %1867 = vmatpush2.msra.mxu0 0.0
  %1868 = vmatprep.subr.mxu0 0.0
  %1869 = vmatpush2.msra.mxu0 0.0
  %1870 = vmatprep.subr.mxu0 0.0
  %1871 = vmatpush2.msra.mxu0 0.0
  %1872 = vmatprep.subr.mxu0 0.0
  %1873 = vmatpush2.msra.mxu0 0.0
  %1874 = vmatprep.subr.mxu0 0.0
  %1875 = vmatpush2.msra.mxu0 0.0
  %1876 = vmatprep.subr.mxu0 0.0
  %1877 = vmatpush2.msra.mxu0 0.0
  %1878 = vmatprep.subr.mxu0 0.0
  %1879 = vmatpush2.msra.mxu0 0.0
  %1880 = vmatprep.subr.mxu0 0.0
  %1881 = vmatpush2.msra.mxu0 0.0
  %1882 = vmatprep.subr.mxu0 0.0
  %1883 = vmatpush2.msra.mxu0 0.0
  %1884 = vmatprep.subr.mxu0 0.0
  %1885 = vmatpush2.msra.mxu0 0.0
  %1886 = vmatprep.mubr.f32.mxu0 0.0
  %1887 = vmatmul.mubr.f32.gmra.mxu0 %v1817
  %v1888 = vpop.f32.mrf.mxu0
  %v1889 = vadd.f32 %v1813, %v1888
  %v1890 = vpop.f32.mrf.mxu0
  %1891 = vmatprep.mubr.f32.mxu0 0.0
  %1892 = vmatmul.mubr.f32.gmra.mxu0 %v1820
  %v1893 = vpop.f32.mrf.mxu0
  %v1894 = vadd.f32 %v1813, %v1893
  %v1895 = vpop.f32.mrf.mxu0
  %1896 = vdwg.mxu0
  %v1897 = vadd.f32 %v1688, %v1889
  %v1898 = vadd.f32 %v1689, %v1894
  %v1899 = vld [vmem:[%s12] sm:$0x1]
  %v1900 = vld [vmem:[%s13] sm:$0x1]
  %v1901 = vsel %vm92, %v1897, 0.0
  %1902 = vadd.xlane.f32.xlu0 %v1901
  %v1903 = vpop.xlane.xlu0 %1902
  %v1904 = vsel %vm92, %v1898, 0.0
  %1905 = vadd.xlane.f32.xlu0 %v1904
  %v1906 = vpop.xlane.xlu0 %1905
  %v1907 = vmul.f32 %v1903, %v1653
  %v1908 = vmul.f32 %v1906, %v1653
  %v1909 = vsub.f32 %v1897, %v1907
  %v1910 = vsub.f32 %v1898, %v1908
  %v1911 = vmul.f32 %v1909, %v1909
  %v1912 = vmul.f32 %v1910, %v1910
  %v1913 = vsel %vm92, %v1911, 0.0
  %1914 = vadd.xlane.f32.xlu0 %v1913
  %v1915 = vpop.xlane.xlu0 %1914
  %v1916 = vsel %vm92, %v1912, 0.0
  %1917 = vadd.xlane.f32.xlu0 %v1916
  %v1918 = vpop.xlane.xlu0 %1917
  %v1919 = vmul.f32 %v1915, %v1653
  %v1920 = vmul.f32 %v1918, %v1653
  %v1921 = vadd.f32 %v1919, 1e-05
  %v1922 = vadd.f32 %v1920, 1e-05
  %v1923 = vrsqrt.pop %v1921
  %v1924 = vrsqrt.pop %v1922
  %v1925 = vmul.f32 %v1909, %v1923
  %v1926 = vmul.f32 %v1910, %v1924
  %v1928 = vlaneseq
  %v1929 = vshrl.u32 %v1928, 7
  %v1930 = vsub.s32 0, %v1929
  %v1931 = vrot.slane %v1899, %v1930
  %v1933 = vmul.f32 %v1925, %v1931
  %v1934 = vmul.f32 %v1926, %v1931
  %v1936 = vlaneseq
  %v1937 = vshrl.u32 %v1936, 7
  %v1938 = vsub.s32 0, %v1937
  %v1939 = vrot.slane %v1900, %v1938
  %v1941 = vadd.f32 %v1933, %v1939
  %v1942 = vadd.f32 %v1934, %v1939
  %s1943 = scalar_lea.vmem %s2, 32
  %v1944 = vld [vmem:[%s1943] sm:$0xff]
  %v1945 = vld [vmem:[%s1943 + $0x8] sm:$0xff]
  %v1946 = vld [vmem:[%s1943 + $0x10] sm:$0xff]
  %v1947 = vld [vmem:[%s1943 + $0x18] sm:$0xff]
  %s1948 = scalar_lea.vmem %s3, 1
  %v1949 = vld [vmem:[%s1948] sm:$0x1]
  %v1951 = vlaneseq
  %v1952 = vshrl.u32 %v1951, 7
  %v1953 = vsub.s32 0, %v1952
  %v1954 = vrot.slane %v1949, %v1953
  %v1957 = vsel %vm92, %v1941, 0
  %v1960 = vsel %vm92, %v1942, 0
  %1962 = vmatprep.subr.mxu0 0.0
  %1963 = vmatpush1.msra.mxu0 0.0
  %1964 = vmatprep.subr.mxu0 0.0
  %1965 = vmatpush1.msra.mxu0 0.0
  %1966 = vmatprep.subr.mxu0 0.0
  %1967 = vmatpush1.msra.mxu0 0.0
  %1968 = vmatprep.subr.mxu0 0.0
  %1969 = vmatpush1.msra.mxu0 0.0
  %1970 = vmatprep.subr.mxu0 0.0
  %1971 = vmatpush1.msra.mxu0 0.0
  %1972 = vmatprep.subr.mxu0 0.0
  %1973 = vmatpush1.msra.mxu0 0.0
  %1974 = vmatprep.subr.mxu0 0.0
  %1975 = vmatpush1.msra.mxu0 0.0
  %1976 = vmatprep.subr.mxu0 0.0
  %1977 = vmatpush1.msra.mxu0 0.0
  %1978 = vmatprep.subr.mxu0 0.0
  %1979 = vmatpush1.msra.mxu0 0.0
  %1980 = vmatprep.subr.mxu0 0.0
  %1981 = vmatpush1.msra.mxu0 0.0
  %1982 = vmatprep.subr.mxu0 0.0
  %1983 = vmatpush1.msra.mxu0 0.0
  %1984 = vmatprep.subr.mxu0 0.0
  %1985 = vmatpush1.msra.mxu0 0.0
  %1986 = vmatprep.subr.mxu0 0.0
  %1987 = vmatpush1.msra.mxu0 %v1947
  %1988 = vmatprep.subr.mxu0 0.0
  %1989 = vmatpush1.msra.mxu0 %v1946
  %1990 = vmatprep.subr.mxu0 0.0
  %1991 = vmatpush1.msra.mxu0 %v1945
  %1992 = vmatprep.subr.mxu0 0.0
  %1993 = vmatpush1.msra.mxu0 %v1944
  %1994 = vmatprep.subr.mxu0 0.0
  %1995 = vmatpush2.msra.mxu0 0.0
  %1996 = vmatprep.subr.mxu0 0.0
  %1997 = vmatpush2.msra.mxu0 0.0
  %1998 = vmatprep.subr.mxu0 0.0
  %1999 = vmatpush2.msra.mxu0 0.0
  %2000 = vmatprep.subr.mxu0 0.0
  %2001 = vmatpush2.msra.mxu0 0.0
  %2002 = vmatprep.subr.mxu0 0.0
  %2003 = vmatpush2.msra.mxu0 0.0
  %2004 = vmatprep.subr.mxu0 0.0
  %2005 = vmatpush2.msra.mxu0 0.0
  %2006 = vmatprep.subr.mxu0 0.0
  %2007 = vmatpush2.msra.mxu0 0.0
  %2008 = vmatprep.subr.mxu0 0.0
  %2009 = vmatpush2.msra.mxu0 0.0
  %2010 = vmatprep.subr.mxu0 0.0
  %2011 = vmatpush2.msra.mxu0 0.0
  %2012 = vmatprep.subr.mxu0 0.0
  %2013 = vmatpush2.msra.mxu0 0.0
  %2014 = vmatprep.subr.mxu0 0.0
  %2015 = vmatpush2.msra.mxu0 0.0
  %2016 = vmatprep.subr.mxu0 0.0
  %2017 = vmatpush2.msra.mxu0 0.0
  %2018 = vmatprep.subr.mxu0 0.0
  %2019 = vmatpush2.msra.mxu0 0.0
  %2020 = vmatprep.subr.mxu0 0.0
  %2021 = vmatpush2.msra.mxu0 0.0
  %2022 = vmatprep.subr.mxu0 0.0
  %2023 = vmatpush2.msra.mxu0 0.0
  %2024 = vmatprep.subr.mxu0 0.0
  %2025 = vmatpush2.msra.mxu0 0.0
  %2026 = vmatprep.mubr.f32.mxu0 0.0
  %2027 = vmatmul.mubr.f32.gmra.mxu0 %v1957
  %v2028 = vpop.f32.mrf.mxu0
  %v2029 = vadd.f32 %v1954, %v2028
  %v2030 = vpop.f32.mrf.mxu0
  %2031 = vmatprep.mubr.f32.mxu0 0.0
  %2032 = vmatmul.mubr.f32.gmra.mxu0 %v1960
  %v2033 = vpop.f32.mrf.mxu0
  %v2034 = vadd.f32 %v1954, %v2033
  %v2035 = vpop.f32.mrf.mxu0
  %2036 = vdwg.mxu0
  %2038 = vrot.lane.b32.xlu0 %v2029, 96
  %v2039 = vpop.permute.xlu0 %2038
  %v2040 = vsel %vm177, %v2029, 0
  %v2042 = vsel %vm177, %v2039, 0
  %2044 = vmatprep.subr.mxu0 0.0
  %2045 = vmatpush1.xpose.msra.mxu0 0.0
  %2046 = vmatprep.subr.mxu0 0.0
  %2047 = vmatpush1.xpose.msra.mxu0 0.0
  %2048 = vmatprep.subr.mxu0 0.0
  %2049 = vmatpush1.xpose.msra.mxu0 0.0
  %2050 = vmatprep.subr.mxu0 0.0
  %2051 = vmatpush1.xpose.msra.mxu0 0.0
  %2052 = vmatprep.subr.mxu0 0.0
  %2053 = vmatpush1.xpose.msra.mxu0 0.0
  %2054 = vmatprep.subr.mxu0 0.0
  %2055 = vmatpush1.xpose.msra.mxu0 0.0
  %2056 = vmatprep.subr.mxu0 0.0
  %2057 = vmatpush1.xpose.msra.mxu0 0.0
  %2058 = vmatprep.subr.mxu0 0.0
  %2059 = vmatpush1.xpose.msra.mxu0 0.0
  %2060 = vmatprep.subr.mxu0 0.0
  %2061 = vmatpush1.xpose.msra.mxu0 0.0
  %2062 = vmatprep.subr.mxu0 0.0
  %2063 = vmatpush1.xpose.msra.mxu0 0.0
  %2064 = vmatprep.subr.mxu0 0.0
  %2065 = vmatpush1.xpose.msra.mxu0 0.0
  %2066 = vmatprep.subr.mxu0 0.0
  %2067 = vmatpush1.xpose.msra.mxu0 0.0
  %2068 = vmatprep.subr.mxu0 0.0
  %2069 = vmatpush1.xpose.msra.mxu0 0.0
  %2070 = vmatprep.subr.mxu0 0.0
  %2071 = vmatpush1.xpose.msra.mxu0 0.0
  %2072 = vmatprep.subr.mxu0 0.0
  %2073 = vmatpush1.xpose.msra.mxu0 0.0
  %2074 = vmatprep.subr.mxu0 0.0
  %2075 = vmatpush1.xpose.msra.mxu0 %v2042
  %2076 = vmatprep.subr.mxu0 0.0
  %2077 = vmatpush2.xpose.msra.mxu0 0.0
  %2078 = vmatprep.subr.mxu0 0.0
  %2079 = vmatpush2.xpose.msra.mxu0 0.0
  %2080 = vmatprep.subr.mxu0 0.0
  %2081 = vmatpush2.xpose.msra.mxu0 0.0
  %2082 = vmatprep.subr.mxu0 0.0
  %2083 = vmatpush2.xpose.msra.mxu0 0.0
  %2084 = vmatprep.subr.mxu0 0.0
  %2085 = vmatpush2.xpose.msra.mxu0 0.0
  %2086 = vmatprep.subr.mxu0 0.0
  %2087 = vmatpush2.xpose.msra.mxu0 0.0
  %2088 = vmatprep.subr.mxu0 0.0
  %2089 = vmatpush2.xpose.msra.mxu0 0.0
  %2090 = vmatprep.subr.mxu0 0.0
  %2091 = vmatpush2.xpose.msra.mxu0 0.0
  %2092 = vmatprep.subr.mxu0 0.0
  %2093 = vmatpush2.xpose.msra.mxu0 0.0
  %2094 = vmatprep.subr.mxu0 0.0
  %2095 = vmatpush2.xpose.msra.mxu0 0.0
  %2096 = vmatprep.subr.mxu0 0.0
  %2097 = vmatpush2.xpose.msra.mxu0 0.0
  %2098 = vmatprep.subr.mxu0 0.0
  %2099 = vmatpush2.xpose.msra.mxu0 0.0
  %2100 = vmatprep.subr.mxu0 0.0
  %2101 = vmatpush2.xpose.msra.mxu0 0.0
  %2102 = vmatprep.subr.mxu0 0.0
  %2103 = vmatpush2.xpose.msra.mxu0 0.0
  %2104 = vmatprep.subr.mxu0 0.0
  %2105 = vmatpush2.xpose.msra.mxu0 0.0
  %2106 = vmatprep.subr.mxu0 0.0
  %2107 = vmatpush2.xpose.msra.mxu0 0.0
  %2108 = vmatprep.mubr.f32.mxu0 0.0
  %2109 = vmatmul.mubr.f32.gmra.mxu0 %v2040
  %v2110 = vpop.f32.mrf.mxu0
  %v2111 = vadd.f32 0.0, %v2110
  %v2112 = vpop.f32.mrf.mxu0
  %2113 = vdwg.mxu0
  %2115 = vrot.lane.b32.xlu0 %v2034, 96
  %v2116 = vpop.permute.xlu0 %2115
  %v2117 = vsel %vm177, %v2034, 0
  %v2119 = vsel %vm177, %v2116, 0
  %2121 = vmatprep.subr.mxu0 0.0
  %2122 = vmatpush1.xpose.msra.mxu0 0.0
  %2123 = vmatprep.subr.mxu0 0.0
  %2124 = vmatpush1.xpose.msra.mxu0 0.0
  %2125 = vmatprep.subr.mxu0 0.0
  %2126 = vmatpush1.xpose.msra.mxu0 0.0
  %2127 = vmatprep.subr.mxu0 0.0
  %2128 = vmatpush1.xpose.msra.mxu0 0.0
  %2129 = vmatprep.subr.mxu0 0.0
  %2130 = vmatpush1.xpose.msra.mxu0 0.0
  %2131 = vmatprep.subr.mxu0 0.0
  %2132 = vmatpush1.xpose.msra.mxu0 0.0
  %2133 = vmatprep.subr.mxu0 0.0
  %2134 = vmatpush1.xpose.msra.mxu0 0.0
  %2135 = vmatprep.subr.mxu0 0.0
  %2136 = vmatpush1.xpose.msra.mxu0 0.0
  %2137 = vmatprep.subr.mxu0 0.0
  %2138 = vmatpush1.xpose.msra.mxu0 0.0
  %2139 = vmatprep.subr.mxu0 0.0
  %2140 = vmatpush1.xpose.msra.mxu0 0.0
  %2141 = vmatprep.subr.mxu0 0.0
  %2142 = vmatpush1.xpose.msra.mxu0 0.0
  %2143 = vmatprep.subr.mxu0 0.0
  %2144 = vmatpush1.xpose.msra.mxu0 0.0
  %2145 = vmatprep.subr.mxu0 0.0
  %2146 = vmatpush1.xpose.msra.mxu0 0.0
  %2147 = vmatprep.subr.mxu0 0.0
  %2148 = vmatpush1.xpose.msra.mxu0 0.0
  %2149 = vmatprep.subr.mxu0 0.0
  %2150 = vmatpush1.xpose.msra.mxu0 0.0
  %2151 = vmatprep.subr.mxu0 0.0
  %2152 = vmatpush1.xpose.msra.mxu0 %v2119
  %2153 = vmatprep.subr.mxu0 0.0
  %2154 = vmatpush2.xpose.msra.mxu0 0.0
  %2155 = vmatprep.subr.mxu0 0.0
  %2156 = vmatpush2.xpose.msra.mxu0 0.0
  %2157 = vmatprep.subr.mxu0 0.0
  %2158 = vmatpush2.xpose.msra.mxu0 0.0
  %2159 = vmatprep.subr.mxu0 0.0
  %2160 = vmatpush2.xpose.msra.mxu0 0.0
  %2161 = vmatprep.subr.mxu0 0.0
  %2162 = vmatpush2.xpose.msra.mxu0 0.0
  %2163 = vmatprep.subr.mxu0 0.0
  %2164 = vmatpush2.xpose.msra.mxu0 0.0
  %2165 = vmatprep.subr.mxu0 0.0
  %2166 = vmatpush2.xpose.msra.mxu0 0.0
  %2167 = vmatprep.subr.mxu0 0.0
  %2168 = vmatpush2.xpose.msra.mxu0 0.0
  %2169 = vmatprep.subr.mxu0 0.0
  %2170 = vmatpush2.xpose.msra.mxu0 0.0
  %2171 = vmatprep.subr.mxu0 0.0
  %2172 = vmatpush2.xpose.msra.mxu0 0.0
  %2173 = vmatprep.subr.mxu0 0.0
  %2174 = vmatpush2.xpose.msra.mxu0 0.0
  %2175 = vmatprep.subr.mxu0 0.0
  %2176 = vmatpush2.xpose.msra.mxu0 0.0
  %2177 = vmatprep.subr.mxu0 0.0
  %2178 = vmatpush2.xpose.msra.mxu0 0.0
  %2179 = vmatprep.subr.mxu0 0.0
  %2180 = vmatpush2.xpose.msra.mxu0 0.0
  %2181 = vmatprep.subr.mxu0 0.0
  %2182 = vmatpush2.xpose.msra.mxu0 0.0
  %2183 = vmatprep.subr.mxu0 0.0
  %2184 = vmatpush2.xpose.msra.mxu0 0.0
  %2185 = vmatprep.mubr.f32.mxu0 0.0
  %2186 = vmatmul.mubr.f32.gmra.mxu0 %v2117
  %v2187 = vpop.f32.mrf.mxu0
  %v2188 = vadd.f32 0.0, %v2187
  %v2189 = vpop.f32.mrf.mxu0
  %2190 = vdwg.mxu0
  %v2191 = vmul.f32 %v2111, 0.35355338
  %v2192 = vmul.f32 %v2188, 0.35355338
  %v2193 = vadd.f32 %v2191, %v334
  %v2194 = vadd.f32 %v2192, %v338
  %v2195 = vsel %vm177, %v2193, -inf
  %2196 = vmax.xlane.f32.xlu0 %v2195
  %v2197 = vpop.xlane.xlu0 %2196
  %v2198 = vsel %vm177, %v2194, -inf
  %2199 = vmax.xlane.f32.xlu0 %v2198
  %v2200 = vpop.xlane.xlu0 %2199
  %v2201 = vsub.f32 %v2193, %v2197
  %v2202 = vsub.f32 %v2194, %v2200
  %v2203 = vmul.f32 %v2201, 1.442695
  %v2204 = vpow.pop %v2203
  %v2205 = vmul.f32 %v2202, 1.442695
  %v2206 = vpow.pop %v2205
  %v2207 = vsel %vm177, %v2204, 0.0
  %2208 = vadd.xlane.f32.xlu0 %v2207
  %v2209 = vpop.xlane.xlu0 %2208
  %v2210 = vsel %vm177, %v2206, 0.0
  %2211 = vadd.xlane.f32.xlu0 %v2210
  %v2212 = vpop.xlane.xlu0 %2211
  %v2213 = vrcp.pop %v2209
  %v2214 = vrcp.pop %v2212
  %v2215 = vmul.f32 %v2204, %v2213
  %v2216 = vmul.f32 %v2206, %v2214
  %2217 = vrot.lane.b32.xlu0 %v2029, 64
  %v2218 = vpop.permute.xlu0 %2217
  %v2221 = vsel %vm177, %v2215, 0
  %2223 = vmatprep.subr.mxu0 0.0
  %2224 = vmatpush1.msra.mxu0 0.0
  %2225 = vmatprep.subr.mxu0 0.0
  %2226 = vmatpush1.msra.mxu0 0.0
  %2227 = vmatprep.subr.mxu0 0.0
  %2228 = vmatpush1.msra.mxu0 0.0
  %2229 = vmatprep.subr.mxu0 0.0
  %2230 = vmatpush1.msra.mxu0 0.0
  %2231 = vmatprep.subr.mxu0 0.0
  %2232 = vmatpush1.msra.mxu0 0.0
  %2233 = vmatprep.subr.mxu0 0.0
  %2234 = vmatpush1.msra.mxu0 0.0
  %2235 = vmatprep.subr.mxu0 0.0
  %2236 = vmatpush1.msra.mxu0 0.0
  %2237 = vmatprep.subr.mxu0 0.0
  %2238 = vmatpush1.msra.mxu0 0.0
  %2239 = vmatprep.subr.mxu0 0.0
  %2240 = vmatpush1.msra.mxu0 0.0
  %2241 = vmatprep.subr.mxu0 0.0
  %2242 = vmatpush1.msra.mxu0 0.0
  %2243 = vmatprep.subr.mxu0 0.0
  %2244 = vmatpush1.msra.mxu0 0.0
  %2245 = vmatprep.subr.mxu0 0.0
  %2246 = vmatpush1.msra.mxu0 0.0
  %2247 = vmatprep.subr.mxu0 0.0
  %2248 = vmatpush1.msra.mxu0 0.0
  %2249 = vmatprep.subr.mxu0 0.0
  %2250 = vmatpush1.msra.mxu0 0.0
  %2251 = vmatprep.subr.mxu0 0.0
  %2252 = vmatpush1.msra.mxu0 0.0
  %2253 = vmatprep.subr.mxu0 0.0
  %2254 = vmatpush1.msra.mxu0 %v2218
  %2255 = vmatprep.subr.mxu0 0.0
  %2256 = vmatpush2.msra.mxu0 0.0
  %2257 = vmatprep.subr.mxu0 0.0
  %2258 = vmatpush2.msra.mxu0 0.0
  %2259 = vmatprep.subr.mxu0 0.0
  %2260 = vmatpush2.msra.mxu0 0.0
  %2261 = vmatprep.subr.mxu0 0.0
  %2262 = vmatpush2.msra.mxu0 0.0
  %2263 = vmatprep.subr.mxu0 0.0
  %2264 = vmatpush2.msra.mxu0 0.0
  %2265 = vmatprep.subr.mxu0 0.0
  %2266 = vmatpush2.msra.mxu0 0.0
  %2267 = vmatprep.subr.mxu0 0.0
  %2268 = vmatpush2.msra.mxu0 0.0
  %2269 = vmatprep.subr.mxu0 0.0
  %2270 = vmatpush2.msra.mxu0 0.0
  %2271 = vmatprep.subr.mxu0 0.0
  %2272 = vmatpush2.msra.mxu0 0.0
  %2273 = vmatprep.subr.mxu0 0.0
  %2274 = vmatpush2.msra.mxu0 0.0
  %2275 = vmatprep.subr.mxu0 0.0
  %2276 = vmatpush2.msra.mxu0 0.0
  %2277 = vmatprep.subr.mxu0 0.0
  %2278 = vmatpush2.msra.mxu0 0.0
  %2279 = vmatprep.subr.mxu0 0.0
  %2280 = vmatpush2.msra.mxu0 0.0
  %2281 = vmatprep.subr.mxu0 0.0
  %2282 = vmatpush2.msra.mxu0 0.0
  %2283 = vmatprep.subr.mxu0 0.0
  %2284 = vmatpush2.msra.mxu0 0.0
  %2285 = vmatprep.subr.mxu0 0.0
  %2286 = vmatpush2.msra.mxu0 0.0
  %2287 = vmatprep.mubr.f32.mxu0 0.0
  %2288 = vmatmul.mubr.f32.gmra.mxu0 %v2221
  %v2289 = vpop.f32.mrf.mxu0
  %v2290 = vadd.f32 0.0, %v2289
  %v2291 = vpop.f32.mrf.mxu0
  %2292 = vdwg.mxu0
  %2293 = vrot.lane.b32.xlu0 %v2034, 64
  %v2294 = vpop.permute.xlu0 %2293
  %v2297 = vsel %vm177, %v2216, 0
  %2299 = vmatprep.subr.mxu0 0.0
  %2300 = vmatpush1.msra.mxu0 0.0
  %2301 = vmatprep.subr.mxu0 0.0
  %2302 = vmatpush1.msra.mxu0 0.0
  %2303 = vmatprep.subr.mxu0 0.0
  %2304 = vmatpush1.msra.mxu0 0.0
  %2305 = vmatprep.subr.mxu0 0.0
  %2306 = vmatpush1.msra.mxu0 0.0
  %2307 = vmatprep.subr.mxu0 0.0
  %2308 = vmatpush1.msra.mxu0 0.0
  %2309 = vmatprep.subr.mxu0 0.0
  %2310 = vmatpush1.msra.mxu0 0.0
  %2311 = vmatprep.subr.mxu0 0.0
  %2312 = vmatpush1.msra.mxu0 0.0
  %2313 = vmatprep.subr.mxu0 0.0
  %2314 = vmatpush1.msra.mxu0 0.0
  %2315 = vmatprep.subr.mxu0 0.0
  %2316 = vmatpush1.msra.mxu0 0.0
  %2317 = vmatprep.subr.mxu0 0.0
  %2318 = vmatpush1.msra.mxu0 0.0
  %2319 = vmatprep.subr.mxu0 0.0
  %2320 = vmatpush1.msra.mxu0 0.0
  %2321 = vmatprep.subr.mxu0 0.0
  %2322 = vmatpush1.msra.mxu0 0.0
  %2323 = vmatprep.subr.mxu0 0.0
  %2324 = vmatpush1.msra.mxu0 0.0
  %2325 = vmatprep.subr.mxu0 0.0
  %2326 = vmatpush1.msra.mxu0 0.0
  %2327 = vmatprep.subr.mxu0 0.0
  %2328 = vmatpush1.msra.mxu0 0.0
  %2329 = vmatprep.subr.mxu0 0.0
  %2330 = vmatpush1.msra.mxu0 %v2294
  %2331 = vmatprep.subr.mxu0 0.0
  %2332 = vmatpush2.msra.mxu0 0.0
  %2333 = vmatprep.subr.mxu0 0.0
  %2334 = vmatpush2.msra.mxu0 0.0
  %2335 = vmatprep.subr.mxu0 0.0
  %2336 = vmatpush2.msra.mxu0 0.0
  %2337 = vmatprep.subr.mxu0 0.0
  %2338 = vmatpush2.msra.mxu0 0.0
  %2339 = vmatprep.subr.mxu0 0.0
  %2340 = vmatpush2.msra.mxu0 0.0
  %2341 = vmatprep.subr.mxu0 0.0
  %2342 = vmatpush2.msra.mxu0 0.0
  %2343 = vmatprep.subr.mxu0 0.0
  %2344 = vmatpush2.msra.mxu0 0.0
  %2345 = vmatprep.subr.mxu0 0.0
  %2346 = vmatpush2.msra.mxu0 0.0
  %2347 = vmatprep.subr.mxu0 0.0
  %2348 = vmatpush2.msra.mxu0 0.0
  %2349 = vmatprep.subr.mxu0 0.0
  %2350 = vmatpush2.msra.mxu0 0.0
  %2351 = vmatprep.subr.mxu0 0.0
  %2352 = vmatpush2.msra.mxu0 0.0
  %2353 = vmatprep.subr.mxu0 0.0
  %2354 = vmatpush2.msra.mxu0 0.0
  %2355 = vmatprep.subr.mxu0 0.0
  %2356 = vmatpush2.msra.mxu0 0.0
  %2357 = vmatprep.subr.mxu0 0.0
  %2358 = vmatpush2.msra.mxu0 0.0
  %2359 = vmatprep.subr.mxu0 0.0
  %2360 = vmatpush2.msra.mxu0 0.0
  %2361 = vmatprep.subr.mxu0 0.0
  %2362 = vmatpush2.msra.mxu0 0.0
  %2363 = vmatprep.mubr.f32.mxu0 0.0
  %2364 = vmatmul.mubr.f32.gmra.mxu0 %v2297
  %v2365 = vpop.f32.mrf.mxu0
  %v2366 = vadd.f32 0.0, %v2365
  %v2367 = vpop.f32.mrf.mxu0
  %2368 = vdwg.mxu0
  %2369 = vrot.lane.b32.xlu0 %v2029, 120
  %v2370 = vpop.permute.xlu0 %2369
  %2371 = vrot.lane.b32.xlu0 %v2029, 88
  %v2372 = vpop.permute.xlu0 %2371
  %v2373 = vsel %vm177, %v2370, 0
  %v2375 = vsel %vm177, %v2372, 0
  %2377 = vmatprep.subr.mxu0 0.0
  %2378 = vmatpush1.xpose.msra.mxu0 0.0
  %2379 = vmatprep.subr.mxu0 0.0
  %2380 = vmatpush1.xpose.msra.mxu0 0.0
  %2381 = vmatprep.subr.mxu0 0.0
  %2382 = vmatpush1.xpose.msra.mxu0 0.0
  %2383 = vmatprep.subr.mxu0 0.0
  %2384 = vmatpush1.xpose.msra.mxu0 0.0
  %2385 = vmatprep.subr.mxu0 0.0
  %2386 = vmatpush1.xpose.msra.mxu0 0.0
  %2387 = vmatprep.subr.mxu0 0.0
  %2388 = vmatpush1.xpose.msra.mxu0 0.0
  %2389 = vmatprep.subr.mxu0 0.0
  %2390 = vmatpush1.xpose.msra.mxu0 0.0
  %2391 = vmatprep.subr.mxu0 0.0
  %2392 = vmatpush1.xpose.msra.mxu0 0.0
  %2393 = vmatprep.subr.mxu0 0.0
  %2394 = vmatpush1.xpose.msra.mxu0 0.0
  %2395 = vmatprep.subr.mxu0 0.0
  %2396 = vmatpush1.xpose.msra.mxu0 0.0
  %2397 = vmatprep.subr.mxu0 0.0
  %2398 = vmatpush1.xpose.msra.mxu0 0.0
  %2399 = vmatprep.subr.mxu0 0.0
  %2400 = vmatpush1.xpose.msra.mxu0 0.0
  %2401 = vmatprep.subr.mxu0 0.0
  %2402 = vmatpush1.xpose.msra.mxu0 0.0
  %2403 = vmatprep.subr.mxu0 0.0
  %2404 = vmatpush1.xpose.msra.mxu0 0.0
  %2405 = vmatprep.subr.mxu0 0.0
  %2406 = vmatpush1.xpose.msra.mxu0 0.0
  %2407 = vmatprep.subr.mxu0 0.0
  %2408 = vmatpush1.xpose.msra.mxu0 %v2375
  %2409 = vmatprep.subr.mxu0 0.0
  %2410 = vmatpush2.xpose.msra.mxu0 0.0
  %2411 = vmatprep.subr.mxu0 0.0
  %2412 = vmatpush2.xpose.msra.mxu0 0.0
  %2413 = vmatprep.subr.mxu0 0.0
  %2414 = vmatpush2.xpose.msra.mxu0 0.0
  %2415 = vmatprep.subr.mxu0 0.0
  %2416 = vmatpush2.xpose.msra.mxu0 0.0
  %2417 = vmatprep.subr.mxu0 0.0
  %2418 = vmatpush2.xpose.msra.mxu0 0.0
  %2419 = vmatprep.subr.mxu0 0.0
  %2420 = vmatpush2.xpose.msra.mxu0 0.0
  %2421 = vmatprep.subr.mxu0 0.0
  %2422 = vmatpush2.xpose.msra.mxu0 0.0
  %2423 = vmatprep.subr.mxu0 0.0
  %2424 = vmatpush2.xpose.msra.mxu0 0.0
  %2425 = vmatprep.subr.mxu0 0.0
  %2426 = vmatpush2.xpose.msra.mxu0 0.0
  %2427 = vmatprep.subr.mxu0 0.0
  %2428 = vmatpush2.xpose.msra.mxu0 0.0
  %2429 = vmatprep.subr.mxu0 0.0
  %2430 = vmatpush2.xpose.msra.mxu0 0.0
  %2431 = vmatprep.subr.mxu0 0.0
  %2432 = vmatpush2.xpose.msra.mxu0 0.0
  %2433 = vmatprep.subr.mxu0 0.0
  %2434 = vmatpush2.xpose.msra.mxu0 0.0
  %2435 = vmatprep.subr.mxu0 0.0
  %2436 = vmatpush2.xpose.msra.mxu0 0.0
  %2437 = vmatprep.subr.mxu0 0.0
  %2438 = vmatpush2.xpose.msra.mxu0 0.0
  %2439 = vmatprep.subr.mxu0 0.0
  %2440 = vmatpush2.xpose.msra.mxu0 0.0
  %2441 = vmatprep.mubr.f32.mxu0 0.0
  %2442 = vmatmul.mubr.f32.gmra.mxu0 %v2373
  %v2443 = vpop.f32.mrf.mxu0
  %v2444 = vadd.f32 0.0, %v2443
  %v2445 = vpop.f32.mrf.mxu0
  %2446 = vdwg.mxu0
  %2447 = vrot.lane.b32.xlu0 %v2034, 120
  %v2448 = vpop.permute.xlu0 %2447
  %2449 = vrot.lane.b32.xlu0 %v2034, 88
  %v2450 = vpop.permute.xlu0 %2449
  %v2451 = vsel %vm177, %v2448, 0
  %v2453 = vsel %vm177, %v2450, 0
  %2455 = vmatprep.subr.mxu0 0.0
  %2456 = vmatpush1.xpose.msra.mxu0 0.0
  %2457 = vmatprep.subr.mxu0 0.0
  %2458 = vmatpush1.xpose.msra.mxu0 0.0
  %2459 = vmatprep.subr.mxu0 0.0
  %2460 = vmatpush1.xpose.msra.mxu0 0.0
  %2461 = vmatprep.subr.mxu0 0.0
  %2462 = vmatpush1.xpose.msra.mxu0 0.0
  %2463 = vmatprep.subr.mxu0 0.0
  %2464 = vmatpush1.xpose.msra.mxu0 0.0
  %2465 = vmatprep.subr.mxu0 0.0
  %2466 = vmatpush1.xpose.msra.mxu0 0.0
  %2467 = vmatprep.subr.mxu0 0.0
  %2468 = vmatpush1.xpose.msra.mxu0 0.0
  %2469 = vmatprep.subr.mxu0 0.0
  %2470 = vmatpush1.xpose.msra.mxu0 0.0
  %2471 = vmatprep.subr.mxu0 0.0
  %2472 = vmatpush1.xpose.msra.mxu0 0.0
  %2473 = vmatprep.subr.mxu0 0.0
  %2474 = vmatpush1.xpose.msra.mxu0 0.0
  %2475 = vmatprep.subr.mxu0 0.0
  %2476 = vmatpush1.xpose.msra.mxu0 0.0
  %2477 = vmatprep.subr.mxu0 0.0
  %2478 = vmatpush1.xpose.msra.mxu0 0.0
  %2479 = vmatprep.subr.mxu0 0.0
  %2480 = vmatpush1.xpose.msra.mxu0 0.0
  %2481 = vmatprep.subr.mxu0 0.0
  %2482 = vmatpush1.xpose.msra.mxu0 0.0
  %2483 = vmatprep.subr.mxu0 0.0
  %2484 = vmatpush1.xpose.msra.mxu0 0.0
  %2485 = vmatprep.subr.mxu0 0.0
  %2486 = vmatpush1.xpose.msra.mxu0 %v2453
  %2487 = vmatprep.subr.mxu0 0.0
  %2488 = vmatpush2.xpose.msra.mxu0 0.0
  %2489 = vmatprep.subr.mxu0 0.0
  %2490 = vmatpush2.xpose.msra.mxu0 0.0
  %2491 = vmatprep.subr.mxu0 0.0
  %2492 = vmatpush2.xpose.msra.mxu0 0.0
  %2493 = vmatprep.subr.mxu0 0.0
  %2494 = vmatpush2.xpose.msra.mxu0 0.0
  %2495 = vmatprep.subr.mxu0 0.0
  %2496 = vmatpush2.xpose.msra.mxu0 0.0
  %2497 = vmatprep.subr.mxu0 0.0
  %2498 = vmatpush2.xpose.msra.mxu0 0.0
  %2499 = vmatprep.subr.mxu0 0.0
  %2500 = vmatpush2.xpose.msra.mxu0 0.0
  %2501 = vmatprep.subr.mxu0 0.0
  %2502 = vmatpush2.xpose.msra.mxu0 0.0
  %2503 = vmatprep.subr.mxu0 0.0
  %2504 = vmatpush2.xpose.msra.mxu0 0.0
  %2505 = vmatprep.subr.mxu0 0.0
  %2506 = vmatpush2.xpose.msra.mxu0 0.0
  %2507 = vmatprep.subr.mxu0 0.0
  %2508 = vmatpush2.xpose.msra.mxu0 0.0
  %2509 = vmatprep.subr.mxu0 0.0
  %2510 = vmatpush2.xpose.msra.mxu0 0.0
  %2511 = vmatprep.subr.mxu0 0.0
  %2512 = vmatpush2.xpose.msra.mxu0 0.0
  %2513 = vmatprep.subr.mxu0 0.0
  %2514 = vmatpush2.xpose.msra.mxu0 0.0
  %2515 = vmatprep.subr.mxu0 0.0
  %2516 = vmatpush2.xpose.msra.mxu0 0.0
  %2517 = vmatprep.subr.mxu0 0.0
  %2518 = vmatpush2.xpose.msra.mxu0 0.0
  %2519 = vmatprep.mubr.f32.mxu0 0.0
  %2520 = vmatmul.mubr.f32.gmra.mxu0 %v2451
  %v2521 = vpop.f32.mrf.mxu0
  %v2522 = vadd.f32 0.0, %v2521
  %v2523 = vpop.f32.mrf.mxu0
  %2524 = vdwg.mxu0
  %v2525 = vmul.f32 %v2444, 0.35355338
  %v2526 = vmul.f32 %v2522, 0.35355338
  %v2527 = vadd.f32 %v2525, %v334
  %v2528 = vadd.f32 %v2526, %v338
  %v2529 = vsel %vm177, %v2527, -inf
  %2530 = vmax.xlane.f32.xlu0 %v2529
  %v2531 = vpop.xlane.xlu0 %2530
  %v2532 = vsel %vm177, %v2528, -inf
  %2533 = vmax.xlane.f32.xlu0 %v2532
  %v2534 = vpop.xlane.xlu0 %2533
  %v2535 = vsub.f32 %v2527, %v2531
  %v2536 = vsub.f32 %v2528, %v2534
  %v2537 = vmul.f32 %v2535, 1.442695
  %v2538 = vpow.pop %v2537
  %v2539 = vmul.f32 %v2536, 1.442695
  %v2540 = vpow.pop %v2539
  %v2541 = vsel %vm177, %v2538, 0.0
  %2542 = vadd.xlane.f32.xlu0 %v2541
  %v2543 = vpop.xlane.xlu0 %2542
  %v2544 = vsel %vm177, %v2540, 0.0
  %2545 = vadd.xlane.f32.xlu0 %v2544
  %v2546 = vpop.xlane.xlu0 %2545
  %v2547 = vrcp.pop %v2543
  %v2548 = vrcp.pop %v2546
  %v2549 = vmul.f32 %v2538, %v2547
  %v2550 = vmul.f32 %v2540, %v2548
  %2551 = vrot.lane.b32.xlu0 %v2029, 56
  %v2552 = vpop.permute.xlu0 %2551
  %v2555 = vsel %vm177, %v2549, 0
  %2557 = vmatprep.subr.mxu0 0.0
  %2558 = vmatpush1.msra.mxu0 0.0
  %2559 = vmatprep.subr.mxu0 0.0
  %2560 = vmatpush1.msra.mxu0 0.0
  %2561 = vmatprep.subr.mxu0 0.0
  %2562 = vmatpush1.msra.mxu0 0.0
  %2563 = vmatprep.subr.mxu0 0.0
  %2564 = vmatpush1.msra.mxu0 0.0
  %2565 = vmatprep.subr.mxu0 0.0
  %2566 = vmatpush1.msra.mxu0 0.0
  %2567 = vmatprep.subr.mxu0 0.0
  %2568 = vmatpush1.msra.mxu0 0.0
  %2569 = vmatprep.subr.mxu0 0.0
  %2570 = vmatpush1.msra.mxu0 0.0
  %2571 = vmatprep.subr.mxu0 0.0
  %2572 = vmatpush1.msra.mxu0 0.0
  %2573 = vmatprep.subr.mxu0 0.0
  %2574 = vmatpush1.msra.mxu0 0.0
  %2575 = vmatprep.subr.mxu0 0.0
  %2576 = vmatpush1.msra.mxu0 0.0
  %2577 = vmatprep.subr.mxu0 0.0
  %2578 = vmatpush1.msra.mxu0 0.0
  %2579 = vmatprep.subr.mxu0 0.0
  %2580 = vmatpush1.msra.mxu0 0.0
  %2581 = vmatprep.subr.mxu0 0.0
  %2582 = vmatpush1.msra.mxu0 0.0
  %2583 = vmatprep.subr.mxu0 0.0
  %2584 = vmatpush1.msra.mxu0 0.0
  %2585 = vmatprep.subr.mxu0 0.0
  %2586 = vmatpush1.msra.mxu0 0.0
  %2587 = vmatprep.subr.mxu0 0.0
  %2588 = vmatpush1.msra.mxu0 %v2552
  %2589 = vmatprep.subr.mxu0 0.0
  %2590 = vmatpush2.msra.mxu0 0.0
  %2591 = vmatprep.subr.mxu0 0.0
  %2592 = vmatpush2.msra.mxu0 0.0
  %2593 = vmatprep.subr.mxu0 0.0
  %2594 = vmatpush2.msra.mxu0 0.0
  %2595 = vmatprep.subr.mxu0 0.0
  %2596 = vmatpush2.msra.mxu0 0.0
  %2597 = vmatprep.subr.mxu0 0.0
  %2598 = vmatpush2.msra.mxu0 0.0
  %2599 = vmatprep.subr.mxu0 0.0
  %2600 = vmatpush2.msra.mxu0 0.0
  %2601 = vmatprep.subr.mxu0 0.0
  %2602 = vmatpush2.msra.mxu0 0.0
  %2603 = vmatprep.subr.mxu0 0.0
  %2604 = vmatpush2.msra.mxu0 0.0
  %2605 = vmatprep.subr.mxu0 0.0
  %2606 = vmatpush2.msra.mxu0 0.0
  %2607 = vmatprep.subr.mxu0 0.0
  %2608 = vmatpush2.msra.mxu0 0.0
  %2609 = vmatprep.subr.mxu0 0.0
  %2610 = vmatpush2.msra.mxu0 0.0
  %2611 = vmatprep.subr.mxu0 0.0
  %2612 = vmatpush2.msra.mxu0 0.0
  %2613 = vmatprep.subr.mxu0 0.0
  %2614 = vmatpush2.msra.mxu0 0.0
  %2615 = vmatprep.subr.mxu0 0.0
  %2616 = vmatpush2.msra.mxu0 0.0
  %2617 = vmatprep.subr.mxu0 0.0
  %2618 = vmatpush2.msra.mxu0 0.0
  %2619 = vmatprep.subr.mxu0 0.0
  %2620 = vmatpush2.msra.mxu0 0.0
  %2621 = vmatprep.mubr.f32.mxu0 0.0
  %2622 = vmatmul.mubr.f32.gmra.mxu0 %v2555
  %v2623 = vpop.f32.mrf.mxu0
  %v2624 = vadd.f32 0.0, %v2623
  %v2625 = vpop.f32.mrf.mxu0
  %2626 = vdwg.mxu0
  %2627 = vrot.lane.b32.xlu0 %v2034, 56
  %v2628 = vpop.permute.xlu0 %2627
  %v2631 = vsel %vm177, %v2550, 0
  %2633 = vmatprep.subr.mxu0 0.0
  %2634 = vmatpush1.msra.mxu0 0.0
  %2635 = vmatprep.subr.mxu0 0.0
  %2636 = vmatpush1.msra.mxu0 0.0
  %2637 = vmatprep.subr.mxu0 0.0
  %2638 = vmatpush1.msra.mxu0 0.0
  %2639 = vmatprep.subr.mxu0 0.0
  %2640 = vmatpush1.msra.mxu0 0.0
  %2641 = vmatprep.subr.mxu0 0.0
  %2642 = vmatpush1.msra.mxu0 0.0
  %2643 = vmatprep.subr.mxu0 0.0
  %2644 = vmatpush1.msra.mxu0 0.0
  %2645 = vmatprep.subr.mxu0 0.0
  %2646 = vmatpush1.msra.mxu0 0.0
  %2647 = vmatprep.subr.mxu0 0.0
  %2648 = vmatpush1.msra.mxu0 0.0
  %2649 = vmatprep.subr.mxu0 0.0
  %2650 = vmatpush1.msra.mxu0 0.0
  %2651 = vmatprep.subr.mxu0 0.0
  %2652 = vmatpush1.msra.mxu0 0.0
  %2653 = vmatprep.subr.mxu0 0.0
  %2654 = vmatpush1.msra.mxu0 0.0
  %2655 = vmatprep.subr.mxu0 0.0
  %2656 = vmatpush1.msra.mxu0 0.0
  %2657 = vmatprep.subr.mxu0 0.0
  %2658 = vmatpush1.msra.mxu0 0.0
  %2659 = vmatprep.subr.mxu0 0.0
  %2660 = vmatpush1.msra.mxu0 0.0
  %2661 = vmatprep.subr.mxu0 0.0
  %2662 = vmatpush1.msra.mxu0 0.0
  %2663 = vmatprep.subr.mxu0 0.0
  %2664 = vmatpush1.msra.mxu0 %v2628
  %2665 = vmatprep.subr.mxu0 0.0
  %2666 = vmatpush2.msra.mxu0 0.0
  %2667 = vmatprep.subr.mxu0 0.0
  %2668 = vmatpush2.msra.mxu0 0.0
  %2669 = vmatprep.subr.mxu0 0.0
  %2670 = vmatpush2.msra.mxu0 0.0
  %2671 = vmatprep.subr.mxu0 0.0
  %2672 = vmatpush2.msra.mxu0 0.0
  %2673 = vmatprep.subr.mxu0 0.0
  %2674 = vmatpush2.msra.mxu0 0.0
  %2675 = vmatprep.subr.mxu0 0.0
  %2676 = vmatpush2.msra.mxu0 0.0
  %2677 = vmatprep.subr.mxu0 0.0
  %2678 = vmatpush2.msra.mxu0 0.0
  %2679 = vmatprep.subr.mxu0 0.0
  %2680 = vmatpush2.msra.mxu0 0.0
  %2681 = vmatprep.subr.mxu0 0.0
  %2682 = vmatpush2.msra.mxu0 0.0
  %2683 = vmatprep.subr.mxu0 0.0
  %2684 = vmatpush2.msra.mxu0 0.0
  %2685 = vmatprep.subr.mxu0 0.0
  %2686 = vmatpush2.msra.mxu0 0.0
  %2687 = vmatprep.subr.mxu0 0.0
  %2688 = vmatpush2.msra.mxu0 0.0
  %2689 = vmatprep.subr.mxu0 0.0
  %2690 = vmatpush2.msra.mxu0 0.0
  %2691 = vmatprep.subr.mxu0 0.0
  %2692 = vmatpush2.msra.mxu0 0.0
  %2693 = vmatprep.subr.mxu0 0.0
  %2694 = vmatpush2.msra.mxu0 0.0
  %2695 = vmatprep.subr.mxu0 0.0
  %2696 = vmatpush2.msra.mxu0 0.0
  %2697 = vmatprep.mubr.f32.mxu0 0.0
  %2698 = vmatmul.mubr.f32.gmra.mxu0 %v2631
  %v2699 = vpop.f32.mrf.mxu0
  %v2700 = vadd.f32 0.0, %v2699
  %v2701 = vpop.f32.mrf.mxu0
  %2702 = vdwg.mxu0
  %2703 = vrot.lane.b32.xlu0 %v2029, 112
  %v2704 = vpop.permute.xlu0 %2703
  %2705 = vrot.lane.b32.xlu0 %v2029, 80
  %v2706 = vpop.permute.xlu0 %2705
  %v2707 = vsel %vm177, %v2704, 0
  %v2709 = vsel %vm177, %v2706, 0
  %2711 = vmatprep.subr.mxu0 0.0
  %2712 = vmatpush1.xpose.msra.mxu0 0.0
  %2713 = vmatprep.subr.mxu0 0.0
  %2714 = vmatpush1.xpose.msra.mxu0 0.0
  %2715 = vmatprep.subr.mxu0 0.0
  %2716 = vmatpush1.xpose.msra.mxu0 0.0
  %2717 = vmatprep.subr.mxu0 0.0
  %2718 = vmatpush1.xpose.msra.mxu0 0.0
  %2719 = vmatprep.subr.mxu0 0.0
  %2720 = vmatpush1.xpose.msra.mxu0 0.0
  %2721 = vmatprep.subr.mxu0 0.0
  %2722 = vmatpush1.xpose.msra.mxu0 0.0
  %2723 = vmatprep.subr.mxu0 0.0
  %2724 = vmatpush1.xpose.msra.mxu0 0.0
  %2725 = vmatprep.subr.mxu0 0.0
  %2726 = vmatpush1.xpose.msra.mxu0 0.0
  %2727 = vmatprep.subr.mxu0 0.0
  %2728 = vmatpush1.xpose.msra.mxu0 0.0
  %2729 = vmatprep.subr.mxu0 0.0
  %2730 = vmatpush1.xpose.msra.mxu0 0.0
  %2731 = vmatprep.subr.mxu0 0.0
  %2732 = vmatpush1.xpose.msra.mxu0 0.0
  %2733 = vmatprep.subr.mxu0 0.0
  %2734 = vmatpush1.xpose.msra.mxu0 0.0
  %2735 = vmatprep.subr.mxu0 0.0
  %2736 = vmatpush1.xpose.msra.mxu0 0.0
  %2737 = vmatprep.subr.mxu0 0.0
  %2738 = vmatpush1.xpose.msra.mxu0 0.0
  %2739 = vmatprep.subr.mxu0 0.0
  %2740 = vmatpush1.xpose.msra.mxu0 0.0
  %2741 = vmatprep.subr.mxu0 0.0
  %2742 = vmatpush1.xpose.msra.mxu0 %v2709
  %2743 = vmatprep.subr.mxu0 0.0
  %2744 = vmatpush2.xpose.msra.mxu0 0.0
  %2745 = vmatprep.subr.mxu0 0.0
  %2746 = vmatpush2.xpose.msra.mxu0 0.0
  %2747 = vmatprep.subr.mxu0 0.0
  %2748 = vmatpush2.xpose.msra.mxu0 0.0
  %2749 = vmatprep.subr.mxu0 0.0
  %2750 = vmatpush2.xpose.msra.mxu0 0.0
  %2751 = vmatprep.subr.mxu0 0.0
  %2752 = vmatpush2.xpose.msra.mxu0 0.0
  %2753 = vmatprep.subr.mxu0 0.0
  %2754 = vmatpush2.xpose.msra.mxu0 0.0
  %2755 = vmatprep.subr.mxu0 0.0
  %2756 = vmatpush2.xpose.msra.mxu0 0.0
  %2757 = vmatprep.subr.mxu0 0.0
  %2758 = vmatpush2.xpose.msra.mxu0 0.0
  %2759 = vmatprep.subr.mxu0 0.0
  %2760 = vmatpush2.xpose.msra.mxu0 0.0
  %2761 = vmatprep.subr.mxu0 0.0
  %2762 = vmatpush2.xpose.msra.mxu0 0.0
  %2763 = vmatprep.subr.mxu0 0.0
  %2764 = vmatpush2.xpose.msra.mxu0 0.0
  %2765 = vmatprep.subr.mxu0 0.0
  %2766 = vmatpush2.xpose.msra.mxu0 0.0
  %2767 = vmatprep.subr.mxu0 0.0
  %2768 = vmatpush2.xpose.msra.mxu0 0.0
  %2769 = vmatprep.subr.mxu0 0.0
  %2770 = vmatpush2.xpose.msra.mxu0 0.0
  %2771 = vmatprep.subr.mxu0 0.0
  %2772 = vmatpush2.xpose.msra.mxu0 0.0
  %2773 = vmatprep.subr.mxu0 0.0
  %2774 = vmatpush2.xpose.msra.mxu0 0.0
  %2775 = vmatprep.mubr.f32.mxu0 0.0
  %2776 = vmatmul.mubr.f32.gmra.mxu0 %v2707
  %v2777 = vpop.f32.mrf.mxu0
  %v2778 = vadd.f32 0.0, %v2777
  %v2779 = vpop.f32.mrf.mxu0
  %2780 = vdwg.mxu0
  %2781 = vrot.lane.b32.xlu0 %v2034, 112
  %v2782 = vpop.permute.xlu0 %2781
  %2783 = vrot.lane.b32.xlu0 %v2034, 80
  %v2784 = vpop.permute.xlu0 %2783
  %v2785 = vsel %vm177, %v2782, 0
  %v2787 = vsel %vm177, %v2784, 0
  %2789 = vmatprep.subr.mxu0 0.0
  %2790 = vmatpush1.xpose.msra.mxu0 0.0
  %2791 = vmatprep.subr.mxu0 0.0
  %2792 = vmatpush1.xpose.msra.mxu0 0.0
  %2793 = vmatprep.subr.mxu0 0.0
  %2794 = vmatpush1.xpose.msra.mxu0 0.0
  %2795 = vmatprep.subr.mxu0 0.0
  %2796 = vmatpush1.xpose.msra.mxu0 0.0
  %2797 = vmatprep.subr.mxu0 0.0
  %2798 = vmatpush1.xpose.msra.mxu0 0.0
  %2799 = vmatprep.subr.mxu0 0.0
  %2800 = vmatpush1.xpose.msra.mxu0 0.0
  %2801 = vmatprep.subr.mxu0 0.0
  %2802 = vmatpush1.xpose.msra.mxu0 0.0
  %2803 = vmatprep.subr.mxu0 0.0
  %2804 = vmatpush1.xpose.msra.mxu0 0.0
  %2805 = vmatprep.subr.mxu0 0.0
  %2806 = vmatpush1.xpose.msra.mxu0 0.0
  %2807 = vmatprep.subr.mxu0 0.0
  %2808 = vmatpush1.xpose.msra.mxu0 0.0
  %2809 = vmatprep.subr.mxu0 0.0
  %2810 = vmatpush1.xpose.msra.mxu0 0.0
  %2811 = vmatprep.subr.mxu0 0.0
  %2812 = vmatpush1.xpose.msra.mxu0 0.0
  %2813 = vmatprep.subr.mxu0 0.0
  %2814 = vmatpush1.xpose.msra.mxu0 0.0
  %2815 = vmatprep.subr.mxu0 0.0
  %2816 = vmatpush1.xpose.msra.mxu0 0.0
  %2817 = vmatprep.subr.mxu0 0.0
  %2818 = vmatpush1.xpose.msra.mxu0 0.0
  %2819 = vmatprep.subr.mxu0 0.0
  %2820 = vmatpush1.xpose.msra.mxu0 %v2787
  %2821 = vmatprep.subr.mxu0 0.0
  %2822 = vmatpush2.xpose.msra.mxu0 0.0
  %2823 = vmatprep.subr.mxu0 0.0
  %2824 = vmatpush2.xpose.msra.mxu0 0.0
  %2825 = vmatprep.subr.mxu0 0.0
  %2826 = vmatpush2.xpose.msra.mxu0 0.0
  %2827 = vmatprep.subr.mxu0 0.0
  %2828 = vmatpush2.xpose.msra.mxu0 0.0
  %2829 = vmatprep.subr.mxu0 0.0
  %2830 = vmatpush2.xpose.msra.mxu0 0.0
  %2831 = vmatprep.subr.mxu0 0.0
  %2832 = vmatpush2.xpose.msra.mxu0 0.0
  %2833 = vmatprep.subr.mxu0 0.0
  %2834 = vmatpush2.xpose.msra.mxu0 0.0
  %2835 = vmatprep.subr.mxu0 0.0
  %2836 = vmatpush2.xpose.msra.mxu0 0.0
  %2837 = vmatprep.subr.mxu0 0.0
  %2838 = vmatpush2.xpose.msra.mxu0 0.0
  %2839 = vmatprep.subr.mxu0 0.0
  %2840 = vmatpush2.xpose.msra.mxu0 0.0
  %2841 = vmatprep.subr.mxu0 0.0
  %2842 = vmatpush2.xpose.msra.mxu0 0.0
  %2843 = vmatprep.subr.mxu0 0.0
  %2844 = vmatpush2.xpose.msra.mxu0 0.0
  %2845 = vmatprep.subr.mxu0 0.0
  %2846 = vmatpush2.xpose.msra.mxu0 0.0
  %2847 = vmatprep.subr.mxu0 0.0
  %2848 = vmatpush2.xpose.msra.mxu0 0.0
  %2849 = vmatprep.subr.mxu0 0.0
  %2850 = vmatpush2.xpose.msra.mxu0 0.0
  %2851 = vmatprep.subr.mxu0 0.0
  %2852 = vmatpush2.xpose.msra.mxu0 0.0
  %2853 = vmatprep.mubr.f32.mxu0 0.0
  %2854 = vmatmul.mubr.f32.gmra.mxu0 %v2785
  %v2855 = vpop.f32.mrf.mxu0
  %v2856 = vadd.f32 0.0, %v2855
  %v2857 = vpop.f32.mrf.mxu0
  %2858 = vdwg.mxu0
  %v2859 = vmul.f32 %v2778, 0.35355338
  %v2860 = vmul.f32 %v2856, 0.35355338
  %v2861 = vadd.f32 %v2859, %v334
  %v2862 = vadd.f32 %v2860, %v338
  %v2863 = vsel %vm177, %v2861, -inf
  %2864 = vmax.xlane.f32.xlu0 %v2863
  %v2865 = vpop.xlane.xlu0 %2864
  %v2866 = vsel %vm177, %v2862, -inf
  %2867 = vmax.xlane.f32.xlu0 %v2866
  %v2868 = vpop.xlane.xlu0 %2867
  %v2869 = vsub.f32 %v2861, %v2865
  %v2870 = vsub.f32 %v2862, %v2868
  %v2871 = vmul.f32 %v2869, 1.442695
  %v2872 = vpow.pop %v2871
  %v2873 = vmul.f32 %v2870, 1.442695
  %v2874 = vpow.pop %v2873
  %v2875 = vsel %vm177, %v2872, 0.0
  %2876 = vadd.xlane.f32.xlu0 %v2875
  %v2877 = vpop.xlane.xlu0 %2876
  %v2878 = vsel %vm177, %v2874, 0.0
  %2879 = vadd.xlane.f32.xlu0 %v2878
  %v2880 = vpop.xlane.xlu0 %2879
  %v2881 = vrcp.pop %v2877
  %v2882 = vrcp.pop %v2880
  %v2883 = vmul.f32 %v2872, %v2881
  %v2884 = vmul.f32 %v2874, %v2882
  %2885 = vrot.lane.b32.xlu0 %v2029, 48
  %v2886 = vpop.permute.xlu0 %2885
  %v2889 = vsel %vm177, %v2883, 0
  %2891 = vmatprep.subr.mxu0 0.0
  %2892 = vmatpush1.msra.mxu0 0.0
  %2893 = vmatprep.subr.mxu0 0.0
  %2894 = vmatpush1.msra.mxu0 0.0
  %2895 = vmatprep.subr.mxu0 0.0
  %2896 = vmatpush1.msra.mxu0 0.0
  %2897 = vmatprep.subr.mxu0 0.0
  %2898 = vmatpush1.msra.mxu0 0.0
  %2899 = vmatprep.subr.mxu0 0.0
  %2900 = vmatpush1.msra.mxu0 0.0
  %2901 = vmatprep.subr.mxu0 0.0
  %2902 = vmatpush1.msra.mxu0 0.0
  %2903 = vmatprep.subr.mxu0 0.0
  %2904 = vmatpush1.msra.mxu0 0.0
  %2905 = vmatprep.subr.mxu0 0.0
  %2906 = vmatpush1.msra.mxu0 0.0
  %2907 = vmatprep.subr.mxu0 0.0
  %2908 = vmatpush1.msra.mxu0 0.0
  %2909 = vmatprep.subr.mxu0 0.0
  %2910 = vmatpush1.msra.mxu0 0.0
  %2911 = vmatprep.subr.mxu0 0.0
  %2912 = vmatpush1.msra.mxu0 0.0
  %2913 = vmatprep.subr.mxu0 0.0
  %2914 = vmatpush1.msra.mxu0 0.0
  %2915 = vmatprep.subr.mxu0 0.0
  %2916 = vmatpush1.msra.mxu0 0.0
  %2917 = vmatprep.subr.mxu0 0.0
  %2918 = vmatpush1.msra.mxu0 0.0
  %2919 = vmatprep.subr.mxu0 0.0
  %2920 = vmatpush1.msra.mxu0 0.0
  %2921 = vmatprep.subr.mxu0 0.0
  %2922 = vmatpush1.msra.mxu0 %v2886
  %2923 = vmatprep.subr.mxu0 0.0
  %2924 = vmatpush2.msra.mxu0 0.0
  %2925 = vmatprep.subr.mxu0 0.0
  %2926 = vmatpush2.msra.mxu0 0.0
  %2927 = vmatprep.subr.mxu0 0.0
  %2928 = vmatpush2.msra.mxu0 0.0
  %2929 = vmatprep.subr.mxu0 0.0
  %2930 = vmatpush2.msra.mxu0 0.0
  %2931 = vmatprep.subr.mxu0 0.0
  %2932 = vmatpush2.msra.mxu0 0.0
  %2933 = vmatprep.subr.mxu0 0.0
  %2934 = vmatpush2.msra.mxu0 0.0
  %2935 = vmatprep.subr.mxu0 0.0
  %2936 = vmatpush2.msra.mxu0 0.0
  %2937 = vmatprep.subr.mxu0 0.0
  %2938 = vmatpush2.msra.mxu0 0.0
  %2939 = vmatprep.subr.mxu0 0.0
  %2940 = vmatpush2.msra.mxu0 0.0
  %2941 = vmatprep.subr.mxu0 0.0
  %2942 = vmatpush2.msra.mxu0 0.0
  %2943 = vmatprep.subr.mxu0 0.0
  %2944 = vmatpush2.msra.mxu0 0.0
  %2945 = vmatprep.subr.mxu0 0.0
  %2946 = vmatpush2.msra.mxu0 0.0
  %2947 = vmatprep.subr.mxu0 0.0
  %2948 = vmatpush2.msra.mxu0 0.0
  %2949 = vmatprep.subr.mxu0 0.0
  %2950 = vmatpush2.msra.mxu0 0.0
  %2951 = vmatprep.subr.mxu0 0.0
  %2952 = vmatpush2.msra.mxu0 0.0
  %2953 = vmatprep.subr.mxu0 0.0
  %2954 = vmatpush2.msra.mxu0 0.0
  %2955 = vmatprep.mubr.f32.mxu0 0.0
  %2956 = vmatmul.mubr.f32.gmra.mxu0 %v2889
  %v2957 = vpop.f32.mrf.mxu0
  %v2958 = vadd.f32 0.0, %v2957
  %v2959 = vpop.f32.mrf.mxu0
  %2960 = vdwg.mxu0
  %2961 = vrot.lane.b32.xlu0 %v2034, 48
  %v2962 = vpop.permute.xlu0 %2961
  %v2965 = vsel %vm177, %v2884, 0
  %2967 = vmatprep.subr.mxu0 0.0
  %2968 = vmatpush1.msra.mxu0 0.0
  %2969 = vmatprep.subr.mxu0 0.0
  %2970 = vmatpush1.msra.mxu0 0.0
  %2971 = vmatprep.subr.mxu0 0.0
  %2972 = vmatpush1.msra.mxu0 0.0
  %2973 = vmatprep.subr.mxu0 0.0
  %2974 = vmatpush1.msra.mxu0 0.0
  %2975 = vmatprep.subr.mxu0 0.0
  %2976 = vmatpush1.msra.mxu0 0.0
  %2977 = vmatprep.subr.mxu0 0.0
  %2978 = vmatpush1.msra.mxu0 0.0
  %2979 = vmatprep.subr.mxu0 0.0
  %2980 = vmatpush1.msra.mxu0 0.0
  %2981 = vmatprep.subr.mxu0 0.0
  %2982 = vmatpush1.msra.mxu0 0.0
  %2983 = vmatprep.subr.mxu0 0.0
  %2984 = vmatpush1.msra.mxu0 0.0
  %2985 = vmatprep.subr.mxu0 0.0
  %2986 = vmatpush1.msra.mxu0 0.0
  %2987 = vmatprep.subr.mxu0 0.0
  %2988 = vmatpush1.msra.mxu0 0.0
  %2989 = vmatprep.subr.mxu0 0.0
  %2990 = vmatpush1.msra.mxu0 0.0
  %2991 = vmatprep.subr.mxu0 0.0
  %2992 = vmatpush1.msra.mxu0 0.0
  %2993 = vmatprep.subr.mxu0 0.0
  %2994 = vmatpush1.msra.mxu0 0.0
  %2995 = vmatprep.subr.mxu0 0.0
  %2996 = vmatpush1.msra.mxu0 0.0
  %2997 = vmatprep.subr.mxu0 0.0
  %2998 = vmatpush1.msra.mxu0 %v2962
  %2999 = vmatprep.subr.mxu0 0.0
  %3000 = vmatpush2.msra.mxu0 0.0
  %3001 = vmatprep.subr.mxu0 0.0
  %3002 = vmatpush2.msra.mxu0 0.0
  %3003 = vmatprep.subr.mxu0 0.0
  %3004 = vmatpush2.msra.mxu0 0.0
  %3005 = vmatprep.subr.mxu0 0.0
  %3006 = vmatpush2.msra.mxu0 0.0
  %3007 = vmatprep.subr.mxu0 0.0
  %3008 = vmatpush2.msra.mxu0 0.0
  %3009 = vmatprep.subr.mxu0 0.0
  %3010 = vmatpush2.msra.mxu0 0.0
  %3011 = vmatprep.subr.mxu0 0.0
  %3012 = vmatpush2.msra.mxu0 0.0
  %3013 = vmatprep.subr.mxu0 0.0
  %3014 = vmatpush2.msra.mxu0 0.0
  %3015 = vmatprep.subr.mxu0 0.0
  %3016 = vmatpush2.msra.mxu0 0.0
  %3017 = vmatprep.subr.mxu0 0.0
  %3018 = vmatpush2.msra.mxu0 0.0
  %3019 = vmatprep.subr.mxu0 0.0
  %3020 = vmatpush2.msra.mxu0 0.0
  %3021 = vmatprep.subr.mxu0 0.0
  %3022 = vmatpush2.msra.mxu0 0.0
  %3023 = vmatprep.subr.mxu0 0.0
  %3024 = vmatpush2.msra.mxu0 0.0
  %3025 = vmatprep.subr.mxu0 0.0
  %3026 = vmatpush2.msra.mxu0 0.0
  %3027 = vmatprep.subr.mxu0 0.0
  %3028 = vmatpush2.msra.mxu0 0.0
  %3029 = vmatprep.subr.mxu0 0.0
  %3030 = vmatpush2.msra.mxu0 0.0
  %3031 = vmatprep.mubr.f32.mxu0 0.0
  %3032 = vmatmul.mubr.f32.gmra.mxu0 %v2965
  %v3033 = vpop.f32.mrf.mxu0
  %v3034 = vadd.f32 0.0, %v3033
  %v3035 = vpop.f32.mrf.mxu0
  %3036 = vdwg.mxu0
  %3037 = vrot.lane.b32.xlu0 %v2029, 104
  %v3038 = vpop.permute.xlu0 %3037
  %3039 = vrot.lane.b32.xlu0 %v2029, 72
  %v3040 = vpop.permute.xlu0 %3039
  %v3041 = vsel %vm177, %v3038, 0
  %v3043 = vsel %vm177, %v3040, 0
  %3045 = vmatprep.subr.mxu0 0.0
  %3046 = vmatpush1.xpose.msra.mxu0 0.0
  %3047 = vmatprep.subr.mxu0 0.0
  %3048 = vmatpush1.xpose.msra.mxu0 0.0
  %3049 = vmatprep.subr.mxu0 0.0
  %3050 = vmatpush1.xpose.msra.mxu0 0.0
  %3051 = vmatprep.subr.mxu0 0.0
  %3052 = vmatpush1.xpose.msra.mxu0 0.0
  %3053 = vmatprep.subr.mxu0 0.0
  %3054 = vmatpush1.xpose.msra.mxu0 0.0
  %3055 = vmatprep.subr.mxu0 0.0
  %3056 = vmatpush1.xpose.msra.mxu0 0.0
  %3057 = vmatprep.subr.mxu0 0.0
  %3058 = vmatpush1.xpose.msra.mxu0 0.0
  %3059 = vmatprep.subr.mxu0 0.0
  %3060 = vmatpush1.xpose.msra.mxu0 0.0
  %3061 = vmatprep.subr.mxu0 0.0
  %3062 = vmatpush1.xpose.msra.mxu0 0.0
  %3063 = vmatprep.subr.mxu0 0.0
  %3064 = vmatpush1.xpose.msra.mxu0 0.0
  %3065 = vmatprep.subr.mxu0 0.0
  %3066 = vmatpush1.xpose.msra.mxu0 0.0
  %3067 = vmatprep.subr.mxu0 0.0
  %3068 = vmatpush1.xpose.msra.mxu0 0.0
  %3069 = vmatprep.subr.mxu0 0.0
  %3070 = vmatpush1.xpose.msra.mxu0 0.0
  %3071 = vmatprep.subr.mxu0 0.0
  %3072 = vmatpush1.xpose.msra.mxu0 0.0
  %3073 = vmatprep.subr.mxu0 0.0
  %3074 = vmatpush1.xpose.msra.mxu0 0.0
  %3075 = vmatprep.subr.mxu0 0.0
  %3076 = vmatpush1.xpose.msra.mxu0 %v3043
  %3077 = vmatprep.subr.mxu0 0.0
  %3078 = vmatpush2.xpose.msra.mxu0 0.0
  %3079 = vmatprep.subr.mxu0 0.0
  %3080 = vmatpush2.xpose.msra.mxu0 0.0
  %3081 = vmatprep.subr.mxu0 0.0
  %3082 = vmatpush2.xpose.msra.mxu0 0.0
  %3083 = vmatprep.subr.mxu0 0.0
  %3084 = vmatpush2.xpose.msra.mxu0 0.0
  %3085 = vmatprep.subr.mxu0 0.0
  %3086 = vmatpush2.xpose.msra.mxu0 0.0
  %3087 = vmatprep.subr.mxu0 0.0
  %3088 = vmatpush2.xpose.msra.mxu0 0.0
  %3089 = vmatprep.subr.mxu0 0.0
  %3090 = vmatpush2.xpose.msra.mxu0 0.0
  %3091 = vmatprep.subr.mxu0 0.0
  %3092 = vmatpush2.xpose.msra.mxu0 0.0
  %3093 = vmatprep.subr.mxu0 0.0
  %3094 = vmatpush2.xpose.msra.mxu0 0.0
  %3095 = vmatprep.subr.mxu0 0.0
  %3096 = vmatpush2.xpose.msra.mxu0 0.0
  %3097 = vmatprep.subr.mxu0 0.0
  %3098 = vmatpush2.xpose.msra.mxu0 0.0
  %3099 = vmatprep.subr.mxu0 0.0
  %3100 = vmatpush2.xpose.msra.mxu0 0.0
  %3101 = vmatprep.subr.mxu0 0.0
  %3102 = vmatpush2.xpose.msra.mxu0 0.0
  %3103 = vmatprep.subr.mxu0 0.0
  %3104 = vmatpush2.xpose.msra.mxu0 0.0
  %3105 = vmatprep.subr.mxu0 0.0
  %3106 = vmatpush2.xpose.msra.mxu0 0.0
  %3107 = vmatprep.subr.mxu0 0.0
  %3108 = vmatpush2.xpose.msra.mxu0 0.0
  %3109 = vmatprep.mubr.f32.mxu0 0.0
  %3110 = vmatmul.mubr.f32.gmra.mxu0 %v3041
  %v3111 = vpop.f32.mrf.mxu0
  %v3112 = vadd.f32 0.0, %v3111
  %v3113 = vpop.f32.mrf.mxu0
  %3114 = vdwg.mxu0
  %3115 = vrot.lane.b32.xlu0 %v2034, 104
  %v3116 = vpop.permute.xlu0 %3115
  %3117 = vrot.lane.b32.xlu0 %v2034, 72
  %v3118 = vpop.permute.xlu0 %3117
  %v3119 = vsel %vm177, %v3116, 0
  %v3121 = vsel %vm177, %v3118, 0
  %3123 = vmatprep.subr.mxu0 0.0
  %3124 = vmatpush1.xpose.msra.mxu0 0.0
  %3125 = vmatprep.subr.mxu0 0.0
  %3126 = vmatpush1.xpose.msra.mxu0 0.0
  %3127 = vmatprep.subr.mxu0 0.0
  %3128 = vmatpush1.xpose.msra.mxu0 0.0
  %3129 = vmatprep.subr.mxu0 0.0
  %3130 = vmatpush1.xpose.msra.mxu0 0.0
  %3131 = vmatprep.subr.mxu0 0.0
  %3132 = vmatpush1.xpose.msra.mxu0 0.0
  %3133 = vmatprep.subr.mxu0 0.0
  %3134 = vmatpush1.xpose.msra.mxu0 0.0
  %3135 = vmatprep.subr.mxu0 0.0
  %3136 = vmatpush1.xpose.msra.mxu0 0.0
  %3137 = vmatprep.subr.mxu0 0.0
  %3138 = vmatpush1.xpose.msra.mxu0 0.0
  %3139 = vmatprep.subr.mxu0 0.0
  %3140 = vmatpush1.xpose.msra.mxu0 0.0
  %3141 = vmatprep.subr.mxu0 0.0
  %3142 = vmatpush1.xpose.msra.mxu0 0.0
  %3143 = vmatprep.subr.mxu0 0.0
  %3144 = vmatpush1.xpose.msra.mxu0 0.0
  %3145 = vmatprep.subr.mxu0 0.0
  %3146 = vmatpush1.xpose.msra.mxu0 0.0
  %3147 = vmatprep.subr.mxu0 0.0
  %3148 = vmatpush1.xpose.msra.mxu0 0.0
  %3149 = vmatprep.subr.mxu0 0.0
  %3150 = vmatpush1.xpose.msra.mxu0 0.0
  %3151 = vmatprep.subr.mxu0 0.0
  %3152 = vmatpush1.xpose.msra.mxu0 0.0
  %3153 = vmatprep.subr.mxu0 0.0
  %3154 = vmatpush1.xpose.msra.mxu0 %v3121
  %3155 = vmatprep.subr.mxu0 0.0
  %3156 = vmatpush2.xpose.msra.mxu0 0.0
  %3157 = vmatprep.subr.mxu0 0.0
  %3158 = vmatpush2.xpose.msra.mxu0 0.0
  %3159 = vmatprep.subr.mxu0 0.0
  %3160 = vmatpush2.xpose.msra.mxu0 0.0
  %3161 = vmatprep.subr.mxu0 0.0
  %3162 = vmatpush2.xpose.msra.mxu0 0.0
  %3163 = vmatprep.subr.mxu0 0.0
  %3164 = vmatpush2.xpose.msra.mxu0 0.0
  %3165 = vmatprep.subr.mxu0 0.0
  %3166 = vmatpush2.xpose.msra.mxu0 0.0
  %3167 = vmatprep.subr.mxu0 0.0
  %3168 = vmatpush2.xpose.msra.mxu0 0.0
  %3169 = vmatprep.subr.mxu0 0.0
  %3170 = vmatpush2.xpose.msra.mxu0 0.0
  %3171 = vmatprep.subr.mxu0 0.0
  %3172 = vmatpush2.xpose.msra.mxu0 0.0
  %3173 = vmatprep.subr.mxu0 0.0
  %3174 = vmatpush2.xpose.msra.mxu0 0.0
  %3175 = vmatprep.subr.mxu0 0.0
  %3176 = vmatpush2.xpose.msra.mxu0 0.0
  %3177 = vmatprep.subr.mxu0 0.0
  %3178 = vmatpush2.xpose.msra.mxu0 0.0
  %3179 = vmatprep.subr.mxu0 0.0
  %3180 = vmatpush2.xpose.msra.mxu0 0.0
  %3181 = vmatprep.subr.mxu0 0.0
  %3182 = vmatpush2.xpose.msra.mxu0 0.0
  %3183 = vmatprep.subr.mxu0 0.0
  %3184 = vmatpush2.xpose.msra.mxu0 0.0
  %3185 = vmatprep.subr.mxu0 0.0
  %3186 = vmatpush2.xpose.msra.mxu0 0.0
  %3187 = vmatprep.mubr.f32.mxu0 0.0
  %3188 = vmatmul.mubr.f32.gmra.mxu0 %v3119
  %v3189 = vpop.f32.mrf.mxu0
  %v3190 = vadd.f32 0.0, %v3189
  %v3191 = vpop.f32.mrf.mxu0
  %3192 = vdwg.mxu0
  %v3193 = vmul.f32 %v3112, 0.35355338
  %v3194 = vmul.f32 %v3190, 0.35355338
  %v3195 = vadd.f32 %v3193, %v334
  %v3196 = vadd.f32 %v3194, %v338
  %v3197 = vsel %vm177, %v3195, -inf
  %3198 = vmax.xlane.f32.xlu0 %v3197
  %v3199 = vpop.xlane.xlu0 %3198
  %v3200 = vsel %vm177, %v3196, -inf
  %3201 = vmax.xlane.f32.xlu0 %v3200
  %v3202 = vpop.xlane.xlu0 %3201
  %v3203 = vsub.f32 %v3195, %v3199
  %v3204 = vsub.f32 %v3196, %v3202
  %v3205 = vmul.f32 %v3203, 1.442695
  %v3206 = vpow.pop %v3205
  %v3207 = vmul.f32 %v3204, 1.442695
  %v3208 = vpow.pop %v3207
  %v3209 = vsel %vm177, %v3206, 0.0
  %3210 = vadd.xlane.f32.xlu0 %v3209
  %v3211 = vpop.xlane.xlu0 %3210
  %v3212 = vsel %vm177, %v3208, 0.0
  %3213 = vadd.xlane.f32.xlu0 %v3212
  %v3214 = vpop.xlane.xlu0 %3213
  %v3215 = vrcp.pop %v3211
  %v3216 = vrcp.pop %v3214
  %v3217 = vmul.f32 %v3206, %v3215
  %v3218 = vmul.f32 %v3208, %v3216
  %3219 = vrot.lane.b32.xlu0 %v2029, 40
  %v3220 = vpop.permute.xlu0 %3219
  %v3223 = vsel %vm177, %v3217, 0
  %3225 = vmatprep.subr.mxu0 0.0
  %3226 = vmatpush1.msra.mxu0 0.0
  %3227 = vmatprep.subr.mxu0 0.0
  %3228 = vmatpush1.msra.mxu0 0.0
  %3229 = vmatprep.subr.mxu0 0.0
  %3230 = vmatpush1.msra.mxu0 0.0
  %3231 = vmatprep.subr.mxu0 0.0
  %3232 = vmatpush1.msra.mxu0 0.0
  %3233 = vmatprep.subr.mxu0 0.0
  %3234 = vmatpush1.msra.mxu0 0.0
  %3235 = vmatprep.subr.mxu0 0.0
  %3236 = vmatpush1.msra.mxu0 0.0
  %3237 = vmatprep.subr.mxu0 0.0
  %3238 = vmatpush1.msra.mxu0 0.0
  %3239 = vmatprep.subr.mxu0 0.0
  %3240 = vmatpush1.msra.mxu0 0.0
  %3241 = vmatprep.subr.mxu0 0.0
  %3242 = vmatpush1.msra.mxu0 0.0
  %3243 = vmatprep.subr.mxu0 0.0
  %3244 = vmatpush1.msra.mxu0 0.0
  %3245 = vmatprep.subr.mxu0 0.0
  %3246 = vmatpush1.msra.mxu0 0.0
  %3247 = vmatprep.subr.mxu0 0.0
  %3248 = vmatpush1.msra.mxu0 0.0
  %3249 = vmatprep.subr.mxu0 0.0
  %3250 = vmatpush1.msra.mxu0 0.0
  %3251 = vmatprep.subr.mxu0 0.0
  %3252 = vmatpush1.msra.mxu0 0.0
  %3253 = vmatprep.subr.mxu0 0.0
  %3254 = vmatpush1.msra.mxu0 0.0
  %3255 = vmatprep.subr.mxu0 0.0
  %3256 = vmatpush1.msra.mxu0 %v3220
  %3257 = vmatprep.subr.mxu0 0.0
  %3258 = vmatpush2.msra.mxu0 0.0
  %3259 = vmatprep.subr.mxu0 0.0
  %3260 = vmatpush2.msra.mxu0 0.0
  %3261 = vmatprep.subr.mxu0 0.0
  %3262 = vmatpush2.msra.mxu0 0.0
  %3263 = vmatprep.subr.mxu0 0.0
  %3264 = vmatpush2.msra.mxu0 0.0
  %3265 = vmatprep.subr.mxu0 0.0
  %3266 = vmatpush2.msra.mxu0 0.0
  %3267 = vmatprep.subr.mxu0 0.0
  %3268 = vmatpush2.msra.mxu0 0.0
  %3269 = vmatprep.subr.mxu0 0.0
  %3270 = vmatpush2.msra.mxu0 0.0
  %3271 = vmatprep.subr.mxu0 0.0
  %3272 = vmatpush2.msra.mxu0 0.0
  %3273 = vmatprep.subr.mxu0 0.0
  %3274 = vmatpush2.msra.mxu0 0.0
  %3275 = vmatprep.subr.mxu0 0.0
  %3276 = vmatpush2.msra.mxu0 0.0
  %3277 = vmatprep.subr.mxu0 0.0
  %3278 = vmatpush2.msra.mxu0 0.0
  %3279 = vmatprep.subr.mxu0 0.0
  %3280 = vmatpush2.msra.mxu0 0.0
  %3281 = vmatprep.subr.mxu0 0.0
  %3282 = vmatpush2.msra.mxu0 0.0
  %3283 = vmatprep.subr.mxu0 0.0
  %3284 = vmatpush2.msra.mxu0 0.0
  %3285 = vmatprep.subr.mxu0 0.0
  %3286 = vmatpush2.msra.mxu0 0.0
  %3287 = vmatprep.subr.mxu0 0.0
  %3288 = vmatpush2.msra.mxu0 0.0
  %3289 = vmatprep.mubr.f32.mxu0 0.0
  %3290 = vmatmul.mubr.f32.gmra.mxu0 %v3223
  %v3291 = vpop.f32.mrf.mxu0
  %v3292 = vadd.f32 0.0, %v3291
  %v3293 = vpop.f32.mrf.mxu0
  %3294 = vdwg.mxu0
  %3295 = vrot.lane.b32.xlu0 %v2034, 40
  %v3296 = vpop.permute.xlu0 %3295
  %v3299 = vsel %vm177, %v3218, 0
  %3301 = vmatprep.subr.mxu0 0.0
  %3302 = vmatpush1.msra.mxu0 0.0
  %3303 = vmatprep.subr.mxu0 0.0
  %3304 = vmatpush1.msra.mxu0 0.0
  %3305 = vmatprep.subr.mxu0 0.0
  %3306 = vmatpush1.msra.mxu0 0.0
  %3307 = vmatprep.subr.mxu0 0.0
  %3308 = vmatpush1.msra.mxu0 0.0
  %3309 = vmatprep.subr.mxu0 0.0
  %3310 = vmatpush1.msra.mxu0 0.0
  %3311 = vmatprep.subr.mxu0 0.0
  %3312 = vmatpush1.msra.mxu0 0.0
  %3313 = vmatprep.subr.mxu0 0.0
  %3314 = vmatpush1.msra.mxu0 0.0
  %3315 = vmatprep.subr.mxu0 0.0
  %3316 = vmatpush1.msra.mxu0 0.0
  %3317 = vmatprep.subr.mxu0 0.0
  %3318 = vmatpush1.msra.mxu0 0.0
  %3319 = vmatprep.subr.mxu0 0.0
  %3320 = vmatpush1.msra.mxu0 0.0
  %3321 = vmatprep.subr.mxu0 0.0
  %3322 = vmatpush1.msra.mxu0 0.0
  %3323 = vmatprep.subr.mxu0 0.0
  %3324 = vmatpush1.msra.mxu0 0.0
  %3325 = vmatprep.subr.mxu0 0.0
  %3326 = vmatpush1.msra.mxu0 0.0
  %3327 = vmatprep.subr.mxu0 0.0
  %3328 = vmatpush1.msra.mxu0 0.0
  %3329 = vmatprep.subr.mxu0 0.0
  %3330 = vmatpush1.msra.mxu0 0.0
  %3331 = vmatprep.subr.mxu0 0.0
  %3332 = vmatpush1.msra.mxu0 %v3296
  %3333 = vmatprep.subr.mxu0 0.0
  %3334 = vmatpush2.msra.mxu0 0.0
  %3335 = vmatprep.subr.mxu0 0.0
  %3336 = vmatpush2.msra.mxu0 0.0
  %3337 = vmatprep.subr.mxu0 0.0
  %3338 = vmatpush2.msra.mxu0 0.0
  %3339 = vmatprep.subr.mxu0 0.0
  %3340 = vmatpush2.msra.mxu0 0.0
  %3341 = vmatprep.subr.mxu0 0.0
  %3342 = vmatpush2.msra.mxu0 0.0
  %3343 = vmatprep.subr.mxu0 0.0
  %3344 = vmatpush2.msra.mxu0 0.0
  %3345 = vmatprep.subr.mxu0 0.0
  %3346 = vmatpush2.msra.mxu0 0.0
  %3347 = vmatprep.subr.mxu0 0.0
  %3348 = vmatpush2.msra.mxu0 0.0
  %3349 = vmatprep.subr.mxu0 0.0
  %3350 = vmatpush2.msra.mxu0 0.0
  %3351 = vmatprep.subr.mxu0 0.0
  %3352 = vmatpush2.msra.mxu0 0.0
  %3353 = vmatprep.subr.mxu0 0.0
  %3354 = vmatpush2.msra.mxu0 0.0
  %3355 = vmatprep.subr.mxu0 0.0
  %3356 = vmatpush2.msra.mxu0 0.0
  %3357 = vmatprep.subr.mxu0 0.0
  %3358 = vmatpush2.msra.mxu0 0.0
  %3359 = vmatprep.subr.mxu0 0.0
  %3360 = vmatpush2.msra.mxu0 0.0
  %3361 = vmatprep.subr.mxu0 0.0
  %3362 = vmatpush2.msra.mxu0 0.0
  %3363 = vmatprep.subr.mxu0 0.0
  %3364 = vmatpush2.msra.mxu0 0.0
  %3365 = vmatprep.mubr.f32.mxu0 0.0
  %3366 = vmatmul.mubr.f32.gmra.mxu0 %v3299
  %v3367 = vpop.f32.mrf.mxu0
  %v3368 = vadd.f32 0.0, %v3367
  %v3369 = vpop.f32.mrf.mxu0
  %3370 = vdwg.mxu0
  %3373 = vrot.lane.b32.xlu0 %v2624, 8
  %v3374 = vpop.permute.xlu0 %3373
  %3375 = vrot.lane.b32.xlu0 %v2700, 8
  %v3376 = vpop.permute.xlu0 %3375
  %3381 = vrot.lane.b32.xlu0 %v2958, 16
  %v3382 = vpop.permute.xlu0 %3381
  %3383 = vrot.lane.b32.xlu0 %v3034, 16
  %v3384 = vpop.permute.xlu0 %3383
  %3389 = vrot.lane.b32.xlu0 %v3292, 24
  %v3390 = vpop.permute.xlu0 %3389
  %3391 = vrot.lane.b32.xlu0 %v3368, 24
  %v3392 = vpop.permute.xlu0 %3391
  %v3395 = vsel %vm177, %v2290, %v3374
  %v3396 = vsel %vm177, %v2366, %v3376
  %v3397 = vsel %vm1545, %v3395, %v3382
  %v3398 = vsel %vm1545, %v3396, %v3384
  %v3399 = vsel %vm1548, %v3397, %v3390
  %v3400 = vsel %vm1548, %v3398, %v3392
  %s3401 = scalar_lea.vmem %s4, 32
  %v3402 = vld [vmem:[%s3401] sm:$0xff]
  %v3403 = vld [vmem:[%s3401 + $0x8] sm:$0xff]
  %v3404 = vld [vmem:[%s3401 + $0x10] sm:$0xff]
  %v3405 = vld [vmem:[%s3401 + $0x18] sm:$0xff]
  %s3406 = scalar_lea.vmem %s5, 1
  %v3407 = vld [vmem:[%s3406] sm:$0x1]
  %v3409 = vlaneseq
  %v3410 = vshrl.u32 %v3409, 7
  %v3411 = vsub.s32 0, %v3410
  %v3412 = vrot.slane %v3407, %v3411
  %v3415 = vsel %vm92, %v3399, 0
  %v3418 = vsel %vm92, %v3400, 0
  %3420 = vmatprep.subr.mxu0 0.0
  %3421 = vmatpush1.msra.mxu0 0.0
  %3422 = vmatprep.subr.mxu0 0.0
  %3423 = vmatpush1.msra.mxu0 0.0
  %3424 = vmatprep.subr.mxu0 0.0
  %3425 = vmatpush1.msra.mxu0 0.0
  %3426 = vmatprep.subr.mxu0 0.0
  %3427 = vmatpush1.msra.mxu0 0.0
  %3428 = vmatprep.subr.mxu0 0.0
  %3429 = vmatpush1.msra.mxu0 0.0
  %3430 = vmatprep.subr.mxu0 0.0
  %3431 = vmatpush1.msra.mxu0 0.0
  %3432 = vmatprep.subr.mxu0 0.0
  %3433 = vmatpush1.msra.mxu0 0.0
  %3434 = vmatprep.subr.mxu0 0.0
  %3435 = vmatpush1.msra.mxu0 0.0
  %3436 = vmatprep.subr.mxu0 0.0
  %3437 = vmatpush1.msra.mxu0 0.0
  %3438 = vmatprep.subr.mxu0 0.0
  %3439 = vmatpush1.msra.mxu0 0.0
  %3440 = vmatprep.subr.mxu0 0.0
  %3441 = vmatpush1.msra.mxu0 0.0
  %3442 = vmatprep.subr.mxu0 0.0
  %3443 = vmatpush1.msra.mxu0 0.0
  %3444 = vmatprep.subr.mxu0 0.0
  %3445 = vmatpush1.msra.mxu0 %v3405
  %3446 = vmatprep.subr.mxu0 0.0
  %3447 = vmatpush1.msra.mxu0 %v3404
  %3448 = vmatprep.subr.mxu0 0.0
  %3449 = vmatpush1.msra.mxu0 %v3403
  %3450 = vmatprep.subr.mxu0 0.0
  %3451 = vmatpush1.msra.mxu0 %v3402
  %3452 = vmatprep.subr.mxu0 0.0
  %3453 = vmatpush2.msra.mxu0 0.0
  %3454 = vmatprep.subr.mxu0 0.0
  %3455 = vmatpush2.msra.mxu0 0.0
  %3456 = vmatprep.subr.mxu0 0.0
  %3457 = vmatpush2.msra.mxu0 0.0
  %3458 = vmatprep.subr.mxu0 0.0
  %3459 = vmatpush2.msra.mxu0 0.0
  %3460 = vmatprep.subr.mxu0 0.0
  %3461 = vmatpush2.msra.mxu0 0.0
  %3462 = vmatprep.subr.mxu0 0.0
  %3463 = vmatpush2.msra.mxu0 0.0
  %3464 = vmatprep.subr.mxu0 0.0
  %3465 = vmatpush2.msra.mxu0 0.0
  %3466 = vmatprep.subr.mxu0 0.0
  %3467 = vmatpush2.msra.mxu0 0.0
  %3468 = vmatprep.subr.mxu0 0.0
  %3469 = vmatpush2.msra.mxu0 0.0
  %3470 = vmatprep.subr.mxu0 0.0
  %3471 = vmatpush2.msra.mxu0 0.0
  %3472 = vmatprep.subr.mxu0 0.0
  %3473 = vmatpush2.msra.mxu0 0.0
  %3474 = vmatprep.subr.mxu0 0.0
  %3475 = vmatpush2.msra.mxu0 0.0
  %3476 = vmatprep.subr.mxu0 0.0
  %3477 = vmatpush2.msra.mxu0 0.0
  %3478 = vmatprep.subr.mxu0 0.0
  %3479 = vmatpush2.msra.mxu0 0.0
  %3480 = vmatprep.subr.mxu0 0.0
  %3481 = vmatpush2.msra.mxu0 0.0
  %3482 = vmatprep.subr.mxu0 0.0
  %3483 = vmatpush2.msra.mxu0 0.0
  %3484 = vmatprep.mubr.f32.mxu0 0.0
  %3485 = vmatmul.mubr.f32.gmra.mxu0 %v3415
  %v3486 = vpop.f32.mrf.mxu0
  %v3487 = vadd.f32 %v3412, %v3486
  %v3488 = vpop.f32.mrf.mxu0
  %3489 = vmatprep.mubr.f32.mxu0 0.0
  %3490 = vmatmul.mubr.f32.gmra.mxu0 %v3418
  %v3491 = vpop.f32.mrf.mxu0
  %v3492 = vadd.f32 %v3412, %v3491
  %v3493 = vpop.f32.mrf.mxu0
  %3494 = vdwg.mxu0
  %v3495 = vadd.f32 %v1941, %v3487
  %v3496 = vadd.f32 %v1942, %v3492
  %s3497 = scalar_lea.vmem %s6, 1
  %v3498 = vld [vmem:[%s3497] sm:$0x1]
  %s3499 = scalar_lea.vmem %s7, 1
  %v3500 = vld [vmem:[%s3499] sm:$0x1]
  %v3501 = vsel %vm92, %v3495, 0.0
  %3502 = vadd.xlane.f32.xlu0 %v3501
  %v3503 = vpop.xlane.xlu0 %3502
  %v3504 = vsel %vm92, %v3496, 0.0
  %3505 = vadd.xlane.f32.xlu0 %v3504
  %v3506 = vpop.xlane.xlu0 %3505
  %v3507 = vmul.f32 %v3503, %v1653
  %v3508 = vmul.f32 %v3506, %v1653
  %v3509 = vsub.f32 %v3495, %v3507
  %v3510 = vsub.f32 %v3496, %v3508
  %v3511 = vmul.f32 %v3509, %v3509
  %v3512 = vmul.f32 %v3510, %v3510
  %v3513 = vsel %vm92, %v3511, 0.0
  %3514 = vadd.xlane.f32.xlu0 %v3513
  %v3515 = vpop.xlane.xlu0 %3514
  %v3516 = vsel %vm92, %v3512, 0.0
  %3517 = vadd.xlane.f32.xlu0 %v3516
  %v3518 = vpop.xlane.xlu0 %3517
  %v3519 = vmul.f32 %v3515, %v1653
  %v3520 = vmul.f32 %v3518, %v1653
  %v3521 = vadd.f32 %v3519, 1e-05
  %v3522 = vadd.f32 %v3520, 1e-05
  %v3523 = vrsqrt.pop %v3521
  %v3524 = vrsqrt.pop %v3522
  %v3525 = vmul.f32 %v3509, %v3523
  %v3526 = vmul.f32 %v3510, %v3524
  %v3528 = vlaneseq
  %v3529 = vshrl.u32 %v3528, 7
  %v3530 = vsub.s32 0, %v3529
  %v3531 = vrot.slane %v3498, %v3530
  %v3533 = vmul.f32 %v3525, %v3531
  %v3534 = vmul.f32 %v3526, %v3531
  %v3536 = vlaneseq
  %v3537 = vshrl.u32 %v3536, 7
  %v3538 = vsub.s32 0, %v3537
  %v3539 = vrot.slane %v3500, %v3538
  %v3541 = vadd.f32 %v3533, %v3539
  %v3542 = vadd.f32 %v3534, %v3539
  %s3543 = scalar_lea.vmem %s8, 32
  %v3544 = vld [vmem:[%s3543] sm:$0xff]
  %v3545 = vld [vmem:[%s3543 + $0x8] sm:$0xff]
  %v3546 = vld [vmem:[%s3543 + $0x10] sm:$0xff]
  %v3547 = vld [vmem:[%s3543 + $0x18] sm:$0xff]
  %s3548 = scalar_lea.vmem %s9, 1
  %v3549 = vld [vmem:[%s3548] sm:$0x1]
  %v3551 = vlaneseq
  %v3552 = vshrl.u32 %v3551, 7
  %v3553 = vsub.s32 0, %v3552
  %v3554 = vrot.slane %v3549, %v3553
  %v3557 = vsel %vm92, %v3541, 0
  %v3560 = vsel %vm92, %v3542, 0
  %3562 = vmatprep.subr.mxu0 0.0
  %3563 = vmatpush1.msra.mxu0 0.0
  %3564 = vmatprep.subr.mxu0 0.0
  %3565 = vmatpush1.msra.mxu0 0.0
  %3566 = vmatprep.subr.mxu0 0.0
  %3567 = vmatpush1.msra.mxu0 0.0
  %3568 = vmatprep.subr.mxu0 0.0
  %3569 = vmatpush1.msra.mxu0 0.0
  %3570 = vmatprep.subr.mxu0 0.0
  %3571 = vmatpush1.msra.mxu0 0.0
  %3572 = vmatprep.subr.mxu0 0.0
  %3573 = vmatpush1.msra.mxu0 0.0
  %3574 = vmatprep.subr.mxu0 0.0
  %3575 = vmatpush1.msra.mxu0 0.0
  %3576 = vmatprep.subr.mxu0 0.0
  %3577 = vmatpush1.msra.mxu0 0.0
  %3578 = vmatprep.subr.mxu0 0.0
  %3579 = vmatpush1.msra.mxu0 0.0
  %3580 = vmatprep.subr.mxu0 0.0
  %3581 = vmatpush1.msra.mxu0 0.0
  %3582 = vmatprep.subr.mxu0 0.0
  %3583 = vmatpush1.msra.mxu0 0.0
  %3584 = vmatprep.subr.mxu0 0.0
  %3585 = vmatpush1.msra.mxu0 0.0
  %3586 = vmatprep.subr.mxu0 0.0
  %3587 = vmatpush1.msra.mxu0 %v3547
  %3588 = vmatprep.subr.mxu0 0.0
  %3589 = vmatpush1.msra.mxu0 %v3546
  %3590 = vmatprep.subr.mxu0 0.0
  %3591 = vmatpush1.msra.mxu0 %v3545
  %3592 = vmatprep.subr.mxu0 0.0
  %3593 = vmatpush1.msra.mxu0 %v3544
  %3594 = vmatprep.subr.mxu0 0.0
  %3595 = vmatpush2.msra.mxu0 0.0
  %3596 = vmatprep.subr.mxu0 0.0
  %3597 = vmatpush2.msra.mxu0 0.0
  %3598 = vmatprep.subr.mxu0 0.0
  %3599 = vmatpush2.msra.mxu0 0.0
  %3600 = vmatprep.subr.mxu0 0.0
  %3601 = vmatpush2.msra.mxu0 0.0
  %3602 = vmatprep.subr.mxu0 0.0
  %3603 = vmatpush2.msra.mxu0 0.0
  %3604 = vmatprep.subr.mxu0 0.0
  %3605 = vmatpush2.msra.mxu0 0.0
  %3606 = vmatprep.subr.mxu0 0.0
  %3607 = vmatpush2.msra.mxu0 0.0
  %3608 = vmatprep.subr.mxu0 0.0
  %3609 = vmatpush2.msra.mxu0 0.0
  %3610 = vmatprep.subr.mxu0 0.0
  %3611 = vmatpush2.msra.mxu0 0.0
  %3612 = vmatprep.subr.mxu0 0.0
  %3613 = vmatpush2.msra.mxu0 0.0
  %3614 = vmatprep.subr.mxu0 0.0
  %3615 = vmatpush2.msra.mxu0 0.0
  %3616 = vmatprep.subr.mxu0 0.0
  %3617 = vmatpush2.msra.mxu0 0.0
  %3618 = vmatprep.subr.mxu0 0.0
  %3619 = vmatpush2.msra.mxu0 0.0
  %3620 = vmatprep.subr.mxu0 0.0
  %3621 = vmatpush2.msra.mxu0 0.0
  %3622 = vmatprep.subr.mxu0 0.0
  %3623 = vmatpush2.msra.mxu0 0.0
  %3624 = vmatprep.subr.mxu0 0.0
  %3625 = vmatpush2.msra.mxu0 0.0
  %3626 = vmatprep.mubr.f32.mxu0 0.0
  %3627 = vmatmul.mubr.f32.gmra.mxu0 %v3557
  %v3628 = vpop.f32.mrf.mxu0
  %v3629 = vadd.f32 %v3554, %v3628
  %v3630 = vpop.f32.mrf.mxu0
  %3631 = vmatprep.mubr.f32.mxu0 0.0
  %3632 = vmatmul.mubr.f32.gmra.mxu0 %v3560
  %v3633 = vpop.f32.mrf.mxu0
  %v3634 = vadd.f32 %v3554, %v3633
  %v3635 = vpop.f32.mrf.mxu0
  %3636 = vdwg.mxu0
  %v3637 = vmul.f32 %v3629, 0.5
  %v3638 = vmul.f32 %v3634, 0.5
  %v3639 = vmul.f32 %v3629, 0.044715
  %v3640 = vmul.f32 %v3634, 0.044715
  %v3641 = vmul.f32 %v3639, %v3629
  %v3642 = vmul.f32 %v3640, %v3634
  %v3643 = vmul.f32 %v3641, %v3629
  %v3644 = vmul.f32 %v3642, %v3634
  %v3645 = vadd.f32 %v3629, %v3643
  %v3646 = vadd.f32 %v3634, %v3644
  %v3647 = vmul.f32 %v3645, 0.7978846
  %v3648 = vmul.f32 %v3646, 0.7978846
  %v3649 = vtanh.pop %v3647
  %v3650 = vtanh.pop %v3648
  %v3651 = vadd.f32 %v3649, 1.0
  %v3652 = vadd.f32 %v3650, 1.0
  %v3653 = vmul.f32 %v3637, %v3651
  %v3654 = vmul.f32 %v3638, %v3652
  %s3655 = scalar_lea.vmem %s10, 64
  %v3656 = vld [vmem:[%s3655] sm:$0xff]
  %v3657 = vld [vmem:[%s3655 + $0x8] sm:$0xff]
  %v3658 = vld [vmem:[%s3655 + $0x10] sm:$0xff]
  %v3659 = vld [vmem:[%s3655 + $0x18] sm:$0xff]
  %v3660 = vld [vmem:[%s3655 + $0x20] sm:$0xff]
  %v3661 = vld [vmem:[%s3655 + $0x28] sm:$0xff]
  %v3662 = vld [vmem:[%s3655 + $0x30] sm:$0xff]
  %v3663 = vld [vmem:[%s3655 + $0x38] sm:$0xff]
  %s3664 = scalar_lea.vmem %s11, 1
  %v3665 = vld [vmem:[%s3664] sm:$0x1]
  %v3667 = vlaneseq
  %v3668 = vshrl.u32 %v3667, 7
  %v3669 = vsub.s32 0, %v3668
  %v3670 = vrot.slane %v3665, %v3669
  %v3673 = vsel %vm1815, %v3653, 0
  %v3676 = vsel %vm1815, %v3654, 0
  %3678 = vmatprep.subr.mxu0 0.0
  %3679 = vmatpush1.msra.mxu0 0.0
  %3680 = vmatprep.subr.mxu0 0.0
  %3681 = vmatpush1.msra.mxu0 0.0
  %3682 = vmatprep.subr.mxu0 0.0
  %3683 = vmatpush1.msra.mxu0 0.0
  %3684 = vmatprep.subr.mxu0 0.0
  %3685 = vmatpush1.msra.mxu0 0.0
  %3686 = vmatprep.subr.mxu0 0.0
  %3687 = vmatpush1.msra.mxu0 0.0
  %3688 = vmatprep.subr.mxu0 0.0
  %3689 = vmatpush1.msra.mxu0 0.0
  %3690 = vmatprep.subr.mxu0 0.0
  %3691 = vmatpush1.msra.mxu0 0.0
  %3692 = vmatprep.subr.mxu0 0.0
  %3693 = vmatpush1.msra.mxu0 0.0
  %3694 = vmatprep.subr.mxu0 0.0
  %3695 = vmatpush1.msra.mxu0 %v3663
  %3696 = vmatprep.subr.mxu0 0.0
  %3697 = vmatpush1.msra.mxu0 %v3662
  %3698 = vmatprep.subr.mxu0 0.0
  %3699 = vmatpush1.msra.mxu0 %v3661
  %3700 = vmatprep.subr.mxu0 0.0
  %3701 = vmatpush1.msra.mxu0 %v3660
  %3702 = vmatprep.subr.mxu0 0.0
  %3703 = vmatpush1.msra.mxu0 %v3659
  %3704 = vmatprep.subr.mxu0 0.0
  %3705 = vmatpush1.msra.mxu0 %v3658
  %3706 = vmatprep.subr.mxu0 0.0
  %3707 = vmatpush1.msra.mxu0 %v3657
  %3708 = vmatprep.subr.mxu0 0.0
  %3709 = vmatpush1.msra.mxu0 %v3656
  %3710 = vmatprep.subr.mxu0 0.0
  %3711 = vmatpush2.msra.mxu0 0.0
  %3712 = vmatprep.subr.mxu0 0.0
  %3713 = vmatpush2.msra.mxu0 0.0
  %3714 = vmatprep.subr.mxu0 0.0
  %3715 = vmatpush2.msra.mxu0 0.0
  %3716 = vmatprep.subr.mxu0 0.0
  %3717 = vmatpush2.msra.mxu0 0.0
  %3718 = vmatprep.subr.mxu0 0.0
  %3719 = vmatpush2.msra.mxu0 0.0
  %3720 = vmatprep.subr.mxu0 0.0
  %3721 = vmatpush2.msra.mxu0 0.0
  %3722 = vmatprep.subr.mxu0 0.0
  %3723 = vmatpush2.msra.mxu0 0.0
  %3724 = vmatprep.subr.mxu0 0.0
  %3725 = vmatpush2.msra.mxu0 0.0
  %3726 = vmatprep.subr.mxu0 0.0
  %3727 = vmatpush2.msra.mxu0 0.0
  %3728 = vmatprep.subr.mxu0 0.0
  %3729 = vmatpush2.msra.mxu0 0.0
  %3730 = vmatprep.subr.mxu0 0.0
  %3731 = vmatpush2.msra.mxu0 0.0
  %3732 = vmatprep.subr.mxu0 0.0
  %3733 = vmatpush2.msra.mxu0 0.0
  %3734 = vmatprep.subr.mxu0 0.0
  %3735 = vmatpush2.msra.mxu0 0.0
  %3736 = vmatprep.subr.mxu0 0.0
  %3737 = vmatpush2.msra.mxu0 0.0
  %3738 = vmatprep.subr.mxu0 0.0
  %3739 = vmatpush2.msra.mxu0 0.0
  %3740 = vmatprep.subr.mxu0 0.0
  %3741 = vmatpush2.msra.mxu0 0.0
  %3742 = vmatprep.mubr.f32.mxu0 0.0
  %3743 = vmatmul.mubr.f32.gmra.mxu0 %v3673
  %v3744 = vpop.f32.mrf.mxu0
  %v3745 = vadd.f32 %v3670, %v3744
  %v3746 = vpop.f32.mrf.mxu0
  %3747 = vmatprep.mubr.f32.mxu0 0.0
  %3748 = vmatmul.mubr.f32.gmra.mxu0 %v3676
  %v3749 = vpop.f32.mrf.mxu0
  %v3750 = vadd.f32 %v3670, %v3749
  %v3751 = vpop.f32.mrf.mxu0
  %3752 = vdwg.mxu0
  %v3753 = vadd.f32 %v3541, %v3745
  %v3754 = vadd.f32 %v3542, %v3750
  %s3755 = scalar_lea.vmem %s12, 1
  %v3756 = vld [vmem:[%s3755] sm:$0x1]
  %s3757 = scalar_lea.vmem %s13, 1
  %v3758 = vld [vmem:[%s3757] sm:$0x1]
  %v3759 = vsel %vm92, %v3753, 0.0
  %3760 = vadd.xlane.f32.xlu0 %v3759
  %v3761 = vpop.xlane.xlu0 %3760
  %v3762 = vsel %vm92, %v3754, 0.0
  %3763 = vadd.xlane.f32.xlu0 %v3762
  %v3764 = vpop.xlane.xlu0 %3763
  %v3765 = vmul.f32 %v3761, %v1653
  %v3766 = vmul.f32 %v3764, %v1653
  %v3767 = vsub.f32 %v3753, %v3765
  %v3768 = vsub.f32 %v3754, %v3766
  %v3769 = vmul.f32 %v3767, %v3767
  %v3770 = vmul.f32 %v3768, %v3768
  %v3771 = vsel %vm92, %v3769, 0.0
  %3772 = vadd.xlane.f32.xlu0 %v3771
  %v3773 = vpop.xlane.xlu0 %3772
  %v3774 = vsel %vm92, %v3770, 0.0
  %3775 = vadd.xlane.f32.xlu0 %v3774
  %v3776 = vpop.xlane.xlu0 %3775
  %v3777 = vmul.f32 %v3773, %v1653
  %v3778 = vmul.f32 %v3776, %v1653
  %v3779 = vadd.f32 %v3777, 1e-05
  %v3780 = vadd.f32 %v3778, 1e-05
  %v3781 = vrsqrt.pop %v3779
  %v3782 = vrsqrt.pop %v3780
  %v3783 = vmul.f32 %v3767, %v3781
  %v3784 = vmul.f32 %v3768, %v3782
  %v3786 = vlaneseq
  %v3787 = vshrl.u32 %v3786, 7
  %v3788 = vsub.s32 0, %v3787
  %v3789 = vrot.slane %v3756, %v3788
  %v3791 = vmul.f32 %v3783, %v3789
  %v3792 = vmul.f32 %v3784, %v3789
  %v3794 = vlaneseq
  %v3795 = vshrl.u32 %v3794, 7
  %v3796 = vsub.s32 0, %v3795
  %v3797 = vrot.slane %v3758, %v3796
  %v3799 = vadd.f32 %v3791, %v3797
  %v3800 = vadd.f32 %v3792, %v3797
  %s3801 = scalar_lea.vmem %s2, 64
  %v3802 = vld [vmem:[%s3801] sm:$0xff]
  %v3803 = vld [vmem:[%s3801 + $0x8] sm:$0xff]
  %v3804 = vld [vmem:[%s3801 + $0x10] sm:$0xff]
  %v3805 = vld [vmem:[%s3801 + $0x18] sm:$0xff]
  %s3806 = scalar_lea.vmem %s3, 2
  %v3807 = vld [vmem:[%s3806] sm:$0x1]
  %v3809 = vlaneseq
  %v3810 = vshrl.u32 %v3809, 7
  %v3811 = vsub.s32 0, %v3810
  %v3812 = vrot.slane %v3807, %v3811
  %v3815 = vsel %vm92, %v3799, 0
  %v3818 = vsel %vm92, %v3800, 0
  %3820 = vmatprep.subr.mxu0 0.0
  %3821 = vmatpush1.msra.mxu0 0.0
  %3822 = vmatprep.subr.mxu0 0.0
  %3823 = vmatpush1.msra.mxu0 0.0
  %3824 = vmatprep.subr.mxu0 0.0
  %3825 = vmatpush1.msra.mxu0 0.0
  %3826 = vmatprep.subr.mxu0 0.0
  %3827 = vmatpush1.msra.mxu0 0.0
  %3828 = vmatprep.subr.mxu0 0.0
  %3829 = vmatpush1.msra.mxu0 0.0
  %3830 = vmatprep.subr.mxu0 0.0
  %3831 = vmatpush1.msra.mxu0 0.0
  %3832 = vmatprep.subr.mxu0 0.0
  %3833 = vmatpush1.msra.mxu0 0.0
  %3834 = vmatprep.subr.mxu0 0.0
  %3835 = vmatpush1.msra.mxu0 0.0
  %3836 = vmatprep.subr.mxu0 0.0
  %3837 = vmatpush1.msra.mxu0 0.0
  %3838 = vmatprep.subr.mxu0 0.0
  %3839 = vmatpush1.msra.mxu0 0.0
  %3840 = vmatprep.subr.mxu0 0.0
  %3841 = vmatpush1.msra.mxu0 0.0
  %3842 = vmatprep.subr.mxu0 0.0
  %3843 = vmatpush1.msra.mxu0 0.0
  %3844 = vmatprep.subr.mxu0 0.0
  %3845 = vmatpush1.msra.mxu0 %v3805
  %3846 = vmatprep.subr.mxu0 0.0
  %3847 = vmatpush1.msra.mxu0 %v3804
  %3848 = vmatprep.subr.mxu0 0.0
  %3849 = vmatpush1.msra.mxu0 %v3803
  %3850 = vmatprep.subr.mxu0 0.0
  %3851 = vmatpush1.msra.mxu0 %v3802
  %3852 = vmatprep.subr.mxu0 0.0
  %3853 = vmatpush2.msra.mxu0 0.0
  %3854 = vmatprep.subr.mxu0 0.0
  %3855 = vmatpush2.msra.mxu0 0.0
  %3856 = vmatprep.subr.mxu0 0.0
  %3857 = vmatpush2.msra.mxu0 0.0
  %3858 = vmatprep.subr.mxu0 0.0
  %3859 = vmatpush2.msra.mxu0 0.0
  %3860 = vmatprep.subr.mxu0 0.0
  %3861 = vmatpush2.msra.mxu0 0.0
  %3862 = vmatprep.subr.mxu0 0.0
  %3863 = vmatpush2.msra.mxu0 0.0
  %3864 = vmatprep.subr.mxu0 0.0
  %3865 = vmatpush2.msra.mxu0 0.0
  %3866 = vmatprep.subr.mxu0 0.0
  %3867 = vmatpush2.msra.mxu0 0.0
  %3868 = vmatprep.subr.mxu0 0.0
  %3869 = vmatpush2.msra.mxu0 0.0
  %3870 = vmatprep.subr.mxu0 0.0
  %3871 = vmatpush2.msra.mxu0 0.0
  %3872 = vmatprep.subr.mxu0 0.0
  %3873 = vmatpush2.msra.mxu0 0.0
  %3874 = vmatprep.subr.mxu0 0.0
  %3875 = vmatpush2.msra.mxu0 0.0
  %3876 = vmatprep.subr.mxu0 0.0
  %3877 = vmatpush2.msra.mxu0 0.0
  %3878 = vmatprep.subr.mxu0 0.0
  %3879 = vmatpush2.msra.mxu0 0.0
  %3880 = vmatprep.subr.mxu0 0.0
  %3881 = vmatpush2.msra.mxu0 0.0
  %3882 = vmatprep.subr.mxu0 0.0
  %3883 = vmatpush2.msra.mxu0 0.0
  %3884 = vmatprep.mubr.f32.mxu0 0.0
  %3885 = vmatmul.mubr.f32.gmra.mxu0 %v3815
  %v3886 = vpop.f32.mrf.mxu0
  %v3887 = vadd.f32 %v3812, %v3886
  %v3888 = vpop.f32.mrf.mxu0
  %3889 = vmatprep.mubr.f32.mxu0 0.0
  %3890 = vmatmul.mubr.f32.gmra.mxu0 %v3818
  %v3891 = vpop.f32.mrf.mxu0
  %v3892 = vadd.f32 %v3812, %v3891
  %v3893 = vpop.f32.mrf.mxu0
  %3894 = vdwg.mxu0
  %3896 = vrot.lane.b32.xlu0 %v3887, 96
  %v3897 = vpop.permute.xlu0 %3896
  %v3898 = vsel %vm177, %v3887, 0
  %v3900 = vsel %vm177, %v3897, 0
  %3902 = vmatprep.subr.mxu0 0.0
  %3903 = vmatpush1.xpose.msra.mxu0 0.0
  %3904 = vmatprep.subr.mxu0 0.0
  %3905 = vmatpush1.xpose.msra.mxu0 0.0
  %3906 = vmatprep.subr.mxu0 0.0
  %3907 = vmatpush1.xpose.msra.mxu0 0.0
  %3908 = vmatprep.subr.mxu0 0.0
  %3909 = vmatpush1.xpose.msra.mxu0 0.0
  %3910 = vmatprep.subr.mxu0 0.0
  %3911 = vmatpush1.xpose.msra.mxu0 0.0
  %3912 = vmatprep.subr.mxu0 0.0
  %3913 = vmatpush1.xpose.msra.mxu0 0.0
  %3914 = vmatprep.subr.mxu0 0.0
  %3915 = vmatpush1.xpose.msra.mxu0 0.0
  %3916 = vmatprep.subr.mxu0 0.0
  %3917 = vmatpush1.xpose.msra.mxu0 0.0
  %3918 = vmatprep.subr.mxu0 0.0
  %3919 = vmatpush1.xpose.msra.mxu0 0.0
  %3920 = vmatprep.subr.mxu0 0.0
  %3921 = vmatpush1.xpose.msra.mxu0 0.0
  %3922 = vmatprep.subr.mxu0 0.0
  %3923 = vmatpush1.xpose.msra.mxu0 0.0
  %3924 = vmatprep.subr.mxu0 0.0
  %3925 = vmatpush1.xpose.msra.mxu0 0.0
  %3926 = vmatprep.subr.mxu0 0.0
  %3927 = vmatpush1.xpose.msra.mxu0 0.0
  %3928 = vmatprep.subr.mxu0 0.0
  %3929 = vmatpush1.xpose.msra.mxu0 0.0
  %3930 = vmatprep.subr.mxu0 0.0
  %3931 = vmatpush1.xpose.msra.mxu0 0.0
  %3932 = vmatprep.subr.mxu0 0.0
  %3933 = vmatpush1.xpose.msra.mxu0 %v3900
  %3934 = vmatprep.subr.mxu0 0.0
  %3935 = vmatpush2.xpose.msra.mxu0 0.0
  %3936 = vmatprep.subr.mxu0 0.0
  %3937 = vmatpush2.xpose.msra.mxu0 0.0
  %3938 = vmatprep.subr.mxu0 0.0
  %3939 = vmatpush2.xpose.msra.mxu0 0.0
  %3940 = vmatprep.subr.mxu0 0.0
  %3941 = vmatpush2.xpose.msra.mxu0 0.0
  %3942 = vmatprep.subr.mxu0 0.0
  %3943 = vmatpush2.xpose.msra.mxu0 0.0
  %3944 = vmatprep.subr.mxu0 0.0
  %3945 = vmatpush2.xpose.msra.mxu0 0.0
  %3946 = vmatprep.subr.mxu0 0.0
  %3947 = vmatpush2.xpose.msra.mxu0 0.0
  %3948 = vmatprep.subr.mxu0 0.0
  %3949 = vmatpush2.xpose.msra.mxu0 0.0
  %3950 = vmatprep.subr.mxu0 0.0
  %3951 = vmatpush2.xpose.msra.mxu0 0.0
  %3952 = vmatprep.subr.mxu0 0.0
  %3953 = vmatpush2.xpose.msra.mxu0 0.0
  %3954 = vmatprep.subr.mxu0 0.0
  %3955 = vmatpush2.xpose.msra.mxu0 0.0
  %3956 = vmatprep.subr.mxu0 0.0
  %3957 = vmatpush2.xpose.msra.mxu0 0.0
  %3958 = vmatprep.subr.mxu0 0.0
  %3959 = vmatpush2.xpose.msra.mxu0 0.0
  %3960 = vmatprep.subr.mxu0 0.0
  %3961 = vmatpush2.xpose.msra.mxu0 0.0
  %3962 = vmatprep.subr.mxu0 0.0
  %3963 = vmatpush2.xpose.msra.mxu0 0.0
  %3964 = vmatprep.subr.mxu0 0.0
  %3965 = vmatpush2.xpose.msra.mxu0 0.0
  %3966 = vmatprep.mubr.f32.mxu0 0.0
  %3967 = vmatmul.mubr.f32.gmra.mxu0 %v3898
  %v3968 = vpop.f32.mrf.mxu0
  %v3969 = vadd.f32 0.0, %v3968
  %v3970 = vpop.f32.mrf.mxu0
  %3971 = vdwg.mxu0
  %3973 = vrot.lane.b32.xlu0 %v3892, 96
  %v3974 = vpop.permute.xlu0 %3973
  %v3975 = vsel %vm177, %v3892, 0
  %v3977 = vsel %vm177, %v3974, 0
  %3979 = vmatprep.subr.mxu0 0.0
  %3980 = vmatpush1.xpose.msra.mxu0 0.0
  %3981 = vmatprep.subr.mxu0 0.0
  %3982 = vmatpush1.xpose.msra.mxu0 0.0
  %3983 = vmatprep.subr.mxu0 0.0
  %3984 = vmatpush1.xpose.msra.mxu0 0.0
  %3985 = vmatprep.subr.mxu0 0.0
  %3986 = vmatpush1.xpose.msra.mxu0 0.0
  %3987 = vmatprep.subr.mxu0 0.0
  %3988 = vmatpush1.xpose.msra.mxu0 0.0
  %3989 = vmatprep.subr.mxu0 0.0
  %3990 = vmatpush1.xpose.msra.mxu0 0.0
  %3991 = vmatprep.subr.mxu0 0.0
  %3992 = vmatpush1.xpose.msra.mxu0 0.0
  %3993 = vmatprep.subr.mxu0 0.0
  %3994 = vmatpush1.xpose.msra.mxu0 0.0
  %3995 = vmatprep.subr.mxu0 0.0
  %3996 = vmatpush1.xpose.msra.mxu0 0.0
  %3997 = vmatprep.subr.mxu0 0.0
  %3998 = vmatpush1.xpose.msra.mxu0 0.0
  %3999 = vmatprep.subr.mxu0 0.0
  %4000 = vmatpush1.xpose.msra.mxu0 0.0
  %4001 = vmatprep.subr.mxu0 0.0
  %4002 = vmatpush1.xpose.msra.mxu0 0.0
  %4003 = vmatprep.subr.mxu0 0.0
  %4004 = vmatpush1.xpose.msra.mxu0 0.0
  %4005 = vmatprep.subr.mxu0 0.0
  %4006 = vmatpush1.xpose.msra.mxu0 0.0
  %4007 = vmatprep.subr.mxu0 0.0
  %4008 = vmatpush1.xpose.msra.mxu0 0.0
  %4009 = vmatprep.subr.mxu0 0.0
  %4010 = vmatpush1.xpose.msra.mxu0 %v3977
  %4011 = vmatprep.subr.mxu0 0.0
  %4012 = vmatpush2.xpose.msra.mxu0 0.0
  %4013 = vmatprep.subr.mxu0 0.0
  %4014 = vmatpush2.xpose.msra.mxu0 0.0
  %4015 = vmatprep.subr.mxu0 0.0
  %4016 = vmatpush2.xpose.msra.mxu0 0.0
  %4017 = vmatprep.subr.mxu0 0.0
  %4018 = vmatpush2.xpose.msra.mxu0 0.0
  %4019 = vmatprep.subr.mxu0 0.0
  %4020 = vmatpush2.xpose.msra.mxu0 0.0
  %4021 = vmatprep.subr.mxu0 0.0
  %4022 = vmatpush2.xpose.msra.mxu0 0.0
  %4023 = vmatprep.subr.mxu0 0.0
  %4024 = vmatpush2.xpose.msra.mxu0 0.0
  %4025 = vmatprep.subr.mxu0 0.0
  %4026 = vmatpush2.xpose.msra.mxu0 0.0
  %4027 = vmatprep.subr.mxu0 0.0
  %4028 = vmatpush2.xpose.msra.mxu0 0.0
  %4029 = vmatprep.subr.mxu0 0.0
  %4030 = vmatpush2.xpose.msra.mxu0 0.0
  %4031 = vmatprep.subr.mxu0 0.0
  %4032 = vmatpush2.xpose.msra.mxu0 0.0
  %4033 = vmatprep.subr.mxu0 0.0
  %4034 = vmatpush2.xpose.msra.mxu0 0.0
  %4035 = vmatprep.subr.mxu0 0.0
  %4036 = vmatpush2.xpose.msra.mxu0 0.0
  %4037 = vmatprep.subr.mxu0 0.0
  %4038 = vmatpush2.xpose.msra.mxu0 0.0
  %4039 = vmatprep.subr.mxu0 0.0
  %4040 = vmatpush2.xpose.msra.mxu0 0.0
  %4041 = vmatprep.subr.mxu0 0.0
  %4042 = vmatpush2.xpose.msra.mxu0 0.0
  %4043 = vmatprep.mubr.f32.mxu0 0.0
  %4044 = vmatmul.mubr.f32.gmra.mxu0 %v3975
  %v4045 = vpop.f32.mrf.mxu0
  %v4046 = vadd.f32 0.0, %v4045
  %v4047 = vpop.f32.mrf.mxu0
  %4048 = vdwg.mxu0
  %v4049 = vmul.f32 %v3969, 0.35355338
  %v4050 = vmul.f32 %v4046, 0.35355338
  %v4051 = vadd.f32 %v4049, %v334
  %v4052 = vadd.f32 %v4050, %v338
  %v4053 = vsel %vm177, %v4051, -inf
  %4054 = vmax.xlane.f32.xlu0 %v4053
  %v4055 = vpop.xlane.xlu0 %4054
  %v4056 = vsel %vm177, %v4052, -inf
  %4057 = vmax.xlane.f32.xlu0 %v4056
  %v4058 = vpop.xlane.xlu0 %4057
  %v4059 = vsub.f32 %v4051, %v4055
  %v4060 = vsub.f32 %v4052, %v4058
  %v4061 = vmul.f32 %v4059, 1.442695
  %v4062 = vpow.pop %v4061
  %v4063 = vmul.f32 %v4060, 1.442695
  %v4064 = vpow.pop %v4063
  %v4065 = vsel %vm177, %v4062, 0.0
  %4066 = vadd.xlane.f32.xlu0 %v4065
  %v4067 = vpop.xlane.xlu0 %4066
  %v4068 = vsel %vm177, %v4064, 0.0
  %4069 = vadd.xlane.f32.xlu0 %v4068
  %v4070 = vpop.xlane.xlu0 %4069
  %v4071 = vrcp.pop %v4067
  %v4072 = vrcp.pop %v4070
  %v4073 = vmul.f32 %v4062, %v4071
  %v4074 = vmul.f32 %v4064, %v4072
  %4075 = vrot.lane.b32.xlu0 %v3887, 64
  %v4076 = vpop.permute.xlu0 %4075
  %v4079 = vsel %vm177, %v4073, 0
  %4081 = vmatprep.subr.mxu0 0.0
  %4082 = vmatpush1.msra.mxu0 0.0
  %4083 = vmatprep.subr.mxu0 0.0
  %4084 = vmatpush1.msra.mxu0 0.0
  %4085 = vmatprep.subr.mxu0 0.0
  %4086 = vmatpush1.msra.mxu0 0.0
  %4087 = vmatprep.subr.mxu0 0.0
  %4088 = vmatpush1.msra.mxu0 0.0
  %4089 = vmatprep.subr.mxu0 0.0
  %4090 = vmatpush1.msra.mxu0 0.0
  %4091 = vmatprep.subr.mxu0 0.0
  %4092 = vmatpush1.msra.mxu0 0.0
  %4093 = vmatprep.subr.mxu0 0.0
  %4094 = vmatpush1.msra.mxu0 0.0
  %4095 = vmatprep.subr.mxu0 0.0
  %4096 = vmatpush1.msra.mxu0 0.0
  %4097 = vmatprep.subr.mxu0 0.0
  %4098 = vmatpush1.msra.mxu0 0.0
  %4099 = vmatprep.subr.mxu0 0.0
  %4100 = vmatpush1.msra.mxu0 0.0
  %4101 = vmatprep.subr.mxu0 0.0
  %4102 = vmatpush1.msra.mxu0 0.0
  %4103 = vmatprep.subr.mxu0 0.0
  %4104 = vmatpush1.msra.mxu0 0.0
  %4105 = vmatprep.subr.mxu0 0.0
  %4106 = vmatpush1.msra.mxu0 0.0
  %4107 = vmatprep.subr.mxu0 0.0
  %4108 = vmatpush1.msra.mxu0 0.0
  %4109 = vmatprep.subr.mxu0 0.0
  %4110 = vmatpush1.msra.mxu0 0.0
  %4111 = vmatprep.subr.mxu0 0.0
  %4112 = vmatpush1.msra.mxu0 %v4076
  %4113 = vmatprep.subr.mxu0 0.0
  %4114 = vmatpush2.msra.mxu0 0.0
  %4115 = vmatprep.subr.mxu0 0.0
  %4116 = vmatpush2.msra.mxu0 0.0
  %4117 = vmatprep.subr.mxu0 0.0
  %4118 = vmatpush2.msra.mxu0 0.0
  %4119 = vmatprep.subr.mxu0 0.0
  %4120 = vmatpush2.msra.mxu0 0.0
  %4121 = vmatprep.subr.mxu0 0.0
  %4122 = vmatpush2.msra.mxu0 0.0
  %4123 = vmatprep.subr.mxu0 0.0
  %4124 = vmatpush2.msra.mxu0 0.0
  %4125 = vmatprep.subr.mxu0 0.0
  %4126 = vmatpush2.msra.mxu0 0.0
  %4127 = vmatprep.subr.mxu0 0.0
  %4128 = vmatpush2.msra.mxu0 0.0
  %4129 = vmatprep.subr.mxu0 0.0
  %4130 = vmatpush2.msra.mxu0 0.0
  %4131 = vmatprep.subr.mxu0 0.0
  %4132 = vmatpush2.msra.mxu0 0.0
  %4133 = vmatprep.subr.mxu0 0.0
  %4134 = vmatpush2.msra.mxu0 0.0
  %4135 = vmatprep.subr.mxu0 0.0
  %4136 = vmatpush2.msra.mxu0 0.0
  %4137 = vmatprep.subr.mxu0 0.0
  %4138 = vmatpush2.msra.mxu0 0.0
  %4139 = vmatprep.subr.mxu0 0.0
  %4140 = vmatpush2.msra.mxu0 0.0
  %4141 = vmatprep.subr.mxu0 0.0
  %4142 = vmatpush2.msra.mxu0 0.0
  %4143 = vmatprep.subr.mxu0 0.0
  %4144 = vmatpush2.msra.mxu0 0.0
  %4145 = vmatprep.mubr.f32.mxu0 0.0
  %4146 = vmatmul.mubr.f32.gmra.mxu0 %v4079
  %v4147 = vpop.f32.mrf.mxu0
  %v4148 = vadd.f32 0.0, %v4147
  %v4149 = vpop.f32.mrf.mxu0
  %4150 = vdwg.mxu0
  %4151 = vrot.lane.b32.xlu0 %v3892, 64
  %v4152 = vpop.permute.xlu0 %4151
  %v4155 = vsel %vm177, %v4074, 0
  %4157 = vmatprep.subr.mxu0 0.0
  %4158 = vmatpush1.msra.mxu0 0.0
  %4159 = vmatprep.subr.mxu0 0.0
  %4160 = vmatpush1.msra.mxu0 0.0
  %4161 = vmatprep.subr.mxu0 0.0
  %4162 = vmatpush1.msra.mxu0 0.0
  %4163 = vmatprep.subr.mxu0 0.0
  %4164 = vmatpush1.msra.mxu0 0.0
  %4165 = vmatprep.subr.mxu0 0.0
  %4166 = vmatpush1.msra.mxu0 0.0
  %4167 = vmatprep.subr.mxu0 0.0
  %4168 = vmatpush1.msra.mxu0 0.0
  %4169 = vmatprep.subr.mxu0 0.0
  %4170 = vmatpush1.msra.mxu0 0.0
  %4171 = vmatprep.subr.mxu0 0.0
  %4172 = vmatpush1.msra.mxu0 0.0
  %4173 = vmatprep.subr.mxu0 0.0
  %4174 = vmatpush1.msra.mxu0 0.0
  %4175 = vmatprep.subr.mxu0 0.0
  %4176 = vmatpush1.msra.mxu0 0.0
  %4177 = vmatprep.subr.mxu0 0.0
  %4178 = vmatpush1.msra.mxu0 0.0
  %4179 = vmatprep.subr.mxu0 0.0
  %4180 = vmatpush1.msra.mxu0 0.0
  %4181 = vmatprep.subr.mxu0 0.0
  %4182 = vmatpush1.msra.mxu0 0.0
  %4183 = vmatprep.subr.mxu0 0.0
  %4184 = vmatpush1.msra.mxu0 0.0
  %4185 = vmatprep.subr.mxu0 0.0
  %4186 = vmatpush1.msra.mxu0 0.0
  %4187 = vmatprep.subr.mxu0 0.0
  %4188 = vmatpush1.msra.mxu0 %v4152
  %4189 = vmatprep.subr.mxu0 0.0
  %4190 = vmatpush2.msra.mxu0 0.0
  %4191 = vmatprep.subr.mxu0 0.0
  %4192 = vmatpush2.msra.mxu0 0.0
  %4193 = vmatprep.subr.mxu0 0.0
  %4194 = vmatpush2.msra.mxu0 0.0
  %4195 = vmatprep.subr.mxu0 0.0
  %4196 = vmatpush2.msra.mxu0 0.0
  %4197 = vmatprep.subr.mxu0 0.0
  %4198 = vmatpush2.msra.mxu0 0.0
  %4199 = vmatprep.subr.mxu0 0.0
  %4200 = vmatpush2.msra.mxu0 0.0
  %4201 = vmatprep.subr.mxu0 0.0
  %4202 = vmatpush2.msra.mxu0 0.0
  %4203 = vmatprep.subr.mxu0 0.0
  %4204 = vmatpush2.msra.mxu0 0.0
  %4205 = vmatprep.subr.mxu0 0.0
  %4206 = vmatpush2.msra.mxu0 0.0
  %4207 = vmatprep.subr.mxu0 0.0
  %4208 = vmatpush2.msra.mxu0 0.0
  %4209 = vmatprep.subr.mxu0 0.0
  %4210 = vmatpush2.msra.mxu0 0.0
  %4211 = vmatprep.subr.mxu0 0.0
  %4212 = vmatpush2.msra.mxu0 0.0
  %4213 = vmatprep.subr.mxu0 0.0
  %4214 = vmatpush2.msra.mxu0 0.0
  %4215 = vmatprep.subr.mxu0 0.0
  %4216 = vmatpush2.msra.mxu0 0.0
  %4217 = vmatprep.subr.mxu0 0.0
  %4218 = vmatpush2.msra.mxu0 0.0
  %4219 = vmatprep.subr.mxu0 0.0
  %4220 = vmatpush2.msra.mxu0 0.0
  %4221 = vmatprep.mubr.f32.mxu0 0.0
  %4222 = vmatmul.mubr.f32.gmra.mxu0 %v4155
  %v4223 = vpop.f32.mrf.mxu0
  %v4224 = vadd.f32 0.0, %v4223
  %v4225 = vpop.f32.mrf.mxu0
  %4226 = vdwg.mxu0
  %4227 = vrot.lane.b32.xlu0 %v3887, 120
  %v4228 = vpop.permute.xlu0 %4227
  %4229 = vrot.lane.b32.xlu0 %v3887, 88
  %v4230 = vpop.permute.xlu0 %4229
  %v4231 = vsel %vm177, %v4228, 0
  %v4233 = vsel %vm177, %v4230, 0
  %4235 = vmatprep.subr.mxu0 0.0
  %4236 = vmatpush1.xpose.msra.mxu0 0.0
  %4237 = vmatprep.subr.mxu0 0.0
  %4238 = vmatpush1.xpose.msra.mxu0 0.0
  %4239 = vmatprep.subr.mxu0 0.0
  %4240 = vmatpush1.xpose.msra.mxu0 0.0
  %4241 = vmatprep.subr.mxu0 0.0
  %4242 = vmatpush1.xpose.msra.mxu0 0.0
  %4243 = vmatprep.subr.mxu0 0.0
  %4244 = vmatpush1.xpose.msra.mxu0 0.0
  %4245 = vmatprep.subr.mxu0 0.0
  %4246 = vmatpush1.xpose.msra.mxu0 0.0
  %4247 = vmatprep.subr.mxu0 0.0
  %4248 = vmatpush1.xpose.msra.mxu0 0.0
  %4249 = vmatprep.subr.mxu0 0.0
  %4250 = vmatpush1.xpose.msra.mxu0 0.0
  %4251 = vmatprep.subr.mxu0 0.0
  %4252 = vmatpush1.xpose.msra.mxu0 0.0
  %4253 = vmatprep.subr.mxu0 0.0
  %4254 = vmatpush1.xpose.msra.mxu0 0.0
  %4255 = vmatprep.subr.mxu0 0.0
  %4256 = vmatpush1.xpose.msra.mxu0 0.0
  %4257 = vmatprep.subr.mxu0 0.0
  %4258 = vmatpush1.xpose.msra.mxu0 0.0
  %4259 = vmatprep.subr.mxu0 0.0
  %4260 = vmatpush1.xpose.msra.mxu0 0.0
  %4261 = vmatprep.subr.mxu0 0.0
  %4262 = vmatpush1.xpose.msra.mxu0 0.0
  %4263 = vmatprep.subr.mxu0 0.0
  %4264 = vmatpush1.xpose.msra.mxu0 0.0
  %4265 = vmatprep.subr.mxu0 0.0
  %4266 = vmatpush1.xpose.msra.mxu0 %v4233
  %4267 = vmatprep.subr.mxu0 0.0
  %4268 = vmatpush2.xpose.msra.mxu0 0.0
  %4269 = vmatprep.subr.mxu0 0.0
  %4270 = vmatpush2.xpose.msra.mxu0 0.0
  %4271 = vmatprep.subr.mxu0 0.0
  %4272 = vmatpush2.xpose.msra.mxu0 0.0
  %4273 = vmatprep.subr.mxu0 0.0
  %4274 = vmatpush2.xpose.msra.mxu0 0.0
  %4275 = vmatprep.subr.mxu0 0.0
  %4276 = vmatpush2.xpose.msra.mxu0 0.0
  %4277 = vmatprep.subr.mxu0 0.0
  %4278 = vmatpush2.xpose.msra.mxu0 0.0
  %4279 = vmatprep.subr.mxu0 0.0
  %4280 = vmatpush2.xpose.msra.mxu0 0.0
  %4281 = vmatprep.subr.mxu0 0.0
  %4282 = vmatpush2.xpose.msra.mxu0 0.0
  %4283 = vmatprep.subr.mxu0 0.0
  %4284 = vmatpush2.xpose.msra.mxu0 0.0
  %4285 = vmatprep.subr.mxu0 0.0
  %4286 = vmatpush2.xpose.msra.mxu0 0.0
  %4287 = vmatprep.subr.mxu0 0.0
  %4288 = vmatpush2.xpose.msra.mxu0 0.0
  %4289 = vmatprep.subr.mxu0 0.0
  %4290 = vmatpush2.xpose.msra.mxu0 0.0
  %4291 = vmatprep.subr.mxu0 0.0
  %4292 = vmatpush2.xpose.msra.mxu0 0.0
  %4293 = vmatprep.subr.mxu0 0.0
  %4294 = vmatpush2.xpose.msra.mxu0 0.0
  %4295 = vmatprep.subr.mxu0 0.0
  %4296 = vmatpush2.xpose.msra.mxu0 0.0
  %4297 = vmatprep.subr.mxu0 0.0
  %4298 = vmatpush2.xpose.msra.mxu0 0.0
  %4299 = vmatprep.mubr.f32.mxu0 0.0
  %4300 = vmatmul.mubr.f32.gmra.mxu0 %v4231
  %v4301 = vpop.f32.mrf.mxu0
  %v4302 = vadd.f32 0.0, %v4301
  %v4303 = vpop.f32.mrf.mxu0
  %4304 = vdwg.mxu0
  %4305 = vrot.lane.b32.xlu0 %v3892, 120
  %v4306 = vpop.permute.xlu0 %4305
  %4307 = vrot.lane.b32.xlu0 %v3892, 88
  %v4308 = vpop.permute.xlu0 %4307
  %v4309 = vsel %vm177, %v4306, 0
  %v4311 = vsel %vm177, %v4308, 0
  %4313 = vmatprep.subr.mxu0 0.0
  %4314 = vmatpush1.xpose.msra.mxu0 0.0
  %4315 = vmatprep.subr.mxu0 0.0
  %4316 = vmatpush1.xpose.msra.mxu0 0.0
  %4317 = vmatprep.subr.mxu0 0.0
  %4318 = vmatpush1.xpose.msra.mxu0 0.0
  %4319 = vmatprep.subr.mxu0 0.0
  %4320 = vmatpush1.xpose.msra.mxu0 0.0
  %4321 = vmatprep.subr.mxu0 0.0
  %4322 = vmatpush1.xpose.msra.mxu0 0.0
  %4323 = vmatprep.subr.mxu0 0.0
  %4324 = vmatpush1.xpose.msra.mxu0 0.0
  %4325 = vmatprep.subr.mxu0 0.0
  %4326 = vmatpush1.xpose.msra.mxu0 0.0
  %4327 = vmatprep.subr.mxu0 0.0
  %4328 = vmatpush1.xpose.msra.mxu0 0.0
  %4329 = vmatprep.subr.mxu0 0.0
  %4330 = vmatpush1.xpose.msra.mxu0 0.0
  %4331 = vmatprep.subr.mxu0 0.0
  %4332 = vmatpush1.xpose.msra.mxu0 0.0
  %4333 = vmatprep.subr.mxu0 0.0
  %4334 = vmatpush1.xpose.msra.mxu0 0.0
  %4335 = vmatprep.subr.mxu0 0.0
  %4336 = vmatpush1.xpose.msra.mxu0 0.0
  %4337 = vmatprep.subr.mxu0 0.0
  %4338 = vmatpush1.xpose.msra.mxu0 0.0
  %4339 = vmatprep.subr.mxu0 0.0
  %4340 = vmatpush1.xpose.msra.mxu0 0.0
  %4341 = vmatprep.subr.mxu0 0.0
  %4342 = vmatpush1.xpose.msra.mxu0 0.0
  %4343 = vmatprep.subr.mxu0 0.0
  %4344 = vmatpush1.xpose.msra.mxu0 %v4311
  %4345 = vmatprep.subr.mxu0 0.0
  %4346 = vmatpush2.xpose.msra.mxu0 0.0
  %4347 = vmatprep.subr.mxu0 0.0
  %4348 = vmatpush2.xpose.msra.mxu0 0.0
  %4349 = vmatprep.subr.mxu0 0.0
  %4350 = vmatpush2.xpose.msra.mxu0 0.0
  %4351 = vmatprep.subr.mxu0 0.0
  %4352 = vmatpush2.xpose.msra.mxu0 0.0
  %4353 = vmatprep.subr.mxu0 0.0
  %4354 = vmatpush2.xpose.msra.mxu0 0.0
  %4355 = vmatprep.subr.mxu0 0.0
  %4356 = vmatpush2.xpose.msra.mxu0 0.0
  %4357 = vmatprep.subr.mxu0 0.0
  %4358 = vmatpush2.xpose.msra.mxu0 0.0
  %4359 = vmatprep.subr.mxu0 0.0
  %4360 = vmatpush2.xpose.msra.mxu0 0.0
  %4361 = vmatprep.subr.mxu0 0.0
  %4362 = vmatpush2.xpose.msra.mxu0 0.0
  %4363 = vmatprep.subr.mxu0 0.0
  %4364 = vmatpush2.xpose.msra.mxu0 0.0
  %4365 = vmatprep.subr.mxu0 0.0
  %4366 = vmatpush2.xpose.msra.mxu0 0.0
  %4367 = vmatprep.subr.mxu0 0.0
  %4368 = vmatpush2.xpose.msra.mxu0 0.0
  %4369 = vmatprep.subr.mxu0 0.0
  %4370 = vmatpush2.xpose.msra.mxu0 0.0
  %4371 = vmatprep.subr.mxu0 0.0
  %4372 = vmatpush2.xpose.msra.mxu0 0.0
  %4373 = vmatprep.subr.mxu0 0.0
  %4374 = vmatpush2.xpose.msra.mxu0 0.0
  %4375 = vmatprep.subr.mxu0 0.0
  %4376 = vmatpush2.xpose.msra.mxu0 0.0
  %4377 = vmatprep.mubr.f32.mxu0 0.0
  %4378 = vmatmul.mubr.f32.gmra.mxu0 %v4309
  %v4379 = vpop.f32.mrf.mxu0
  %v4380 = vadd.f32 0.0, %v4379
  %v4381 = vpop.f32.mrf.mxu0
  %4382 = vdwg.mxu0
  %v4383 = vmul.f32 %v4302, 0.35355338
  %v4384 = vmul.f32 %v4380, 0.35355338
  %v4385 = vadd.f32 %v4383, %v334
  %v4386 = vadd.f32 %v4384, %v338
  %v4387 = vsel %vm177, %v4385, -inf
  %4388 = vmax.xlane.f32.xlu0 %v4387
  %v4389 = vpop.xlane.xlu0 %4388
  %v4390 = vsel %vm177, %v4386, -inf
  %4391 = vmax.xlane.f32.xlu0 %v4390
  %v4392 = vpop.xlane.xlu0 %4391
  %v4393 = vsub.f32 %v4385, %v4389
  %v4394 = vsub.f32 %v4386, %v4392
  %v4395 = vmul.f32 %v4393, 1.442695
  %v4396 = vpow.pop %v4395
  %v4397 = vmul.f32 %v4394, 1.442695
  %v4398 = vpow.pop %v4397
  %v4399 = vsel %vm177, %v4396, 0.0
  %4400 = vadd.xlane.f32.xlu0 %v4399
  %v4401 = vpop.xlane.xlu0 %4400
  %v4402 = vsel %vm177, %v4398, 0.0
  %4403 = vadd.xlane.f32.xlu0 %v4402
  %v4404 = vpop.xlane.xlu0 %4403
  %v4405 = vrcp.pop %v4401
  %v4406 = vrcp.pop %v4404
  %v4407 = vmul.f32 %v4396, %v4405
  %v4408 = vmul.f32 %v4398, %v4406
  %4409 = vrot.lane.b32.xlu0 %v3887, 56
  %v4410 = vpop.permute.xlu0 %4409
  %v4413 = vsel %vm177, %v4407, 0
  %4415 = vmatprep.subr.mxu0 0.0
  %4416 = vmatpush1.msra.mxu0 0.0
  %4417 = vmatprep.subr.mxu0 0.0
  %4418 = vmatpush1.msra.mxu0 0.0
  %4419 = vmatprep.subr.mxu0 0.0
  %4420 = vmatpush1.msra.mxu0 0.0
  %4421 = vmatprep.subr.mxu0 0.0
  %4422 = vmatpush1.msra.mxu0 0.0
  %4423 = vmatprep.subr.mxu0 0.0
  %4424 = vmatpush1.msra.mxu0 0.0
  %4425 = vmatprep.subr.mxu0 0.0
  %4426 = vmatpush1.msra.mxu0 0.0
  %4427 = vmatprep.subr.mxu0 0.0
  %4428 = vmatpush1.msra.mxu0 0.0
  %4429 = vmatprep.subr.mxu0 0.0
  %4430 = vmatpush1.msra.mxu0 0.0
  %4431 = vmatprep.subr.mxu0 0.0
  %4432 = vmatpush1.msra.mxu0 0.0
  %4433 = vmatprep.subr.mxu0 0.0
  %4434 = vmatpush1.msra.mxu0 0.0
  %4435 = vmatprep.subr.mxu0 0.0
  %4436 = vmatpush1.msra.mxu0 0.0
  %4437 = vmatprep.subr.mxu0 0.0
  %4438 = vmatpush1.msra.mxu0 0.0
  %4439 = vmatprep.subr.mxu0 0.0
  %4440 = vmatpush1.msra.mxu0 0.0
  %4441 = vmatprep.subr.mxu0 0.0
  %4442 = vmatpush1.msra.mxu0 0.0
  %4443 = vmatprep.subr.mxu0 0.0
  %4444 = vmatpush1.msra.mxu0 0.0
  %4445 = vmatprep.subr.mxu0 0.0
  %4446 = vmatpush1.msra.mxu0 %v4410
  %4447 = vmatprep.subr.mxu0 0.0
  %4448 = vmatpush2.msra.mxu0 0.0
  %4449 = vmatprep.subr.mxu0 0.0
  %4450 = vmatpush2.msra.mxu0 0.0
  %4451 = vmatprep.subr.mxu0 0.0
  %4452 = vmatpush2.msra.mxu0 0.0
  %4453 = vmatprep.subr.mxu0 0.0
  %4454 = vmatpush2.msra.mxu0 0.0
  %4455 = vmatprep.subr.mxu0 0.0
  %4456 = vmatpush2.msra.mxu0 0.0
  %4457 = vmatprep.subr.mxu0 0.0
  %4458 = vmatpush2.msra.mxu0 0.0
  %4459 = vmatprep.subr.mxu0 0.0
  %4460 = vmatpush2.msra.mxu0 0.0
  %4461 = vmatprep.subr.mxu0 0.0
  %4462 = vmatpush2.msra.mxu0 0.0
  %4463 = vmatprep.subr.mxu0 0.0
  %4464 = vmatpush2.msra.mxu0 0.0
  %4465 = vmatprep.subr.mxu0 0.0
  %4466 = vmatpush2.msra.mxu0 0.0
  %4467 = vmatprep.subr.mxu0 0.0
  %4468 = vmatpush2.msra.mxu0 0.0
  %4469 = vmatprep.subr.mxu0 0.0
  %4470 = vmatpush2.msra.mxu0 0.0
  %4471 = vmatprep.subr.mxu0 0.0
  %4472 = vmatpush2.msra.mxu0 0.0
  %4473 = vmatprep.subr.mxu0 0.0
  %4474 = vmatpush2.msra.mxu0 0.0
  %4475 = vmatprep.subr.mxu0 0.0
  %4476 = vmatpush2.msra.mxu0 0.0
  %4477 = vmatprep.subr.mxu0 0.0
  %4478 = vmatpush2.msra.mxu0 0.0
  %4479 = vmatprep.mubr.f32.mxu0 0.0
  %4480 = vmatmul.mubr.f32.gmra.mxu0 %v4413
  %v4481 = vpop.f32.mrf.mxu0
  %v4482 = vadd.f32 0.0, %v4481
  %v4483 = vpop.f32.mrf.mxu0
  %4484 = vdwg.mxu0
  %4485 = vrot.lane.b32.xlu0 %v3892, 56
  %v4486 = vpop.permute.xlu0 %4485
  %v4489 = vsel %vm177, %v4408, 0
  %4491 = vmatprep.subr.mxu0 0.0
  %4492 = vmatpush1.msra.mxu0 0.0
  %4493 = vmatprep.subr.mxu0 0.0
  %4494 = vmatpush1.msra.mxu0 0.0
  %4495 = vmatprep.subr.mxu0 0.0
  %4496 = vmatpush1.msra.mxu0 0.0
  %4497 = vmatprep.subr.mxu0 0.0
  %4498 = vmatpush1.msra.mxu0 0.0
  %4499 = vmatprep.subr.mxu0 0.0
  %4500 = vmatpush1.msra.mxu0 0.0
  %4501 = vmatprep.subr.mxu0 0.0
  %4502 = vmatpush1.msra.mxu0 0.0
  %4503 = vmatprep.subr.mxu0 0.0
  %4504 = vmatpush1.msra.mxu0 0.0
  %4505 = vmatprep.subr.mxu0 0.0
  %4506 = vmatpush1.msra.mxu0 0.0
  %4507 = vmatprep.subr.mxu0 0.0
  %4508 = vmatpush1.msra.mxu0 0.0
  %4509 = vmatprep.subr.mxu0 0.0
  %4510 = vmatpush1.msra.mxu0 0.0
  %4511 = vmatprep.subr.mxu0 0.0
  %4512 = vmatpush1.msra.mxu0 0.0
  %4513 = vmatprep.subr.mxu0 0.0
  %4514 = vmatpush1.msra.mxu0 0.0
  %4515 = vmatprep.subr.mxu0 0.0
  %4516 = vmatpush1.msra.mxu0 0.0
  %4517 = vmatprep.subr.mxu0 0.0
  %4518 = vmatpush1.msra.mxu0 0.0
  %4519 = vmatprep.subr.mxu0 0.0
  %4520 = vmatpush1.msra.mxu0 0.0
  %4521 = vmatprep.subr.mxu0 0.0
  %4522 = vmatpush1.msra.mxu0 %v4486
  %4523 = vmatprep.subr.mxu0 0.0
  %4524 = vmatpush2.msra.mxu0 0.0
  %4525 = vmatprep.subr.mxu0 0.0
  %4526 = vmatpush2.msra.mxu0 0.0
  %4527 = vmatprep.subr.mxu0 0.0
  %4528 = vmatpush2.msra.mxu0 0.0
  %4529 = vmatprep.subr.mxu0 0.0
  %4530 = vmatpush2.msra.mxu0 0.0
  %4531 = vmatprep.subr.mxu0 0.0
  %4532 = vmatpush2.msra.mxu0 0.0
  %4533 = vmatprep.subr.mxu0 0.0
  %4534 = vmatpush2.msra.mxu0 0.0
  %4535 = vmatprep.subr.mxu0 0.0
  %4536 = vmatpush2.msra.mxu0 0.0
  %4537 = vmatprep.subr.mxu0 0.0
  %4538 = vmatpush2.msra.mxu0 0.0
  %4539 = vmatprep.subr.mxu0 0.0
  %4540 = vmatpush2.msra.mxu0 0.0
  %4541 = vmatprep.subr.mxu0 0.0
  %4542 = vmatpush2.msra.mxu0 0.0
  %4543 = vmatprep.subr.mxu0 0.0
  %4544 = vmatpush2.msra.mxu0 0.0
  %4545 = vmatprep.subr.mxu0 0.0
  %4546 = vmatpush2.msra.mxu0 0.0
  %4547 = vmatprep.subr.mxu0 0.0
  %4548 = vmatpush2.msra.mxu0 0.0
  %4549 = vmatprep.subr.mxu0 0.0
  %4550 = vmatpush2.msra.mxu0 0.0
  %4551 = vmatprep.subr.mxu0 0.0
  %4552 = vmatpush2.msra.mxu0 0.0
  %4553 = vmatprep.subr.mxu0 0.0
  %4554 = vmatpush2.msra.mxu0 0.0
  %4555 = vmatprep.mubr.f32.mxu0 0.0
  %4556 = vmatmul.mubr.f32.gmra.mxu0 %v4489
  %v4557 = vpop.f32.mrf.mxu0
  %v4558 = vadd.f32 0.0, %v4557
  %v4559 = vpop.f32.mrf.mxu0
  %4560 = vdwg.mxu0
  %4561 = vrot.lane.b32.xlu0 %v3887, 112
  %v4562 = vpop.permute.xlu0 %4561
  %4563 = vrot.lane.b32.xlu0 %v3887, 80
  %v4564 = vpop.permute.xlu0 %4563
  %v4565 = vsel %vm177, %v4562, 0
  %v4567 = vsel %vm177, %v4564, 0
  %4569 = vmatprep.subr.mxu0 0.0
  %4570 = vmatpush1.xpose.msra.mxu0 0.0
  %4571 = vmatprep.subr.mxu0 0.0
  %4572 = vmatpush1.xpose.msra.mxu0 0.0
  %4573 = vmatprep.subr.mxu0 0.0
  %4574 = vmatpush1.xpose.msra.mxu0 0.0
  %4575 = vmatprep.subr.mxu0 0.0
  %4576 = vmatpush1.xpose.msra.mxu0 0.0
  %4577 = vmatprep.subr.mxu0 0.0
  %4578 = vmatpush1.xpose.msra.mxu0 0.0
  %4579 = vmatprep.subr.mxu0 0.0
  %4580 = vmatpush1.xpose.msra.mxu0 0.0
  %4581 = vmatprep.subr.mxu0 0.0
  %4582 = vmatpush1.xpose.msra.mxu0 0.0
  %4583 = vmatprep.subr.mxu0 0.0
  %4584 = vmatpush1.xpose.msra.mxu0 0.0
  %4585 = vmatprep.subr.mxu0 0.0
  %4586 = vmatpush1.xpose.msra.mxu0 0.0
  %4587 = vmatprep.subr.mxu0 0.0
  %4588 = vmatpush1.xpose.msra.mxu0 0.0
  %4589 = vmatprep.subr.mxu0 0.0
  %4590 = vmatpush1.xpose.msra.mxu0 0.0
  %4591 = vmatprep.subr.mxu0 0.0
  %4592 = vmatpush1.xpose.msra.mxu0 0.0
  %4593 = vmatprep.subr.mxu0 0.0
  %4594 = vmatpush1.xpose.msra.mxu0 0.0
  %4595 = vmatprep.subr.mxu0 0.0
  %4596 = vmatpush1.xpose.msra.mxu0 0.0
  %4597 = vmatprep.subr.mxu0 0.0
  %4598 = vmatpush1.xpose.msra.mxu0 0.0
  %4599 = vmatprep.subr.mxu0 0.0
  %4600 = vmatpush1.xpose.msra.mxu0 %v4567
  %4601 = vmatprep.subr.mxu0 0.0
  %4602 = vmatpush2.xpose.msra.mxu0 0.0
  %4603 = vmatprep.subr.mxu0 0.0
  %4604 = vmatpush2.xpose.msra.mxu0 0.0
  %4605 = vmatprep.subr.mxu0 0.0
  %4606 = vmatpush2.xpose.msra.mxu0 0.0
  %4607 = vmatprep.subr.mxu0 0.0
  %4608 = vmatpush2.xpose.msra.mxu0 0.0
  %4609 = vmatprep.subr.mxu0 0.0
  %4610 = vmatpush2.xpose.msra.mxu0 0.0
  %4611 = vmatprep.subr.mxu0 0.0
  %4612 = vmatpush2.xpose.msra.mxu0 0.0
  %4613 = vmatprep.subr.mxu0 0.0
  %4614 = vmatpush2.xpose.msra.mxu0 0.0
  %4615 = vmatprep.subr.mxu0 0.0
  %4616 = vmatpush2.xpose.msra.mxu0 0.0
  %4617 = vmatprep.subr.mxu0 0.0
  %4618 = vmatpush2.xpose.msra.mxu0 0.0
  %4619 = vmatprep.subr.mxu0 0.0
  %4620 = vmatpush2.xpose.msra.mxu0 0.0
  %4621 = vmatprep.subr.mxu0 0.0
  %4622 = vmatpush2.xpose.msra.mxu0 0.0
  %4623 = vmatprep.subr.mxu0 0.0
  %4624 = vmatpush2.xpose.msra.mxu0 0.0
  %4625 = vmatprep.subr.mxu0 0.0
  %4626 = vmatpush2.xpose.msra.mxu0 0.0
  %4627 = vmatprep.subr.mxu0 0.0
  %4628 = vmatpush2.xpose.msra.mxu0 0.0
  %4629 = vmatprep.subr.mxu0 0.0
  %4630 = vmatpush2.xpose.msra.mxu0 0.0
  %4631 = vmatprep.subr.mxu0 0.0
  %4632 = vmatpush2.xpose.msra.mxu0 0.0
  %4633 = vmatprep.mubr.f32.mxu0 0.0
  %4634 = vmatmul.mubr.f32.gmra.mxu0 %v4565
  %v4635 = vpop.f32.mrf.mxu0
  %v4636 = vadd.f32 0.0, %v4635
  %v4637 = vpop.f32.mrf.mxu0
  %4638 = vdwg.mxu0
  %4639 = vrot.lane.b32.xlu0 %v3892, 112
  %v4640 = vpop.permute.xlu0 %4639
  %4641 = vrot.lane.b32.xlu0 %v3892, 80
  %v4642 = vpop.permute.xlu0 %4641
  %v4643 = vsel %vm177, %v4640, 0
  %v4645 = vsel %vm177, %v4642, 0
  %4647 = vmatprep.subr.mxu0 0.0
  %4648 = vmatpush1.xpose.msra.mxu0 0.0
  %4649 = vmatprep.subr.mxu0 0.0
  %4650 = vmatpush1.xpose.msra.mxu0 0.0
  %4651 = vmatprep.subr.mxu0 0.0
  %4652 = vmatpush1.xpose.msra.mxu0 0.0
  %4653 = vmatprep.subr.mxu0 0.0
  %4654 = vmatpush1.xpose.msra.mxu0 0.0
  %4655 = vmatprep.subr.mxu0 0.0
  %4656 = vmatpush1.xpose.msra.mxu0 0.0
  %4657 = vmatprep.subr.mxu0 0.0
  %4658 = vmatpush1.xpose.msra.mxu0 0.0
  %4659 = vmatprep.subr.mxu0 0.0
  %4660 = vmatpush1.xpose.msra.mxu0 0.0
  %4661 = vmatprep.subr.mxu0 0.0
  %4662 = vmatpush1.xpose.msra.mxu0 0.0
  %4663 = vmatprep.subr.mxu0 0.0
  %4664 = vmatpush1.xpose.msra.mxu0 0.0
  %4665 = vmatprep.subr.mxu0 0.0
  %4666 = vmatpush1.xpose.msra.mxu0 0.0
  %4667 = vmatprep.subr.mxu0 0.0
  %4668 = vmatpush1.xpose.msra.mxu0 0.0
  %4669 = vmatprep.subr.mxu0 0.0
  %4670 = vmatpush1.xpose.msra.mxu0 0.0
  %4671 = vmatprep.subr.mxu0 0.0
  %4672 = vmatpush1.xpose.msra.mxu0 0.0
  %4673 = vmatprep.subr.mxu0 0.0
  %4674 = vmatpush1.xpose.msra.mxu0 0.0
  %4675 = vmatprep.subr.mxu0 0.0
  %4676 = vmatpush1.xpose.msra.mxu0 0.0
  %4677 = vmatprep.subr.mxu0 0.0
  %4678 = vmatpush1.xpose.msra.mxu0 %v4645
  %4679 = vmatprep.subr.mxu0 0.0
  %4680 = vmatpush2.xpose.msra.mxu0 0.0
  %4681 = vmatprep.subr.mxu0 0.0
  %4682 = vmatpush2.xpose.msra.mxu0 0.0
  %4683 = vmatprep.subr.mxu0 0.0
  %4684 = vmatpush2.xpose.msra.mxu0 0.0
  %4685 = vmatprep.subr.mxu0 0.0
  %4686 = vmatpush2.xpose.msra.mxu0 0.0
  %4687 = vmatprep.subr.mxu0 0.0
  %4688 = vmatpush2.xpose.msra.mxu0 0.0
  %4689 = vmatprep.subr.mxu0 0.0
  %4690 = vmatpush2.xpose.msra.mxu0 0.0
  %4691 = vmatprep.subr.mxu0 0.0
  %4692 = vmatpush2.xpose.msra.mxu0 0.0
  %4693 = vmatprep.subr.mxu0 0.0
  %4694 = vmatpush2.xpose.msra.mxu0 0.0
  %4695 = vmatprep.subr.mxu0 0.0
  %4696 = vmatpush2.xpose.msra.mxu0 0.0
  %4697 = vmatprep.subr.mxu0 0.0
  %4698 = vmatpush2.xpose.msra.mxu0 0.0
  %4699 = vmatprep.subr.mxu0 0.0
  %4700 = vmatpush2.xpose.msra.mxu0 0.0
  %4701 = vmatprep.subr.mxu0 0.0
  %4702 = vmatpush2.xpose.msra.mxu0 0.0
  %4703 = vmatprep.subr.mxu0 0.0
  %4704 = vmatpush2.xpose.msra.mxu0 0.0
  %4705 = vmatprep.subr.mxu0 0.0
  %4706 = vmatpush2.xpose.msra.mxu0 0.0
  %4707 = vmatprep.subr.mxu0 0.0
  %4708 = vmatpush2.xpose.msra.mxu0 0.0
  %4709 = vmatprep.subr.mxu0 0.0
  %4710 = vmatpush2.xpose.msra.mxu0 0.0
  %4711 = vmatprep.mubr.f32.mxu0 0.0
  %4712 = vmatmul.mubr.f32.gmra.mxu0 %v4643
  %v4713 = vpop.f32.mrf.mxu0
  %v4714 = vadd.f32 0.0, %v4713
  %v4715 = vpop.f32.mrf.mxu0
  %4716 = vdwg.mxu0
  %v4717 = vmul.f32 %v4636, 0.35355338
  %v4718 = vmul.f32 %v4714, 0.35355338
  %v4719 = vadd.f32 %v4717, %v334
  %v4720 = vadd.f32 %v4718, %v338
  %v4721 = vsel %vm177, %v4719, -inf
  %4722 = vmax.xlane.f32.xlu0 %v4721
  %v4723 = vpop.xlane.xlu0 %4722
  %v4724 = vsel %vm177, %v4720, -inf
  %4725 = vmax.xlane.f32.xlu0 %v4724
  %v4726 = vpop.xlane.xlu0 %4725
  %v4727 = vsub.f32 %v4719, %v4723
  %v4728 = vsub.f32 %v4720, %v4726
  %v4729 = vmul.f32 %v4727, 1.442695
  %v4730 = vpow.pop %v4729
  %v4731 = vmul.f32 %v4728, 1.442695
  %v4732 = vpow.pop %v4731
  %v4733 = vsel %vm177, %v4730, 0.0
  %4734 = vadd.xlane.f32.xlu0 %v4733
  %v4735 = vpop.xlane.xlu0 %4734
  %v4736 = vsel %vm177, %v4732, 0.0
  %4737 = vadd.xlane.f32.xlu0 %v4736
  %v4738 = vpop.xlane.xlu0 %4737
  %v4739 = vrcp.pop %v4735
  %v4740 = vrcp.pop %v4738
  %v4741 = vmul.f32 %v4730, %v4739
  %v4742 = vmul.f32 %v4732, %v4740
  %4743 = vrot.lane.b32.xlu0 %v3887, 48
  %v4744 = vpop.permute.xlu0 %4743
  %v4747 = vsel %vm177, %v4741, 0
  %4749 = vmatprep.subr.mxu0 0.0
  %4750 = vmatpush1.msra.mxu0 0.0
  %4751 = vmatprep.subr.mxu0 0.0
  %4752 = vmatpush1.msra.mxu0 0.0
  %4753 = vmatprep.subr.mxu0 0.0
  %4754 = vmatpush1.msra.mxu0 0.0
  %4755 = vmatprep.subr.mxu0 0.0
  %4756 = vmatpush1.msra.mxu0 0.0
  %4757 = vmatprep.subr.mxu0 0.0
  %4758 = vmatpush1.msra.mxu0 0.0
  %4759 = vmatprep.subr.mxu0 0.0
  %4760 = vmatpush1.msra.mxu0 0.0
  %4761 = vmatprep.subr.mxu0 0.0
  %4762 = vmatpush1.msra.mxu0 0.0
  %4763 = vmatprep.subr.mxu0 0.0
  %4764 = vmatpush1.msra.mxu0 0.0
  %4765 = vmatprep.subr.mxu0 0.0
  %4766 = vmatpush1.msra.mxu0 0.0
  %4767 = vmatprep.subr.mxu0 0.0
  %4768 = vmatpush1.msra.mxu0 0.0
  %4769 = vmatprep.subr.mxu0 0.0
  %4770 = vmatpush1.msra.mxu0 0.0
  %4771 = vmatprep.subr.mxu0 0.0
  %4772 = vmatpush1.msra.mxu0 0.0
  %4773 = vmatprep.subr.mxu0 0.0
  %4774 = vmatpush1.msra.mxu0 0.0
  %4775 = vmatprep.subr.mxu0 0.0
  %4776 = vmatpush1.msra.mxu0 0.0
  %4777 = vmatprep.subr.mxu0 0.0
  %4778 = vmatpush1.msra.mxu0 0.0
  %4779 = vmatprep.subr.mxu0 0.0
  %4780 = vmatpush1.msra.mxu0 %v4744
  %4781 = vmatprep.subr.mxu0 0.0
  %4782 = vmatpush2.msra.mxu0 0.0
  %4783 = vmatprep.subr.mxu0 0.0
  %4784 = vmatpush2.msra.mxu0 0.0
  %4785 = vmatprep.subr.mxu0 0.0
  %4786 = vmatpush2.msra.mxu0 0.0
  %4787 = vmatprep.subr.mxu0 0.0
  %4788 = vmatpush2.msra.mxu0 0.0
  %4789 = vmatprep.subr.mxu0 0.0
  %4790 = vmatpush2.msra.mxu0 0.0
  %4791 = vmatprep.subr.mxu0 0.0
  %4792 = vmatpush2.msra.mxu0 0.0
  %4793 = vmatprep.subr.mxu0 0.0
  %4794 = vmatpush2.msra.mxu0 0.0
  %4795 = vmatprep.subr.mxu0 0.0
  %4796 = vmatpush2.msra.mxu0 0.0
  %4797 = vmatprep.subr.mxu0 0.0
  %4798 = vmatpush2.msra.mxu0 0.0
  %4799 = vmatprep.subr.mxu0 0.0
  %4800 = vmatpush2.msra.mxu0 0.0
  %4801 = vmatprep.subr.mxu0 0.0
  %4802 = vmatpush2.msra.mxu0 0.0
  %4803 = vmatprep.subr.mxu0 0.0
  %4804 = vmatpush2.msra.mxu0 0.0
  %4805 = vmatprep.subr.mxu0 0.0
  %4806 = vmatpush2.msra.mxu0 0.0
  %4807 = vmatprep.subr.mxu0 0.0
  %4808 = vmatpush2.msra.mxu0 0.0
  %4809 = vmatprep.subr.mxu0 0.0
  %4810 = vmatpush2.msra.mxu0 0.0
  %4811 = vmatprep.subr.mxu0 0.0
  %4812 = vmatpush2.msra.mxu0 0.0
  %4813 = vmatprep.mubr.f32.mxu0 0.0
  %4814 = vmatmul.mubr.f32.gmra.mxu0 %v4747
  %v4815 = vpop.f32.mrf.mxu0
  %v4816 = vadd.f32 0.0, %v4815
  %v4817 = vpop.f32.mrf.mxu0
  %4818 = vdwg.mxu0
  %4819 = vrot.lane.b32.xlu0 %v3892, 48
  %v4820 = vpop.permute.xlu0 %4819
  %v4823 = vsel %vm177, %v4742, 0
  %4825 = vmatprep.subr.mxu0 0.0
  %4826 = vmatpush1.msra.mxu0 0.0
  %4827 = vmatprep.subr.mxu0 0.0
  %4828 = vmatpush1.msra.mxu0 0.0
  %4829 = vmatprep.subr.mxu0 0.0
  %4830 = vmatpush1.msra.mxu0 0.0
  %4831 = vmatprep.subr.mxu0 0.0
  %4832 = vmatpush1.msra.mxu0 0.0
  %4833 = vmatprep.subr.mxu0 0.0
  %4834 = vmatpush1.msra.mxu0 0.0
  %4835 = vmatprep.subr.mxu0 0.0
  %4836 = vmatpush1.msra.mxu0 0.0
  %4837 = vmatprep.subr.mxu0 0.0
  %4838 = vmatpush1.msra.mxu0 0.0
  %4839 = vmatprep.subr.mxu0 0.0
  %4840 = vmatpush1.msra.mxu0 0.0
  %4841 = vmatprep.subr.mxu0 0.0
  %4842 = vmatpush1.msra.mxu0 0.0
  %4843 = vmatprep.subr.mxu0 0.0
  %4844 = vmatpush1.msra.mxu0 0.0
  %4845 = vmatprep.subr.mxu0 0.0
  %4846 = vmatpush1.msra.mxu0 0.0
  %4847 = vmatprep.subr.mxu0 0.0
  %4848 = vmatpush1.msra.mxu0 0.0
  %4849 = vmatprep.subr.mxu0 0.0
  %4850 = vmatpush1.msra.mxu0 0.0
  %4851 = vmatprep.subr.mxu0 0.0
  %4852 = vmatpush1.msra.mxu0 0.0
  %4853 = vmatprep.subr.mxu0 0.0
  %4854 = vmatpush1.msra.mxu0 0.0
  %4855 = vmatprep.subr.mxu0 0.0
  %4856 = vmatpush1.msra.mxu0 %v4820
  %4857 = vmatprep.subr.mxu0 0.0
  %4858 = vmatpush2.msra.mxu0 0.0
  %4859 = vmatprep.subr.mxu0 0.0
  %4860 = vmatpush2.msra.mxu0 0.0
  %4861 = vmatprep.subr.mxu0 0.0
  %4862 = vmatpush2.msra.mxu0 0.0
  %4863 = vmatprep.subr.mxu0 0.0
  %4864 = vmatpush2.msra.mxu0 0.0
  %4865 = vmatprep.subr.mxu0 0.0
  %4866 = vmatpush2.msra.mxu0 0.0
  %4867 = vmatprep.subr.mxu0 0.0
  %4868 = vmatpush2.msra.mxu0 0.0
  %4869 = vmatprep.subr.mxu0 0.0
  %4870 = vmatpush2.msra.mxu0 0.0
  %4871 = vmatprep.subr.mxu0 0.0
  %4872 = vmatpush2.msra.mxu0 0.0
  %4873 = vmatprep.subr.mxu0 0.0
  %4874 = vmatpush2.msra.mxu0 0.0
  %4875 = vmatprep.subr.mxu0 0.0
  %4876 = vmatpush2.msra.mxu0 0.0
  %4877 = vmatprep.subr.mxu0 0.0
  %4878 = vmatpush2.msra.mxu0 0.0
  %4879 = vmatprep.subr.mxu0 0.0
  %4880 = vmatpush2.msra.mxu0 0.0
  %4881 = vmatprep.subr.mxu0 0.0
  %4882 = vmatpush2.msra.mxu0 0.0
  %4883 = vmatprep.subr.mxu0 0.0
  %4884 = vmatpush2.msra.mxu0 0.0
  %4885 = vmatprep.subr.mxu0 0.0
  %4886 = vmatpush2.msra.mxu0 0.0
  %4887 = vmatprep.subr.mxu0 0.0
  %4888 = vmatpush2.msra.mxu0 0.0
  %4889 = vmatprep.mubr.f32.mxu0 0.0
  %4890 = vmatmul.mubr.f32.gmra.mxu0 %v4823
  %v4891 = vpop.f32.mrf.mxu0
  %v4892 = vadd.f32 0.0, %v4891
  %v4893 = vpop.f32.mrf.mxu0
  %4894 = vdwg.mxu0
  %4895 = vrot.lane.b32.xlu0 %v3887, 104
  %v4896 = vpop.permute.xlu0 %4895
  %4897 = vrot.lane.b32.xlu0 %v3887, 72
  %v4898 = vpop.permute.xlu0 %4897
  %v4899 = vsel %vm177, %v4896, 0
  %v4901 = vsel %vm177, %v4898, 0
  %4903 = vmatprep.subr.mxu0 0.0
  %4904 = vmatpush1.xpose.msra.mxu0 0.0
  %4905 = vmatprep.subr.mxu0 0.0
  %4906 = vmatpush1.xpose.msra.mxu0 0.0
  %4907 = vmatprep.subr.mxu0 0.0
  %4908 = vmatpush1.xpose.msra.mxu0 0.0
  %4909 = vmatprep.subr.mxu0 0.0
  %4910 = vmatpush1.xpose.msra.mxu0 0.0
  %4911 = vmatprep.subr.mxu0 0.0
  %4912 = vmatpush1.xpose.msra.mxu0 0.0
  %4913 = vmatprep.subr.mxu0 0.0
  %4914 = vmatpush1.xpose.msra.mxu0 0.0
  %4915 = vmatprep.subr.mxu0 0.0
  %4916 = vmatpush1.xpose.msra.mxu0 0.0
  %4917 = vmatprep.subr.mxu0 0.0
  %4918 = vmatpush1.xpose.msra.mxu0 0.0
  %4919 = vmatprep.subr.mxu0 0.0
  %4920 = vmatpush1.xpose.msra.mxu0 0.0
  %4921 = vmatprep.subr.mxu0 0.0
  %4922 = vmatpush1.xpose.msra.mxu0 0.0
  %4923 = vmatprep.subr.mxu0 0.0
  %4924 = vmatpush1.xpose.msra.mxu0 0.0
  %4925 = vmatprep.subr.mxu0 0.0
  %4926 = vmatpush1.xpose.msra.mxu0 0.0
  %4927 = vmatprep.subr.mxu0 0.0
  %4928 = vmatpush1.xpose.msra.mxu0 0.0
  %4929 = vmatprep.subr.mxu0 0.0
  %4930 = vmatpush1.xpose.msra.mxu0 0.0
  %4931 = vmatprep.subr.mxu0 0.0
  %4932 = vmatpush1.xpose.msra.mxu0 0.0
  %4933 = vmatprep.subr.mxu0 0.0
  %4934 = vmatpush1.xpose.msra.mxu0 %v4901
  %4935 = vmatprep.subr.mxu0 0.0
  %4936 = vmatpush2.xpose.msra.mxu0 0.0
  %4937 = vmatprep.subr.mxu0 0.0
  %4938 = vmatpush2.xpose.msra.mxu0 0.0
  %4939 = vmatprep.subr.mxu0 0.0
  %4940 = vmatpush2.xpose.msra.mxu0 0.0
  %4941 = vmatprep.subr.mxu0 0.0
  %4942 = vmatpush2.xpose.msra.mxu0 0.0
  %4943 = vmatprep.subr.mxu0 0.0
  %4944 = vmatpush2.xpose.msra.mxu0 0.0
  %4945 = vmatprep.subr.mxu0 0.0
  %4946 = vmatpush2.xpose.msra.mxu0 0.0
  %4947 = vmatprep.subr.mxu0 0.0
  %4948 = vmatpush2.xpose.msra.mxu0 0.0
  %4949 = vmatprep.subr.mxu0 0.0
  %4950 = vmatpush2.xpose.msra.mxu0 0.0
  %4951 = vmatprep.subr.mxu0 0.0
  %4952 = vmatpush2.xpose.msra.mxu0 0.0
  %4953 = vmatprep.subr.mxu0 0.0
  %4954 = vmatpush2.xpose.msra.mxu0 0.0
  %4955 = vmatprep.subr.mxu0 0.0
  %4956 = vmatpush2.xpose.msra.mxu0 0.0
  %4957 = vmatprep.subr.mxu0 0.0
  %4958 = vmatpush2.xpose.msra.mxu0 0.0
  %4959 = vmatprep.subr.mxu0 0.0
  %4960 = vmatpush2.xpose.msra.mxu0 0.0
  %4961 = vmatprep.subr.mxu0 0.0
  %4962 = vmatpush2.xpose.msra.mxu0 0.0
  %4963 = vmatprep.subr.mxu0 0.0
  %4964 = vmatpush2.xpose.msra.mxu0 0.0
  %4965 = vmatprep.subr.mxu0 0.0
  %4966 = vmatpush2.xpose.msra.mxu0 0.0
  %4967 = vmatprep.mubr.f32.mxu0 0.0
  %4968 = vmatmul.mubr.f32.gmra.mxu0 %v4899
  %v4969 = vpop.f32.mrf.mxu0
  %v4970 = vadd.f32 0.0, %v4969
  %v4971 = vpop.f32.mrf.mxu0
  %4972 = vdwg.mxu0
  %4973 = vrot.lane.b32.xlu0 %v3892, 104
  %v4974 = vpop.permute.xlu0 %4973
  %4975 = vrot.lane.b32.xlu0 %v3892, 72
  %v4976 = vpop.permute.xlu0 %4975
  %v4977 = vsel %vm177, %v4974, 0
  %v4979 = vsel %vm177, %v4976, 0
  %4981 = vmatprep.subr.mxu0 0.0
  %4982 = vmatpush1.xpose.msra.mxu0 0.0
  %4983 = vmatprep.subr.mxu0 0.0
  %4984 = vmatpush1.xpose.msra.mxu0 0.0
  %4985 = vmatprep.subr.mxu0 0.0
  %4986 = vmatpush1.xpose.msra.mxu0 0.0
  %4987 = vmatprep.subr.mxu0 0.0
  %4988 = vmatpush1.xpose.msra.mxu0 0.0
  %4989 = vmatprep.subr.mxu0 0.0
  %4990 = vmatpush1.xpose.msra.mxu0 0.0
  %4991 = vmatprep.subr.mxu0 0.0
  %4992 = vmatpush1.xpose.msra.mxu0 0.0
  %4993 = vmatprep.subr.mxu0 0.0
  %4994 = vmatpush1.xpose.msra.mxu0 0.0
  %4995 = vmatprep.subr.mxu0 0.0
  %4996 = vmatpush1.xpose.msra.mxu0 0.0
  %4997 = vmatprep.subr.mxu0 0.0
  %4998 = vmatpush1.xpose.msra.mxu0 0.0
  %4999 = vmatprep.subr.mxu0 0.0
  %5000 = vmatpush1.xpose.msra.mxu0 0.0
  %5001 = vmatprep.subr.mxu0 0.0
  %5002 = vmatpush1.xpose.msra.mxu0 0.0
  %5003 = vmatprep.subr.mxu0 0.0
  %5004 = vmatpush1.xpose.msra.mxu0 0.0
  %5005 = vmatprep.subr.mxu0 0.0
  %5006 = vmatpush1.xpose.msra.mxu0 0.0
  %5007 = vmatprep.subr.mxu0 0.0
  %5008 = vmatpush1.xpose.msra.mxu0 0.0
  %5009 = vmatprep.subr.mxu0 0.0
  %5010 = vmatpush1.xpose.msra.mxu0 0.0
  %5011 = vmatprep.subr.mxu0 0.0
  %5012 = vmatpush1.xpose.msra.mxu0 %v4979
  %5013 = vmatprep.subr.mxu0 0.0
  %5014 = vmatpush2.xpose.msra.mxu0 0.0
  %5015 = vmatprep.subr.mxu0 0.0
  %5016 = vmatpush2.xpose.msra.mxu0 0.0
  %5017 = vmatprep.subr.mxu0 0.0
  %5018 = vmatpush2.xpose.msra.mxu0 0.0
  %5019 = vmatprep.subr.mxu0 0.0
  %5020 = vmatpush2.xpose.msra.mxu0 0.0
  %5021 = vmatprep.subr.mxu0 0.0
  %5022 = vmatpush2.xpose.msra.mxu0 0.0
  %5023 = vmatprep.subr.mxu0 0.0
  %5024 = vmatpush2.xpose.msra.mxu0 0.0
  %5025 = vmatprep.subr.mxu0 0.0
  %5026 = vmatpush2.xpose.msra.mxu0 0.0
  %5027 = vmatprep.subr.mxu0 0.0
  %5028 = vmatpush2.xpose.msra.mxu0 0.0
  %5029 = vmatprep.subr.mxu0 0.0
  %5030 = vmatpush2.xpose.msra.mxu0 0.0
  %5031 = vmatprep.subr.mxu0 0.0
  %5032 = vmatpush2.xpose.msra.mxu0 0.0
  %5033 = vmatprep.subr.mxu0 0.0
  %5034 = vmatpush2.xpose.msra.mxu0 0.0
  %5035 = vmatprep.subr.mxu0 0.0
  %5036 = vmatpush2.xpose.msra.mxu0 0.0
  %5037 = vmatprep.subr.mxu0 0.0
  %5038 = vmatpush2.xpose.msra.mxu0 0.0
  %5039 = vmatprep.subr.mxu0 0.0
  %5040 = vmatpush2.xpose.msra.mxu0 0.0
  %5041 = vmatprep.subr.mxu0 0.0
  %5042 = vmatpush2.xpose.msra.mxu0 0.0
  %5043 = vmatprep.subr.mxu0 0.0
  %5044 = vmatpush2.xpose.msra.mxu0 0.0
  %5045 = vmatprep.mubr.f32.mxu0 0.0
  %5046 = vmatmul.mubr.f32.gmra.mxu0 %v4977
  %v5047 = vpop.f32.mrf.mxu0
  %v5048 = vadd.f32 0.0, %v5047
  %v5049 = vpop.f32.mrf.mxu0
  %5050 = vdwg.mxu0
  %v5051 = vmul.f32 %v4970, 0.35355338
  %v5052 = vmul.f32 %v5048, 0.35355338
  %v5053 = vadd.f32 %v5051, %v334
  %v5054 = vadd.f32 %v5052, %v338
  %v5055 = vsel %vm177, %v5053, -inf
  %5056 = vmax.xlane.f32.xlu0 %v5055
  %v5057 = vpop.xlane.xlu0 %5056
  %v5058 = vsel %vm177, %v5054, -inf
  %5059 = vmax.xlane.f32.xlu0 %v5058
  %v5060 = vpop.xlane.xlu0 %5059
  %v5061 = vsub.f32 %v5053, %v5057
  %v5062 = vsub.f32 %v5054, %v5060
  %v5063 = vmul.f32 %v5061, 1.442695
  %v5064 = vpow.pop %v5063
  %v5065 = vmul.f32 %v5062, 1.442695
  %v5066 = vpow.pop %v5065
  %v5067 = vsel %vm177, %v5064, 0.0
  %5068 = vadd.xlane.f32.xlu0 %v5067
  %v5069 = vpop.xlane.xlu0 %5068
  %v5070 = vsel %vm177, %v5066, 0.0
  %5071 = vadd.xlane.f32.xlu0 %v5070
  %v5072 = vpop.xlane.xlu0 %5071
  %v5073 = vrcp.pop %v5069
  %v5074 = vrcp.pop %v5072
  %v5075 = vmul.f32 %v5064, %v5073
  %v5076 = vmul.f32 %v5066, %v5074
  %5077 = vrot.lane.b32.xlu0 %v3887, 40
  %v5078 = vpop.permute.xlu0 %5077
  %v5081 = vsel %vm177, %v5075, 0
  %5083 = vmatprep.subr.mxu0 0.0
  %5084 = vmatpush1.msra.mxu0 0.0
  %5085 = vmatprep.subr.mxu0 0.0
  %5086 = vmatpush1.msra.mxu0 0.0
  %5087 = vmatprep.subr.mxu0 0.0
  %5088 = vmatpush1.msra.mxu0 0.0
  %5089 = vmatprep.subr.mxu0 0.0
  %5090 = vmatpush1.msra.mxu0 0.0
  %5091 = vmatprep.subr.mxu0 0.0
  %5092 = vmatpush1.msra.mxu0 0.0
  %5093 = vmatprep.subr.mxu0 0.0
  %5094 = vmatpush1.msra.mxu0 0.0
  %5095 = vmatprep.subr.mxu0 0.0
  %5096 = vmatpush1.msra.mxu0 0.0
  %5097 = vmatprep.subr.mxu0 0.0
  %5098 = vmatpush1.msra.mxu0 0.0
  %5099 = vmatprep.subr.mxu0 0.0
  %5100 = vmatpush1.msra.mxu0 0.0
  %5101 = vmatprep.subr.mxu0 0.0
  %5102 = vmatpush1.msra.mxu0 0.0
  %5103 = vmatprep.subr.mxu0 0.0
  %5104 = vmatpush1.msra.mxu0 0.0
  %5105 = vmatprep.subr.mxu0 0.0
  %5106 = vmatpush1.msra.mxu0 0.0
  %5107 = vmatprep.subr.mxu0 0.0
  %5108 = vmatpush1.msra.mxu0 0.0
  %5109 = vmatprep.subr.mxu0 0.0
  %5110 = vmatpush1.msra.mxu0 0.0
  %5111 = vmatprep.subr.mxu0 0.0
  %5112 = vmatpush1.msra.mxu0 0.0
  %5113 = vmatprep.subr.mxu0 0.0
  %5114 = vmatpush1.msra.mxu0 %v5078
  %5115 = vmatprep.subr.mxu0 0.0
  %5116 = vmatpush2.msra.mxu0 0.0
  %5117 = vmatprep.subr.mxu0 0.0
  %5118 = vmatpush2.msra.mxu0 0.0
  %5119 = vmatprep.subr.mxu0 0.0
  %5120 = vmatpush2.msra.mxu0 0.0
  %5121 = vmatprep.subr.mxu0 0.0
  %5122 = vmatpush2.msra.mxu0 0.0
  %5123 = vmatprep.subr.mxu0 0.0
  %5124 = vmatpush2.msra.mxu0 0.0
  %5125 = vmatprep.subr.mxu0 0.0
  %5126 = vmatpush2.msra.mxu0 0.0
  %5127 = vmatprep.subr.mxu0 0.0
  %5128 = vmatpush2.msra.mxu0 0.0
  %5129 = vmatprep.subr.mxu0 0.0
  %5130 = vmatpush2.msra.mxu0 0.0
  %5131 = vmatprep.subr.mxu0 0.0
  %5132 = vmatpush2.msra.mxu0 0.0
  %5133 = vmatprep.subr.mxu0 0.0
  %5134 = vmatpush2.msra.mxu0 0.0
  %5135 = vmatprep.subr.mxu0 0.0
  %5136 = vmatpush2.msra.mxu0 0.0
  %5137 = vmatprep.subr.mxu0 0.0
  %5138 = vmatpush2.msra.mxu0 0.0
  %5139 = vmatprep.subr.mxu0 0.0
  %5140 = vmatpush2.msra.mxu0 0.0
  %5141 = vmatprep.subr.mxu0 0.0
  %5142 = vmatpush2.msra.mxu0 0.0
  %5143 = vmatprep.subr.mxu0 0.0
  %5144 = vmatpush2.msra.mxu0 0.0
  %5145 = vmatprep.subr.mxu0 0.0
  %5146 = vmatpush2.msra.mxu0 0.0
  %5147 = vmatprep.mubr.f32.mxu0 0.0
  %5148 = vmatmul.mubr.f32.gmra.mxu0 %v5081
  %v5149 = vpop.f32.mrf.mxu0
  %v5150 = vadd.f32 0.0, %v5149
  %v5151 = vpop.f32.mrf.mxu0
  %5152 = vdwg.mxu0
  %5153 = vrot.lane.b32.xlu0 %v3892, 40
  %v5154 = vpop.permute.xlu0 %5153
  %v5157 = vsel %vm177, %v5076, 0
  %5159 = vmatprep.subr.mxu0 0.0
  %5160 = vmatpush1.msra.mxu0 0.0
  %5161 = vmatprep.subr.mxu0 0.0
  %5162 = vmatpush1.msra.mxu0 0.0
  %5163 = vmatprep.subr.mxu0 0.0
  %5164 = vmatpush1.msra.mxu0 0.0
  %5165 = vmatprep.subr.mxu0 0.0
  %5166 = vmatpush1.msra.mxu0 0.0
  %5167 = vmatprep.subr.mxu0 0.0
  %5168 = vmatpush1.msra.mxu0 0.0
  %5169 = vmatprep.subr.mxu0 0.0
  %5170 = vmatpush1.msra.mxu0 0.0
  %5171 = vmatprep.subr.mxu0 0.0
  %5172 = vmatpush1.msra.mxu0 0.0
  %5173 = vmatprep.subr.mxu0 0.0
  %5174 = vmatpush1.msra.mxu0 0.0
  %5175 = vmatprep.subr.mxu0 0.0
  %5176 = vmatpush1.msra.mxu0 0.0
  %5177 = vmatprep.subr.mxu0 0.0
  %5178 = vmatpush1.msra.mxu0 0.0
  %5179 = vmatprep.subr.mxu0 0.0
  %5180 = vmatpush1.msra.mxu0 0.0
  %5181 = vmatprep.subr.mxu0 0.0
  %5182 = vmatpush1.msra.mxu0 0.0
  %5183 = vmatprep.subr.mxu0 0.0
  %5184 = vmatpush1.msra.mxu0 0.0
  %5185 = vmatprep.subr.mxu0 0.0
  %5186 = vmatpush1.msra.mxu0 0.0
  %5187 = vmatprep.subr.mxu0 0.0
  %5188 = vmatpush1.msra.mxu0 0.0
  %5189 = vmatprep.subr.mxu0 0.0
  %5190 = vmatpush1.msra.mxu0 %v5154
  %5191 = vmatprep.subr.mxu0 0.0
  %5192 = vmatpush2.msra.mxu0 0.0
  %5193 = vmatprep.subr.mxu0 0.0
  %5194 = vmatpush2.msra.mxu0 0.0
  %5195 = vmatprep.subr.mxu0 0.0
  %5196 = vmatpush2.msra.mxu0 0.0
  %5197 = vmatprep.subr.mxu0 0.0
  %5198 = vmatpush2.msra.mxu0 0.0
  %5199 = vmatprep.subr.mxu0 0.0
  %5200 = vmatpush2.msra.mxu0 0.0
  %5201 = vmatprep.subr.mxu0 0.0
  %5202 = vmatpush2.msra.mxu0 0.0
  %5203 = vmatprep.subr.mxu0 0.0
  %5204 = vmatpush2.msra.mxu0 0.0
  %5205 = vmatprep.subr.mxu0 0.0
  %5206 = vmatpush2.msra.mxu0 0.0
  %5207 = vmatprep.subr.mxu0 0.0
  %5208 = vmatpush2.msra.mxu0 0.0
  %5209 = vmatprep.subr.mxu0 0.0
  %5210 = vmatpush2.msra.mxu0 0.0
  %5211 = vmatprep.subr.mxu0 0.0
  %5212 = vmatpush2.msra.mxu0 0.0
  %5213 = vmatprep.subr.mxu0 0.0
  %5214 = vmatpush2.msra.mxu0 0.0
  %5215 = vmatprep.subr.mxu0 0.0
  %5216 = vmatpush2.msra.mxu0 0.0
  %5217 = vmatprep.subr.mxu0 0.0
  %5218 = vmatpush2.msra.mxu0 0.0
  %5219 = vmatprep.subr.mxu0 0.0
  %5220 = vmatpush2.msra.mxu0 0.0
  %5221 = vmatprep.subr.mxu0 0.0
  %5222 = vmatpush2.msra.mxu0 0.0
  %5223 = vmatprep.mubr.f32.mxu0 0.0
  %5224 = vmatmul.mubr.f32.gmra.mxu0 %v5157
  %v5225 = vpop.f32.mrf.mxu0
  %v5226 = vadd.f32 0.0, %v5225
  %v5227 = vpop.f32.mrf.mxu0
  %5228 = vdwg.mxu0
  %5231 = vrot.lane.b32.xlu0 %v4482, 8
  %v5232 = vpop.permute.xlu0 %5231
  %5233 = vrot.lane.b32.xlu0 %v4558, 8
  %v5234 = vpop.permute.xlu0 %5233
  %5239 = vrot.lane.b32.xlu0 %v4816, 16
  %v5240 = vpop.permute.xlu0 %5239
  %5241 = vrot.lane.b32.xlu0 %v4892, 16
  %v5242 = vpop.permute.xlu0 %5241
  %5247 = vrot.lane.b32.xlu0 %v5150, 24
  %v5248 = vpop.permute.xlu0 %5247
  %5249 = vrot.lane.b32.xlu0 %v5226, 24
  %v5250 = vpop.permute.xlu0 %5249
  %v5253 = vsel %vm177, %v4148, %v5232
  %v5254 = vsel %vm177, %v4224, %v5234
  %v5255 = vsel %vm1545, %v5253, %v5240
  %v5256 = vsel %vm1545, %v5254, %v5242
  %v5257 = vsel %vm1548, %v5255, %v5248
  %v5258 = vsel %vm1548, %v5256, %v5250
  %s5259 = scalar_lea.vmem %s4, 64
  %v5260 = vld [vmem:[%s5259] sm:$0xff]
  %v5261 = vld [vmem:[%s5259 + $0x8] sm:$0xff]
  %v5262 = vld [vmem:[%s5259 + $0x10] sm:$0xff]
  %v5263 = vld [vmem:[%s5259 + $0x18] sm:$0xff]
  %s5264 = scalar_lea.vmem %s5, 2
  %v5265 = vld [vmem:[%s5264] sm:$0x1]
  %v5267 = vlaneseq
  %v5268 = vshrl.u32 %v5267, 7
  %v5269 = vsub.s32 0, %v5268
  %v5270 = vrot.slane %v5265, %v5269
  %v5273 = vsel %vm92, %v5257, 0
  %v5276 = vsel %vm92, %v5258, 0
  %5278 = vmatprep.subr.mxu0 0.0
  %5279 = vmatpush1.msra.mxu0 0.0
  %5280 = vmatprep.subr.mxu0 0.0
  %5281 = vmatpush1.msra.mxu0 0.0
  %5282 = vmatprep.subr.mxu0 0.0
  %5283 = vmatpush1.msra.mxu0 0.0
  %5284 = vmatprep.subr.mxu0 0.0
  %5285 = vmatpush1.msra.mxu0 0.0
  %5286 = vmatprep.subr.mxu0 0.0
  %5287 = vmatpush1.msra.mxu0 0.0
  %5288 = vmatprep.subr.mxu0 0.0
  %5289 = vmatpush1.msra.mxu0 0.0
  %5290 = vmatprep.subr.mxu0 0.0
  %5291 = vmatpush1.msra.mxu0 0.0
  %5292 = vmatprep.subr.mxu0 0.0
  %5293 = vmatpush1.msra.mxu0 0.0
  %5294 = vmatprep.subr.mxu0 0.0
  %5295 = vmatpush1.msra.mxu0 0.0
  %5296 = vmatprep.subr.mxu0 0.0
  %5297 = vmatpush1.msra.mxu0 0.0
  %5298 = vmatprep.subr.mxu0 0.0
  %5299 = vmatpush1.msra.mxu0 0.0
  %5300 = vmatprep.subr.mxu0 0.0
  %5301 = vmatpush1.msra.mxu0 0.0
  %5302 = vmatprep.subr.mxu0 0.0
  %5303 = vmatpush1.msra.mxu0 %v5263
  %5304 = vmatprep.subr.mxu0 0.0
  %5305 = vmatpush1.msra.mxu0 %v5262
  %5306 = vmatprep.subr.mxu0 0.0
  %5307 = vmatpush1.msra.mxu0 %v5261
  %5308 = vmatprep.subr.mxu0 0.0
  %5309 = vmatpush1.msra.mxu0 %v5260
  %5310 = vmatprep.subr.mxu0 0.0
  %5311 = vmatpush2.msra.mxu0 0.0
  %5312 = vmatprep.subr.mxu0 0.0
  %5313 = vmatpush2.msra.mxu0 0.0
  %5314 = vmatprep.subr.mxu0 0.0
  %5315 = vmatpush2.msra.mxu0 0.0
  %5316 = vmatprep.subr.mxu0 0.0
  %5317 = vmatpush2.msra.mxu0 0.0
  %5318 = vmatprep.subr.mxu0 0.0
  %5319 = vmatpush2.msra.mxu0 0.0
  %5320 = vmatprep.subr.mxu0 0.0
  %5321 = vmatpush2.msra.mxu0 0.0
  %5322 = vmatprep.subr.mxu0 0.0
  %5323 = vmatpush2.msra.mxu0 0.0
  %5324 = vmatprep.subr.mxu0 0.0
  %5325 = vmatpush2.msra.mxu0 0.0
  %5326 = vmatprep.subr.mxu0 0.0
  %5327 = vmatpush2.msra.mxu0 0.0
  %5328 = vmatprep.subr.mxu0 0.0
  %5329 = vmatpush2.msra.mxu0 0.0
  %5330 = vmatprep.subr.mxu0 0.0
  %5331 = vmatpush2.msra.mxu0 0.0
  %5332 = vmatprep.subr.mxu0 0.0
  %5333 = vmatpush2.msra.mxu0 0.0
  %5334 = vmatprep.subr.mxu0 0.0
  %5335 = vmatpush2.msra.mxu0 0.0
  %5336 = vmatprep.subr.mxu0 0.0
  %5337 = vmatpush2.msra.mxu0 0.0
  %5338 = vmatprep.subr.mxu0 0.0
  %5339 = vmatpush2.msra.mxu0 0.0
  %5340 = vmatprep.subr.mxu0 0.0
  %5341 = vmatpush2.msra.mxu0 0.0
  %5342 = vmatprep.mubr.f32.mxu0 0.0
  %5343 = vmatmul.mubr.f32.gmra.mxu0 %v5273
  %v5344 = vpop.f32.mrf.mxu0
  %v5345 = vadd.f32 %v5270, %v5344
  %v5346 = vpop.f32.mrf.mxu0
  %5347 = vmatprep.mubr.f32.mxu0 0.0
  %5348 = vmatmul.mubr.f32.gmra.mxu0 %v5276
  %v5349 = vpop.f32.mrf.mxu0
  %v5350 = vadd.f32 %v5270, %v5349
  %v5351 = vpop.f32.mrf.mxu0
  %5352 = vdwg.mxu0
  %v5353 = vadd.f32 %v3799, %v5345
  %v5354 = vadd.f32 %v3800, %v5350
  %s5355 = scalar_lea.vmem %s6, 2
  %v5356 = vld [vmem:[%s5355] sm:$0x1]
  %s5357 = scalar_lea.vmem %s7, 2
  %v5358 = vld [vmem:[%s5357] sm:$0x1]
  %v5359 = vsel %vm92, %v5353, 0.0
  %5360 = vadd.xlane.f32.xlu0 %v5359
  %v5361 = vpop.xlane.xlu0 %5360
  %v5362 = vsel %vm92, %v5354, 0.0
  %5363 = vadd.xlane.f32.xlu0 %v5362
  %v5364 = vpop.xlane.xlu0 %5363
  %v5365 = vmul.f32 %v5361, %v1653
  %v5366 = vmul.f32 %v5364, %v1653
  %v5367 = vsub.f32 %v5353, %v5365
  %v5368 = vsub.f32 %v5354, %v5366
  %v5369 = vmul.f32 %v5367, %v5367
  %v5370 = vmul.f32 %v5368, %v5368
  %v5371 = vsel %vm92, %v5369, 0.0
  %5372 = vadd.xlane.f32.xlu0 %v5371
  %v5373 = vpop.xlane.xlu0 %5372
  %v5374 = vsel %vm92, %v5370, 0.0
  %5375 = vadd.xlane.f32.xlu0 %v5374
  %v5376 = vpop.xlane.xlu0 %5375
  %v5377 = vmul.f32 %v5373, %v1653
  %v5378 = vmul.f32 %v5376, %v1653
  %v5379 = vadd.f32 %v5377, 1e-05
  %v5380 = vadd.f32 %v5378, 1e-05
  %v5381 = vrsqrt.pop %v5379
  %v5382 = vrsqrt.pop %v5380
  %v5383 = vmul.f32 %v5367, %v5381
  %v5384 = vmul.f32 %v5368, %v5382
  %v5386 = vlaneseq
  %v5387 = vshrl.u32 %v5386, 7
  %v5388 = vsub.s32 0, %v5387
  %v5389 = vrot.slane %v5356, %v5388
  %v5391 = vmul.f32 %v5383, %v5389
  %v5392 = vmul.f32 %v5384, %v5389
  %v5394 = vlaneseq
  %v5395 = vshrl.u32 %v5394, 7
  %v5396 = vsub.s32 0, %v5395
  %v5397 = vrot.slane %v5358, %v5396
  %v5399 = vadd.f32 %v5391, %v5397
  %v5400 = vadd.f32 %v5392, %v5397
  %s5401 = scalar_lea.vmem %s8, 64
  %v5402 = vld [vmem:[%s5401] sm:$0xff]
  %v5403 = vld [vmem:[%s5401 + $0x8] sm:$0xff]
  %v5404 = vld [vmem:[%s5401 + $0x10] sm:$0xff]
  %v5405 = vld [vmem:[%s5401 + $0x18] sm:$0xff]
  %s5406 = scalar_lea.vmem %s9, 2
  %v5407 = vld [vmem:[%s5406] sm:$0x1]
  %v5409 = vlaneseq
  %v5410 = vshrl.u32 %v5409, 7
  %v5411 = vsub.s32 0, %v5410
  %v5412 = vrot.slane %v5407, %v5411
  %v5415 = vsel %vm92, %v5399, 0
  %v5418 = vsel %vm92, %v5400, 0
  %5420 = vmatprep.subr.mxu0 0.0
  %5421 = vmatpush1.msra.mxu0 0.0
  %5422 = vmatprep.subr.mxu0 0.0
  %5423 = vmatpush1.msra.mxu0 0.0
  %5424 = vmatprep.subr.mxu0 0.0
  %5425 = vmatpush1.msra.mxu0 0.0
  %5426 = vmatprep.subr.mxu0 0.0
  %5427 = vmatpush1.msra.mxu0 0.0
  %5428 = vmatprep.subr.mxu0 0.0
  %5429 = vmatpush1.msra.mxu0 0.0
  %5430 = vmatprep.subr.mxu0 0.0
  %5431 = vmatpush1.msra.mxu0 0.0
  %5432 = vmatprep.subr.mxu0 0.0
  %5433 = vmatpush1.msra.mxu0 0.0
  %5434 = vmatprep.subr.mxu0 0.0
  %5435 = vmatpush1.msra.mxu0 0.0
  %5436 = vmatprep.subr.mxu0 0.0
  %5437 = vmatpush1.msra.mxu0 0.0
  %5438 = vmatprep.subr.mxu0 0.0
  %5439 = vmatpush1.msra.mxu0 0.0
  %5440 = vmatprep.subr.mxu0 0.0
  %5441 = vmatpush1.msra.mxu0 0.0
  %5442 = vmatprep.subr.mxu0 0.0
  %5443 = vmatpush1.msra.mxu0 0.0
  %5444 = vmatprep.subr.mxu0 0.0
  %5445 = vmatpush1.msra.mxu0 %v5405
  %5446 = vmatprep.subr.mxu0 0.0
  %5447 = vmatpush1.msra.mxu0 %v5404
  %5448 = vmatprep.subr.mxu0 0.0
  %5449 = vmatpush1.msra.mxu0 %v5403
  %5450 = vmatprep.subr.mxu0 0.0
  %5451 = vmatpush1.msra.mxu0 %v5402
  %5452 = vmatprep.subr.mxu0 0.0
  %5453 = vmatpush2.msra.mxu0 0.0
  %5454 = vmatprep.subr.mxu0 0.0
  %5455 = vmatpush2.msra.mxu0 0.0
  %5456 = vmatprep.subr.mxu0 0.0
  %5457 = vmatpush2.msra.mxu0 0.0
  %5458 = vmatprep.subr.mxu0 0.0
  %5459 = vmatpush2.msra.mxu0 0.0
  %5460 = vmatprep.subr.mxu0 0.0
  %5461 = vmatpush2.msra.mxu0 0.0
  %5462 = vmatprep.subr.mxu0 0.0
  %5463 = vmatpush2.msra.mxu0 0.0
  %5464 = vmatprep.subr.mxu0 0.0
  %5465 = vmatpush2.msra.mxu0 0.0
  %5466 = vmatprep.subr.mxu0 0.0
  %5467 = vmatpush2.msra.mxu0 0.0
  %5468 = vmatprep.subr.mxu0 0.0
  %5469 = vmatpush2.msra.mxu0 0.0
  %5470 = vmatprep.subr.mxu0 0.0
  %5471 = vmatpush2.msra.mxu0 0.0
  %5472 = vmatprep.subr.mxu0 0.0
  %5473 = vmatpush2.msra.mxu0 0.0
  %5474 = vmatprep.subr.mxu0 0.0
  %5475 = vmatpush2.msra.mxu0 0.0
  %5476 = vmatprep.subr.mxu0 0.0
  %5477 = vmatpush2.msra.mxu0 0.0
  %5478 = vmatprep.subr.mxu0 0.0
  %5479 = vmatpush2.msra.mxu0 0.0
  %5480 = vmatprep.subr.mxu0 0.0
  %5481 = vmatpush2.msra.mxu0 0.0
  %5482 = vmatprep.subr.mxu0 0.0
  %5483 = vmatpush2.msra.mxu0 0.0
  %5484 = vmatprep.mubr.f32.mxu0 0.0
  %5485 = vmatmul.mubr.f32.gmra.mxu0 %v5415
  %v5486 = vpop.f32.mrf.mxu0
  %v5487 = vadd.f32 %v5412, %v5486
  %v5488 = vpop.f32.mrf.mxu0
  %5489 = vmatprep.mubr.f32.mxu0 0.0
  %5490 = vmatmul.mubr.f32.gmra.mxu0 %v5418
  %v5491 = vpop.f32.mrf.mxu0
  %v5492 = vadd.f32 %v5412, %v5491
  %v5493 = vpop.f32.mrf.mxu0
  %5494 = vdwg.mxu0
  %v5495 = vmul.f32 %v5487, 0.5
  %v5496 = vmul.f32 %v5492, 0.5
  %v5497 = vmul.f32 %v5487, 0.044715
  %v5498 = vmul.f32 %v5492, 0.044715
  %v5499 = vmul.f32 %v5497, %v5487
  %v5500 = vmul.f32 %v5498, %v5492
  %v5501 = vmul.f32 %v5499, %v5487
  %v5502 = vmul.f32 %v5500, %v5492
  %v5503 = vadd.f32 %v5487, %v5501
  %v5504 = vadd.f32 %v5492, %v5502
  %v5505 = vmul.f32 %v5503, 0.7978846
  %v5506 = vmul.f32 %v5504, 0.7978846
  %v5507 = vtanh.pop %v5505
  %v5508 = vtanh.pop %v5506
  %v5509 = vadd.f32 %v5507, 1.0
  %v5510 = vadd.f32 %v5508, 1.0
  %v5511 = vmul.f32 %v5495, %v5509
  %v5512 = vmul.f32 %v5496, %v5510
  %s5513 = scalar_lea.vmem %s10, 128
  %v5514 = vld [vmem:[%s5513] sm:$0xff]
  %v5515 = vld [vmem:[%s5513 + $0x8] sm:$0xff]
  %v5516 = vld [vmem:[%s5513 + $0x10] sm:$0xff]
  %v5517 = vld [vmem:[%s5513 + $0x18] sm:$0xff]
  %v5518 = vld [vmem:[%s5513 + $0x20] sm:$0xff]
  %v5519 = vld [vmem:[%s5513 + $0x28] sm:$0xff]
  %v5520 = vld [vmem:[%s5513 + $0x30] sm:$0xff]
  %v5521 = vld [vmem:[%s5513 + $0x38] sm:$0xff]
  %s5522 = scalar_lea.vmem %s11, 2
  %v5523 = vld [vmem:[%s5522] sm:$0x1]
  %v5525 = vlaneseq
  %v5526 = vshrl.u32 %v5525, 7
  %v5527 = vsub.s32 0, %v5526
  %v5528 = vrot.slane %v5523, %v5527
  %v5531 = vsel %vm1815, %v5511, 0
  %v5534 = vsel %vm1815, %v5512, 0
  %5536 = vmatprep.subr.mxu0 0.0
  %5537 = vmatpush1.msra.mxu0 0.0
  %5538 = vmatprep.subr.mxu0 0.0
  %5539 = vmatpush1.msra.mxu0 0.0
  %5540 = vmatprep.subr.mxu0 0.0
  %5541 = vmatpush1.msra.mxu0 0.0
  %5542 = vmatprep.subr.mxu0 0.0
  %5543 = vmatpush1.msra.mxu0 0.0
  %5544 = vmatprep.subr.mxu0 0.0
  %5545 = vmatpush1.msra.mxu0 0.0
  %5546 = vmatprep.subr.mxu0 0.0
  %5547 = vmatpush1.msra.mxu0 0.0
  %5548 = vmatprep.subr.mxu0 0.0
  %5549 = vmatpush1.msra.mxu0 0.0
  %5550 = vmatprep.subr.mxu0 0.0
  %5551 = vmatpush1.msra.mxu0 0.0
  %5552 = vmatprep.subr.mxu0 0.0
  %5553 = vmatpush1.msra.mxu0 %v5521
  %5554 = vmatprep.subr.mxu0 0.0
  %5555 = vmatpush1.msra.mxu0 %v5520
  %5556 = vmatprep.subr.mxu0 0.0
  %5557 = vmatpush1.msra.mxu0 %v5519
  %5558 = vmatprep.subr.mxu0 0.0
  %5559 = vmatpush1.msra.mxu0 %v5518
  %5560 = vmatprep.subr.mxu0 0.0
  %5561 = vmatpush1.msra.mxu0 %v5517
  %5562 = vmatprep.subr.mxu0 0.0
  %5563 = vmatpush1.msra.mxu0 %v5516
  %5564 = vmatprep.subr.mxu0 0.0
  %5565 = vmatpush1.msra.mxu0 %v5515
  %5566 = vmatprep.subr.mxu0 0.0
  %5567 = vmatpush1.msra.mxu0 %v5514
  %5568 = vmatprep.subr.mxu0 0.0
  %5569 = vmatpush2.msra.mxu0 0.0
  %5570 = vmatprep.subr.mxu0 0.0
  %5571 = vmatpush2.msra.mxu0 0.0
  %5572 = vmatprep.subr.mxu0 0.0
  %5573 = vmatpush2.msra.mxu0 0.0
  %5574 = vmatprep.subr.mxu0 0.0
  %5575 = vmatpush2.msra.mxu0 0.0
  %5576 = vmatprep.subr.mxu0 0.0
  %5577 = vmatpush2.msra.mxu0 0.0
  %5578 = vmatprep.subr.mxu0 0.0
  %5579 = vmatpush2.msra.mxu0 0.0
  %5580 = vmatprep.subr.mxu0 0.0
  %5581 = vmatpush2.msra.mxu0 0.0
  %5582 = vmatprep.subr.mxu0 0.0
  %5583 = vmatpush2.msra.mxu0 0.0
  %5584 = vmatprep.subr.mxu0 0.0
  %5585 = vmatpush2.msra.mxu0 0.0
  %5586 = vmatprep.subr.mxu0 0.0
  %5587 = vmatpush2.msra.mxu0 0.0
  %5588 = vmatprep.subr.mxu0 0.0
  %5589 = vmatpush2.msra.mxu0 0.0
  %5590 = vmatprep.subr.mxu0 0.0
  %5591 = vmatpush2.msra.mxu0 0.0
  %5592 = vmatprep.subr.mxu0 0.0
  %5593 = vmatpush2.msra.mxu0 0.0
  %5594 = vmatprep.subr.mxu0 0.0
  %5595 = vmatpush2.msra.mxu0 0.0
  %5596 = vmatprep.subr.mxu0 0.0
  %5597 = vmatpush2.msra.mxu0 0.0
  %5598 = vmatprep.subr.mxu0 0.0
  %5599 = vmatpush2.msra.mxu0 0.0
  %5600 = vmatprep.mubr.f32.mxu0 0.0
  %5601 = vmatmul.mubr.f32.gmra.mxu0 %v5531
  %v5602 = vpop.f32.mrf.mxu0
  %v5603 = vadd.f32 %v5528, %v5602
  %v5604 = vpop.f32.mrf.mxu0
  %5605 = vmatprep.mubr.f32.mxu0 0.0
  %5606 = vmatmul.mubr.f32.gmra.mxu0 %v5534
  %v5607 = vpop.f32.mrf.mxu0
  %v5608 = vadd.f32 %v5528, %v5607
  %v5609 = vpop.f32.mrf.mxu0
  %5610 = vdwg.mxu0
  %v5611 = vadd.f32 %v5399, %v5603
  %v5612 = vadd.f32 %v5400, %v5608
  %s5613 = scalar_lea.vmem %s12, 2
  %v5614 = vld [vmem:[%s5613] sm:$0x1]
  %s5615 = scalar_lea.vmem %s13, 2
  %v5616 = vld [vmem:[%s5615] sm:$0x1]
  %v5617 = vsel %vm92, %v5611, 0.0
  %5618 = vadd.xlane.f32.xlu0 %v5617
  %v5619 = vpop.xlane.xlu0 %5618
  %v5620 = vsel %vm92, %v5612, 0.0
  %5621 = vadd.xlane.f32.xlu0 %v5620
  %v5622 = vpop.xlane.xlu0 %5621
  %v5623 = vmul.f32 %v5619, %v1653
  %v5624 = vmul.f32 %v5622, %v1653
  %v5625 = vsub.f32 %v5611, %v5623
  %v5626 = vsub.f32 %v5612, %v5624
  %v5627 = vmul.f32 %v5625, %v5625
  %v5628 = vmul.f32 %v5626, %v5626
  %v5629 = vsel %vm92, %v5627, 0.0
  %5630 = vadd.xlane.f32.xlu0 %v5629
  %v5631 = vpop.xlane.xlu0 %5630
  %v5632 = vsel %vm92, %v5628, 0.0
  %5633 = vadd.xlane.f32.xlu0 %v5632
  %v5634 = vpop.xlane.xlu0 %5633
  %v5635 = vmul.f32 %v5631, %v1653
  %v5636 = vmul.f32 %v5634, %v1653
  %v5637 = vadd.f32 %v5635, 1e-05
  %v5638 = vadd.f32 %v5636, 1e-05
  %v5639 = vrsqrt.pop %v5637
  %v5640 = vrsqrt.pop %v5638
  %v5641 = vmul.f32 %v5625, %v5639
  %v5642 = vmul.f32 %v5626, %v5640
  %v5644 = vlaneseq
  %v5645 = vshrl.u32 %v5644, 7
  %v5646 = vsub.s32 0, %v5645
  %v5647 = vrot.slane %v5614, %v5646
  %v5649 = vmul.f32 %v5641, %v5647
  %v5650 = vmul.f32 %v5642, %v5647
  %v5652 = vlaneseq
  %v5653 = vshrl.u32 %v5652, 7
  %v5654 = vsub.s32 0, %v5653
  %v5655 = vrot.slane %v5616, %v5654
  %v5657 = vadd.f32 %v5649, %v5655
  %v5658 = vadd.f32 %v5650, %v5655
  %s5659 = scalar_lea.vmem %s2, 96
  %v5660 = vld [vmem:[%s5659] sm:$0xff]
  %v5661 = vld [vmem:[%s5659 + $0x8] sm:$0xff]
  %v5662 = vld [vmem:[%s5659 + $0x10] sm:$0xff]
  %v5663 = vld [vmem:[%s5659 + $0x18] sm:$0xff]
  %s5664 = scalar_lea.vmem %s3, 3
  %v5665 = vld [vmem:[%s5664] sm:$0x1]
  %v5667 = vlaneseq
  %v5668 = vshrl.u32 %v5667, 7
  %v5669 = vsub.s32 0, %v5668
  %v5670 = vrot.slane %v5665, %v5669
  %v5673 = vsel %vm92, %v5657, 0
  %v5676 = vsel %vm92, %v5658, 0
  %5678 = vmatprep.subr.mxu0 0.0
  %5679 = vmatpush1.msra.mxu0 0.0
  %5680 = vmatprep.subr.mxu0 0.0
  %5681 = vmatpush1.msra.mxu0 0.0
  %5682 = vmatprep.subr.mxu0 0.0
  %5683 = vmatpush1.msra.mxu0 0.0
  %5684 = vmatprep.subr.mxu0 0.0
  %5685 = vmatpush1.msra.mxu0 0.0
  %5686 = vmatprep.subr.mxu0 0.0
  %5687 = vmatpush1.msra.mxu0 0.0
  %5688 = vmatprep.subr.mxu0 0.0
  %5689 = vmatpush1.msra.mxu0 0.0
  %5690 = vmatprep.subr.mxu0 0.0
  %5691 = vmatpush1.msra.mxu0 0.0
  %5692 = vmatprep.subr.mxu0 0.0
  %5693 = vmatpush1.msra.mxu0 0.0
  %5694 = vmatprep.subr.mxu0 0.0
  %5695 = vmatpush1.msra.mxu0 0.0
  %5696 = vmatprep.subr.mxu0 0.0
  %5697 = vmatpush1.msra.mxu0 0.0
  %5698 = vmatprep.subr.mxu0 0.0
  %5699 = vmatpush1.msra.mxu0 0.0
  %5700 = vmatprep.subr.mxu0 0.0
  %5701 = vmatpush1.msra.mxu0 0.0
  %5702 = vmatprep.subr.mxu0 0.0
  %5703 = vmatpush1.msra.mxu0 %v5663
  %5704 = vmatprep.subr.mxu0 0.0
  %5705 = vmatpush1.msra.mxu0 %v5662
  %5706 = vmatprep.subr.mxu0 0.0
  %5707 = vmatpush1.msra.mxu0 %v5661
  %5708 = vmatprep.subr.mxu0 0.0
  %5709 = vmatpush1.msra.mxu0 %v5660
  %5710 = vmatprep.subr.mxu0 0.0
  %5711 = vmatpush2.msra.mxu0 0.0
  %5712 = vmatprep.subr.mxu0 0.0
  %5713 = vmatpush2.msra.mxu0 0.0
  %5714 = vmatprep.subr.mxu0 0.0
  %5715 = vmatpush2.msra.mxu0 0.0
  %5716 = vmatprep.subr.mxu0 0.0
  %5717 = vmatpush2.msra.mxu0 0.0
  %5718 = vmatprep.subr.mxu0 0.0
  %5719 = vmatpush2.msra.mxu0 0.0
  %5720 = vmatprep.subr.mxu0 0.0
  %5721 = vmatpush2.msra.mxu0 0.0
  %5722 = vmatprep.subr.mxu0 0.0
  %5723 = vmatpush2.msra.mxu0 0.0
  %5724 = vmatprep.subr.mxu0 0.0
  %5725 = vmatpush2.msra.mxu0 0.0
  %5726 = vmatprep.subr.mxu0 0.0
  %5727 = vmatpush2.msra.mxu0 0.0
  %5728 = vmatprep.subr.mxu0 0.0
  %5729 = vmatpush2.msra.mxu0 0.0
  %5730 = vmatprep.subr.mxu0 0.0
  %5731 = vmatpush2.msra.mxu0 0.0
  %5732 = vmatprep.subr.mxu0 0.0
  %5733 = vmatpush2.msra.mxu0 0.0
  %5734 = vmatprep.subr.mxu0 0.0
  %5735 = vmatpush2.msra.mxu0 0.0
  %5736 = vmatprep.subr.mxu0 0.0
  %5737 = vmatpush2.msra.mxu0 0.0
  %5738 = vmatprep.subr.mxu0 0.0
  %5739 = vmatpush2.msra.mxu0 0.0
  %5740 = vmatprep.subr.mxu0 0.0
  %5741 = vmatpush2.msra.mxu0 0.0
  %5742 = vmatprep.mubr.f32.mxu0 0.0
  %5743 = vmatmul.mubr.f32.gmra.mxu0 %v5673
  %v5744 = vpop.f32.mrf.mxu0
  %v5745 = vadd.f32 %v5670, %v5744
  %v5746 = vpop.f32.mrf.mxu0
  %5747 = vmatprep.mubr.f32.mxu0 0.0
  %5748 = vmatmul.mubr.f32.gmra.mxu0 %v5676
  %v5749 = vpop.f32.mrf.mxu0
  %v5750 = vadd.f32 %v5670, %v5749
  %v5751 = vpop.f32.mrf.mxu0
  %5752 = vdwg.mxu0
  %5754 = vrot.lane.b32.xlu0 %v5745, 96
  %v5755 = vpop.permute.xlu0 %5754
  %v5756 = vsel %vm177, %v5745, 0
  %v5758 = vsel %vm177, %v5755, 0
  %5760 = vmatprep.subr.mxu0 0.0
  %5761 = vmatpush1.xpose.msra.mxu0 0.0
  %5762 = vmatprep.subr.mxu0 0.0
  %5763 = vmatpush1.xpose.msra.mxu0 0.0
  %5764 = vmatprep.subr.mxu0 0.0
  %5765 = vmatpush1.xpose.msra.mxu0 0.0
  %5766 = vmatprep.subr.mxu0 0.0
  %5767 = vmatpush1.xpose.msra.mxu0 0.0
  %5768 = vmatprep.subr.mxu0 0.0
  %5769 = vmatpush1.xpose.msra.mxu0 0.0
  %5770 = vmatprep.subr.mxu0 0.0
  %5771 = vmatpush1.xpose.msra.mxu0 0.0
  %5772 = vmatprep.subr.mxu0 0.0
  %5773 = vmatpush1.xpose.msra.mxu0 0.0
  %5774 = vmatprep.subr.mxu0 0.0
  %5775 = vmatpush1.xpose.msra.mxu0 0.0
  %5776 = vmatprep.subr.mxu0 0.0
  %5777 = vmatpush1.xpose.msra.mxu0 0.0
  %5778 = vmatprep.subr.mxu0 0.0
  %5779 = vmatpush1.xpose.msra.mxu0 0.0
  %5780 = vmatprep.subr.mxu0 0.0
  %5781 = vmatpush1.xpose.msra.mxu0 0.0
  %5782 = vmatprep.subr.mxu0 0.0
  %5783 = vmatpush1.xpose.msra.mxu0 0.0
  %5784 = vmatprep.subr.mxu0 0.0
  %5785 = vmatpush1.xpose.msra.mxu0 0.0
  %5786 = vmatprep.subr.mxu0 0.0
  %5787 = vmatpush1.xpose.msra.mxu0 0.0
  %5788 = vmatprep.subr.mxu0 0.0
  %5789 = vmatpush1.xpose.msra.mxu0 0.0
  %5790 = vmatprep.subr.mxu0 0.0
  %5791 = vmatpush1.xpose.msra.mxu0 %v5758
  %5792 = vmatprep.subr.mxu0 0.0
  %5793 = vmatpush2.xpose.msra.mxu0 0.0
  %5794 = vmatprep.subr.mxu0 0.0
  %5795 = vmatpush2.xpose.msra.mxu0 0.0
  %5796 = vmatprep.subr.mxu0 0.0
  %5797 = vmatpush2.xpose.msra.mxu0 0.0
  %5798 = vmatprep.subr.mxu0 0.0
  %5799 = vmatpush2.xpose.msra.mxu0 0.0
  %5800 = vmatprep.subr.mxu0 0.0
  %5801 = vmatpush2.xpose.msra.mxu0 0.0
  %5802 = vmatprep.subr.mxu0 0.0
  %5803 = vmatpush2.xpose.msra.mxu0 0.0
  %5804 = vmatprep.subr.mxu0 0.0
  %5805 = vmatpush2.xpose.msra.mxu0 0.0
  %5806 = vmatprep.subr.mxu0 0.0
  %5807 = vmatpush2.xpose.msra.mxu0 0.0
  %5808 = vmatprep.subr.mxu0 0.0
  %5809 = vmatpush2.xpose.msra.mxu0 0.0
  %5810 = vmatprep.subr.mxu0 0.0
  %5811 = vmatpush2.xpose.msra.mxu0 0.0
  %5812 = vmatprep.subr.mxu0 0.0
  %5813 = vmatpush2.xpose.msra.mxu0 0.0
  %5814 = vmatprep.subr.mxu0 0.0
  %5815 = vmatpush2.xpose.msra.mxu0 0.0
  %5816 = vmatprep.subr.mxu0 0.0
  %5817 = vmatpush2.xpose.msra.mxu0 0.0
  %5818 = vmatprep.subr.mxu0 0.0
  %5819 = vmatpush2.xpose.msra.mxu0 0.0
  %5820 = vmatprep.subr.mxu0 0.0
  %5821 = vmatpush2.xpose.msra.mxu0 0.0
  %5822 = vmatprep.subr.mxu0 0.0
  %5823 = vmatpush2.xpose.msra.mxu0 0.0
  %5824 = vmatprep.mubr.f32.mxu0 0.0
  %5825 = vmatmul.mubr.f32.gmra.mxu0 %v5756
  %v5826 = vpop.f32.mrf.mxu0
  %v5827 = vadd.f32 0.0, %v5826
  %v5828 = vpop.f32.mrf.mxu0
  %5829 = vdwg.mxu0
  %5831 = vrot.lane.b32.xlu0 %v5750, 96
  %v5832 = vpop.permute.xlu0 %5831
  %v5833 = vsel %vm177, %v5750, 0
  %v5835 = vsel %vm177, %v5832, 0
  %5837 = vmatprep.subr.mxu0 0.0
  %5838 = vmatpush1.xpose.msra.mxu0 0.0
  %5839 = vmatprep.subr.mxu0 0.0
  %5840 = vmatpush1.xpose.msra.mxu0 0.0
  %5841 = vmatprep.subr.mxu0 0.0
  %5842 = vmatpush1.xpose.msra.mxu0 0.0
  %5843 = vmatprep.subr.mxu0 0.0
  %5844 = vmatpush1.xpose.msra.mxu0 0.0
  %5845 = vmatprep.subr.mxu0 0.0
  %5846 = vmatpush1.xpose.msra.mxu0 0.0
  %5847 = vmatprep.subr.mxu0 0.0
  %5848 = vmatpush1.xpose.msra.mxu0 0.0
  %5849 = vmatprep.subr.mxu0 0.0
  %5850 = vmatpush1.xpose.msra.mxu0 0.0
  %5851 = vmatprep.subr.mxu0 0.0
  %5852 = vmatpush1.xpose.msra.mxu0 0.0
  %5853 = vmatprep.subr.mxu0 0.0
  %5854 = vmatpush1.xpose.msra.mxu0 0.0
  %5855 = vmatprep.subr.mxu0 0.0
  %5856 = vmatpush1.xpose.msra.mxu0 0.0
  %5857 = vmatprep.subr.mxu0 0.0
  %5858 = vmatpush1.xpose.msra.mxu0 0.0
  %5859 = vmatprep.subr.mxu0 0.0
  %5860 = vmatpush1.xpose.msra.mxu0 0.0
  %5861 = vmatprep.subr.mxu0 0.0
  %5862 = vmatpush1.xpose.msra.mxu0 0.0
  %5863 = vmatprep.subr.mxu0 0.0
  %5864 = vmatpush1.xpose.msra.mxu0 0.0
  %5865 = vmatprep.subr.mxu0 0.0
  %5866 = vmatpush1.xpose.msra.mxu0 0.0
  %5867 = vmatprep.subr.mxu0 0.0
  %5868 = vmatpush1.xpose.msra.mxu0 %v5835
  %5869 = vmatprep.subr.mxu0 0.0
  %5870 = vmatpush2.xpose.msra.mxu0 0.0
  %5871 = vmatprep.subr.mxu0 0.0
  %5872 = vmatpush2.xpose.msra.mxu0 0.0
  %5873 = vmatprep.subr.mxu0 0.0
  %5874 = vmatpush2.xpose.msra.mxu0 0.0
  %5875 = vmatprep.subr.mxu0 0.0
  %5876 = vmatpush2.xpose.msra.mxu0 0.0
  %5877 = vmatprep.subr.mxu0 0.0
  %5878 = vmatpush2.xpose.msra.mxu0 0.0
  %5879 = vmatprep.subr.mxu0 0.0
  %5880 = vmatpush2.xpose.msra.mxu0 0.0
  %5881 = vmatprep.subr.mxu0 0.0
  %5882 = vmatpush2.xpose.msra.mxu0 0.0
  %5883 = vmatprep.subr.mxu0 0.0
  %5884 = vmatpush2.xpose.msra.mxu0 0.0
  %5885 = vmatprep.subr.mxu0 0.0
  %5886 = vmatpush2.xpose.msra.mxu0 0.0
  %5887 = vmatprep.subr.mxu0 0.0
  %5888 = vmatpush2.xpose.msra.mxu0 0.0
  %5889 = vmatprep.subr.mxu0 0.0
  %5890 = vmatpush2.xpose.msra.mxu0 0.0
  %5891 = vmatprep.subr.mxu0 0.0
  %5892 = vmatpush2.xpose.msra.mxu0 0.0
  %5893 = vmatprep.subr.mxu0 0.0
  %5894 = vmatpush2.xpose.msra.mxu0 0.0
  %5895 = vmatprep.subr.mxu0 0.0
  %5896 = vmatpush2.xpose.msra.mxu0 0.0
  %5897 = vmatprep.subr.mxu0 0.0
  %5898 = vmatpush2.xpose.msra.mxu0 0.0
  %5899 = vmatprep.subr.mxu0 0.0
  %5900 = vmatpush2.xpose.msra.mxu0 0.0
  %5901 = vmatprep.mubr.f32.mxu0 0.0
  %5902 = vmatmul.mubr.f32.gmra.mxu0 %v5833
  %v5903 = vpop.f32.mrf.mxu0
  %v5904 = vadd.f32 0.0, %v5903
  %v5905 = vpop.f32.mrf.mxu0
  %5906 = vdwg.mxu0
  %v5907 = vmul.f32 %v5827, 0.35355338
  %v5908 = vmul.f32 %v5904, 0.35355338
  %v5909 = vadd.f32 %v5907, %v334
  %v5910 = vadd.f32 %v5908, %v338
  %v5911 = vsel %vm177, %v5909, -inf
  %5912 = vmax.xlane.f32.xlu0 %v5911
  %v5913 = vpop.xlane.xlu0 %5912
  %v5914 = vsel %vm177, %v5910, -inf
  %5915 = vmax.xlane.f32.xlu0 %v5914
  %v5916 = vpop.xlane.xlu0 %5915
  %v5917 = vsub.f32 %v5909, %v5913
  %v5918 = vsub.f32 %v5910, %v5916
  %v5919 = vmul.f32 %v5917, 1.442695
  %v5920 = vpow.pop %v5919
  %v5921 = vmul.f32 %v5918, 1.442695
  %v5922 = vpow.pop %v5921
  %v5923 = vsel %vm177, %v5920, 0.0
  %5924 = vadd.xlane.f32.xlu0 %v5923
  %v5925 = vpop.xlane.xlu0 %5924
  %v5926 = vsel %vm177, %v5922, 0.0
  %5927 = vadd.xlane.f32.xlu0 %v5926
  %v5928 = vpop.xlane.xlu0 %5927
  %v5929 = vrcp.pop %v5925
  %v5930 = vrcp.pop %v5928
  %v5931 = vmul.f32 %v5920, %v5929
  %v5932 = vmul.f32 %v5922, %v5930
  %5933 = vrot.lane.b32.xlu0 %v5745, 64
  %v5934 = vpop.permute.xlu0 %5933
  %v5937 = vsel %vm177, %v5931, 0
  %5939 = vmatprep.subr.mxu0 0.0
  %5940 = vmatpush1.msra.mxu0 0.0
  %5941 = vmatprep.subr.mxu0 0.0
  %5942 = vmatpush1.msra.mxu0 0.0
  %5943 = vmatprep.subr.mxu0 0.0
  %5944 = vmatpush1.msra.mxu0 0.0
  %5945 = vmatprep.subr.mxu0 0.0
  %5946 = vmatpush1.msra.mxu0 0.0
  %5947 = vmatprep.subr.mxu0 0.0
  %5948 = vmatpush1.msra.mxu0 0.0
  %5949 = vmatprep.subr.mxu0 0.0
  %5950 = vmatpush1.msra.mxu0 0.0
  %5951 = vmatprep.subr.mxu0 0.0
  %5952 = vmatpush1.msra.mxu0 0.0
  %5953 = vmatprep.subr.mxu0 0.0
  %5954 = vmatpush1.msra.mxu0 0.0
  %5955 = vmatprep.subr.mxu0 0.0
  %5956 = vmatpush1.msra.mxu0 0.0
  %5957 = vmatprep.subr.mxu0 0.0
  %5958 = vmatpush1.msra.mxu0 0.0
  %5959 = vmatprep.subr.mxu0 0.0
  %5960 = vmatpush1.msra.mxu0 0.0
  %5961 = vmatprep.subr.mxu0 0.0
  %5962 = vmatpush1.msra.mxu0 0.0
  %5963 = vmatprep.subr.mxu0 0.0
  %5964 = vmatpush1.msra.mxu0 0.0
  %5965 = vmatprep.subr.mxu0 0.0
  %5966 = vmatpush1.msra.mxu0 0.0
  %5967 = vmatprep.subr.mxu0 0.0
  %5968 = vmatpush1.msra.mxu0 0.0
  %5969 = vmatprep.subr.mxu0 0.0
  %5970 = vmatpush1.msra.mxu0 %v5934
  %5971 = vmatprep.subr.mxu0 0.0
  %5972 = vmatpush2.msra.mxu0 0.0
  %5973 = vmatprep.subr.mxu0 0.0
  %5974 = vmatpush2.msra.mxu0 0.0
  %5975 = vmatprep.subr.mxu0 0.0
  %5976 = vmatpush2.msra.mxu0 0.0
  %5977 = vmatprep.subr.mxu0 0.0
  %5978 = vmatpush2.msra.mxu0 0.0
  %5979 = vmatprep.subr.mxu0 0.0
  %5980 = vmatpush2.msra.mxu0 0.0
  %5981 = vmatprep.subr.mxu0 0.0
  %5982 = vmatpush2.msra.mxu0 0.0
  %5983 = vmatprep.subr.mxu0 0.0
  %5984 = vmatpush2.msra.mxu0 0.0
  %5985 = vmatprep.subr.mxu0 0.0
  %5986 = vmatpush2.msra.mxu0 0.0
  %5987 = vmatprep.subr.mxu0 0.0
  %5988 = vmatpush2.msra.mxu0 0.0
  %5989 = vmatprep.subr.mxu0 0.0
  %5990 = vmatpush2.msra.mxu0 0.0
  %5991 = vmatprep.subr.mxu0 0.0
  %5992 = vmatpush2.msra.mxu0 0.0
  %5993 = vmatprep.subr.mxu0 0.0
  %5994 = vmatpush2.msra.mxu0 0.0
  %5995 = vmatprep.subr.mxu0 0.0
  %5996 = vmatpush2.msra.mxu0 0.0
  %5997 = vmatprep.subr.mxu0 0.0
  %5998 = vmatpush2.msra.mxu0 0.0
  %5999 = vmatprep.subr.mxu0 0.0
  %6000 = vmatpush2.msra.mxu0 0.0
  %6001 = vmatprep.subr.mxu0 0.0
  %6002 = vmatpush2.msra.mxu0 0.0
  %6003 = vmatprep.mubr.f32.mxu0 0.0
  %6004 = vmatmul.mubr.f32.gmra.mxu0 %v5937
  %v6005 = vpop.f32.mrf.mxu0
  %v6006 = vadd.f32 0.0, %v6005
  %v6007 = vpop.f32.mrf.mxu0
  %6008 = vdwg.mxu0
  %6009 = vrot.lane.b32.xlu0 %v5750, 64
  %v6010 = vpop.permute.xlu0 %6009
  %v6013 = vsel %vm177, %v5932, 0
  %6015 = vmatprep.subr.mxu0 0.0
  %6016 = vmatpush1.msra.mxu0 0.0
  %6017 = vmatprep.subr.mxu0 0.0
  %6018 = vmatpush1.msra.mxu0 0.0
  %6019 = vmatprep.subr.mxu0 0.0
  %6020 = vmatpush1.msra.mxu0 0.0
  %6021 = vmatprep.subr.mxu0 0.0
  %6022 = vmatpush1.msra.mxu0 0.0
  %6023 = vmatprep.subr.mxu0 0.0
  %6024 = vmatpush1.msra.mxu0 0.0
  %6025 = vmatprep.subr.mxu0 0.0
  %6026 = vmatpush1.msra.mxu0 0.0
  %6027 = vmatprep.subr.mxu0 0.0
  %6028 = vmatpush1.msra.mxu0 0.0
  %6029 = vmatprep.subr.mxu0 0.0
  %6030 = vmatpush1.msra.mxu0 0.0
  %6031 = vmatprep.subr.mxu0 0.0
  %6032 = vmatpush1.msra.mxu0 0.0
  %6033 = vmatprep.subr.mxu0 0.0
  %6034 = vmatpush1.msra.mxu0 0.0
  %6035 = vmatprep.subr.mxu0 0.0
  %6036 = vmatpush1.msra.mxu0 0.0
  %6037 = vmatprep.subr.mxu0 0.0
  %6038 = vmatpush1.msra.mxu0 0.0
  %6039 = vmatprep.subr.mxu0 0.0
  %6040 = vmatpush1.msra.mxu0 0.0
  %6041 = vmatprep.subr.mxu0 0.0
  %6042 = vmatpush1.msra.mxu0 0.0
  %6043 = vmatprep.subr.mxu0 0.0
  %6044 = vmatpush1.msra.mxu0 0.0
  %6045 = vmatprep.subr.mxu0 0.0
  %6046 = vmatpush1.msra.mxu0 %v6010
  %6047 = vmatprep.subr.mxu0 0.0
  %6048 = vmatpush2.msra.mxu0 0.0
  %6049 = vmatprep.subr.mxu0 0.0
  %6050 = vmatpush2.msra.mxu0 0.0
  %6051 = vmatprep.subr.mxu0 0.0
  %6052 = vmatpush2.msra.mxu0 0.0
  %6053 = vmatprep.subr.mxu0 0.0
  %6054 = vmatpush2.msra.mxu0 0.0
  %6055 = vmatprep.subr.mxu0 0.0
  %6056 = vmatpush2.msra.mxu0 0.0
  %6057 = vmatprep.subr.mxu0 0.0
  %6058 = vmatpush2.msra.mxu0 0.0
  %6059 = vmatprep.subr.mxu0 0.0
  %6060 = vmatpush2.msra.mxu0 0.0
  %6061 = vmatprep.subr.mxu0 0.0
  %6062 = vmatpush2.msra.mxu0 0.0
  %6063 = vmatprep.subr.mxu0 0.0
  %6064 = vmatpush2.msra.mxu0 0.0
  %6065 = vmatprep.subr.mxu0 0.0
  %6066 = vmatpush2.msra.mxu0 0.0
  %6067 = vmatprep.subr.mxu0 0.0
  %6068 = vmatpush2.msra.mxu0 0.0
  %6069 = vmatprep.subr.mxu0 0.0
  %6070 = vmatpush2.msra.mxu0 0.0
  %6071 = vmatprep.subr.mxu0 0.0
  %6072 = vmatpush2.msra.mxu0 0.0
  %6073 = vmatprep.subr.mxu0 0.0
  %6074 = vmatpush2.msra.mxu0 0.0
  %6075 = vmatprep.subr.mxu0 0.0
  %6076 = vmatpush2.msra.mxu0 0.0
  %6077 = vmatprep.subr.mxu0 0.0
  %6078 = vmatpush2.msra.mxu0 0.0
  %6079 = vmatprep.mubr.f32.mxu0 0.0
  %6080 = vmatmul.mubr.f32.gmra.mxu0 %v6013
  %v6081 = vpop.f32.mrf.mxu0
  %v6082 = vadd.f32 0.0, %v6081
  %v6083 = vpop.f32.mrf.mxu0
  %6084 = vdwg.mxu0
  %6085 = vrot.lane.b32.xlu0 %v5745, 120
  %v6086 = vpop.permute.xlu0 %6085
  %6087 = vrot.lane.b32.xlu0 %v5745, 88
  %v6088 = vpop.permute.xlu0 %6087
  %v6089 = vsel %vm177, %v6086, 0
  %v6091 = vsel %vm177, %v6088, 0
  %6093 = vmatprep.subr.mxu0 0.0
  %6094 = vmatpush1.xpose.msra.mxu0 0.0
  %6095 = vmatprep.subr.mxu0 0.0
  %6096 = vmatpush1.xpose.msra.mxu0 0.0
  %6097 = vmatprep.subr.mxu0 0.0
  %6098 = vmatpush1.xpose.msra.mxu0 0.0
  %6099 = vmatprep.subr.mxu0 0.0
  %6100 = vmatpush1.xpose.msra.mxu0 0.0
  %6101 = vmatprep.subr.mxu0 0.0
  %6102 = vmatpush1.xpose.msra.mxu0 0.0
  %6103 = vmatprep.subr.mxu0 0.0
  %6104 = vmatpush1.xpose.msra.mxu0 0.0
  %6105 = vmatprep.subr.mxu0 0.0
  %6106 = vmatpush1.xpose.msra.mxu0 0.0
  %6107 = vmatprep.subr.mxu0 0.0
  %6108 = vmatpush1.xpose.msra.mxu0 0.0
  %6109 = vmatprep.subr.mxu0 0.0
  %6110 = vmatpush1.xpose.msra.mxu0 0.0
  %6111 = vmatprep.subr.mxu0 0.0
  %6112 = vmatpush1.xpose.msra.mxu0 0.0
  %6113 = vmatprep.subr.mxu0 0.0
  %6114 = vmatpush1.xpose.msra.mxu0 0.0
  %6115 = vmatprep.subr.mxu0 0.0
  %6116 = vmatpush1.xpose.msra.mxu0 0.0
  %6117 = vmatprep.subr.mxu0 0.0
  %6118 = vmatpush1.xpose.msra.mxu0 0.0
  %6119 = vmatprep.subr.mxu0 0.0
  %6120 = vmatpush1.xpose.msra.mxu0 0.0
  %6121 = vmatprep.subr.mxu0 0.0
  %6122 = vmatpush1.xpose.msra.mxu0 0.0
  %6123 = vmatprep.subr.mxu0 0.0
  %6124 = vmatpush1.xpose.msra.mxu0 %v6091
  %6125 = vmatprep.subr.mxu0 0.0
  %6126 = vmatpush2.xpose.msra.mxu0 0.0
  %6127 = vmatprep.subr.mxu0 0.0
  %6128 = vmatpush2.xpose.msra.mxu0 0.0
  %6129 = vmatprep.subr.mxu0 0.0
  %6130 = vmatpush2.xpose.msra.mxu0 0.0
  %6131 = vmatprep.subr.mxu0 0.0
  %6132 = vmatpush2.xpose.msra.mxu0 0.0
  %6133 = vmatprep.subr.mxu0 0.0
  %6134 = vmatpush2.xpose.msra.mxu0 0.0
  %6135 = vmatprep.subr.mxu0 0.0
  %6136 = vmatpush2.xpose.msra.mxu0 0.0
  %6137 = vmatprep.subr.mxu0 0.0
  %6138 = vmatpush2.xpose.msra.mxu0 0.0
  %6139 = vmatprep.subr.mxu0 0.0
  %6140 = vmatpush2.xpose.msra.mxu0 0.0
  %6141 = vmatprep.subr.mxu0 0.0
  %6142 = vmatpush2.xpose.msra.mxu0 0.0
  %6143 = vmatprep.subr.mxu0 0.0
  %6144 = vmatpush2.xpose.msra.mxu0 0.0
  %6145 = vmatprep.subr.mxu0 0.0
  %6146 = vmatpush2.xpose.msra.mxu0 0.0
  %6147 = vmatprep.subr.mxu0 0.0
  %6148 = vmatpush2.xpose.msra.mxu0 0.0
  %6149 = vmatprep.subr.mxu0 0.0
  %6150 = vmatpush2.xpose.msra.mxu0 0.0
  %6151 = vmatprep.subr.mxu0 0.0
  %6152 = vmatpush2.xpose.msra.mxu0 0.0
  %6153 = vmatprep.subr.mxu0 0.0
  %6154 = vmatpush2.xpose.msra.mxu0 0.0
  %6155 = vmatprep.subr.mxu0 0.0
  %6156 = vmatpush2.xpose.msra.mxu0 0.0
  %6157 = vmatprep.mubr.f32.mxu0 0.0
  %6158 = vmatmul.mubr.f32.gmra.mxu0 %v6089
  %v6159 = vpop.f32.mrf.mxu0
  %v6160 = vadd.f32 0.0, %v6159
  %v6161 = vpop.f32.mrf.mxu0
  %6162 = vdwg.mxu0
  %6163 = vrot.lane.b32.xlu0 %v5750, 120
  %v6164 = vpop.permute.xlu0 %6163
  %6165 = vrot.lane.b32.xlu0 %v5750, 88
  %v6166 = vpop.permute.xlu0 %6165
  %v6167 = vsel %vm177, %v6164, 0
  %v6169 = vsel %vm177, %v6166, 0
  %6171 = vmatprep.subr.mxu0 0.0
  %6172 = vmatpush1.xpose.msra.mxu0 0.0
  %6173 = vmatprep.subr.mxu0 0.0
  %6174 = vmatpush1.xpose.msra.mxu0 0.0
  %6175 = vmatprep.subr.mxu0 0.0
  %6176 = vmatpush1.xpose.msra.mxu0 0.0
  %6177 = vmatprep.subr.mxu0 0.0
  %6178 = vmatpush1.xpose.msra.mxu0 0.0
  %6179 = vmatprep.subr.mxu0 0.0
  %6180 = vmatpush1.xpose.msra.mxu0 0.0
  %6181 = vmatprep.subr.mxu0 0.0
  %6182 = vmatpush1.xpose.msra.mxu0 0.0
  %6183 = vmatprep.subr.mxu0 0.0
  %6184 = vmatpush1.xpose.msra.mxu0 0.0
  %6185 = vmatprep.subr.mxu0 0.0
  %6186 = vmatpush1.xpose.msra.mxu0 0.0
  %6187 = vmatprep.subr.mxu0 0.0
  %6188 = vmatpush1.xpose.msra.mxu0 0.0
  %6189 = vmatprep.subr.mxu0 0.0
  %6190 = vmatpush1.xpose.msra.mxu0 0.0
  %6191 = vmatprep.subr.mxu0 0.0
  %6192 = vmatpush1.xpose.msra.mxu0 0.0
  %6193 = vmatprep.subr.mxu0 0.0
  %6194 = vmatpush1.xpose.msra.mxu0 0.0
  %6195 = vmatprep.subr.mxu0 0.0
  %6196 = vmatpush1.xpose.msra.mxu0 0.0
  %6197 = vmatprep.subr.mxu0 0.0
  %6198 = vmatpush1.xpose.msra.mxu0 0.0
  %6199 = vmatprep.subr.mxu0 0.0
  %6200 = vmatpush1.xpose.msra.mxu0 0.0
  %6201 = vmatprep.subr.mxu0 0.0
  %6202 = vmatpush1.xpose.msra.mxu0 %v6169
  %6203 = vmatprep.subr.mxu0 0.0
  %6204 = vmatpush2.xpose.msra.mxu0 0.0
  %6205 = vmatprep.subr.mxu0 0.0
  %6206 = vmatpush2.xpose.msra.mxu0 0.0
  %6207 = vmatprep.subr.mxu0 0.0
  %6208 = vmatpush2.xpose.msra.mxu0 0.0
  %6209 = vmatprep.subr.mxu0 0.0
  %6210 = vmatpush2.xpose.msra.mxu0 0.0
  %6211 = vmatprep.subr.mxu0 0.0
  %6212 = vmatpush2.xpose.msra.mxu0 0.0
  %6213 = vmatprep.subr.mxu0 0.0
  %6214 = vmatpush2.xpose.msra.mxu0 0.0
  %6215 = vmatprep.subr.mxu0 0.0
  %6216 = vmatpush2.xpose.msra.mxu0 0.0
  %6217 = vmatprep.subr.mxu0 0.0
  %6218 = vmatpush2.xpose.msra.mxu0 0.0
  %6219 = vmatprep.subr.mxu0 0.0
  %6220 = vmatpush2.xpose.msra.mxu0 0.0
  %6221 = vmatprep.subr.mxu0 0.0
  %6222 = vmatpush2.xpose.msra.mxu0 0.0
  %6223 = vmatprep.subr.mxu0 0.0
  %6224 = vmatpush2.xpose.msra.mxu0 0.0
  %6225 = vmatprep.subr.mxu0 0.0
  %6226 = vmatpush2.xpose.msra.mxu0 0.0
  %6227 = vmatprep.subr.mxu0 0.0
  %6228 = vmatpush2.xpose.msra.mxu0 0.0
  %6229 = vmatprep.subr.mxu0 0.0
  %6230 = vmatpush2.xpose.msra.mxu0 0.0
  %6231 = vmatprep.subr.mxu0 0.0
  %6232 = vmatpush2.xpose.msra.mxu0 0.0
  %6233 = vmatprep.subr.mxu0 0.0
  %6234 = vmatpush2.xpose.msra.mxu0 0.0
  %6235 = vmatprep.mubr.f32.mxu0 0.0
  %6236 = vmatmul.mubr.f32.gmra.mxu0 %v6167
  %v6237 = vpop.f32.mrf.mxu0
  %v6238 = vadd.f32 0.0, %v6237
  %v6239 = vpop.f32.mrf.mxu0
  %6240 = vdwg.mxu0
  %v6241 = vmul.f32 %v6160, 0.35355338
  %v6242 = vmul.f32 %v6238, 0.35355338
  %v6243 = vadd.f32 %v6241, %v334
  %v6244 = vadd.f32 %v6242, %v338
  %v6245 = vsel %vm177, %v6243, -inf
  %6246 = vmax.xlane.f32.xlu0 %v6245
  %v6247 = vpop.xlane.xlu0 %6246
  %v6248 = vsel %vm177, %v6244, -inf
  %6249 = vmax.xlane.f32.xlu0 %v6248
  %v6250 = vpop.xlane.xlu0 %6249
  %v6251 = vsub.f32 %v6243, %v6247
  %v6252 = vsub.f32 %v6244, %v6250
  %v6253 = vmul.f32 %v6251, 1.442695
  %v6254 = vpow.pop %v6253
  %v6255 = vmul.f32 %v6252, 1.442695
  %v6256 = vpow.pop %v6255
  %v6257 = vsel %vm177, %v6254, 0.0
  %6258 = vadd.xlane.f32.xlu0 %v6257
  %v6259 = vpop.xlane.xlu0 %6258
  %v6260 = vsel %vm177, %v6256, 0.0
  %6261 = vadd.xlane.f32.xlu0 %v6260
  %v6262 = vpop.xlane.xlu0 %6261
  %v6263 = vrcp.pop %v6259
  %v6264 = vrcp.pop %v6262
  %v6265 = vmul.f32 %v6254, %v6263
  %v6266 = vmul.f32 %v6256, %v6264
  %6267 = vrot.lane.b32.xlu0 %v5745, 56
  %v6268 = vpop.permute.xlu0 %6267
  %v6271 = vsel %vm177, %v6265, 0
  %6273 = vmatprep.subr.mxu0 0.0
  %6274 = vmatpush1.msra.mxu0 0.0
  %6275 = vmatprep.subr.mxu0 0.0
  %6276 = vmatpush1.msra.mxu0 0.0
  %6277 = vmatprep.subr.mxu0 0.0
  %6278 = vmatpush1.msra.mxu0 0.0
  %6279 = vmatprep.subr.mxu0 0.0
  %6280 = vmatpush1.msra.mxu0 0.0
  %6281 = vmatprep.subr.mxu0 0.0
  %6282 = vmatpush1.msra.mxu0 0.0
  %6283 = vmatprep.subr.mxu0 0.0
  %6284 = vmatpush1.msra.mxu0 0.0
  %6285 = vmatprep.subr.mxu0 0.0
  %6286 = vmatpush1.msra.mxu0 0.0
  %6287 = vmatprep.subr.mxu0 0.0
  %6288 = vmatpush1.msra.mxu0 0.0
  %6289 = vmatprep.subr.mxu0 0.0
  %6290 = vmatpush1.msra.mxu0 0.0
  %6291 = vmatprep.subr.mxu0 0.0
  %6292 = vmatpush1.msra.mxu0 0.0
  %6293 = vmatprep.subr.mxu0 0.0
  %6294 = vmatpush1.msra.mxu0 0.0
  %6295 = vmatprep.subr.mxu0 0.0
  %6296 = vmatpush1.msra.mxu0 0.0
  %6297 = vmatprep.subr.mxu0 0.0
  %6298 = vmatpush1.msra.mxu0 0.0
  %6299 = vmatprep.subr.mxu0 0.0
  %6300 = vmatpush1.msra.mxu0 0.0
  %6301 = vmatprep.subr.mxu0 0.0
  %6302 = vmatpush1.msra.mxu0 0.0
  %6303 = vmatprep.subr.mxu0 0.0
  %6304 = vmatpush1.msra.mxu0 %v6268
  %6305 = vmatprep.subr.mxu0 0.0
  %6306 = vmatpush2.msra.mxu0 0.0
  %6307 = vmatprep.subr.mxu0 0.0
  %6308 = vmatpush2.msra.mxu0 0.0
  %6309 = vmatprep.subr.mxu0 0.0
  %6310 = vmatpush2.msra.mxu0 0.0
  %6311 = vmatprep.subr.mxu0 0.0
  %6312 = vmatpush2.msra.mxu0 0.0
  %6313 = vmatprep.subr.mxu0 0.0
  %6314 = vmatpush2.msra.mxu0 0.0
  %6315 = vmatprep.subr.mxu0 0.0
  %6316 = vmatpush2.msra.mxu0 0.0
  %6317 = vmatprep.subr.mxu0 0.0
  %6318 = vmatpush2.msra.mxu0 0.0
  %6319 = vmatprep.subr.mxu0 0.0
  %6320 = vmatpush2.msra.mxu0 0.0
  %6321 = vmatprep.subr.mxu0 0.0
  %6322 = vmatpush2.msra.mxu0 0.0
  %6323 = vmatprep.subr.mxu0 0.0
  %6324 = vmatpush2.msra.mxu0 0.0
  %6325 = vmatprep.subr.mxu0 0.0
  %6326 = vmatpush2.msra.mxu0 0.0
  %6327 = vmatprep.subr.mxu0 0.0
  %6328 = vmatpush2.msra.mxu0 0.0
  %6329 = vmatprep.subr.mxu0 0.0
  %6330 = vmatpush2.msra.mxu0 0.0
  %6331 = vmatprep.subr.mxu0 0.0
  %6332 = vmatpush2.msra.mxu0 0.0
  %6333 = vmatprep.subr.mxu0 0.0
  %6334 = vmatpush2.msra.mxu0 0.0
  %6335 = vmatprep.subr.mxu0 0.0
  %6336 = vmatpush2.msra.mxu0 0.0
  %6337 = vmatprep.mubr.f32.mxu0 0.0
  %6338 = vmatmul.mubr.f32.gmra.mxu0 %v6271
  %v6339 = vpop.f32.mrf.mxu0
  %v6340 = vadd.f32 0.0, %v6339
  %v6341 = vpop.f32.mrf.mxu0
  %6342 = vdwg.mxu0
  %6343 = vrot.lane.b32.xlu0 %v5750, 56
  %v6344 = vpop.permute.xlu0 %6343
  %v6347 = vsel %vm177, %v6266, 0
  %6349 = vmatprep.subr.mxu0 0.0
  %6350 = vmatpush1.msra.mxu0 0.0
  %6351 = vmatprep.subr.mxu0 0.0
  %6352 = vmatpush1.msra.mxu0 0.0
  %6353 = vmatprep.subr.mxu0 0.0
  %6354 = vmatpush1.msra.mxu0 0.0
  %6355 = vmatprep.subr.mxu0 0.0
  %6356 = vmatpush1.msra.mxu0 0.0
  %6357 = vmatprep.subr.mxu0 0.0
  %6358 = vmatpush1.msra.mxu0 0.0
  %6359 = vmatprep.subr.mxu0 0.0
  %6360 = vmatpush1.msra.mxu0 0.0
  %6361 = vmatprep.subr.mxu0 0.0
  %6362 = vmatpush1.msra.mxu0 0.0
  %6363 = vmatprep.subr.mxu0 0.0
  %6364 = vmatpush1.msra.mxu0 0.0
  %6365 = vmatprep.subr.mxu0 0.0
  %6366 = vmatpush1.msra.mxu0 0.0
  %6367 = vmatprep.subr.mxu0 0.0
  %6368 = vmatpush1.msra.mxu0 0.0
  %6369 = vmatprep.subr.mxu0 0.0
  %6370 = vmatpush1.msra.mxu0 0.0
  %6371 = vmatprep.subr.mxu0 0.0
  %6372 = vmatpush1.msra.mxu0 0.0
  %6373 = vmatprep.subr.mxu0 0.0
  %6374 = vmatpush1.msra.mxu0 0.0
  %6375 = vmatprep.subr.mxu0 0.0
  %6376 = vmatpush1.msra.mxu0 0.0
  %6377 = vmatprep.subr.mxu0 0.0
  %6378 = vmatpush1.msra.mxu0 0.0
  %6379 = vmatprep.subr.mxu0 0.0
  %6380 = vmatpush1.msra.mxu0 %v6344
  %6381 = vmatprep.subr.mxu0 0.0
  %6382 = vmatpush2.msra.mxu0 0.0
  %6383 = vmatprep.subr.mxu0 0.0
  %6384 = vmatpush2.msra.mxu0 0.0
  %6385 = vmatprep.subr.mxu0 0.0
  %6386 = vmatpush2.msra.mxu0 0.0
  %6387 = vmatprep.subr.mxu0 0.0
  %6388 = vmatpush2.msra.mxu0 0.0
  %6389 = vmatprep.subr.mxu0 0.0
  %6390 = vmatpush2.msra.mxu0 0.0
  %6391 = vmatprep.subr.mxu0 0.0
  %6392 = vmatpush2.msra.mxu0 0.0
  %6393 = vmatprep.subr.mxu0 0.0
  %6394 = vmatpush2.msra.mxu0 0.0
  %6395 = vmatprep.subr.mxu0 0.0
  %6396 = vmatpush2.msra.mxu0 0.0
  %6397 = vmatprep.subr.mxu0 0.0
  %6398 = vmatpush2.msra.mxu0 0.0
  %6399 = vmatprep.subr.mxu0 0.0
  %6400 = vmatpush2.msra.mxu0 0.0
  %6401 = vmatprep.subr.mxu0 0.0
  %6402 = vmatpush2.msra.mxu0 0.0
  %6403 = vmatprep.subr.mxu0 0.0
  %6404 = vmatpush2.msra.mxu0 0.0
  %6405 = vmatprep.subr.mxu0 0.0
  %6406 = vmatpush2.msra.mxu0 0.0
  %6407 = vmatprep.subr.mxu0 0.0
  %6408 = vmatpush2.msra.mxu0 0.0
  %6409 = vmatprep.subr.mxu0 0.0
  %6410 = vmatpush2.msra.mxu0 0.0
  %6411 = vmatprep.subr.mxu0 0.0
  %6412 = vmatpush2.msra.mxu0 0.0
  %6413 = vmatprep.mubr.f32.mxu0 0.0
  %6414 = vmatmul.mubr.f32.gmra.mxu0 %v6347
  %v6415 = vpop.f32.mrf.mxu0
  %v6416 = vadd.f32 0.0, %v6415
  %v6417 = vpop.f32.mrf.mxu0
  %6418 = vdwg.mxu0
  %6419 = vrot.lane.b32.xlu0 %v5745, 112
  %v6420 = vpop.permute.xlu0 %6419
  %6421 = vrot.lane.b32.xlu0 %v5745, 80
  %v6422 = vpop.permute.xlu0 %6421
  %v6423 = vsel %vm177, %v6420, 0
  %v6425 = vsel %vm177, %v6422, 0
  %6427 = vmatprep.subr.mxu0 0.0
  %6428 = vmatpush1.xpose.msra.mxu0 0.0
  %6429 = vmatprep.subr.mxu0 0.0
  %6430 = vmatpush1.xpose.msra.mxu0 0.0
  %6431 = vmatprep.subr.mxu0 0.0
  %6432 = vmatpush1.xpose.msra.mxu0 0.0
  %6433 = vmatprep.subr.mxu0 0.0
  %6434 = vmatpush1.xpose.msra.mxu0 0.0
  %6435 = vmatprep.subr.mxu0 0.0
  %6436 = vmatpush1.xpose.msra.mxu0 0.0
  %6437 = vmatprep.subr.mxu0 0.0
  %6438 = vmatpush1.xpose.msra.mxu0 0.0
  %6439 = vmatprep.subr.mxu0 0.0
  %6440 = vmatpush1.xpose.msra.mxu0 0.0
  %6441 = vmatprep.subr.mxu0 0.0
  %6442 = vmatpush1.xpose.msra.mxu0 0.0
  %6443 = vmatprep.subr.mxu0 0.0
  %6444 = vmatpush1.xpose.msra.mxu0 0.0
  %6445 = vmatprep.subr.mxu0 0.0
  %6446 = vmatpush1.xpose.msra.mxu0 0.0
  %6447 = vmatprep.subr.mxu0 0.0
  %6448 = vmatpush1.xpose.msra.mxu0 0.0
  %6449 = vmatprep.subr.mxu0 0.0
  %6450 = vmatpush1.xpose.msra.mxu0 0.0
  %6451 = vmatprep.subr.mxu0 0.0
  %6452 = vmatpush1.xpose.msra.mxu0 0.0
  %6453 = vmatprep.subr.mxu0 0.0
  %6454 = vmatpush1.xpose.msra.mxu0 0.0
  %6455 = vmatprep.subr.mxu0 0.0
  %6456 = vmatpush1.xpose.msra.mxu0 0.0
  %6457 = vmatprep.subr.mxu0 0.0
  %6458 = vmatpush1.xpose.msra.mxu0 %v6425
  %6459 = vmatprep.subr.mxu0 0.0
  %6460 = vmatpush2.xpose.msra.mxu0 0.0
  %6461 = vmatprep.subr.mxu0 0.0
  %6462 = vmatpush2.xpose.msra.mxu0 0.0
  %6463 = vmatprep.subr.mxu0 0.0
  %6464 = vmatpush2.xpose.msra.mxu0 0.0
  %6465 = vmatprep.subr.mxu0 0.0
  %6466 = vmatpush2.xpose.msra.mxu0 0.0
  %6467 = vmatprep.subr.mxu0 0.0
  %6468 = vmatpush2.xpose.msra.mxu0 0.0
  %6469 = vmatprep.subr.mxu0 0.0
  %6470 = vmatpush2.xpose.msra.mxu0 0.0
  %6471 = vmatprep.subr.mxu0 0.0
  %6472 = vmatpush2.xpose.msra.mxu0 0.0
  %6473 = vmatprep.subr.mxu0 0.0
  %6474 = vmatpush2.xpose.msra.mxu0 0.0
  %6475 = vmatprep.subr.mxu0 0.0
  %6476 = vmatpush2.xpose.msra.mxu0 0.0
  %6477 = vmatprep.subr.mxu0 0.0
  %6478 = vmatpush2.xpose.msra.mxu0 0.0
  %6479 = vmatprep.subr.mxu0 0.0
  %6480 = vmatpush2.xpose.msra.mxu0 0.0
  %6481 = vmatprep.subr.mxu0 0.0
  %6482 = vmatpush2.xpose.msra.mxu0 0.0
  %6483 = vmatprep.subr.mxu0 0.0
  %6484 = vmatpush2.xpose.msra.mxu0 0.0
  %6485 = vmatprep.subr.mxu0 0.0
  %6486 = vmatpush2.xpose.msra.mxu0 0.0
  %6487 = vmatprep.subr.mxu0 0.0
  %6488 = vmatpush2.xpose.msra.mxu0 0.0
  %6489 = vmatprep.subr.mxu0 0.0
  %6490 = vmatpush2.xpose.msra.mxu0 0.0
  %6491 = vmatprep.mubr.f32.mxu0 0.0
  %6492 = vmatmul.mubr.f32.gmra.mxu0 %v6423
  %v6493 = vpop.f32.mrf.mxu0
  %v6494 = vadd.f32 0.0, %v6493
  %v6495 = vpop.f32.mrf.mxu0
  %6496 = vdwg.mxu0
  %6497 = vrot.lane.b32.xlu0 %v5750, 112
  %v6498 = vpop.permute.xlu0 %6497
  %6499 = vrot.lane.b32.xlu0 %v5750, 80
  %v6500 = vpop.permute.xlu0 %6499
  %v6501 = vsel %vm177, %v6498, 0
  %v6503 = vsel %vm177, %v6500, 0
  %6505 = vmatprep.subr.mxu0 0.0
  %6506 = vmatpush1.xpose.msra.mxu0 0.0
  %6507 = vmatprep.subr.mxu0 0.0
  %6508 = vmatpush1.xpose.msra.mxu0 0.0
  %6509 = vmatprep.subr.mxu0 0.0
  %6510 = vmatpush1.xpose.msra.mxu0 0.0
  %6511 = vmatprep.subr.mxu0 0.0
  %6512 = vmatpush1.xpose.msra.mxu0 0.0
  %6513 = vmatprep.subr.mxu0 0.0
  %6514 = vmatpush1.xpose.msra.mxu0 0.0
  %6515 = vmatprep.subr.mxu0 0.0
  %6516 = vmatpush1.xpose.msra.mxu0 0.0
  %6517 = vmatprep.subr.mxu0 0.0
  %6518 = vmatpush1.xpose.msra.mxu0 0.0
  %6519 = vmatprep.subr.mxu0 0.0
  %6520 = vmatpush1.xpose.msra.mxu0 0.0
  %6521 = vmatprep.subr.mxu0 0.0
  %6522 = vmatpush1.xpose.msra.mxu0 0.0
  %6523 = vmatprep.subr.mxu0 0.0
  %6524 = vmatpush1.xpose.msra.mxu0 0.0
  %6525 = vmatprep.subr.mxu0 0.0
  %6526 = vmatpush1.xpose.msra.mxu0 0.0
  %6527 = vmatprep.subr.mxu0 0.0
  %6528 = vmatpush1.xpose.msra.mxu0 0.0
  %6529 = vmatprep.subr.mxu0 0.0
  %6530 = vmatpush1.xpose.msra.mxu0 0.0
  %6531 = vmatprep.subr.mxu0 0.0
  %6532 = vmatpush1.xpose.msra.mxu0 0.0
  %6533 = vmatprep.subr.mxu0 0.0
  %6534 = vmatpush1.xpose.msra.mxu0 0.0
  %6535 = vmatprep.subr.mxu0 0.0
  %6536 = vmatpush1.xpose.msra.mxu0 %v6503
  %6537 = vmatprep.subr.mxu0 0.0
  %6538 = vmatpush2.xpose.msra.mxu0 0.0
  %6539 = vmatprep.subr.mxu0 0.0
  %6540 = vmatpush2.xpose.msra.mxu0 0.0
  %6541 = vmatprep.subr.mxu0 0.0
  %6542 = vmatpush2.xpose.msra.mxu0 0.0
  %6543 = vmatprep.subr.mxu0 0.0
  %6544 = vmatpush2.xpose.msra.mxu0 0.0
  %6545 = vmatprep.subr.mxu0 0.0
  %6546 = vmatpush2.xpose.msra.mxu0 0.0
  %6547 = vmatprep.subr.mxu0 0.0
  %6548 = vmatpush2.xpose.msra.mxu0 0.0
  %6549 = vmatprep.subr.mxu0 0.0
  %6550 = vmatpush2.xpose.msra.mxu0 0.0
  %6551 = vmatprep.subr.mxu0 0.0
  %6552 = vmatpush2.xpose.msra.mxu0 0.0
  %6553 = vmatprep.subr.mxu0 0.0
  %6554 = vmatpush2.xpose.msra.mxu0 0.0
  %6555 = vmatprep.subr.mxu0 0.0
  %6556 = vmatpush2.xpose.msra.mxu0 0.0
  %6557 = vmatprep.subr.mxu0 0.0
  %6558 = vmatpush2.xpose.msra.mxu0 0.0
  %6559 = vmatprep.subr.mxu0 0.0
  %6560 = vmatpush2.xpose.msra.mxu0 0.0
  %6561 = vmatprep.subr.mxu0 0.0
  %6562 = vmatpush2.xpose.msra.mxu0 0.0
  %6563 = vmatprep.subr.mxu0 0.0
  %6564 = vmatpush2.xpose.msra.mxu0 0.0
  %6565 = vmatprep.subr.mxu0 0.0
  %6566 = vmatpush2.xpose.msra.mxu0 0.0
  %6567 = vmatprep.subr.mxu0 0.0
  %6568 = vmatpush2.xpose.msra.mxu0 0.0
  %6569 = vmatprep.mubr.f32.mxu0 0.0
  %6570 = vmatmul.mubr.f32.gmra.mxu0 %v6501
  %v6571 = vpop.f32.mrf.mxu0
  %v6572 = vadd.f32 0.0, %v6571
  %v6573 = vpop.f32.mrf.mxu0
  %6574 = vdwg.mxu0
  %v6575 = vmul.f32 %v6494, 0.35355338
  %v6576 = vmul.f32 %v6572, 0.35355338
  %v6577 = vadd.f32 %v6575, %v334
  %v6578 = vadd.f32 %v6576, %v338
  %v6579 = vsel %vm177, %v6577, -inf
  %6580 = vmax.xlane.f32.xlu0 %v6579
  %v6581 = vpop.xlane.xlu0 %6580
  %v6582 = vsel %vm177, %v6578, -inf
  %6583 = vmax.xlane.f32.xlu0 %v6582
  %v6584 = vpop.xlane.xlu0 %6583
  %v6585 = vsub.f32 %v6577, %v6581
  %v6586 = vsub.f32 %v6578, %v6584
  %v6587 = vmul.f32 %v6585, 1.442695
  %v6588 = vpow.pop %v6587
  %v6589 = vmul.f32 %v6586, 1.442695
  %v6590 = vpow.pop %v6589
  %v6591 = vsel %vm177, %v6588, 0.0
  %6592 = vadd.xlane.f32.xlu0 %v6591
  %v6593 = vpop.xlane.xlu0 %6592
  %v6594 = vsel %vm177, %v6590, 0.0
  %6595 = vadd.xlane.f32.xlu0 %v6594
  %v6596 = vpop.xlane.xlu0 %6595
  %v6597 = vrcp.pop %v6593
  %v6598 = vrcp.pop %v6596
  %v6599 = vmul.f32 %v6588, %v6597
  %v6600 = vmul.f32 %v6590, %v6598
  %6601 = vrot.lane.b32.xlu0 %v5745, 48
  %v6602 = vpop.permute.xlu0 %6601
  %v6605 = vsel %vm177, %v6599, 0
  %6607 = vmatprep.subr.mxu0 0.0
  %6608 = vmatpush1.msra.mxu0 0.0
  %6609 = vmatprep.subr.mxu0 0.0
  %6610 = vmatpush1.msra.mxu0 0.0
  %6611 = vmatprep.subr.mxu0 0.0
  %6612 = vmatpush1.msra.mxu0 0.0
  %6613 = vmatprep.subr.mxu0 0.0
  %6614 = vmatpush1.msra.mxu0 0.0
  %6615 = vmatprep.subr.mxu0 0.0
  %6616 = vmatpush1.msra.mxu0 0.0
  %6617 = vmatprep.subr.mxu0 0.0
  %6618 = vmatpush1.msra.mxu0 0.0
  %6619 = vmatprep.subr.mxu0 0.0
  %6620 = vmatpush1.msra.mxu0 0.0
  %6621 = vmatprep.subr.mxu0 0.0
  %6622 = vmatpush1.msra.mxu0 0.0
  %6623 = vmatprep.subr.mxu0 0.0
  %6624 = vmatpush1.msra.mxu0 0.0
  %6625 = vmatprep.subr.mxu0 0.0
  %6626 = vmatpush1.msra.mxu0 0.0
  %6627 = vmatprep.subr.mxu0 0.0
  %6628 = vmatpush1.msra.mxu0 0.0
  %6629 = vmatprep.subr.mxu0 0.0
  %6630 = vmatpush1.msra.mxu0 0.0
  %6631 = vmatprep.subr.mxu0 0.0
  %6632 = vmatpush1.msra.mxu0 0.0
  %6633 = vmatprep.subr.mxu0 0.0
  %6634 = vmatpush1.msra.mxu0 0.0
  %6635 = vmatprep.subr.mxu0 0.0
  %6636 = vmatpush1.msra.mxu0 0.0
  %6637 = vmatprep.subr.mxu0 0.0
  %6638 = vmatpush1.msra.mxu0 %v6602
  %6639 = vmatprep.subr.mxu0 0.0
  %6640 = vmatpush2.msra.mxu0 0.0
  %6641 = vmatprep.subr.mxu0 0.0
  %6642 = vmatpush2.msra.mxu0 0.0
  %6643 = vmatprep.subr.mxu0 0.0
  %6644 = vmatpush2.msra.mxu0 0.0
  %6645 = vmatprep.subr.mxu0 0.0
  %6646 = vmatpush2.msra.mxu0 0.0
  %6647 = vmatprep.subr.mxu0 0.0
  %6648 = vmatpush2.msra.mxu0 0.0
  %6649 = vmatprep.subr.mxu0 0.0
  %6650 = vmatpush2.msra.mxu0 0.0
  %6651 = vmatprep.subr.mxu0 0.0
  %6652 = vmatpush2.msra.mxu0 0.0
  %6653 = vmatprep.subr.mxu0 0.0
  %6654 = vmatpush2.msra.mxu0 0.0
  %6655 = vmatprep.subr.mxu0 0.0
  %6656 = vmatpush2.msra.mxu0 0.0
  %6657 = vmatprep.subr.mxu0 0.0
  %6658 = vmatpush2.msra.mxu0 0.0
  %6659 = vmatprep.subr.mxu0 0.0
  %6660 = vmatpush2.msra.mxu0 0.0
  %6661 = vmatprep.subr.mxu0 0.0
  %6662 = vmatpush2.msra.mxu0 0.0
  %6663 = vmatprep.subr.mxu0 0.0
  %6664 = vmatpush2.msra.mxu0 0.0
  %6665 = vmatprep.subr.mxu0 0.0
  %6666 = vmatpush2.msra.mxu0 0.0
  %6667 = vmatprep.subr.mxu0 0.0
  %6668 = vmatpush2.msra.mxu0 0.0
  %6669 = vmatprep.subr.mxu0 0.0
  %6670 = vmatpush2.msra.mxu0 0.0
  %6671 = vmatprep.mubr.f32.mxu0 0.0
  %6672 = vmatmul.mubr.f32.gmra.mxu0 %v6605
  %v6673 = vpop.f32.mrf.mxu0
  %v6674 = vadd.f32 0.0, %v6673
  %v6675 = vpop.f32.mrf.mxu0
  %6676 = vdwg.mxu0
  %6677 = vrot.lane.b32.xlu0 %v5750, 48
  %v6678 = vpop.permute.xlu0 %6677
  %v6681 = vsel %vm177, %v6600, 0
  %6683 = vmatprep.subr.mxu0 0.0
  %6684 = vmatpush1.msra.mxu0 0.0
  %6685 = vmatprep.subr.mxu0 0.0
  %6686 = vmatpush1.msra.mxu0 0.0
  %6687 = vmatprep.subr.mxu0 0.0
  %6688 = vmatpush1.msra.mxu0 0.0
  %6689 = vmatprep.subr.mxu0 0.0
  %6690 = vmatpush1.msra.mxu0 0.0
  %6691 = vmatprep.subr.mxu0 0.0
  %6692 = vmatpush1.msra.mxu0 0.0
  %6693 = vmatprep.subr.mxu0 0.0
  %6694 = vmatpush1.msra.mxu0 0.0
  %6695 = vmatprep.subr.mxu0 0.0
  %6696 = vmatpush1.msra.mxu0 0.0
  %6697 = vmatprep.subr.mxu0 0.0
  %6698 = vmatpush1.msra.mxu0 0.0
  %6699 = vmatprep.subr.mxu0 0.0
  %6700 = vmatpush1.msra.mxu0 0.0
  %6701 = vmatprep.subr.mxu0 0.0
  %6702 = vmatpush1.msra.mxu0 0.0
  %6703 = vmatprep.subr.mxu0 0.0
  %6704 = vmatpush1.msra.mxu0 0.0
  %6705 = vmatprep.subr.mxu0 0.0
  %6706 = vmatpush1.msra.mxu0 0.0
  %6707 = vmatprep.subr.mxu0 0.0
  %6708 = vmatpush1.msra.mxu0 0.0
  %6709 = vmatprep.subr.mxu0 0.0
  %6710 = vmatpush1.msra.mxu0 0.0
  %6711 = vmatprep.subr.mxu0 0.0
  %6712 = vmatpush1.msra.mxu0 0.0
  %6713 = vmatprep.subr.mxu0 0.0
  %6714 = vmatpush1.msra.mxu0 %v6678
  %6715 = vmatprep.subr.mxu0 0.0
  %6716 = vmatpush2.msra.mxu0 0.0
  %6717 = vmatprep.subr.mxu0 0.0
  %6718 = vmatpush2.msra.mxu0 0.0
  %6719 = vmatprep.subr.mxu0 0.0
  %6720 = vmatpush2.msra.mxu0 0.0
  %6721 = vmatprep.subr.mxu0 0.0
  %6722 = vmatpush2.msra.mxu0 0.0
  %6723 = vmatprep.subr.mxu0 0.0
  %6724 = vmatpush2.msra.mxu0 0.0
  %6725 = vmatprep.subr.mxu0 0.0
  %6726 = vmatpush2.msra.mxu0 0.0
  %6727 = vmatprep.subr.mxu0 0.0
  %6728 = vmatpush2.msra.mxu0 0.0
  %6729 = vmatprep.subr.mxu0 0.0
  %6730 = vmatpush2.msra.mxu0 0.0
  %6731 = vmatprep.subr.mxu0 0.0
  %6732 = vmatpush2.msra.mxu0 0.0
  %6733 = vmatprep.subr.mxu0 0.0
  %6734 = vmatpush2.msra.mxu0 0.0
  %6735 = vmatprep.subr.mxu0 0.0
  %6736 = vmatpush2.msra.mxu0 0.0
  %6737 = vmatprep.subr.mxu0 0.0
  %6738 = vmatpush2.msra.mxu0 0.0
  %6739 = vmatprep.subr.mxu0 0.0
  %6740 = vmatpush2.msra.mxu0 0.0
  %6741 = vmatprep.subr.mxu0 0.0
  %6742 = vmatpush2.msra.mxu0 0.0
  %6743 = vmatprep.subr.mxu0 0.0
  %6744 = vmatpush2.msra.mxu0 0.0
  %6745 = vmatprep.subr.mxu0 0.0
  %6746 = vmatpush2.msra.mxu0 0.0
  %6747 = vmatprep.mubr.f32.mxu0 0.0
  %6748 = vmatmul.mubr.f32.gmra.mxu0 %v6681
  %v6749 = vpop.f32.mrf.mxu0
  %v6750 = vadd.f32 0.0, %v6749
  %v6751 = vpop.f32.mrf.mxu0
  %6752 = vdwg.mxu0
  %6753 = vrot.lane.b32.xlu0 %v5745, 104
  %v6754 = vpop.permute.xlu0 %6753
  %6755 = vrot.lane.b32.xlu0 %v5745, 72
  %v6756 = vpop.permute.xlu0 %6755
  %v6757 = vsel %vm177, %v6754, 0
  %v6759 = vsel %vm177, %v6756, 0
  %6761 = vmatprep.subr.mxu0 0.0
  %6762 = vmatpush1.xpose.msra.mxu0 0.0
  %6763 = vmatprep.subr.mxu0 0.0
  %6764 = vmatpush1.xpose.msra.mxu0 0.0
  %6765 = vmatprep.subr.mxu0 0.0
  %6766 = vmatpush1.xpose.msra.mxu0 0.0
  %6767 = vmatprep.subr.mxu0 0.0
  %6768 = vmatpush1.xpose.msra.mxu0 0.0
  %6769 = vmatprep.subr.mxu0 0.0
  %6770 = vmatpush1.xpose.msra.mxu0 0.0
  %6771 = vmatprep.subr.mxu0 0.0
  %6772 = vmatpush1.xpose.msra.mxu0 0.0
  %6773 = vmatprep.subr.mxu0 0.0
  %6774 = vmatpush1.xpose.msra.mxu0 0.0
  %6775 = vmatprep.subr.mxu0 0.0
  %6776 = vmatpush1.xpose.msra.mxu0 0.0
  %6777 = vmatprep.subr.mxu0 0.0
  %6778 = vmatpush1.xpose.msra.mxu0 0.0
  %6779 = vmatprep.subr.mxu0 0.0
  %6780 = vmatpush1.xpose.msra.mxu0 0.0
  %6781 = vmatprep.subr.mxu0 0.0
  %6782 = vmatpush1.xpose.msra.mxu0 0.0
  %6783 = vmatprep.subr.mxu0 0.0
  %6784 = vmatpush1.xpose.msra.mxu0 0.0
  %6785 = vmatprep.subr.mxu0 0.0
  %6786 = vmatpush1.xpose.msra.mxu0 0.0
  %6787 = vmatprep.subr.mxu0 0.0
  %6788 = vmatpush1.xpose.msra.mxu0 0.0
  %6789 = vmatprep.subr.mxu0 0.0
  %6790 = vmatpush1.xpose.msra.mxu0 0.0
  %6791 = vmatprep.subr.mxu0 0.0
  %6792 = vmatpush1.xpose.msra.mxu0 %v6759
  %6793 = vmatprep.subr.mxu0 0.0
  %6794 = vmatpush2.xpose.msra.mxu0 0.0
  %6795 = vmatprep.subr.mxu0 0.0
  %6796 = vmatpush2.xpose.msra.mxu0 0.0
  %6797 = vmatprep.subr.mxu0 0.0
  %6798 = vmatpush2.xpose.msra.mxu0 0.0
  %6799 = vmatprep.subr.mxu0 0.0
  %6800 = vmatpush2.xpose.msra.mxu0 0.0
  %6801 = vmatprep.subr.mxu0 0.0
  %6802 = vmatpush2.xpose.msra.mxu0 0.0
  %6803 = vmatprep.subr.mxu0 0.0
  %6804 = vmatpush2.xpose.msra.mxu0 0.0
  %6805 = vmatprep.subr.mxu0 0.0
  %6806 = vmatpush2.xpose.msra.mxu0 0.0
  %6807 = vmatprep.subr.mxu0 0.0
  %6808 = vmatpush2.xpose.msra.mxu0 0.0
  %6809 = vmatprep.subr.mxu0 0.0
  %6810 = vmatpush2.xpose.msra.mxu0 0.0
  %6811 = vmatprep.subr.mxu0 0.0
  %6812 = vmatpush2.xpose.msra.mxu0 0.0
  %6813 = vmatprep.subr.mxu0 0.0
  %6814 = vmatpush2.xpose.msra.mxu0 0.0
  %6815 = vmatprep.subr.mxu0 0.0
  %6816 = vmatpush2.xpose.msra.mxu0 0.0
  %6817 = vmatprep.subr.mxu0 0.0
  %6818 = vmatpush2.xpose.msra.mxu0 0.0
  %6819 = vmatprep.subr.mxu0 0.0
  %6820 = vmatpush2.xpose.msra.mxu0 0.0
  %6821 = vmatprep.subr.mxu0 0.0
  %6822 = vmatpush2.xpose.msra.mxu0 0.0
  %6823 = vmatprep.subr.mxu0 0.0
  %6824 = vmatpush2.xpose.msra.mxu0 0.0
  %6825 = vmatprep.mubr.f32.mxu0 0.0
  %6826 = vmatmul.mubr.f32.gmra.mxu0 %v6757
  %v6827 = vpop.f32.mrf.mxu0
  %v6828 = vadd.f32 0.0, %v6827
  %v6829 = vpop.f32.mrf.mxu0
  %6830 = vdwg.mxu0
  %6831 = vrot.lane.b32.xlu0 %v5750, 104
  %v6832 = vpop.permute.xlu0 %6831
  %6833 = vrot.lane.b32.xlu0 %v5750, 72
  %v6834 = vpop.permute.xlu0 %6833
  %v6835 = vsel %vm177, %v6832, 0
  %v6837 = vsel %vm177, %v6834, 0
  %6839 = vmatprep.subr.mxu0 0.0
  %6840 = vmatpush1.xpose.msra.mxu0 0.0
  %6841 = vmatprep.subr.mxu0 0.0
  %6842 = vmatpush1.xpose.msra.mxu0 0.0
  %6843 = vmatprep.subr.mxu0 0.0
  %6844 = vmatpush1.xpose.msra.mxu0 0.0
  %6845 = vmatprep.subr.mxu0 0.0
  %6846 = vmatpush1.xpose.msra.mxu0 0.0
  %6847 = vmatprep.subr.mxu0 0.0
  %6848 = vmatpush1.xpose.msra.mxu0 0.0
  %6849 = vmatprep.subr.mxu0 0.0
  %6850 = vmatpush1.xpose.msra.mxu0 0.0
  %6851 = vmatprep.subr.mxu0 0.0
  %6852 = vmatpush1.xpose.msra.mxu0 0.0
  %6853 = vmatprep.subr.mxu0 0.0
  %6854 = vmatpush1.xpose.msra.mxu0 0.0
  %6855 = vmatprep.subr.mxu0 0.0
  %6856 = vmatpush1.xpose.msra.mxu0 0.0
  %6857 = vmatprep.subr.mxu0 0.0
  %6858 = vmatpush1.xpose.msra.mxu0 0.0
  %6859 = vmatprep.subr.mxu0 0.0
  %6860 = vmatpush1.xpose.msra.mxu0 0.0
  %6861 = vmatprep.subr.mxu0 0.0
  %6862 = vmatpush1.xpose.msra.mxu0 0.0
  %6863 = vmatprep.subr.mxu0 0.0
  %6864 = vmatpush1.xpose.msra.mxu0 0.0
  %6865 = vmatprep.subr.mxu0 0.0
  %6866 = vmatpush1.xpose.msra.mxu0 0.0
  %6867 = vmatprep.subr.mxu0 0.0
  %6868 = vmatpush1.xpose.msra.mxu0 0.0
  %6869 = vmatprep.subr.mxu0 0.0
  %6870 = vmatpush1.xpose.msra.mxu0 %v6837
  %6871 = vmatprep.subr.mxu0 0.0
  %6872 = vmatpush2.xpose.msra.mxu0 0.0
  %6873 = vmatprep.subr.mxu0 0.0
  %6874 = vmatpush2.xpose.msra.mxu0 0.0
  %6875 = vmatprep.subr.mxu0 0.0
  %6876 = vmatpush2.xpose.msra.mxu0 0.0
  %6877 = vmatprep.subr.mxu0 0.0
  %6878 = vmatpush2.xpose.msra.mxu0 0.0
  %6879 = vmatprep.subr.mxu0 0.0
  %6880 = vmatpush2.xpose.msra.mxu0 0.0
  %6881 = vmatprep.subr.mxu0 0.0
  %6882 = vmatpush2.xpose.msra.mxu0 0.0
  %6883 = vmatprep.subr.mxu0 0.0
  %6884 = vmatpush2.xpose.msra.mxu0 0.0
  %6885 = vmatprep.subr.mxu0 0.0
  %6886 = vmatpush2.xpose.msra.mxu0 0.0
  %6887 = vmatprep.subr.mxu0 0.0
  %6888 = vmatpush2.xpose.msra.mxu0 0.0
  %6889 = vmatprep.subr.mxu0 0.0
  %6890 = vmatpush2.xpose.msra.mxu0 0.0
  %6891 = vmatprep.subr.mxu0 0.0
  %6892 = vmatpush2.xpose.msra.mxu0 0.0
  %6893 = vmatprep.subr.mxu0 0.0
  %6894 = vmatpush2.xpose.msra.mxu0 0.0
  %6895 = vmatprep.subr.mxu0 0.0
  %6896 = vmatpush2.xpose.msra.mxu0 0.0
  %6897 = vmatprep.subr.mxu0 0.0
  %6898 = vmatpush2.xpose.msra.mxu0 0.0
  %6899 = vmatprep.subr.mxu0 0.0
  %6900 = vmatpush2.xpose.msra.mxu0 0.0
  %6901 = vmatprep.subr.mxu0 0.0
  %6902 = vmatpush2.xpose.msra.mxu0 0.0
  %6903 = vmatprep.mubr.f32.mxu0 0.0
  %6904 = vmatmul.mubr.f32.gmra.mxu0 %v6835
  %v6905 = vpop.f32.mrf.mxu0
  %v6906 = vadd.f32 0.0, %v6905
  %v6907 = vpop.f32.mrf.mxu0
  %6908 = vdwg.mxu0
  %v6909 = vmul.f32 %v6828, 0.35355338
  %v6910 = vmul.f32 %v6906, 0.35355338
  %v6911 = vadd.f32 %v6909, %v334
  %v6912 = vadd.f32 %v6910, %v338
  %v6913 = vsel %vm177, %v6911, -inf
  %6914 = vmax.xlane.f32.xlu0 %v6913
  %v6915 = vpop.xlane.xlu0 %6914
  %v6916 = vsel %vm177, %v6912, -inf
  %6917 = vmax.xlane.f32.xlu0 %v6916
  %v6918 = vpop.xlane.xlu0 %6917
  %v6919 = vsub.f32 %v6911, %v6915
  %v6920 = vsub.f32 %v6912, %v6918
  %v6921 = vmul.f32 %v6919, 1.442695
  %v6922 = vpow.pop %v6921
  %v6923 = vmul.f32 %v6920, 1.442695
  %v6924 = vpow.pop %v6923
  %v6925 = vsel %vm177, %v6922, 0.0
  %6926 = vadd.xlane.f32.xlu0 %v6925
  %v6927 = vpop.xlane.xlu0 %6926
  %v6928 = vsel %vm177, %v6924, 0.0
  %6929 = vadd.xlane.f32.xlu0 %v6928
  %v6930 = vpop.xlane.xlu0 %6929
  %v6931 = vrcp.pop %v6927
  %v6932 = vrcp.pop %v6930
  %v6933 = vmul.f32 %v6922, %v6931
  %v6934 = vmul.f32 %v6924, %v6932
  %6935 = vrot.lane.b32.xlu0 %v5745, 40
  %v6936 = vpop.permute.xlu0 %6935
  %v6939 = vsel %vm177, %v6933, 0
  %6941 = vmatprep.subr.mxu0 0.0
  %6942 = vmatpush1.msra.mxu0 0.0
  %6943 = vmatprep.subr.mxu0 0.0
  %6944 = vmatpush1.msra.mxu0 0.0
  %6945 = vmatprep.subr.mxu0 0.0
  %6946 = vmatpush1.msra.mxu0 0.0
  %6947 = vmatprep.subr.mxu0 0.0
  %6948 = vmatpush1.msra.mxu0 0.0
  %6949 = vmatprep.subr.mxu0 0.0
  %6950 = vmatpush1.msra.mxu0 0.0
  %6951 = vmatprep.subr.mxu0 0.0
  %6952 = vmatpush1.msra.mxu0 0.0
  %6953 = vmatprep.subr.mxu0 0.0
  %6954 = vmatpush1.msra.mxu0 0.0
  %6955 = vmatprep.subr.mxu0 0.0
  %6956 = vmatpush1.msra.mxu0 0.0
  %6957 = vmatprep.subr.mxu0 0.0
  %6958 = vmatpush1.msra.mxu0 0.0
  %6959 = vmatprep.subr.mxu0 0.0
  %6960 = vmatpush1.msra.mxu0 0.0
  %6961 = vmatprep.subr.mxu0 0.0
  %6962 = vmatpush1.msra.mxu0 0.0
  %6963 = vmatprep.subr.mxu0 0.0
  %6964 = vmatpush1.msra.mxu0 0.0
  %6965 = vmatprep.subr.mxu0 0.0
  %6966 = vmatpush1.msra.mxu0 0.0
  %6967 = vmatprep.subr.mxu0 0.0
  %6968 = vmatpush1.msra.mxu0 0.0
  %6969 = vmatprep.subr.mxu0 0.0
  %6970 = vmatpush1.msra.mxu0 0.0
  %6971 = vmatprep.subr.mxu0 0.0
  %6972 = vmatpush1.msra.mxu0 %v6936
  %6973 = vmatprep.subr.mxu0 0.0
  %6974 = vmatpush2.msra.mxu0 0.0
  %6975 = vmatprep.subr.mxu0 0.0
  %6976 = vmatpush2.msra.mxu0 0.0
  %6977 = vmatprep.subr.mxu0 0.0
  %6978 = vmatpush2.msra.mxu0 0.0
  %6979 = vmatprep.subr.mxu0 0.0
  %6980 = vmatpush2.msra.mxu0 0.0
  %6981 = vmatprep.subr.mxu0 0.0
  %6982 = vmatpush2.msra.mxu0 0.0
  %6983 = vmatprep.subr.mxu0 0.0
  %6984 = vmatpush2.msra.mxu0 0.0
  %6985 = vmatprep.subr.mxu0 0.0
  %6986 = vmatpush2.msra.mxu0 0.0
  %6987 = vmatprep.subr.mxu0 0.0
  %6988 = vmatpush2.msra.mxu0 0.0
  %6989 = vmatprep.subr.mxu0 0.0
  %6990 = vmatpush2.msra.mxu0 0.0
  %6991 = vmatprep.subr.mxu0 0.0
  %6992 = vmatpush2.msra.mxu0 0.0
  %6993 = vmatprep.subr.mxu0 0.0
  %6994 = vmatpush2.msra.mxu0 0.0
  %6995 = vmatprep.subr.mxu0 0.0
  %6996 = vmatpush2.msra.mxu0 0.0
  %6997 = vmatprep.subr.mxu0 0.0
  %6998 = vmatpush2.msra.mxu0 0.0
  %6999 = vmatprep.subr.mxu0 0.0
  %7000 = vmatpush2.msra.mxu0 0.0
  %7001 = vmatprep.subr.mxu0 0.0
  %7002 = vmatpush2.msra.mxu0 0.0
  %7003 = vmatprep.subr.mxu0 0.0
  %7004 = vmatpush2.msra.mxu0 0.0
  %7005 = vmatprep.mubr.f32.mxu0 0.0
  %7006 = vmatmul.mubr.f32.gmra.mxu0 %v6939
  %v7007 = vpop.f32.mrf.mxu0
  %v7008 = vadd.f32 0.0, %v7007
  %v7009 = vpop.f32.mrf.mxu0
  %7010 = vdwg.mxu0
  %7011 = vrot.lane.b32.xlu0 %v5750, 40
  %v7012 = vpop.permute.xlu0 %7011
  %v7015 = vsel %vm177, %v6934, 0
  %7017 = vmatprep.subr.mxu0 0.0
  %7018 = vmatpush1.msra.mxu0 0.0
  %7019 = vmatprep.subr.mxu0 0.0
  %7020 = vmatpush1.msra.mxu0 0.0
  %7021 = vmatprep.subr.mxu0 0.0
  %7022 = vmatpush1.msra.mxu0 0.0
  %7023 = vmatprep.subr.mxu0 0.0
  %7024 = vmatpush1.msra.mxu0 0.0
  %7025 = vmatprep.subr.mxu0 0.0
  %7026 = vmatpush1.msra.mxu0 0.0
  %7027 = vmatprep.subr.mxu0 0.0
  %7028 = vmatpush1.msra.mxu0 0.0
  %7029 = vmatprep.subr.mxu0 0.0
  %7030 = vmatpush1.msra.mxu0 0.0
  %7031 = vmatprep.subr.mxu0 0.0
  %7032 = vmatpush1.msra.mxu0 0.0
  %7033 = vmatprep.subr.mxu0 0.0
  %7034 = vmatpush1.msra.mxu0 0.0
  %7035 = vmatprep.subr.mxu0 0.0
  %7036 = vmatpush1.msra.mxu0 0.0
  %7037 = vmatprep.subr.mxu0 0.0
  %7038 = vmatpush1.msra.mxu0 0.0
  %7039 = vmatprep.subr.mxu0 0.0
  %7040 = vmatpush1.msra.mxu0 0.0
  %7041 = vmatprep.subr.mxu0 0.0
  %7042 = vmatpush1.msra.mxu0 0.0
  %7043 = vmatprep.subr.mxu0 0.0
  %7044 = vmatpush1.msra.mxu0 0.0
  %7045 = vmatprep.subr.mxu0 0.0
  %7046 = vmatpush1.msra.mxu0 0.0
  %7047 = vmatprep.subr.mxu0 0.0
  %7048 = vmatpush1.msra.mxu0 %v7012
  %7049 = vmatprep.subr.mxu0 0.0
  %7050 = vmatpush2.msra.mxu0 0.0
  %7051 = vmatprep.subr.mxu0 0.0
  %7052 = vmatpush2.msra.mxu0 0.0
  %7053 = vmatprep.subr.mxu0 0.0
  %7054 = vmatpush2.msra.mxu0 0.0
  %7055 = vmatprep.subr.mxu0 0.0
  %7056 = vmatpush2.msra.mxu0 0.0
  %7057 = vmatprep.subr.mxu0 0.0
  %7058 = vmatpush2.msra.mxu0 0.0
  %7059 = vmatprep.subr.mxu0 0.0
  %7060 = vmatpush2.msra.mxu0 0.0
  %7061 = vmatprep.subr.mxu0 0.0
  %7062 = vmatpush2.msra.mxu0 0.0
  %7063 = vmatprep.subr.mxu0 0.0
  %7064 = vmatpush2.msra.mxu0 0.0
  %7065 = vmatprep.subr.mxu0 0.0
  %7066 = vmatpush2.msra.mxu0 0.0
  %7067 = vmatprep.subr.mxu0 0.0
  %7068 = vmatpush2.msra.mxu0 0.0
  %7069 = vmatprep.subr.mxu0 0.0
  %7070 = vmatpush2.msra.mxu0 0.0
  %7071 = vmatprep.subr.mxu0 0.0
  %7072 = vmatpush2.msra.mxu0 0.0
  %7073 = vmatprep.subr.mxu0 0.0
  %7074 = vmatpush2.msra.mxu0 0.0
  %7075 = vmatprep.subr.mxu0 0.0
  %7076 = vmatpush2.msra.mxu0 0.0
  %7077 = vmatprep.subr.mxu0 0.0
  %7078 = vmatpush2.msra.mxu0 0.0
  %7079 = vmatprep.subr.mxu0 0.0
  %7080 = vmatpush2.msra.mxu0 0.0
  %7081 = vmatprep.mubr.f32.mxu0 0.0
  %7082 = vmatmul.mubr.f32.gmra.mxu0 %v7015
  %v7083 = vpop.f32.mrf.mxu0
  %v7084 = vadd.f32 0.0, %v7083
  %v7085 = vpop.f32.mrf.mxu0
  %7086 = vdwg.mxu0
  %7089 = vrot.lane.b32.xlu0 %v6340, 8
  %v7090 = vpop.permute.xlu0 %7089
  %7091 = vrot.lane.b32.xlu0 %v6416, 8
  %v7092 = vpop.permute.xlu0 %7091
  %7097 = vrot.lane.b32.xlu0 %v6674, 16
  %v7098 = vpop.permute.xlu0 %7097
  %7099 = vrot.lane.b32.xlu0 %v6750, 16
  %v7100 = vpop.permute.xlu0 %7099
  %7105 = vrot.lane.b32.xlu0 %v7008, 24
  %v7106 = vpop.permute.xlu0 %7105
  %7107 = vrot.lane.b32.xlu0 %v7084, 24
  %v7108 = vpop.permute.xlu0 %7107
  %v7111 = vsel %vm177, %v6006, %v7090
  %v7112 = vsel %vm177, %v6082, %v7092
  %v7113 = vsel %vm1545, %v7111, %v7098
  %v7114 = vsel %vm1545, %v7112, %v7100
  %v7115 = vsel %vm1548, %v7113, %v7106
  %v7116 = vsel %vm1548, %v7114, %v7108
  %s7117 = scalar_lea.vmem %s4, 96
  %v7118 = vld [vmem:[%s7117] sm:$0xff]
  %v7119 = vld [vmem:[%s7117 + $0x8] sm:$0xff]
  %v7120 = vld [vmem:[%s7117 + $0x10] sm:$0xff]
  %v7121 = vld [vmem:[%s7117 + $0x18] sm:$0xff]
  %s7122 = scalar_lea.vmem %s5, 3
  %v7123 = vld [vmem:[%s7122] sm:$0x1]
  %v7125 = vlaneseq
  %v7126 = vshrl.u32 %v7125, 7
  %v7127 = vsub.s32 0, %v7126
  %v7128 = vrot.slane %v7123, %v7127
  %v7131 = vsel %vm92, %v7115, 0
  %v7134 = vsel %vm92, %v7116, 0
  %7136 = vmatprep.subr.mxu0 0.0
  %7137 = vmatpush1.msra.mxu0 0.0
  %7138 = vmatprep.subr.mxu0 0.0
  %7139 = vmatpush1.msra.mxu0 0.0
  %7140 = vmatprep.subr.mxu0 0.0
  %7141 = vmatpush1.msra.mxu0 0.0
  %7142 = vmatprep.subr.mxu0 0.0
  %7143 = vmatpush1.msra.mxu0 0.0
  %7144 = vmatprep.subr.mxu0 0.0
  %7145 = vmatpush1.msra.mxu0 0.0
  %7146 = vmatprep.subr.mxu0 0.0
  %7147 = vmatpush1.msra.mxu0 0.0
  %7148 = vmatprep.subr.mxu0 0.0
  %7149 = vmatpush1.msra.mxu0 0.0
  %7150 = vmatprep.subr.mxu0 0.0
  %7151 = vmatpush1.msra.mxu0 0.0
  %7152 = vmatprep.subr.mxu0 0.0
  %7153 = vmatpush1.msra.mxu0 0.0
  %7154 = vmatprep.subr.mxu0 0.0
  %7155 = vmatpush1.msra.mxu0 0.0
  %7156 = vmatprep.subr.mxu0 0.0
  %7157 = vmatpush1.msra.mxu0 0.0
  %7158 = vmatprep.subr.mxu0 0.0
  %7159 = vmatpush1.msra.mxu0 0.0
  %7160 = vmatprep.subr.mxu0 0.0
  %7161 = vmatpush1.msra.mxu0 %v7121
  %7162 = vmatprep.subr.mxu0 0.0
  %7163 = vmatpush1.msra.mxu0 %v7120
  %7164 = vmatprep.subr.mxu0 0.0
  %7165 = vmatpush1.msra.mxu0 %v7119
  %7166 = vmatprep.subr.mxu0 0.0
  %7167 = vmatpush1.msra.mxu0 %v7118
  %7168 = vmatprep.subr.mxu0 0.0
  %7169 = vmatpush2.msra.mxu0 0.0
  %7170 = vmatprep.subr.mxu0 0.0
  %7171 = vmatpush2.msra.mxu0 0.0
  %7172 = vmatprep.subr.mxu0 0.0
  %7173 = vmatpush2.msra.mxu0 0.0
  %7174 = vmatprep.subr.mxu0 0.0
  %7175 = vmatpush2.msra.mxu0 0.0
  %7176 = vmatprep.subr.mxu0 0.0
  %7177 = vmatpush2.msra.mxu0 0.0
  %7178 = vmatprep.subr.mxu0 0.0
  %7179 = vmatpush2.msra.mxu0 0.0
  %7180 = vmatprep.subr.mxu0 0.0
  %7181 = vmatpush2.msra.mxu0 0.0
  %7182 = vmatprep.subr.mxu0 0.0
  %7183 = vmatpush2.msra.mxu0 0.0
  %7184 = vmatprep.subr.mxu0 0.0
  %7185 = vmatpush2.msra.mxu0 0.0
  %7186 = vmatprep.subr.mxu0 0.0
  %7187 = vmatpush2.msra.mxu0 0.0
  %7188 = vmatprep.subr.mxu0 0.0
  %7189 = vmatpush2.msra.mxu0 0.0
  %7190 = vmatprep.subr.mxu0 0.0
  %7191 = vmatpush2.msra.mxu0 0.0
  %7192 = vmatprep.subr.mxu0 0.0
  %7193 = vmatpush2.msra.mxu0 0.0
  %7194 = vmatprep.subr.mxu0 0.0
  %7195 = vmatpush2.msra.mxu0 0.0
  %7196 = vmatprep.subr.mxu0 0.0
  %7197 = vmatpush2.msra.mxu0 0.0
  %7198 = vmatprep.subr.mxu0 0.0
  %7199 = vmatpush2.msra.mxu0 0.0
  %7200 = vmatprep.mubr.f32.mxu0 0.0
  %7201 = vmatmul.mubr.f32.gmra.mxu0 %v7131
  %v7202 = vpop.f32.mrf.mxu0
  %v7203 = vadd.f32 %v7128, %v7202
  %v7204 = vpop.f32.mrf.mxu0
  %7205 = vmatprep.mubr.f32.mxu0 0.0
  %7206 = vmatmul.mubr.f32.gmra.mxu0 %v7134
  %v7207 = vpop.f32.mrf.mxu0
  %v7208 = vadd.f32 %v7128, %v7207
  %v7209 = vpop.f32.mrf.mxu0
  %7210 = vdwg.mxu0
  %v7211 = vadd.f32 %v5657, %v7203
  %v7212 = vadd.f32 %v5658, %v7208
  %s7213 = scalar_lea.vmem %s6, 3
  %v7214 = vld [vmem:[%s7213] sm:$0x1]
  %s7215 = scalar_lea.vmem %s7, 3
  %v7216 = vld [vmem:[%s7215] sm:$0x1]
  %v7217 = vsel %vm92, %v7211, 0.0
  %7218 = vadd.xlane.f32.xlu0 %v7217
  %v7219 = vpop.xlane.xlu0 %7218
  %v7220 = vsel %vm92, %v7212, 0.0
  %7221 = vadd.xlane.f32.xlu0 %v7220
  %v7222 = vpop.xlane.xlu0 %7221
  %v7223 = vmul.f32 %v7219, %v1653
  %v7224 = vmul.f32 %v7222, %v1653
  %v7225 = vsub.f32 %v7211, %v7223
  %v7226 = vsub.f32 %v7212, %v7224
  %v7227 = vmul.f32 %v7225, %v7225
  %v7228 = vmul.f32 %v7226, %v7226
  %v7229 = vsel %vm92, %v7227, 0.0
  %7230 = vadd.xlane.f32.xlu0 %v7229
  %v7231 = vpop.xlane.xlu0 %7230
  %v7232 = vsel %vm92, %v7228, 0.0
  %7233 = vadd.xlane.f32.xlu0 %v7232
  %v7234 = vpop.xlane.xlu0 %7233
  %v7235 = vmul.f32 %v7231, %v1653
  %v7236 = vmul.f32 %v7234, %v1653
  %v7237 = vadd.f32 %v7235, 1e-05
  %v7238 = vadd.f32 %v7236, 1e-05
  %v7239 = vrsqrt.pop %v7237
  %v7240 = vrsqrt.pop %v7238
  %v7241 = vmul.f32 %v7225, %v7239
  %v7242 = vmul.f32 %v7226, %v7240
  %v7244 = vlaneseq
  %v7245 = vshrl.u32 %v7244, 7
  %v7246 = vsub.s32 0, %v7245
  %v7247 = vrot.slane %v7214, %v7246
  %v7249 = vmul.f32 %v7241, %v7247
  %v7250 = vmul.f32 %v7242, %v7247
  %v7252 = vlaneseq
  %v7253 = vshrl.u32 %v7252, 7
  %v7254 = vsub.s32 0, %v7253
  %v7255 = vrot.slane %v7216, %v7254
  %v7257 = vadd.f32 %v7249, %v7255
  %v7258 = vadd.f32 %v7250, %v7255
  %s7259 = scalar_lea.vmem %s8, 96
  %v7260 = vld [vmem:[%s7259] sm:$0xff]
  %v7261 = vld [vmem:[%s7259 + $0x8] sm:$0xff]
  %v7262 = vld [vmem:[%s7259 + $0x10] sm:$0xff]
  %v7263 = vld [vmem:[%s7259 + $0x18] sm:$0xff]
  %s7264 = scalar_lea.vmem %s9, 3
  %v7265 = vld [vmem:[%s7264] sm:$0x1]
  %v7267 = vlaneseq
  %v7268 = vshrl.u32 %v7267, 7
  %v7269 = vsub.s32 0, %v7268
  %v7270 = vrot.slane %v7265, %v7269
  %v7273 = vsel %vm92, %v7257, 0
  %v7276 = vsel %vm92, %v7258, 0
  %7278 = vmatprep.subr.mxu0 0.0
  %7279 = vmatpush1.msra.mxu0 0.0
  %7280 = vmatprep.subr.mxu0 0.0
  %7281 = vmatpush1.msra.mxu0 0.0
  %7282 = vmatprep.subr.mxu0 0.0
  %7283 = vmatpush1.msra.mxu0 0.0
  %7284 = vmatprep.subr.mxu0 0.0
  %7285 = vmatpush1.msra.mxu0 0.0
  %7286 = vmatprep.subr.mxu0 0.0
  %7287 = vmatpush1.msra.mxu0 0.0
  %7288 = vmatprep.subr.mxu0 0.0
  %7289 = vmatpush1.msra.mxu0 0.0
  %7290 = vmatprep.subr.mxu0 0.0
  %7291 = vmatpush1.msra.mxu0 0.0
  %7292 = vmatprep.subr.mxu0 0.0
  %7293 = vmatpush1.msra.mxu0 0.0
  %7294 = vmatprep.subr.mxu0 0.0
  %7295 = vmatpush1.msra.mxu0 0.0
  %7296 = vmatprep.subr.mxu0 0.0
  %7297 = vmatpush1.msra.mxu0 0.0
  %7298 = vmatprep.subr.mxu0 0.0
  %7299 = vmatpush1.msra.mxu0 0.0
  %7300 = vmatprep.subr.mxu0 0.0
  %7301 = vmatpush1.msra.mxu0 0.0
  %7302 = vmatprep.subr.mxu0 0.0
  %7303 = vmatpush1.msra.mxu0 %v7263
  %7304 = vmatprep.subr.mxu0 0.0
  %7305 = vmatpush1.msra.mxu0 %v7262
  %7306 = vmatprep.subr.mxu0 0.0
  %7307 = vmatpush1.msra.mxu0 %v7261
  %7308 = vmatprep.subr.mxu0 0.0
  %7309 = vmatpush1.msra.mxu0 %v7260
  %7310 = vmatprep.subr.mxu0 0.0
  %7311 = vmatpush2.msra.mxu0 0.0
  %7312 = vmatprep.subr.mxu0 0.0
  %7313 = vmatpush2.msra.mxu0 0.0
  %7314 = vmatprep.subr.mxu0 0.0
  %7315 = vmatpush2.msra.mxu0 0.0
  %7316 = vmatprep.subr.mxu0 0.0
  %7317 = vmatpush2.msra.mxu0 0.0
  %7318 = vmatprep.subr.mxu0 0.0
  %7319 = vmatpush2.msra.mxu0 0.0
  %7320 = vmatprep.subr.mxu0 0.0
  %7321 = vmatpush2.msra.mxu0 0.0
  %7322 = vmatprep.subr.mxu0 0.0
  %7323 = vmatpush2.msra.mxu0 0.0
  %7324 = vmatprep.subr.mxu0 0.0
  %7325 = vmatpush2.msra.mxu0 0.0
  %7326 = vmatprep.subr.mxu0 0.0
  %7327 = vmatpush2.msra.mxu0 0.0
  %7328 = vmatprep.subr.mxu0 0.0
  %7329 = vmatpush2.msra.mxu0 0.0
  %7330 = vmatprep.subr.mxu0 0.0
  %7331 = vmatpush2.msra.mxu0 0.0
  %7332 = vmatprep.subr.mxu0 0.0
  %7333 = vmatpush2.msra.mxu0 0.0
  %7334 = vmatprep.subr.mxu0 0.0
  %7335 = vmatpush2.msra.mxu0 0.0
  %7336 = vmatprep.subr.mxu0 0.0
  %7337 = vmatpush2.msra.mxu0 0.0
  %7338 = vmatprep.subr.mxu0 0.0
  %7339 = vmatpush2.msra.mxu0 0.0
  %7340 = vmatprep.subr.mxu0 0.0
  %7341 = vmatpush2.msra.mxu0 0.0
  %7342 = vmatprep.mubr.f32.mxu0 0.0
  %7343 = vmatmul.mubr.f32.gmra.mxu0 %v7273
  %v7344 = vpop.f32.mrf.mxu0
  %v7345 = vadd.f32 %v7270, %v7344
  %v7346 = vpop.f32.mrf.mxu0
  %7347 = vmatprep.mubr.f32.mxu0 0.0
  %7348 = vmatmul.mubr.f32.gmra.mxu0 %v7276
  %v7349 = vpop.f32.mrf.mxu0
  %v7350 = vadd.f32 %v7270, %v7349
  %v7351 = vpop.f32.mrf.mxu0
  %7352 = vdwg.mxu0
  %v7353 = vmul.f32 %v7345, 0.5
  %v7354 = vmul.f32 %v7350, 0.5
  %v7355 = vmul.f32 %v7345, 0.044715
  %v7356 = vmul.f32 %v7350, 0.044715
  %v7357 = vmul.f32 %v7355, %v7345
  %v7358 = vmul.f32 %v7356, %v7350
  %v7359 = vmul.f32 %v7357, %v7345
  %v7360 = vmul.f32 %v7358, %v7350
  %v7361 = vadd.f32 %v7345, %v7359
  %v7362 = vadd.f32 %v7350, %v7360
  %v7363 = vmul.f32 %v7361, 0.7978846
  %v7364 = vmul.f32 %v7362, 0.7978846
  %v7365 = vtanh.pop %v7363
  %v7366 = vtanh.pop %v7364
  %v7367 = vadd.f32 %v7365, 1.0
  %v7368 = vadd.f32 %v7366, 1.0
  %v7369 = vmul.f32 %v7353, %v7367
  %v7370 = vmul.f32 %v7354, %v7368
  %s7371 = scalar_lea.vmem %s10, 192
  %v7372 = vld [vmem:[%s7371] sm:$0xff]
  %v7373 = vld [vmem:[%s7371 + $0x8] sm:$0xff]
  %v7374 = vld [vmem:[%s7371 + $0x10] sm:$0xff]
  %v7375 = vld [vmem:[%s7371 + $0x18] sm:$0xff]
  %v7376 = vld [vmem:[%s7371 + $0x20] sm:$0xff]
  %v7377 = vld [vmem:[%s7371 + $0x28] sm:$0xff]
  %v7378 = vld [vmem:[%s7371 + $0x30] sm:$0xff]
  %v7379 = vld [vmem:[%s7371 + $0x38] sm:$0xff]
  %s7380 = scalar_lea.vmem %s11, 3
  %v7381 = vld [vmem:[%s7380] sm:$0x1]
  %v7383 = vlaneseq
  %v7384 = vshrl.u32 %v7383, 7
  %v7385 = vsub.s32 0, %v7384
  %v7386 = vrot.slane %v7381, %v7385
  %v7389 = vsel %vm1815, %v7369, 0
  %v7392 = vsel %vm1815, %v7370, 0
  %7394 = vmatprep.subr.mxu0 0.0
  %7395 = vmatpush1.msra.mxu0 0.0
  %7396 = vmatprep.subr.mxu0 0.0
  %7397 = vmatpush1.msra.mxu0 0.0
  %7398 = vmatprep.subr.mxu0 0.0
  %7399 = vmatpush1.msra.mxu0 0.0
  %7400 = vmatprep.subr.mxu0 0.0
  %7401 = vmatpush1.msra.mxu0 0.0
  %7402 = vmatprep.subr.mxu0 0.0
  %7403 = vmatpush1.msra.mxu0 0.0
  %7404 = vmatprep.subr.mxu0 0.0
  %7405 = vmatpush1.msra.mxu0 0.0
  %7406 = vmatprep.subr.mxu0 0.0
  %7407 = vmatpush1.msra.mxu0 0.0
  %7408 = vmatprep.subr.mxu0 0.0
  %7409 = vmatpush1.msra.mxu0 0.0
  %7410 = vmatprep.subr.mxu0 0.0
  %7411 = vmatpush1.msra.mxu0 %v7379
  %7412 = vmatprep.subr.mxu0 0.0
  %7413 = vmatpush1.msra.mxu0 %v7378
  %7414 = vmatprep.subr.mxu0 0.0
  %7415 = vmatpush1.msra.mxu0 %v7377
  %7416 = vmatprep.subr.mxu0 0.0
  %7417 = vmatpush1.msra.mxu0 %v7376
  %7418 = vmatprep.subr.mxu0 0.0
  %7419 = vmatpush1.msra.mxu0 %v7375
  %7420 = vmatprep.subr.mxu0 0.0
  %7421 = vmatpush1.msra.mxu0 %v7374
  %7422 = vmatprep.subr.mxu0 0.0
  %7423 = vmatpush1.msra.mxu0 %v7373
  %7424 = vmatprep.subr.mxu0 0.0
  %7425 = vmatpush1.msra.mxu0 %v7372
  %7426 = vmatprep.subr.mxu0 0.0
  %7427 = vmatpush2.msra.mxu0 0.0
  %7428 = vmatprep.subr.mxu0 0.0
  %7429 = vmatpush2.msra.mxu0 0.0
  %7430 = vmatprep.subr.mxu0 0.0
  %7431 = vmatpush2.msra.mxu0 0.0
  %7432 = vmatprep.subr.mxu0 0.0
  %7433 = vmatpush2.msra.mxu0 0.0
  %7434 = vmatprep.subr.mxu0 0.0
  %7435 = vmatpush2.msra.mxu0 0.0
  %7436 = vmatprep.subr.mxu0 0.0
  %7437 = vmatpush2.msra.mxu0 0.0
  %7438 = vmatprep.subr.mxu0 0.0
  %7439 = vmatpush2.msra.mxu0 0.0
  %7440 = vmatprep.subr.mxu0 0.0
  %7441 = vmatpush2.msra.mxu0 0.0
  %7442 = vmatprep.subr.mxu0 0.0
  %7443 = vmatpush2.msra.mxu0 0.0
  %7444 = vmatprep.subr.mxu0 0.0
  %7445 = vmatpush2.msra.mxu0 0.0
  %7446 = vmatprep.subr.mxu0 0.0
  %7447 = vmatpush2.msra.mxu0 0.0
  %7448 = vmatprep.subr.mxu0 0.0
  %7449 = vmatpush2.msra.mxu0 0.0
  %7450 = vmatprep.subr.mxu0 0.0
  %7451 = vmatpush2.msra.mxu0 0.0
  %7452 = vmatprep.subr.mxu0 0.0
  %7453 = vmatpush2.msra.mxu0 0.0
  %7454 = vmatprep.subr.mxu0 0.0
  %7455 = vmatpush2.msra.mxu0 0.0
  %7456 = vmatprep.subr.mxu0 0.0
  %7457 = vmatpush2.msra.mxu0 0.0
  %7458 = vmatprep.mubr.f32.mxu0 0.0
  %7459 = vmatmul.mubr.f32.gmra.mxu0 %v7389
  %v7460 = vpop.f32.mrf.mxu0
  %v7461 = vadd.f32 %v7386, %v7460
  %v7462 = vpop.f32.mrf.mxu0
  %7463 = vmatprep.mubr.f32.mxu0 0.0
  %7464 = vmatmul.mubr.f32.gmra.mxu0 %v7392
  %v7465 = vpop.f32.mrf.mxu0
  %v7466 = vadd.f32 %v7386, %v7465
  %v7467 = vpop.f32.mrf.mxu0
  %7468 = vdwg.mxu0
  %v7469 = vadd.f32 %v7257, %v7461
  %v7470 = vadd.f32 %v7258, %v7466
  %s7471 = scalar_lea.vmem %s12, 3
  %v7472 = vld [vmem:[%s7471] sm:$0x1]
  %s7473 = scalar_lea.vmem %s13, 3
  %v7474 = vld [vmem:[%s7473] sm:$0x1]
  %v7475 = vsel %vm92, %v7469, 0.0
  %7476 = vadd.xlane.f32.xlu0 %v7475
  %v7477 = vpop.xlane.xlu0 %7476
  %v7478 = vsel %vm92, %v7470, 0.0
  %7479 = vadd.xlane.f32.xlu0 %v7478
  %v7480 = vpop.xlane.xlu0 %7479
  %v7481 = vmul.f32 %v7477, %v1653
  %v7482 = vmul.f32 %v7480, %v1653
  %v7483 = vsub.f32 %v7469, %v7481
  %v7484 = vsub.f32 %v7470, %v7482
  %v7485 = vmul.f32 %v7483, %v7483
  %v7486 = vmul.f32 %v7484, %v7484
  %v7487 = vsel %vm92, %v7485, 0.0
  %7488 = vadd.xlane.f32.xlu0 %v7487
  %v7489 = vpop.xlane.xlu0 %7488
  %v7490 = vsel %vm92, %v7486, 0.0
  %7491 = vadd.xlane.f32.xlu0 %v7490
  %v7492 = vpop.xlane.xlu0 %7491
  %v7493 = vmul.f32 %v7489, %v1653
  %v7494 = vmul.f32 %v7492, %v1653
  %v7495 = vadd.f32 %v7493, 1e-05
  %v7496 = vadd.f32 %v7494, 1e-05
  %v7497 = vrsqrt.pop %v7495
  %v7498 = vrsqrt.pop %v7496
  %v7499 = vmul.f32 %v7483, %v7497
  %v7500 = vmul.f32 %v7484, %v7498
  %v7502 = vlaneseq
  %v7503 = vshrl.u32 %v7502, 7
  %v7504 = vsub.s32 0, %v7503
  %v7505 = vrot.slane %v7472, %v7504
  %v7507 = vmul.f32 %v7499, %v7505
  %v7508 = vmul.f32 %v7500, %v7505
  %v7510 = vlaneseq
  %v7511 = vshrl.u32 %v7510, 7
  %v7512 = vsub.s32 0, %v7511
  %v7513 = vrot.slane %v7474, %v7512
  %v7515 = vadd.f32 %v7507, %v7513
  %v7516 = vadd.f32 %v7508, %v7513
  %v7519 = vrot.slane %v7516, 7
  %vm7520 = vcmask 1041409
  %v7521 = vsel %vm7520, %v7519, %v7515
  %v7523 = vrot.slane %v5658, 7
  %v7524 = vsel %vm7520, %v7523, %v5657
  %7525 = vrot.lane.b32.xlu0 %v7524, 32
  %v7526 = vpop.permute.xlu0 %7525
  %v7528 = vsel %vm92, %v7521, %v7526
  %v7529 = vld [vmem:[%s14] sm:$0xff]
  %v7530 = vld [vmem:[%s14 + $0x8] sm:$0xff]
  %v7531 = vld [vmem:[%s14 + $0x10] sm:$0xff]
  %v7532 = vld [vmem:[%s14 + $0x18] sm:$0xff]
  %v7533 = vld [vmem:[%s14 + $0x20] sm:$0xff]
  %v7534 = vld [vmem:[%s14 + $0x28] sm:$0xff]
  %v7535 = vld [vmem:[%s14 + $0x30] sm:$0xff]
  %v7536 = vld [vmem:[%s14 + $0x38] sm:$0xff]
  %v7537 = vld [vmem:[#allocation2] sm:$0x1]
  %v7539 = vlaneseq
  %v7540 = vshrl.u32 %v7539, 7
  %v7541 = vsub.s32 0, %v7540
  %v7542 = vrot.slane %v7537, %v7541
  %v7545 = vsel %vm1815, %v7528, 0
  %7547 = vmatprep.subr.mxu0 0.0
  %7548 = vmatpush1.msra.mxu0 0.0
  %7549 = vmatprep.subr.mxu0 0.0
  %7550 = vmatpush1.msra.mxu0 0.0
  %7551 = vmatprep.subr.mxu0 0.0
  %7552 = vmatpush1.msra.mxu0 0.0
  %7553 = vmatprep.subr.mxu0 0.0
  %7554 = vmatpush1.msra.mxu0 0.0
  %7555 = vmatprep.subr.mxu0 0.0
  %7556 = vmatpush1.msra.mxu0 0.0
  %7557 = vmatprep.subr.mxu0 0.0
  %7558 = vmatpush1.msra.mxu0 0.0
  %7559 = vmatprep.subr.mxu0 0.0
  %7560 = vmatpush1.msra.mxu0 0.0
  %7561 = vmatprep.subr.mxu0 0.0
  %7562 = vmatpush1.msra.mxu0 0.0
  %7563 = vmatprep.subr.mxu0 0.0
  %7564 = vmatpush1.msra.mxu0 %v7536
  %7565 = vmatprep.subr.mxu0 0.0
  %7566 = vmatpush1.msra.mxu0 %v7535
  %7567 = vmatprep.subr.mxu0 0.0
  %7568 = vmatpush1.msra.mxu0 %v7534
  %7569 = vmatprep.subr.mxu0 0.0
  %7570 = vmatpush1.msra.mxu0 %v7533
  %7571 = vmatprep.subr.mxu0 0.0
  %7572 = vmatpush1.msra.mxu0 %v7532
  %7573 = vmatprep.subr.mxu0 0.0
  %7574 = vmatpush1.msra.mxu0 %v7531
  %7575 = vmatprep.subr.mxu0 0.0
  %7576 = vmatpush1.msra.mxu0 %v7530
  %7577 = vmatprep.subr.mxu0 0.0
  %7578 = vmatpush1.msra.mxu0 %v7529
  %7579 = vmatprep.subr.mxu0 0.0
  %7580 = vmatpush2.msra.mxu0 0.0
  %7581 = vmatprep.subr.mxu0 0.0
  %7582 = vmatpush2.msra.mxu0 0.0
  %7583 = vmatprep.subr.mxu0 0.0
  %7584 = vmatpush2.msra.mxu0 0.0
  %7585 = vmatprep.subr.mxu0 0.0
  %7586 = vmatpush2.msra.mxu0 0.0
  %7587 = vmatprep.subr.mxu0 0.0
  %7588 = vmatpush2.msra.mxu0 0.0
  %7589 = vmatprep.subr.mxu0 0.0
  %7590 = vmatpush2.msra.mxu0 0.0
  %7591 = vmatprep.subr.mxu0 0.0
  %7592 = vmatpush2.msra.mxu0 0.0
  %7593 = vmatprep.subr.mxu0 0.0
  %7594 = vmatpush2.msra.mxu0 0.0
  %7595 = vmatprep.subr.mxu0 0.0
  %7596 = vmatpush2.msra.mxu0 0.0
  %7597 = vmatprep.subr.mxu0 0.0
  %7598 = vmatpush2.msra.mxu0 0.0
  %7599 = vmatprep.subr.mxu0 0.0
  %7600 = vmatpush2.msra.mxu0 0.0
  %7601 = vmatprep.subr.mxu0 0.0
  %7602 = vmatpush2.msra.mxu0 0.0
  %7603 = vmatprep.subr.mxu0 0.0
  %7604 = vmatpush2.msra.mxu0 0.0
  %7605 = vmatprep.subr.mxu0 0.0
  %7606 = vmatpush2.msra.mxu0 0.0
  %7607 = vmatprep.subr.mxu0 0.0
  %7608 = vmatpush2.msra.mxu0 0.0
  %7609 = vmatprep.subr.mxu0 0.0
  %7610 = vmatpush2.msra.mxu0 0.0
  %7611 = vmatprep.mubr.f32.mxu0 0.0
  %7612 = vmatmul.mubr.f32.gmra.mxu0 %v7545
  %v7613 = vpop.f32.mrf.mxu0
  %v7614 = vadd.f32 %v7542, %v7613
  %v7615 = vpop.f32.mrf.mxu0
  %7616 = vdwg.mxu0
  %vm7617 = vcmask 1024
  %7618 = vst.msk [vmem:[%s16] sm:$0x3] %vm7617, %v7614
  // Predicated region
  $region66: #{roberta_layer_cat_forward.1} parent=0 // pred_check
    _
  $region67: #{roberta_layer_cat_forward.1} parent=0 // pred_check_branch
    %7620 = sbr.rel (0) target = $region69
  $region68: #{roberta_layer_cat_forward.1} parent=0 // pred_region
    _
  $region69: #{roberta_layer_cat_forward.1} parent=0 // pred_fallthru
    _
  // Predicated region
  $region70: #{roberta_layer_cat_forward.1} parent=0 // pred_check
    _
  $region71: #{roberta_layer_cat_forward.1} parent=0 // pred_check_branch
    %7622 = sbr.rel (0) target = $region73
  $region72: #{roberta_layer_cat_forward.1} parent=0 // pred_region
    _
  $region73: #{roberta_layer_cat_forward.1} parent=0 // pred_fallthru
    _

</llo_original>
